<compile_context>
chip_gen: v5e
topology: v5e:2x2
jax: 0.10.0
libtpu: 0.0.40
codegen_flags: <defaults>
</compile_context>

<pallas_src>
import math
import jax
import jax.numpy as jnp
from jax import lax
from jax.experimental import pallas as pl
from jax.experimental.pallas import tpu as pltpu


# ----------------------------------------------------------------------------
# Kernels
# ----------------------------------------------------------------------------
def _conv1x1_relu_kernel(x_ref, w_ref, b_ref, o_ref):
    # x_ref: (1, M, Cin) bf16; w_ref: (Cin, Cout) bf16; b_ref: (1, Cout) f32.
    y = jnp.dot(x_ref[0], w_ref[...], preferred_element_type=jnp.float32)
    y = jnp.maximum(y + b_ref[...], 0.0)
    o_ref[0] = y.astype(o_ref.dtype)


def _conv3x3s2_relu_conv1x1_relu_kernel(x9_ref, w2_ref, b2_ref, w3_ref, b3_ref,
                                        o2_ref, o3_ref):
    # x9_ref: (1, 9, M, Cin) bf16 stride-2 tap slabs; w2_ref: (9, Cin, C2) bf16.
    m = x9_ref.shape[2]
    c2 = w2_ref.shape[2]
    acc = jnp.zeros((m, c2), jnp.float32)
    for t in range(9):                                   # static unroll: 9 MXU matmuls
        acc = acc + jnp.dot(x9_ref[0, t], w2_ref[t],
                            preferred_element_type=jnp.float32)
    y2 = jnp.maximum(acc + b2_ref[...], 0.0)             # conv8_2 + ReLU (f32)
    o2_ref[0] = y2.astype(o2_ref.dtype)
    y3 = jnp.dot(y2.astype(w3_ref.dtype), w3_ref[...],   # fused conv9_1 (1x1)
                 preferred_element_type=jnp.float32)
    o3_ref[0] = jnp.maximum(y3 + b3_ref[...], 0.0).astype(o3_ref.dtype)


def _conv3x3s2_relu_kernel(x9_ref, w_ref, b_ref, o_ref):
    m = x9_ref.shape[2]
    c = w_ref.shape[2]
    acc = jnp.zeros((m, c), jnp.float32)
    for t in range(9):
        acc = acc + jnp.dot(x9_ref[0, t], w_ref[t],
                            preferred_element_type=jnp.float32)
    o_ref[0] = jnp.maximum(acc + b_ref[...], 0.0).astype(o_ref.dtype)


# ----------------------------------------------------------------------------
# pallas_call wrappers
# ----------------------------------------------------------------------------
_PARALLEL = pltpu.CompilerParams(dimension_semantics=("parallel",))


def conv1x1_relu_pallas(x, w, b, out_dtype):
    """x: (N, M, Cin) bf16; w: (Cin, Cout) bf16; b: (Cout,) f32."""
    N, M, Cin = x.shape
    Cout = w.shape[1]
    cost = pl.CostEstimate(
        flops=2 * N * M * Cin * Cout, transcendentals=0,
        bytes_accessed=N * M * Cin * 2 + Cin * Cout * 2 + Cout * 4
        + N * M * Cout * jnp.dtype(out_dtype).itemsize)
    return pl.pallas_call(
        _conv1x1_relu_kernel,
        out_shape=jax.ShapeDtypeStruct((N, M, Cout), out_dtype),
        grid=(N,),
        in_specs=[
            pl.BlockSpec((1, M, Cin), lambda n: (n, 0, 0)),
            pl.BlockSpec((Cin, Cout), lambda n: (0, 0)),
            pl.BlockSpec((1, Cout), lambda n: (0, 0)),
        ],
        out_specs=pl.BlockSpec((1, M, Cout), lambda n: (n, 0, 0)),
        compiler_params=_PARALLEL,
        cost_estimate=cost,
    )(x, w, b.reshape(1, Cout))


def conv3x3s2_relu_conv1x1_relu_pallas(x9, w2, b2, w3, b3):
    """Fused conv8_2 (3x3 s2) + ReLU + conv9_1 (1x1) + ReLU.
    x9: (N, 9, M, Cin) bf16; w2: (9, Cin, C2) bf16; w3: (C2, C3) bf16."""
    N, _, M, Cin = x9.shape
    C2 = w2.shape[2]
    C3 = w3.shape[1]
    cost = pl.CostEstimate(
        flops=2 * N * M * (9 * Cin * C2 + C2 * C3), transcendentals=0,
        bytes_accessed=N * 9 * M * Cin * 2 + 9 * Cin * C2 * 2 + C2 * C3 * 2
        + (C2 + C3) * 4 + N * M * C2 * 4 + N * M * C3 * 2)
    return pl.pallas_call(
        _conv3x3s2_relu_conv1x1_relu_kernel,
        out_shape=(jax.ShapeDtypeStruct((N, M, C2), jnp.float32),
                   jax.ShapeDtypeStruct((N, M, C3), jnp.bfloat16)),
        grid=(N,),
        in_specs=[
            pl.BlockSpec((1, 9, M, Cin), lambda n: (n, 0, 0, 0)),
            pl.BlockSpec((9, Cin, C2), lambda n: (0, 0, 0)),
            pl.BlockSpec((1, C2), lambda n: (0, 0)),
            pl.BlockSpec((C2, C3), lambda n: (0, 0)),
            pl.BlockSpec((1, C3), lambda n: (0, 0)),
        ],
        out_specs=(pl.BlockSpec((1, M, C2), lambda n: (n, 0, 0)),
                   pl.BlockSpec((1, M, C3), lambda n: (n, 0, 0))),
        compiler_params=_PARALLEL,
        cost_estimate=cost,
    )(x9, w2, b2.reshape(1, C2), w3, b3.reshape(1, C3))


def conv3x3s2_relu_pallas(x9, w, b, out_dtype):
    """x9: (N, 9, M, Cin) bf16; w: (9, Cin, Cout) bf16; b: (Cout,) f32."""
    N, _, M, Cin = x9.shape
    Cout = w.shape[2]
    cost = pl.CostEstimate(
        flops=2 * N * M * 9 * Cin * Cout, transcendentals=0,
        bytes_accessed=N * 9 * M * Cin * 2 + 9 * Cin * Cout * 2 + Cout * 4
        + N * M * Cout * jnp.dtype(out_dtype).itemsize)
    return pl.pallas_call(
        _conv3x3s2_relu_kernel,
        out_shape=jax.ShapeDtypeStruct((N, M, Cout), out_dtype),
        grid=(N,),
        in_specs=[
            pl.BlockSpec((1, 9, M, Cin), lambda n: (n, 0, 0, 0)),
            pl.BlockSpec((9, Cin, Cout), lambda n: (0, 0, 0)),
            pl.BlockSpec((1, Cout), lambda n: (0, 0)),
        ],
        out_specs=pl.BlockSpec((1, M, Cout), lambda n: (n, 0, 0)),
        compiler_params=_PARALLEL,
        cost_estimate=cost,
    )(x9, w, b.reshape(1, Cout))


# ----------------------------------------------------------------------------
# Stride-2 "phase im2col" (pure data movement in plain JAX, small tensors only)
# ----------------------------------------------------------------------------
def _stride2_taps(y_nhwc):
    """y: (N, Hi, Wi, C) -> ((N, 9, Ho*Wo, C), Ho, Wo) for a 3x3/s2/p1 conv."""
    N, Hi, Wi, C = y_nhwc.shape
    Ho = (Hi - 1) // 2 + 1
    Wo = (Wi - 1) // 2 + 1
    yp = jnp.pad(y_nhwc, ((0, 0), (1, 1), (1, 1), (0, 0)))
    taps = []
    for kh in range(3):
        for kw in range(3):
            taps.append(yp[:, kh:kh + 2 * Ho - 1:2, kw:kw + 2 * Wo - 1:2, :])
    x9 = jnp.stack(taps, axis=1)                         # (N, 9, Ho, Wo, C)
    return x9.reshape(N, 9, Ho * Wo, C), Ho, Wo


# ----------------------------------------------------------------------------
# Parameters (mirrors nn.init.xavier_uniform_ + zero bias)
# ----------------------------------------------------------------------------
def _xavier_uniform(key, kh, kw, cin, cout):
    fan_in = cin * kh * kw
    fan_out = cout * kh * kw
    bound = math.sqrt(6.0 / (fan_in + fan_out))
    return jax.random.uniform(key, (kh, kw, cin, cout), jnp.float32, -bound, bound)


def init_auxiliary_conv_params(key):
    k1, k2, k3, k4 = jax.random.split(key, 4)
    return {
        "conv8_1_w": _xavier_uniform(k1, 1, 1, 1024, 256),
        "conv8_1_b": jnp.zeros((256,), jnp.float32),
        "conv8_2_w": _xavier_uniform(k2, 3, 3, 256, 512),
        "conv8_2_b": jnp.zeros((512,), jnp.float32),
        "conv9_1_w": _xavier_uniform(k3, 1, 1, 512, 128),
        "conv9_1_b": jnp.zeros((128,), jnp.float32),
        "conv9_2_w": _xavier_uniform(k4, 3, 3, 128, 256),
        "conv9_2_b": jnp.zeros((256,), jnp.float32),
    }


# ----------------------------------------------------------------------------
# AuxiliaryConvolutions forward (Pallas-backed)
# ----------------------------------------------------------------------------
def auxiliary_convolutions_forward(params, conv7_feats_nchw):
    """conv7_feats_nchw: (N, 1024, H, W) f32 (PyTorch layout).
    Returns (conv8_2_feats, conv9_2_feats) in NCHW f32, like the module."""
    bf16 = jnp.bfloat16
    x = jnp.transpose(conv7_feats_nchw, (0, 2, 3, 1)).astype(bf16)     # NHWC
    N, H, W, _ = x.shape

    w81 = params["conv8_1_w"].reshape(1024, 256).astype(bf16)
    w82 = params["conv8_2_w"].reshape(9, 256, 512).astype(bf16)        # tap-major kh*3+kw
    w91 = params["conv9_1_w"].reshape(512, 128).astype(bf16)
    w92 = params["conv9_2_w"].reshape(9, 128, 256).astype(bf16)

    # conv8_1 + ReLU : one slab matmul per image.
    y1 = conv1x1_relu_pallas(x.reshape(N, H * W, 1024), w81,
                             params["conv8_1_b"], bf16)
    y1 = y1.reshape(N, H, W, 256)

    # conv8_2 (3x3, s2, p1) + ReLU fused with conv9_1 (1x1) + ReLU.
    x9, Ho1, Wo1 = _stride2_taps(y1)
    out8_flat, y3_flat = conv3x3s2_relu_conv1x1_relu_pallas(
        x9, w82, params["conv8_2_b"], w91, params["conv9_1_b"])
    conv8_2_feats = out8_flat.reshape(N, Ho1, Wo1, 512)
    y3 = y3_flat.reshape(N, Ho1, Wo1, 128)

    # conv9_2 (3x3, s2, p1) + ReLU.
    x9b, Ho2, Wo2 = _stride2_taps(y3)
    out9_flat = conv3x3s2_relu_pallas(x9b, w92, params["conv9_2_b"], jnp.float32)
    conv9_2_feats = out9_flat.reshape(N, Ho2, Wo2, 256)

    # Back to PyTorch NCHW.
    return (jnp.transpose(conv8_2_feats, (0, 3, 1, 2)),
            jnp.transpose(conv9_2_feats, (0, 3, 1, 2)))


# ----------------------------------------------------------------------------
# Precision-matched pure-JAX reference (lax.conv) for the correctness check.
# ----------------------------------------------------------------------------
def _conv_relu_ref(x_nhwc, w_hwio, b, stride, pad):
    y = lax.conv_general_dilated(
        x_nhwc.astype(jnp.bfloat16), w_hwio.astype(jnp.bfloat16),
        window_strides=(stride, stride), padding=((pad, pad), (pad, pad)),
        dimension_numbers=("NHWC", "HWIO", "NHWC"),
        preferred_element_type=jnp.float32)
    return jnp.maximum(y + b, 0.0)


def _ref_forward(params, conv7_feats_nchw):
    x = jnp.transpose(conv7_feats_nchw, (0, 2, 3, 1))
    y1 = _conv_relu_ref(x, params["conv8_1_w"], params["conv8_1_b"], 1, 0)
    y2 = _conv_relu_ref(y1, params["conv8_2_w"], params["conv8_2_b"], 2, 1)
    y3 = _conv_relu_ref(y2, params["conv9_1_w"], params["conv9_1_b"], 1, 0)
    y4 = _conv_relu_ref(y3, params["conv9_2_w"], params["conv9_2_b"], 2, 1)
    return (jnp.transpose(y2, (0, 3, 1, 2)), jnp.transpose(y4, (0, 3, 1, 2)))


if __name__ == "__main__":
    # Small shapes consistent with the module (channel counts fixed by the
    # module; spatial size scaled down from the real 19x19).
    batch, H, W = 2, 10, 10
    key = jax.random.PRNGKey(0)
    kp, kx = jax.random.split(key)
    params = init_auxiliary_conv_params(kp)
    conv7_feats = jax.random.normal(kx, (batch, 1024, H, W), jnp.float32)

    fwd = jax.jit(auxiliary_convolutions_forward)
    conv8_2_feats, conv9_2_feats = fwd(params, conv7_feats)
    conv8_2_feats = jax.block_until_ready(conv8_2_feats)
    conv9_2_feats = jax.block_until_ready(conv9_2_feats)

    Ho1 = (H - 1) // 2 + 1
    Ho2 = (Ho1 - 1) // 2 + 1
    assert conv8_2_feats.shape == (batch, 512, Ho1, Ho1), conv8_2_feats.shape
    assert conv9_2_feats.shape == (batch, 256, Ho2, Ho2), conv9_2_feats.shape

    ref8, ref9 = _ref_forward(params, conv7_feats)
    assert jnp.allclose(conv8_2_feats, ref8, atol=5e-3, rtol=5e-3), \
        float(jnp.max(jnp.abs(conv8_2_feats - ref8)))
    assert jnp.allclose(conv9_2_feats, ref9, atol=5e-3, rtol=5e-3), \
        float(jnp.max(jnp.abs(conv9_2_feats - ref9)))

    print("KERNEL_OK")
</pallas_src>

<mosaic_0001>
module attributes {stable_mosaic.version = 11 : i64} {
  func.func @_conv1x1_relu_kernel(%arg0: i32, %arg1: memref<1x100x1024xbf16, #tpu.memory_space<vmem>>, %arg2: memref<1024x256xbf16, #tpu.memory_space<vmem>>, %arg3: memref<1x256xf32, #tpu.memory_space<vmem>>, %arg4: memref<1x100x256xbf16, #tpu.memory_space<vmem>>) attributes {dimension_semantics = [#tpu.dimension_semantics<parallel>], iteration_bounds = array<i64: 2>, scalar_prefetch = 0 : i64, scratch_operands = 0 : i64, tpu.core_type = #tpu.core_type<tc>, window_params = [{transform_indices = @transform_0, window_bounds = array<i64: 1, 100, 1024>}, {pipeline_mode = #tpu.pipeline_mode<synchronous>, transform_indices = @transform_1, window_bounds = array<i64: 1024, 256>}, {pipeline_mode = #tpu.pipeline_mode<synchronous>, transform_indices = @transform_2, window_bounds = array<i64: 1, 256>}, {transform_indices = @transform_3, window_bounds = array<i64: 1, 100, 256>}]} {
    %c0 = arith.constant 0 : index
    %c0_0 = arith.constant 0 : index
    %c0_1 = arith.constant 0 : index
    %0 = vector.load %arg1[%c0, %c0_0, %c0_1] : memref<1x100x1024xbf16, #tpu.memory_space<vmem>>, vector<1x100x1024xbf16>
    %1 = vector.shape_cast %0 : vector<1x100x1024xbf16> to vector<100x1024xbf16>
    %c0_2 = arith.constant 0 : index
    %c0_3 = arith.constant 0 : index
    %2 = vector.load %arg2[%c0_2, %c0_3] : memref<1024x256xbf16, #tpu.memory_space<vmem>>, vector<1024x256xbf16>
    %cst = arith.constant dense<0.000000e+00> : vector<100x256xf32>
    %3 = tpu.matmul %1, %2, %cst {dimension_numbers = #tpu.dot_dimension_numbers<[1], [0], [0], [1], [0, 0, 1, 1], [], []>} : vector<100x1024xbf16>, vector<1024x256xbf16>, vector<100x256xf32> -> vector<100x256xf32>
    %c0_4 = arith.constant 0 : index
    %c0_5 = arith.constant 0 : index
    %4 = vector.load %arg3[%c0_4, %c0_5] : memref<1x256xf32, #tpu.memory_space<vmem>>, vector<1x256xf32>
    %5 = vector.broadcast %4 : vector<1x256xf32> to vector<100x256xf32>
    %6 = arith.addf %3, %5 : vector<100x256xf32>
    %cst_6 = arith.constant 0.000000e+00 : f32
    %7 = vector.broadcast %cst_6 : f32 to vector<100x256xf32>
    %8 = arith.maximumf %6, %7 : vector<100x256xf32>
    %9 = arith.truncf %8 : vector<100x256xf32> to vector<100x256xbf16>
    %c0_7 = arith.constant 0 : index
    %c0_8 = arith.constant 0 : index
    %c0_9 = arith.constant 0 : index
    %10 = vector.load %arg4[%c0_7, %c0_8, %c0_9] : memref<1x100x256xbf16, #tpu.memory_space<vmem>>, vector<1x100x256xbf16>
    %11 = vector.shape_cast %10 : vector<1x100x256xbf16> to vector<100x256xbf16>
    %12 = vector.shape_cast %9 : vector<100x256xbf16> to vector<1x100x256xbf16>
    tpu.vector_store %arg4[%c0_7, %c0_8, %c0_9], %12 {strides = array<i32>} : memref<1x100x256xbf16, #tpu.memory_space<vmem>>, vector<1x100x256xbf16>,
    return
  }
  func.func @transform_0(%arg0: i32) -> (i32, i32, i32) {
    %c0_i32 = arith.constant 0 : i32
    %c0_i32_0 = arith.constant 0 : i32
    %c0_i32_1 = arith.constant 0 : i32
    return %arg0, %c0_i32, %c0_i32_0 : i32, i32, i32
  }
  func.func @transform_1(%arg0: i32) -> (i32, i32) {
    %c0_i32 = arith.constant 0 : i32
    %c0_i32_0 = arith.constant 0 : i32
    %c0_i32_1 = arith.constant 0 : i32
    return %c0_i32, %c0_i32_0 : i32, i32
  }
  func.func @transform_2(%arg0: i32) -> (i32, i32) {
    %c0_i32 = arith.constant 0 : i32
    %c0_i32_0 = arith.constant 0 : i32
    %c0_i32_1 = arith.constant 0 : i32
    return %c0_i32, %c0_i32_0 : i32, i32
  }
  func.func @transform_3(%arg0: i32) -> (i32, i32, i32) {
    %c0_i32 = arith.constant 0 : i32
    %c0_i32_0 = arith.constant 0 : i32
    %c0_i32_1 = arith.constant 0 : i32
    return %arg0, %c0_i32, %c0_i32_0 : i32, i32, i32
  }
}

module attributes {stable_mosaic.version = 11 : i64} {
  func.func @_conv3x3s2_relu_conv1x1_relu_kernel(%arg0: i32, %arg1: memref<1x9x25x256xbf16, #tpu.memory_space<vmem>>, %arg2: memref<9x256x512xbf16, #tpu.memory_space<vmem>>, %arg3: memref<1x512xf32, #tpu.memory_space<vmem>>, %arg4: memref<512x128xbf16, #tpu.memory_space<vmem>>, %arg5: memref<1x128xf32, #tpu.memory_space<vmem>>, %arg6: memref<1x25x512xf32, #tpu.memory_space<vmem>>, %arg7: memref<1x25x128xbf16, #tpu.memory_space<vmem>>) attributes {dimension_semantics = [#tpu.dimension_semantics<parallel>], iteration_bounds = array<i64: 2>, scalar_prefetch = 0 : i64, scratch_operands = 0 : i64, tpu.core_type = #tpu.core_type<tc>, window_params = [{transform_indices = @transform_0, window_bounds = array<i64: 1, 9, 25, 256>}, {pipeline_mode = #tpu.pipeline_mode<synchronous>, transform_indices = @transform_1, window_bounds = array<i64: 9, 256, 512>}, {pipeline_mode = #tpu.pipeline_mode<synchronous>, transform_indices = @transform_2, window_bounds = array<i64: 1, 512>}, {pipeline_mode = #tpu.pipeline_mode<synchronous>, transform_indices = @transform_3, window_bounds = array<i64: 512, 128>}, {pipeline_mode = #tpu.pipeline_mode<synchronous>, transform_indices = @transform_4, window_bounds = array<i64: 1, 128>}, {transform_indices = @transform_5, window_bounds = array<i64: 1, 25, 512>}, {transform_indices = @transform_6, window_bounds = array<i64: 1, 25, 128>}]} {
    %cst = arith.constant 0.000000e+00 : f32
    %0 = vector.broadcast %cst : f32 to vector<25x512xf32>
    %c0 = arith.constant 0 : index
    %c0_0 = arith.constant 0 : index
    %c0_1 = arith.constant 0 : index
    %c0_2 = arith.constant 0 : index
    %1 = vector.load %arg1[%c0, %c0_0, %c0_1, %c0_2] : memref<1x9x25x256xbf16, #tpu.memory_space<vmem>>, vector<1x1x25x256xbf16>
    %2 = vector.shape_cast %1 : vector<1x1x25x256xbf16> to vector<25x256xbf16>
    %c0_3 = arith.constant 0 : index
    %c0_4 = arith.constant 0 : index
    %c0_5 = arith.constant 0 : index
    %3 = vector.load %arg2[%c0_3, %c0_4, %c0_5] : memref<9x256x512xbf16, #tpu.memory_space<vmem>>, vector<1x256x512xbf16>
    %4 = vector.shape_cast %3 : vector<1x256x512xbf16> to vector<256x512xbf16>
    %cst_6 = arith.constant dense<0.000000e+00> : vector<25x512xf32>
    %5 = tpu.matmul %2, %4, %cst_6 {dimension_numbers = #tpu.dot_dimension_numbers<[1], [0], [0], [1], [0, 0, 1, 1], [], []>} : vector<25x256xbf16>, vector<256x512xbf16>, vector<25x512xf32> -> vector<25x512xf32>
    %6 = arith.addf %0, %5 : vector<25x512xf32>
    %c0_7 = arith.constant 0 : index
    %c1 = arith.constant 1 : index
    %c0_8 = arith.constant 0 : index
    %c0_9 = arith.constant 0 : index
    %7 = vector.load %arg1[%c0_7, %c1, %c0_8, %c0_9] : memref<1x9x25x256xbf16, #tpu.memory_space<vmem>>, vector<1x1x25x256xbf16>
    %8 = vector.shape_cast %7 : vector<1x1x25x256xbf16> to vector<25x256xbf16>
    %c1_10 = arith.constant 1 : index
    %c0_11 = arith.constant 0 : index
    %c0_12 = arith.constant 0 : index
    %9 = vector.load %arg2[%c1_10, %c0_11, %c0_12] : memref<9x256x512xbf16, #tpu.memory_space<vmem>>, vector<1x256x512xbf16>
    %10 = vector.shape_cast %9 : vector<1x256x512xbf16> to vector<256x512xbf16>
    %cst_13 = arith.constant dense<0.000000e+00> : vector<25x512xf32>
    %11 = tpu.matmul %8, %10, %cst_13 {dimension_numbers = #tpu.dot_dimension_numbers<[1], [0], [0], [1], [0, 0, 1, 1], [], []>} : vector<25x256xbf16>, vector<256x512xbf16>, vector<25x512xf32> -> vector<25x512xf32>
    %12 = arith.addf %6, %11 : vector<25x512xf32>
    %c0_14 = arith.constant 0 : index
    %c2 = arith.constant 2 : index
    %c0_15 = arith.constant 0 : index
    %c0_16 = arith.constant 0 : index
    %13 = vector.load %arg1[%c0_14, %c2, %c0_15, %c0_16] : memref<1x9x25x256xbf16, #tpu.memory_space<vmem>>, vector<1x1x25x256xbf16>
    %14 = vector.shape_cast %13 : vector<1x1x25x256xbf16> to vector<25x256xbf16>
    %c2_17 = arith.constant 2 : index
    %c0_18 = arith.constant 0 : index
    %c0_19 = arith.constant 0 : index
    %15 = vector.load %arg2[%c2_17, %c0_18, %c0_19] : memref<9x256x512xbf16, #tpu.memory_space<vmem>>, vector<1x256x512xbf16>
    %16 = vector.shape_cast %15 : vector<1x256x512xbf16> to vector<256x512xbf16>
    %cst_20 = arith.constant dense<0.000000e+00> : vector<25x512xf32>
    %17 = tpu.matmul %14, %16, %cst_20 {dimension_numbers = #tpu.dot_dimension_numbers<[1], [0], [0], [1], [0, 0, 1, 1], [], []>} : vector<25x256xbf16>, vector<256x512xbf16>, vector<25x512xf32> -> vector<25x512xf32>
    %18 = arith.addf %12, %17 : vector<25x512xf32>
    %c0_21 = arith.constant 0 : index
    %c3 = arith.constant 3 : index
    %c0_22 = arith.constant 0 : index
    %c0_23 = arith.constant 0 : index
    %19 = vector.load %arg1[%c0_21, %c3, %c0_22, %c0_23] : memref<1x9x25x256xbf16, #tpu.memory_space<vmem>>, vector<1x1x25x256xbf16>
    %20 = vector.shape_cast %19 : vector<1x1x25x256xbf16> to vector<25x256xbf16>
    %c3_24 = arith.constant 3 : index
    %c0_25 = arith.constant 0 : index
    %c0_26 = arith.constant 0 : index
    %21 = vector.load %arg2[%c3_24, %c0_25, %c0_26] : memref<9x256x512xbf16, #tpu.memory_space<vmem>>, vector<1x256x512xbf16>
    %22 = vector.shape_cast %21 : vector<1x256x512xbf16> to vector<256x512xbf16>
    %cst_27 = arith.constant dense<0.000000e+00> : vector<25x512xf32>
    %23 = tpu.matmul %20, %22, %cst_27 {dimension_numbers = #tpu.dot_dimension_numbers<[1], [0], [0], [1], [0, 0, 1, 1], [], []>} : vector<25x256xbf16>, vector<256x512xbf16>, vector<25x512xf32> -> vector<25x512xf32>
    %24 = arith.addf %18, %23 : vector<25x512xf32>
    %c0_28 = arith.constant 0 : index
    %c4 = arith.constant 4 : index
    %c0_29 = arith.constant 0 : index
    %c0_30 = arith.constant 0 : index
    %25 = vector.load %arg1[%c0_28, %c4, %c0_29, %c0_30] : memref<1x9x25x256xbf16, #tpu.memory_space<vmem>>, vector<1x1x25x256xbf16>
    %26 = vector.shape_cast %25 : vector<1x1x25x256xbf16> to vector<25x256xbf16>
    %c4_31 = arith.constant 4 : index
    %c0_32 = arith.constant 0 : index
    %c0_33 = arith.constant 0 : index
    %27 = vector.load %arg2[%c4_31, %c0_32, %c0_33] : memref<9x256x512xbf16, #tpu.memory_space<vmem>>, vector<1x256x512xbf16>
    %28 = vector.shape_cast %27 : vector<1x256x512xbf16> to vector<256x512xbf16>
    %cst_34 = arith.constant dense<0.000000e+00> : vector<25x512xf32>
    %29 = tpu.matmul %26, %28, %cst_34 {dimension_numbers = #tpu.dot_dimension_numbers<[1], [0], [0], [1], [0, 0, 1, 1], [], []>} : vector<25x256xbf16>, vector<256x512xbf16>, vector<25x512xf32> -> vector<25x512xf32>
    %30 = arith.addf %24, %29 : vector<25x512xf32>
    %c0_35 = arith.constant 0 : index
    %c5 = arith.constant 5 : index
    %c0_36 = arith.constant 0 : index
    %c0_37 = arith.constant 0 : index
    %31 = vector.load %arg1[%c0_35, %c5, %c0_36, %c0_37] : memref<1x9x25x256xbf16, #tpu.memory_space<vmem>>, vector<1x1x25x256xbf16>
    %32 = vector.shape_cast %31 : vector<1x1x25x256xbf16> to vector<25x256xbf16>
    %c5_38 = arith.constant 5 : index
    %c0_39 = arith.constant 0 : index
    %c0_40 = arith.constant 0 : index
    %33 = vector.load %arg2[%c5_38, %c0_39, %c0_40] : memref<9x256x512xbf16, #tpu.memory_space<vmem>>, vector<1x256x512xbf16>
    %34 = vector.shape_cast %33 : vector<1x256x512xbf16> to vector<256x512xbf16>
    %cst_41 = arith.constant dense<0.000000e+00> : vector<25x512xf32>
    %35 = tpu.matmul %32, %34, %cst_41 {dimension_numbers = #tpu.dot_dimension_numbers<[1], [0], [0], [1], [0, 0, 1, 1], [], []>} : vector<25x256xbf16>, vector<256x512xbf16>, vector<25x512xf32> -> vector<25x512xf32>
    %36 = arith.addf %30, %35 : vector<25x512xf32>
    %c0_42 = arith.constant 0 : index
    %c6 = arith.constant 6 : index
    %c0_43 = arith.constant 0 : index
    %c0_44 = arith.constant 0 : index
    %37 = vector.load %arg1[%c0_42, %c6, %c0_43, %c0_44] : memref<1x9x25x256xbf16, #tpu.memory_space<vmem>>, vector<1x1x25x256xbf16>
    %38 = vector.shape_cast %37 : vector<1x1x25x256xbf16> to vector<25x256xbf16>
    %c6_45 = arith.constant 6 : index
    %c0_46 = arith.constant 0 : index
    %c0_47 = arith.constant 0 : index
    %39 = vector.load %arg2[%c6_45, %c0_46, %c0_47] : memref<9x256x512xbf16, #tpu.memory_space<vmem>>, vector<1x256x512xbf16>
    %40 = vector.shape_cast %39 : vector<1x256x512xbf16> to vector<256x512xbf16>
    %cst_48 = arith.constant dense<0.000000e+00> : vector<25x512xf32>
    %41 = tpu.matmul %38, %40, %cst_48 {dimension_numbers = #tpu.dot_dimension_numbers<[1], [0], [0], [1], [0, 0, 1, 1], [], []>} : vector<25x256xbf16>, vector<256x512xbf16>, vector<25x512xf32> -> vector<25x512xf32>
    %42 = arith.addf %36, %41 : vector<25x512xf32>
    %c0_49 = arith.constant 0 : index
    %c7 = arith.constant 7 : index
    %c0_50 = arith.constant 0 : index
    %c0_51 = arith.constant 0 : index
    %43 = vector.load %arg1[%c0_49, %c7, %c0_50, %c0_51] : memref<1x9x25x256xbf16, #tpu.memory_space<vmem>>, vector<1x1x25x256xbf16>
    %44 = vector.shape_cast %43 : vector<1x1x25x256xbf16> to vector<25x256xbf16>
    %c7_52 = arith.constant 7 : index
    %c0_53 = arith.constant 0 : index
    %c0_54 = arith.constant 0 : index
    %45 = vector.load %arg2[%c7_52, %c0_53, %c0_54] : memref<9x256x512xbf16, #tpu.memory_space<vmem>>, vector<1x256x512xbf16>
    %46 = vector.shape_cast %45 : vector<1x256x512xbf16> to vector<256x512xbf16>
    %cst_55 = arith.constant dense<0.000000e+00> : vector<25x512xf32>
    %47 = tpu.matmul %44, %46, %cst_55 {dimension_numbers = #tpu.dot_dimension_numbers<[1], [0], [0], [1], [0, 0, 1, 1], [], []>} : vector<25x256xbf16>, vector<256x512xbf16>, vector<25x512xf32> -> vector<25x512xf32>
    %48 = arith.addf %42, %47 : vector<25x512xf32>
    %c0_56 = arith.constant 0 : index
    %c8 = arith.constant 8 : index
    %c0_57 = arith.constant 0 : index
    %c0_58 = arith.constant 0 : index
    %49 = vector.load %arg1[%c0_56, %c8, %c0_57, %c0_58] : memref<1x9x25x256xbf16, #tpu.memory_space<vmem>>, vector<1x1x25x256xbf16>
    %50 = vector.shape_cast %49 : vector<1x1x25x256xbf16> to vector<25x256xbf16>
    %c8_59 = arith.constant 8 : index
    %c0_60 = arith.constant 0 : index
    %c0_61 = arith.constant 0 : index
    %51 = vector.load %arg2[%c8_59, %c0_60, %c0_61] : memref<9x256x512xbf16, #tpu.memory_space<vmem>>, vector<1x256x512xbf16>
    %52 = vector.shape_cast %51 : vector<1x256x512xbf16> to vector<256x512xbf16>
    %cst_62 = arith.constant dense<0.000000e+00> : vector<25x512xf32>
    %53 = tpu.matmul %50, %52, %cst_62 {dimension_numbers = #tpu.dot_dimension_numbers<[1], [0], [0], [1], [0, 0, 1, 1], [], []>} : vector<25x256xbf16>, vector<256x512xbf16>, vector<25x512xf32> -> vector<25x512xf32>
    %54 = arith.addf %48, %53 : vector<25x512xf32>
    %c0_63 = arith.constant 0 : index
    %c0_64 = arith.constant 0 : index
    %55 = vector.load %arg3[%c0_63, %c0_64] : memref<1x512xf32, #tpu.memory_space<vmem>>, vector<1x512xf32>
    %56 = vector.broadcast %55 : vector<1x512xf32> to vector<25x512xf32>
    %57 = arith.addf %54, %56 : vector<25x512xf32>
    %cst_65 = arith.constant 0.000000e+00 : f32
    %58 = vector.broadcast %cst_65 : f32 to vector<25x512xf32>
    %59 = arith.maximumf %57, %58 : vector<25x512xf32>
    %c0_66 = arith.constant 0 : index
    %c0_67 = arith.constant 0 : index
    %c0_68 = arith.constant 0 : index
    %60 = vector.load %arg6[%c0_66, %c0_67, %c0_68] : memref<1x25x512xf32, #tpu.memory_space<vmem>>, vector<1x25x512xf32>
    %61 = vector.shape_cast %60 : vector<1x25x512xf32> to vector<25x512xf32>
    %62 = vector.shape_cast %59 : vector<25x512xf32> to vector<1x25x512xf32>
    tpu.vector_store %arg6[%c0_66, %c0_67, %c0_68], %62 {strides = array<i32>} : memref<1x25x512xf32, #tpu.memory_space<vmem>>, vector<1x25x512xf32>,
    %63 = arith.truncf %59 : vector<25x512xf32> to vector<25x512xbf16>
    %c0_69 = arith.constant 0 : index
    %c0_70 = arith.constant 0 : index
    %64 = vector.load %arg4[%c0_69, %c0_70] : memref<512x128xbf16, #tpu.memory_space<vmem>>, vector<512x128xbf16>
    %cst_71 = arith.constant dense<0.000000e+00> : vector<25x128xf32>
    %65 = tpu.matmul %63, %64, %cst_71 {dimension_numbers = #tpu.dot_dimension_numbers<[1], [0], [0], [1], [0, 0, 1, 1], [], []>} : vector<25x512xbf16>, vector<512x128xbf16>, vector<25x128xf32> -> vector<25x128xf32>
    %c0_72 = arith.constant 0 : index
    %c0_73 = arith.constant 0 : index
    %66 = vector.load %arg5[%c0_72, %c0_73] : memref<1x128xf32, #tpu.memory_space<vmem>>, vector<1x128xf32>
    %67 = vector.broadcast %66 : vector<1x128xf32> to vector<25x128xf32>
    %68 = arith.addf %65, %67 : vector<25x128xf32>
    %cst_74 = arith.constant 0.000000e+00 : f32
    %69 = vector.broadcast %cst_74 : f32 to vector<25x128xf32>
    %70 = arith.maximumf %68, %69 : vector<25x128xf32>
    %71 = arith.truncf %70 : vector<25x128xf32> to vector<25x128xbf16>
    %c0_75 = arith.constant 0 : index
    %c0_76 = arith.constant 0 : index
    %c0_77 = arith.constant 0 : index
    %72 = vector.load %arg7[%c0_75, %c0_76, %c0_77] : memref<1x25x128xbf16, #tpu.memory_space<vmem>>, vector<1x25x128xbf16>
    %73 = vector.shape_cast %72 : vector<1x25x128xbf16> to vector<25x128xbf16>
    %74 = vector.shape_cast %71 : vector<25x128xbf16> to vector<1x25x128xbf16>
    tpu.vector_store %arg7[%c0_75, %c0_76, %c0_77], %74 {strides = array<i32>} : memref<1x25x128xbf16, #tpu.memory_space<vmem>>, vector<1x25x128xbf16>,
    return
  }
  func.func @transform_0(%arg0: i32) -> (i32, i32, i32, i32) {
    %c0_i32 = arith.constant 0 : i32
    %c0_i32_0 = arith.constant 0 : i32
    %c0_i32_1 = arith.constant 0 : i32
    %c0_i32_2 = arith.constant 0 : i32
    return %arg0, %c0_i32, %c0_i32_0, %c0_i32_1 : i32, i32, i32, i32
  }
  func.func @transform_1(%arg0: i32) -> (i32, i32, i32) {
    %c0_i32 = arith.constant 0 : i32
    %c0_i32_0 = arith.constant 0 : i32
    %c0_i32_1 = arith.constant 0 : i32
    %c0_i32_2 = arith.constant 0 : i32
    return %c0_i32, %c0_i32_0, %c0_i32_1 : i32, i32, i32
  }
  func.func @transform_2(%arg0: i32) -> (i32, i32) {
    %c0_i32 = arith.constant 0 : i32
    %c0_i32_0 = arith.constant 0 : i32
    %c0_i32_1 = arith.constant 0 : i32
    return %c0_i32, %c0_i32_0 : i32, i32
  }
  func.func @transform_3(%arg0: i32) -> (i32, i32) {
    %c0_i32 = arith.constant 0 : i32
    %c0_i32_0 = arith.constant 0 : i32
    %c0_i32_1 = arith.constant 0 : i32
    return %c0_i32, %c0_i32_0 : i32, i32
  }
  func.func @transform_4(%arg0: i32) -> (i32, i32) {
    %c0_i32 = arith.constant 0 : i32
    %c0_i32_0 = arith.constant 0 : i32
    %c0_i32_1 = arith.constant 0 : i32
    return %c0_i32, %c0_i32_0 : i32, i32
  }
  func.func @transform_5(%arg0: i32) -> (i32, i32, i32) {
    %c0_i32 = arith.constant 0 : i32
    %c0_i32_0 = arith.constant 0 : i32
    %c0_i32_1 = arith.constant 0 : i32
    return %arg0, %c0_i32, %c0_i32_0 : i32, i32, i32
  }
  func.func @transform_6(%arg0: i32) -> (i32, i32, i32) {
    %c0_i32 = arith.constant 0 : i32
    %c0_i32_0 = arith.constant 0 : i32
    %c0_i32_1 = arith.constant 0 : i32
    return %arg0, %c0_i32, %c0_i32_0 : i32, i32, i32
  }
}

module attributes {stable_mosaic.version = 11 : i64} {
  func.func @_conv3x3s2_relu_kernel(%arg0: i32, %arg1: memref<1x9x9x128xbf16, #tpu.memory_space<vmem>>, %arg2: memref<9x128x256xbf16, #tpu.memory_space<vmem>>, %arg3: memref<1x256xf32, #tpu.memory_space<vmem>>, %arg4: memref<1x9x256xf32, #tpu.memory_space<vmem>>) attributes {dimension_semantics = [#tpu.dimension_semantics<parallel>], iteration_bounds = array<i64: 2>, scalar_prefetch = 0 : i64, scratch_operands = 0 : i64, tpu.core_type = #tpu.core_type<tc>, window_params = [{transform_indices = @transform_0, window_bounds = array<i64: 1, 9, 9, 128>}, {pipeline_mode = #tpu.pipeline_mode<synchronous>, transform_indices = @transform_1, window_bounds = array<i64: 9, 128, 256>}, {pipeline_mode = #tpu.pipeline_mode<synchronous>, transform_indices = @transform_2, window_bounds = array<i64: 1, 256>}, {transform_indices = @transform_3, window_bounds = array<i64: 1, 9, 256>}]} {
    %cst = arith.constant 0.000000e+00 : f32
    %0 = vector.broadcast %cst : f32 to vector<9x256xf32>
    %c0 = arith.constant 0 : index
    %c0_0 = arith.constant 0 : index
    %c0_1 = arith.constant 0 : index
    %c0_2 = arith.constant 0 : index
    %1 = vector.load %arg1[%c0, %c0_0, %c0_1, %c0_2] : memref<1x9x9x128xbf16, #tpu.memory_space<vmem>>, vector<1x1x9x128xbf16>
    %2 = vector.shape_cast %1 : vector<1x1x9x128xbf16> to vector<9x128xbf16>
    %c0_3 = arith.constant 0 : index
    %c0_4 = arith.constant 0 : index
    %c0_5 = arith.constant 0 : index
    %3 = vector.load %arg2[%c0_3, %c0_4, %c0_5] : memref<9x128x256xbf16, #tpu.memory_space<vmem>>, vector<1x128x256xbf16>
    %4 = vector.shape_cast %3 : vector<1x128x256xbf16> to vector<128x256xbf16>
    %cst_6 = arith.constant dense<0.000000e+00> : vector<9x256xf32>
    %5 = tpu.matmul %2, %4, %cst_6 {dimension_numbers = #tpu.dot_dimension_numbers<[1], [0], [0], [1], [0, 0, 1, 1], [], []>} : vector<9x128xbf16>, vector<128x256xbf16>, vector<9x256xf32> -> vector<9x256xf32>
    %6 = arith.addf %0, %5 : vector<9x256xf32>
    %c0_7 = arith.constant 0 : index
    %c1 = arith.constant 1 : index
    %c0_8 = arith.constant 0 : index
    %c0_9 = arith.constant 0 : index
    %7 = vector.load %arg1[%c0_7, %c1, %c0_8, %c0_9] : memref<1x9x9x128xbf16, #tpu.memory_space<vmem>>, vector<1x1x9x128xbf16>
    %8 = vector.shape_cast %7 : vector<1x1x9x128xbf16> to vector<9x128xbf16>
    %c1_10 = arith.constant 1 : index
    %c0_11 = arith.constant 0 : index
    %c0_12 = arith.constant 0 : index
    %9 = vector.load %arg2[%c1_10, %c0_11, %c0_12] : memref<9x128x256xbf16, #tpu.memory_space<vmem>>, vector<1x128x256xbf16>
    %10 = vector.shape_cast %9 : vector<1x128x256xbf16> to vector<128x256xbf16>
    %cst_13 = arith.constant dense<0.000000e+00> : vector<9x256xf32>
    %11 = tpu.matmul %8, %10, %cst_13 {dimension_numbers = #tpu.dot_dimension_numbers<[1], [0], [0], [1], [0, 0, 1, 1], [], []>} : vector<9x128xbf16>, vector<128x256xbf16>, vector<9x256xf32> -> vector<9x256xf32>
    %12 = arith.addf %6, %11 : vector<9x256xf32>
    %c0_14 = arith.constant 0 : index
    %c2 = arith.constant 2 : index
    %c0_15 = arith.constant 0 : index
    %c0_16 = arith.constant 0 : index
    %13 = vector.load %arg1[%c0_14, %c2, %c0_15, %c0_16] : memref<1x9x9x128xbf16, #tpu.memory_space<vmem>>, vector<1x1x9x128xbf16>
    %14 = vector.shape_cast %13 : vector<1x1x9x128xbf16> to vector<9x128xbf16>
    %c2_17 = arith.constant 2 : index
    %c0_18 = arith.constant 0 : index
    %c0_19 = arith.constant 0 : index
    %15 = vector.load %arg2[%c2_17, %c0_18, %c0_19] : memref<9x128x256xbf16, #tpu.memory_space<vmem>>, vector<1x128x256xbf16>
    %16 = vector.shape_cast %15 : vector<1x128x256xbf16> to vector<128x256xbf16>
    %cst_20 = arith.constant dense<0.000000e+00> : vector<9x256xf32>
    %17 = tpu.matmul %14, %16, %cst_20 {dimension_numbers = #tpu.dot_dimension_numbers<[1], [0], [0], [1], [0, 0, 1, 1], [], []>} : vector<9x128xbf16>, vector<128x256xbf16>, vector<9x256xf32> -> vector<9x256xf32>
    %18 = arith.addf %12, %17 : vector<9x256xf32>
    %c0_21 = arith.constant 0 : index
    %c3 = arith.constant 3 : index
    %c0_22 = arith.constant 0 : index
    %c0_23 = arith.constant 0 : index
    %19 = vector.load %arg1[%c0_21, %c3, %c0_22, %c0_23] : memref<1x9x9x128xbf16, #tpu.memory_space<vmem>>, vector<1x1x9x128xbf16>
    %20 = vector.shape_cast %19 : vector<1x1x9x128xbf16> to vector<9x128xbf16>
    %c3_24 = arith.constant 3 : index
    %c0_25 = arith.constant 0 : index
    %c0_26 = arith.constant 0 : index
    %21 = vector.load %arg2[%c3_24, %c0_25, %c0_26] : memref<9x128x256xbf16, #tpu.memory_space<vmem>>, vector<1x128x256xbf16>
    %22 = vector.shape_cast %21 : vector<1x128x256xbf16> to vector<128x256xbf16>
    %cst_27 = arith.constant dense<0.000000e+00> : vector<9x256xf32>
    %23 = tpu.matmul %20, %22, %cst_27 {dimension_numbers = #tpu.dot_dimension_numbers<[1], [0], [0], [1], [0, 0, 1, 1], [], []>} : vector<9x128xbf16>, vector<128x256xbf16>, vector<9x256xf32> -> vector<9x256xf32>
    %24 = arith.addf %18, %23 : vector<9x256xf32>
    %c0_28 = arith.constant 0 : index
    %c4 = arith.constant 4 : index
    %c0_29 = arith.constant 0 : index
    %c0_30 = arith.constant 0 : index
    %25 = vector.load %arg1[%c0_28, %c4, %c0_29, %c0_30] : memref<1x9x9x128xbf16, #tpu.memory_space<vmem>>, vector<1x1x9x128xbf16>
    %26 = vector.shape_cast %25 : vector<1x1x9x128xbf16> to vector<9x128xbf16>
    %c4_31 = arith.constant 4 : index
    %c0_32 = arith.constant 0 : index
    %c0_33 = arith.constant 0 : index
    %27 = vector.load %arg2[%c4_31, %c0_32, %c0_33] : memref<9x128x256xbf16, #tpu.memory_space<vmem>>, vector<1x128x256xbf16>
    %28 = vector.shape_cast %27 : vector<1x128x256xbf16> to vector<128x256xbf16>
    %cst_34 = arith.constant dense<0.000000e+00> : vector<9x256xf32>
    %29 = tpu.matmul %26, %28, %cst_34 {dimension_numbers = #tpu.dot_dimension_numbers<[1], [0], [0], [1], [0, 0, 1, 1], [], []>} : vector<9x128xbf16>, vector<128x256xbf16>, vector<9x256xf32> -> vector<9x256xf32>
    %30 = arith.addf %24, %29 : vector<9x256xf32>
    %c0_35 = arith.constant 0 : index
    %c5 = arith.constant 5 : index
    %c0_36 = arith.constant 0 : index
    %c0_37 = arith.constant 0 : index
    %31 = vector.load %arg1[%c0_35, %c5, %c0_36, %c0_37] : memref<1x9x9x128xbf16, #tpu.memory_space<vmem>>, vector<1x1x9x128xbf16>
    %32 = vector.shape_cast %31 : vector<1x1x9x128xbf16> to vector<9x128xbf16>
    %c5_38 = arith.constant 5 : index
    %c0_39 = arith.constant 0 : index
    %c0_40 = arith.constant 0 : index
    %33 = vector.load %arg2[%c5_38, %c0_39, %c0_40] : memref<9x128x256xbf16, #tpu.memory_space<vmem>>, vector<1x128x256xbf16>
    %34 = vector.shape_cast %33 : vector<1x128x256xbf16> to vector<128x256xbf16>
    %cst_41 = arith.constant dense<0.000000e+00> : vector<9x256xf32>
    %35 = tpu.matmul %32, %34, %cst_41 {dimension_numbers = #tpu.dot_dimension_numbers<[1], [0], [0], [1], [0, 0, 1, 1], [], []>} : vector<9x128xbf16>, vector<128x256xbf16>, vector<9x256xf32> -> vector<9x256xf32>
    %36 = arith.addf %30, %35 : vector<9x256xf32>
    %c0_42 = arith.constant 0 : index
    %c6 = arith.constant 6 : index
    %c0_43 = arith.constant 0 : index
    %c0_44 = arith.constant 0 : index
    %37 = vector.load %arg1[%c0_42, %c6, %c0_43, %c0_44] : memref<1x9x9x128xbf16, #tpu.memory_space<vmem>>, vector<1x1x9x128xbf16>
    %38 = vector.shape_cast %37 : vector<1x1x9x128xbf16> to vector<9x128xbf16>
    %c6_45 = arith.constant 6 : index
    %c0_46 = arith.constant 0 : index
    %c0_47 = arith.constant 0 : index
    %39 = vector.load %arg2[%c6_45, %c0_46, %c0_47] : memref<9x128x256xbf16, #tpu.memory_space<vmem>>, vector<1x128x256xbf16>
    %40 = vector.shape_cast %39 : vector<1x128x256xbf16> to vector<128x256xbf16>
    %cst_48 = arith.constant dense<0.000000e+00> : vector<9x256xf32>
    %41 = tpu.matmul %38, %40, %cst_48 {dimension_numbers = #tpu.dot_dimension_numbers<[1], [0], [0], [1], [0, 0, 1, 1], [], []>} : vector<9x128xbf16>, vector<128x256xbf16>, vector<9x256xf32> -> vector<9x256xf32>
    %42 = arith.addf %36, %41 : vector<9x256xf32>
    %c0_49 = arith.constant 0 : index
    %c7 = arith.constant 7 : index
    %c0_50 = arith.constant 0 : index
    %c0_51 = arith.constant 0 : index
    %43 = vector.load %arg1[%c0_49, %c7, %c0_50, %c0_51] : memref<1x9x9x128xbf16, #tpu.memory_space<vmem>>, vector<1x1x9x128xbf16>
    %44 = vector.shape_cast %43 : vector<1x1x9x128xbf16> to vector<9x128xbf16>
    %c7_52 = arith.constant 7 : index
    %c0_53 = arith.constant 0 : index
    %c0_54 = arith.constant 0 : index
    %45 = vector.load %arg2[%c7_52, %c0_53, %c0_54] : memref<9x128x256xbf16, #tpu.memory_space<vmem>>, vector<1x128x256xbf16>
    %46 = vector.shape_cast %45 : vector<1x128x256xbf16> to vector<128x256xbf16>
    %cst_55 = arith.constant dense<0.000000e+00> : vector<9x256xf32>
    %47 = tpu.matmul %44, %46, %cst_55 {dimension_numbers = #tpu.dot_dimension_numbers<[1], [0], [0], [1], [0, 0, 1, 1], [], []>} : vector<9x128xbf16>, vector<128x256xbf16>, vector<9x256xf32> -> vector<9x256xf32>
    %48 = arith.addf %42, %47 : vector<9x256xf32>
    %c0_56 = arith.constant 0 : index
    %c8 = arith.constant 8 : index
    %c0_57 = arith.constant 0 : index
    %c0_58 = arith.constant 0 : index
    %49 = vector.load %arg1[%c0_56, %c8, %c0_57, %c0_58] : memref<1x9x9x128xbf16, #tpu.memory_space<vmem>>, vector<1x1x9x128xbf16>
    %50 = vector.shape_cast %49 : vector<1x1x9x128xbf16> to vector<9x128xbf16>
    %c8_59 = arith.constant 8 : index
    %c0_60 = arith.constant 0 : index
    %c0_61 = arith.constant 0 : index
    %51 = vector.load %arg2[%c8_59, %c0_60, %c0_61] : memref<9x128x256xbf16, #tpu.memory_space<vmem>>, vector<1x128x256xbf16>
    %52 = vector.shape_cast %51 : vector<1x128x256xbf16> to vector<128x256xbf16>
    %cst_62 = arith.constant dense<0.000000e+00> : vector<9x256xf32>
    %53 = tpu.matmul %50, %52, %cst_62 {dimension_numbers = #tpu.dot_dimension_numbers<[1], [0], [0], [1], [0, 0, 1, 1], [], []>} : vector<9x128xbf16>, vector<128x256xbf16>, vector<9x256xf32> -> vector<9x256xf32>
    %54 = arith.addf %48, %53 : vector<9x256xf32>
    %c0_63 = arith.constant 0 : index
    %c0_64 = arith.constant 0 : index
    %55 = vector.load %arg3[%c0_63, %c0_64] : memref<1x256xf32, #tpu.memory_space<vmem>>, vector<1x256xf32>
    %56 = vector.broadcast %55 : vector<1x256xf32> to vector<9x256xf32>
    %57 = arith.addf %54, %56 : vector<9x256xf32>
    %cst_65 = arith.constant 0.000000e+00 : f32
    %58 = vector.broadcast %cst_65 : f32 to vector<9x256xf32>
    %59 = arith.maximumf %57, %58 : vector<9x256xf32>
    %c0_66 = arith.constant 0 : index
    %c0_67 = arith.constant 0 : index
    %c0_68 = arith.constant 0 : index
    %60 = vector.load %arg4[%c0_66, %c0_67, %c0_68] : memref<1x9x256xf32, #tpu.memory_space<vmem>>, vector<1x9x256xf32>
    %61 = vector.shape_cast %60 : vector<1x9x256xf32> to vector<9x256xf32>
    %62 = vector.shape_cast %59 : vector<9x256xf32> to vector<1x9x256xf32>
    tpu.vector_store %arg4[%c0_66, %c0_67, %c0_68], %62 {strides = array<i32>} : memref<1x9x256xf32, #tpu.memory_space<vmem>>, vector<1x9x256xf32>,
    return
  }
  func.func @transform_0(%arg0: i32) -> (i32, i32, i32, i32) {
    %c0_i32 = arith.constant 0 : i32
    %c0_i32_0 = arith.constant 0 : i32
    %c0_i32_1 = arith.constant 0 : i32
    %c0_i32_2 = arith.constant 0 : i32
    return %arg0, %c0_i32, %c0_i32_0, %c0_i32_1 : i32, i32, i32, i32
  }
  func.func @transform_1(%arg0: i32) -> (i32, i32, i32) {
    %c0_i32 = arith.constant 0 : i32
    %c0_i32_0 = arith.constant 0 : i32
    %c0_i32_1 = arith.constant 0 : i32
    %c0_i32_2 = arith.constant 0 : i32
    return %c0_i32, %c0_i32_0, %c0_i32_1 : i32, i32, i32
  }
  func.func @transform_2(%arg0: i32) -> (i32, i32) {
    %c0_i32 = arith.constant 0 : i32
    %c0_i32_0 = arith.constant 0 : i32
    %c0_i32_1 = arith.constant 0 : i32
    return %c0_i32, %c0_i32_0 : i32, i32
  }
  func.func @transform_3(%arg0: i32) -> (i32, i32, i32) {
    %c0_i32 = arith.constant 0 : i32
    %c0_i32_0 = arith.constant 0 : i32
    %c0_i32_1 = arith.constant 0 : i32
    return %arg0, %c0_i32, %c0_i32_0 : i32, i32, i32
  }
}

</mosaic_0001>

<llo_original>
// kernel: auxiliary_convolutions_forward.3
$region0: #{auxiliary_convolutions_forward.3}
  #allocation0 [shape = 'u32[]', space=smem, size = 0x4, offset = 0x4, fixed_abs, tag = 'smem constant byte address 0x4 - core index']
  #allocation1 [shape = 'u32[72,128]{1,0:T(1,128)}', space=vmem, size = 0x9000, scoped, tag = 'internal scratch']
  %s0 = inlined_call_operand.vmem [shape: bf16[2,100,1024], index: 0, kind: input, shape index: {}]
  %s1 = inlined_call_operand.vmem [shape: bf16[1024,256], index: 1, kind: input, shape index: {}]
  %s2 = inlined_call_operand.vmem [shape: f32[1,256], index: 2, kind: input, shape index: {}]
  %s3 = inlined_call_operand.vmem [shape: bf16[2,100,256], index: 3, kind: output, shape index: {}]
  %s4 = sld [smem:[#allocation0]]
  $region45: #{auxiliary_convolutions_forward.3} parent=0
    _
  %s6 = ssub.s32 1, %s4
  %s7 = scalar_select 0, %s6, %s4
  loop: start=0, step=1, limit=4
  $region2: #{auxiliary_convolutions_forward.3} parent=0 // loop_pre_header
    _
  $region3: #{auxiliary_convolutions_forward.3} parent=0 // loop_header
    %s9 = sphi 0, %s13
    %p10 = scmp.ge.s32.totalorder %s9, 4
    %s19 = sphi 0, %s21
    %s22 = sphi 0, %s19
    %s23 = sphi 0, %s22
    %s39 = sphi 0, %s23
    %s43 = sphi 0, %s43
    %s45 = sphi 0, %s43
    %s46 = sphi 0, %s45
    %s60 = sphi 0, %s46
    %s64 = sphi 0, %s64
    %s66 = sphi 0, %s64
    %s67 = sphi 0, %s66
    %s81 = sphi 0, %s67
    %s87 = sphi 0, %s89
    %s90 = sphi 0, %s87
    %s91 = sphi 0, %s90
    %s107 = sphi 0, %s91
  $region4: #{auxiliary_convolutions_forward.3} parent=0 // loop_header_branch
    %12 = sbr.rel (%p10) target = $region8
  $region5: #{auxiliary_convolutions_forward.3} parent=0 // loop_body
    %s14 = ssub.s32 %s9, 1
    %s15 = ssub.s32 %s9, 2
    %s16 = sadd.s32 %s9, 1
    %s17 = ssub.s32 %s9, %s16
    %p18 = scmp.eq.s32.totalorder %s17, 0
    %s20 = sadd.s32 %s19, 1
    %s21 = scalar_select %p18, %s19, %s20
    %p24 = pneg %p18
    %p25 = scmp.eq.s32.totalorder %s9, 1
    %p26 = por %p24, %p25
    %p27 = scmp.ne.s32.totalorder %s19, %s22
    %p28 = scmp.eq.s32.totalorder %s9, 0
    %p29 = por %p27, %p28
    %p30 = scmp.ne.s32.totalorder %s19, %s22
    %p31 = scmp.eq.s32.totalorder %s14, 1
    %p32 = por %p30, %p31
    %p33 = scmp.ne.s32.totalorder %s22, %s23
    %p34 = scmp.eq.s32.totalorder %s14, 0
    %p35 = por %p33, %p34
    %p36 = scmp.ne.s32.totalorder %s22, %s23
    %p37 = scmp.eq.s32.totalorder %s15, 1
    %p38 = por %p36, %p37
    %p40 = scmp.ne.s32.totalorder %s23, %s39
    %p41 = scmp.eq.s32.totalorder %s15, 0
    %p42 = por %p40, %p41
    %s44 = sadd.s32 %s43, 1
    %p47 = scmp.eq.s32.totalorder %s9, 1
    %p48 = scmp.ne.s32.totalorder %s43, %s45
    %p49 = scmp.eq.s32.totalorder %s9, 0
    %p50 = por %p48, %p49
    %p51 = scmp.ne.s32.totalorder %s43, %s45
    %p52 = scmp.eq.s32.totalorder %s14, 1
    %p53 = por %p51, %p52
    %p54 = scmp.ne.s32.totalorder %s45, %s46
    %p55 = scmp.eq.s32.totalorder %s14, 0
    %p56 = por %p54, %p55
    %p57 = scmp.ne.s32.totalorder %s45, %s46
    %p58 = scmp.eq.s32.totalorder %s15, 1
    %p59 = por %p57, %p58
    %p61 = scmp.ne.s32.totalorder %s46, %s60
    %p62 = scmp.eq.s32.totalorder %s15, 0
    %p63 = por %p61, %p62
    %s65 = sadd.s32 %s64, 1
    %p68 = scmp.eq.s32.totalorder %s9, 1
    %p69 = scmp.ne.s32.totalorder %s64, %s66
    %p70 = scmp.eq.s32.totalorder %s9, 0
    %p71 = por %p69, %p70
    %p72 = scmp.ne.s32.totalorder %s64, %s66
    %p73 = scmp.eq.s32.totalorder %s14, 1
    %p74 = por %p72, %p73
    %p75 = scmp.ne.s32.totalorder %s66, %s67
    %p76 = scmp.eq.s32.totalorder %s14, 0
    %p77 = por %p75, %p76
    %p78 = scmp.ne.s32.totalorder %s66, %s67
    %p79 = scmp.eq.s32.totalorder %s15, 1
    %p80 = por %p78, %p79
    %p82 = scmp.ne.s32.totalorder %s67, %s81
    %p83 = scmp.eq.s32.totalorder %s15, 0
    %p84 = por %p82, %p83
    %s85 = ssub.s32 %s9, %s16
    %p86 = scmp.eq.s32.totalorder %s85, 0
    %s88 = sadd.s32 %s87, 1
    %s89 = scalar_select %p86, %s87, %s88
    %p92 = pneg %p86
    %p93 = scmp.eq.s32.totalorder %s9, 1
    %p94 = por %p92, %p93
    %p95 = scmp.ne.s32.totalorder %s87, %s90
    %p96 = scmp.eq.s32.totalorder %s9, 0
    %p97 = por %p95, %p96
    %p98 = scmp.ne.s32.totalorder %s87, %s90
    %p99 = scmp.eq.s32.totalorder %s14, 1
    %p100 = por %p98, %p99
    %p101 = scmp.ne.s32.totalorder %s90, %s91
    %p102 = scmp.eq.s32.totalorder %s14, 0
    %p103 = por %p101, %p102
    %p104 = scmp.ne.s32.totalorder %s90, %s91
    %p105 = scmp.eq.s32.totalorder %s15, 1
    %p106 = por %p104, %p105
    %p108 = scmp.ne.s32.totalorder %s91, %s107
    %p109 = scmp.eq.s32.totalorder %s15, 0
    %p110 = por %p108, %p109
    %p111 = scmp.le.s32.totalorder 1, %s9
    %p112 = scmp.lt.s32.totalorder %s9, 3
    %p113 = pnand %p111, %p112
    %p114 = pneg %p113
    // Predicated region
    $region9: #{auxiliary_convolutions_forward.3} parent=5 // pred_check
      _
    $region10: #{auxiliary_convolutions_forward.3} parent=5 // pred_check_branch
      %116 = sbr.rel (%p113) target = $region12
    $region11: #{auxiliary_convolutions_forward.3} parent=5 // pred_region
      %s117 = ssub.s32 %s9, 1
      // Predicated region
      $region13: #{auxiliary_convolutions_forward.3} parent=11 // pred_check
        %p118 = pneg %p56
      $region14: #{auxiliary_convolutions_forward.3} parent=11 // pred_check_branch
        %120 = sbr.rel (%p118) target = $region16
      $region15: #{auxiliary_convolutions_forward.3} parent=11 // pred_region
        _
      $region16: #{auxiliary_convolutions_forward.3} parent=11 // pred_fallthru
        _
      // Predicated region
      $region17: #{auxiliary_convolutions_forward.3} parent=11 // pred_check
        %p121 = pneg %p77
      $region18: #{auxiliary_convolutions_forward.3} parent=11 // pred_check_branch
        %123 = sbr.rel (%p121) target = $region20
      $region19: #{auxiliary_convolutions_forward.3} parent=11 // pred_region
        _
      $region20: #{auxiliary_convolutions_forward.3} parent=11 // pred_fallthru
        _
    $region12: #{auxiliary_convolutions_forward.3} parent=5 // pred_fallthru
      _
    %p124 = scmp.lt.s32.totalorder %s9, 2
    // Predicated region
    $region21: #{auxiliary_convolutions_forward.3} parent=5 // pred_check
      %p125 = pneg %p124
    $region22: #{auxiliary_convolutions_forward.3} parent=5 // pred_check_branch
      %127 = sbr.rel (%p125) target = $region24
    $region23: #{auxiliary_convolutions_forward.3} parent=5 // pred_region
      // Predicated region
      $region25: #{auxiliary_convolutions_forward.3} parent=23 // pred_check
        %p128 = pneg %p29
      $region26: #{auxiliary_convolutions_forward.3} parent=23 // pred_check_branch
        %130 = sbr.rel (%p128) target = $region28
      $region27: #{auxiliary_convolutions_forward.3} parent=23 // pred_region
        %p131 = scmp.lt.s32.totalorder %s9, 1
        %s132 = scalar_select %p131, %s9, 1
        %s133 = smul.addr %s132, 104
        %s134 = smul.addr %s133, 4
        %s135 = scalar_lea.vmem %s0, %s134
      $region28: #{auxiliary_convolutions_forward.3} parent=23 // pred_fallthru
        _
    $region24: #{auxiliary_convolutions_forward.3} parent=5 // pred_fallthru
      _
    %p136 = scmp.le.s32.totalorder 1, %s9
    %p137 = scmp.lt.s32.totalorder %s9, 3
    %p138 = pnand %p136, %p137
    %p139 = pneg %p138
    // Predicated region
    $region29: #{auxiliary_convolutions_forward.3} parent=5 // pred_check
      _
    $region30: #{auxiliary_convolutions_forward.3} parent=5 // pred_check_branch
      %141 = sbr.rel (%p138) target = $region32
    $region31: #{auxiliary_convolutions_forward.3} parent=5 // pred_region
      %s142 = ssub.s32 %s9, 1
      %p143 = scmp.lt.s32.totalorder %s14, 1
      %s144 = scalar_select %p143, %s14, 1
      %s145 = smul.addr %s144, 104
      %s146 = smul.addr %s145, 4
      %s147 = scalar_lea.vmem %s0, %s146
      %p148 = pneg %p35
      %p149 = pneg %p32
      %p150 = pneg %p56
      %p151 = pneg %p53
      %p152 = pneg %p77
      %p153 = pneg %p74
      %p154 = pneg %p103
      %p155 = pneg %p100
      %p156 = scmp.lt.s32.totalorder %s14, 1
      %s157 = scalar_select %p156, %s14, 1
      %s158 = smul.addr %s157, 26
      %s159 = smul.addr %s158, 4
      %s160 = scalar_lea.vmem %s3, %s159
      %p161 = scmp.lt.s32.totalorder %s14, 1
      %s162 = scalar_select %p161, %s14, 1
      %s163 = smul.addr %s162, 104
      %s164 = smul.addr %s163, 4
      %s165 = scalar_lea.vmem %s0, %s164
      %p166 = scmp.lt.s32.totalorder %s14, 1
      %s167 = scalar_select %p166, %s14, 1
      %s168 = smul.addr %s167, 26
      %s169 = smul.addr %s168, 4
      %s170 = scalar_lea.vmem %s3, %s169
      %v171 = vld [vmem:[%s165] sm:$0xff]
      %v172 = vld [vmem:[%s165 + $0x8] sm:$0xff]
      %v173 = vld [vmem:[%s165 + $0x10] sm:$0xff]
      %v174 = vld [vmem:[%s165 + $0x18] sm:$0xff]
      %v175 = vld [vmem:[%s165 + $0x20] sm:$0xff]
      %v176 = vld [vmem:[%s165 + $0x28] sm:$0xff]
      %v177 = vld [vmem:[%s165 + $0x30] sm:$0xff]
      %v178 = vld [vmem:[%s165 + $0x38] sm:$0xff]
      %v179 = vld [vmem:[%s165 + $0x40] sm:$0xff]
      %v180 = vld [vmem:[%s165 + $0x48] sm:$0xff]
      %v181 = vld [vmem:[%s165 + $0x50] sm:$0xff]
      %v182 = vld [vmem:[%s165 + $0x58] sm:$0xff]
      %v183 = vld [vmem:[%s165 + $0x60] sm:$0xff]
      %v184 = vld [vmem:[%s165 + $0x68] sm:$0xff]
      %v185 = vld [vmem:[%s165 + $0x70] sm:$0xff]
      %v186 = vld [vmem:[%s165 + $0x78] sm:$0xff]
      %v187 = vld [vmem:[%s165 + $0x80] sm:$0xff]
      %v188 = vld [vmem:[%s165 + $0x88] sm:$0xff]
      %v189 = vld [vmem:[%s165 + $0x90] sm:$0xff]
      %v190 = vld [vmem:[%s165 + $0x98] sm:$0xff]
      %v191 = vld [vmem:[%s165 + $0xa0] sm:$0xff]
      %v192 = vld [vmem:[%s165 + $0xa8] sm:$0xff]
      %v193 = vld [vmem:[%s165 + $0xb0] sm:$0xff]
      %v194 = vld [vmem:[%s165 + $0xb8] sm:$0xff]
      %v195 = vld [vmem:[%s165 + $0xc0] sm:$0xff]
      %v196 = vld [vmem:[%s165 + $0xc8] sm:$0xff]
      %v197 = vld [vmem:[%s165 + $0xd0] sm:$0xff]
      %v198 = vld [vmem:[%s165 + $0xd8] sm:$0xff]
      %v199 = vld [vmem:[%s165 + $0xe0] sm:$0xff]
      %v200 = vld [vmem:[%s165 + $0xe8] sm:$0xff]
      %v201 = vld [vmem:[%s165 + $0xf0] sm:$0xff]
      %v202 = vld [vmem:[%s165 + $0xf8] sm:$0xff]
      %v203 = vld [vmem:[%s165 + $0x100] sm:$0xff]
      %v204 = vld [vmem:[%s165 + $0x108] sm:$0xff]
      %v205 = vld [vmem:[%s165 + $0x110] sm:$0xff]
      %v206 = vld [vmem:[%s165 + $0x118] sm:$0xff]
      %v207 = vld [vmem:[%s165 + $0x120] sm:$0xff]
      %v208 = vld [vmem:[%s165 + $0x128] sm:$0xff]
      %v209 = vld [vmem:[%s165 + $0x130] sm:$0xff]
      %v210 = vld [vmem:[%s165 + $0x138] sm:$0xff]
      %v211 = vld [vmem:[%s165 + $0x140] sm:$0xff]
      %v212 = vld [vmem:[%s165 + $0x148] sm:$0xff]
      %v213 = vld [vmem:[%s165 + $0x150] sm:$0xff]
      %v214 = vld [vmem:[%s165 + $0x158] sm:$0xff]
      %v215 = vld [vmem:[%s165 + $0x160] sm:$0xff]
      %v216 = vld [vmem:[%s165 + $0x168] sm:$0xff]
      %v217 = vld [vmem:[%s165 + $0x170] sm:$0xff]
      %v218 = vld [vmem:[%s165 + $0x178] sm:$0xff]
      %v219 = vld [vmem:[%s165 + $0x180] sm:$0x33]
      %v220 = vld [vmem:[%s165 + $0x188] sm:$0x33]
      %v221 = vld [vmem:[%s165 + $0x190] sm:$0x33]
      %v222 = vld [vmem:[%s165 + $0x198] sm:$0x33]
      %v223 = vld [vmem:[%s1] sm:$0xff]
      %v224 = vld [vmem:[%s1 + $0x8] sm:$0xff]
      %v225 = vld [vmem:[%s1 + $0x10] sm:$0xff]
      %v226 = vld [vmem:[%s1 + $0x18] sm:$0xff]
      %v227 = vld [vmem:[%s1 + $0x20] sm:$0xff]
      %v228 = vld [vmem:[%s1 + $0x28] sm:$0xff]
      %v229 = vld [vmem:[%s1 + $0x30] sm:$0xff]
      %v230 = vld [vmem:[%s1 + $0x38] sm:$0xff]
      %v231 = vld [vmem:[%s1 + $0x40] sm:$0xff]
      %v232 = vld [vmem:[%s1 + $0x48] sm:$0xff]
      %v233 = vld [vmem:[%s1 + $0x50] sm:$0xff]
      %v234 = vld [vmem:[%s1 + $0x58] sm:$0xff]
      %v235 = vld [vmem:[%s1 + $0x60] sm:$0xff]
      %v236 = vld [vmem:[%s1 + $0x68] sm:$0xff]
      %v237 = vld [vmem:[%s1 + $0x70] sm:$0xff]
      %v238 = vld [vmem:[%s1 + $0x78] sm:$0xff]
      %v239 = vld [vmem:[%s1 + $0x80] sm:$0xff]
      %v240 = vld [vmem:[%s1 + $0x88] sm:$0xff]
      %v241 = vld [vmem:[%s1 + $0x90] sm:$0xff]
      %v242 = vld [vmem:[%s1 + $0x98] sm:$0xff]
      %v243 = vld [vmem:[%s1 + $0xa0] sm:$0xff]
      %v244 = vld [vmem:[%s1 + $0xa8] sm:$0xff]
      %v245 = vld [vmem:[%s1 + $0xb0] sm:$0xff]
      %v246 = vld [vmem:[%s1 + $0xb8] sm:$0xff]
      %v247 = vld [vmem:[%s1 + $0xc0] sm:$0xff]
      %v248 = vld [vmem:[%s1 + $0xc8] sm:$0xff]
      %v249 = vld [vmem:[%s1 + $0xd0] sm:$0xff]
      %v250 = vld [vmem:[%s1 + $0xd8] sm:$0xff]
      %v251 = vld [vmem:[%s1 + $0xe0] sm:$0xff]
      %v252 = vld [vmem:[%s1 + $0xe8] sm:$0xff]
      %v253 = vld [vmem:[%s1 + $0xf0] sm:$0xff]
      %v254 = vld [vmem:[%s1 + $0xf8] sm:$0xff]
      %v255 = vld [vmem:[%s1 + $0x100] sm:$0xff]
      %v256 = vld [vmem:[%s1 + $0x108] sm:$0xff]
      %v257 = vld [vmem:[%s1 + $0x110] sm:$0xff]
      %v258 = vld [vmem:[%s1 + $0x118] sm:$0xff]
      %v259 = vld [vmem:[%s1 + $0x120] sm:$0xff]
      %v260 = vld [vmem:[%s1 + $0x128] sm:$0xff]
      %v261 = vld [vmem:[%s1 + $0x130] sm:$0xff]
      %v262 = vld [vmem:[%s1 + $0x138] sm:$0xff]
      %v263 = vld [vmem:[%s1 + $0x140] sm:$0xff]
      %v264 = vld [vmem:[%s1 + $0x148] sm:$0xff]
      %v265 = vld [vmem:[%s1 + $0x150] sm:$0xff]
      %v266 = vld [vmem:[%s1 + $0x158] sm:$0xff]
      %v267 = vld [vmem:[%s1 + $0x160] sm:$0xff]
      %v268 = vld [vmem:[%s1 + $0x168] sm:$0xff]
      %v269 = vld [vmem:[%s1 + $0x170] sm:$0xff]
      %v270 = vld [vmem:[%s1 + $0x178] sm:$0xff]
      %v271 = vld [vmem:[%s1 + $0x180] sm:$0xff]
      %v272 = vld [vmem:[%s1 + $0x188] sm:$0xff]
      %v273 = vld [vmem:[%s1 + $0x190] sm:$0xff]
      %v274 = vld [vmem:[%s1 + $0x198] sm:$0xff]
      %v275 = vld [vmem:[%s1 + $0x1a0] sm:$0xff]
      %v276 = vld [vmem:[%s1 + $0x1a8] sm:$0xff]
      %v277 = vld [vmem:[%s1 + $0x1b0] sm:$0xff]
      %v278 = vld [vmem:[%s1 + $0x1b8] sm:$0xff]
      %v279 = vld [vmem:[%s1 + $0x1c0] sm:$0xff]
      %v280 = vld [vmem:[%s1 + $0x1c8] sm:$0xff]
      %v281 = vld [vmem:[%s1 + $0x1d0] sm:$0xff]
      %v282 = vld [vmem:[%s1 + $0x1d8] sm:$0xff]
      %v283 = vld [vmem:[%s1 + $0x1e0] sm:$0xff]
      %v284 = vld [vmem:[%s1 + $0x1e8] sm:$0xff]
      %v285 = vld [vmem:[%s1 + $0x1f0] sm:$0xff]
      %v286 = vld [vmem:[%s1 + $0x1f8] sm:$0xff]
      %v287 = vld [vmem:[%s1 + $0x200] sm:$0xff]
      %v288 = vld [vmem:[%s1 + $0x208] sm:$0xff]
      %v289 = vld [vmem:[%s1 + $0x210] sm:$0xff]
      %v290 = vld [vmem:[%s1 + $0x218] sm:$0xff]
      %v291 = vld [vmem:[%s1 + $0x220] sm:$0xff]
      %v292 = vld [vmem:[%s1 + $0x228] sm:$0xff]
      %v293 = vld [vmem:[%s1 + $0x230] sm:$0xff]
      %v294 = vld [vmem:[%s1 + $0x238] sm:$0xff]
      %v295 = vld [vmem:[%s1 + $0x240] sm:$0xff]
      %v296 = vld [vmem:[%s1 + $0x248] sm:$0xff]
      %v297 = vld [vmem:[%s1 + $0x250] sm:$0xff]
      %v298 = vld [vmem:[%s1 + $0x258] sm:$0xff]
      %v299 = vld [vmem:[%s1 + $0x260] sm:$0xff]
      %v300 = vld [vmem:[%s1 + $0x268] sm:$0xff]
      %v301 = vld [vmem:[%s1 + $0x270] sm:$0xff]
      %v302 = vld [vmem:[%s1 + $0x278] sm:$0xff]
      %v303 = vld [vmem:[%s1 + $0x280] sm:$0xff]
      %v304 = vld [vmem:[%s1 + $0x288] sm:$0xff]
      %v305 = vld [vmem:[%s1 + $0x290] sm:$0xff]
      %v306 = vld [vmem:[%s1 + $0x298] sm:$0xff]
      %v307 = vld [vmem:[%s1 + $0x2a0] sm:$0xff]
      %v308 = vld [vmem:[%s1 + $0x2a8] sm:$0xff]
      %v309 = vld [vmem:[%s1 + $0x2b0] sm:$0xff]
      %v310 = vld [vmem:[%s1 + $0x2b8] sm:$0xff]
      %v311 = vld [vmem:[%s1 + $0x2c0] sm:$0xff]
      %v312 = vld [vmem:[%s1 + $0x2c8] sm:$0xff]
      %v313 = vld [vmem:[%s1 + $0x2d0] sm:$0xff]
      %v314 = vld [vmem:[%s1 + $0x2d8] sm:$0xff]
      %v315 = vld [vmem:[%s1 + $0x2e0] sm:$0xff]
      %v316 = vld [vmem:[%s1 + $0x2e8] sm:$0xff]
      %v317 = vld [vmem:[%s1 + $0x2f0] sm:$0xff]
      %v318 = vld [vmem:[%s1 + $0x2f8] sm:$0xff]
      %v319 = vld [vmem:[%s1 + $0x300] sm:$0xff]
      %v320 = vld [vmem:[%s1 + $0x308] sm:$0xff]
      %v321 = vld [vmem:[%s1 + $0x310] sm:$0xff]
      %v322 = vld [vmem:[%s1 + $0x318] sm:$0xff]
      %v323 = vld [vmem:[%s1 + $0x320] sm:$0xff]
      %v324 = vld [vmem:[%s1 + $0x328] sm:$0xff]
      %v325 = vld [vmem:[%s1 + $0x330] sm:$0xff]
      %v326 = vld [vmem:[%s1 + $0x338] sm:$0xff]
      %v327 = vld [vmem:[%s1 + $0x340] sm:$0xff]
      %v328 = vld [vmem:[%s1 + $0x348] sm:$0xff]
      %v329 = vld [vmem:[%s1 + $0x350] sm:$0xff]
      %v330 = vld [vmem:[%s1 + $0x358] sm:$0xff]
      %v331 = vld [vmem:[%s1 + $0x360] sm:$0xff]
      %v332 = vld [vmem:[%s1 + $0x368] sm:$0xff]
      %v333 = vld [vmem:[%s1 + $0x370] sm:$0xff]
      %v334 = vld [vmem:[%s1 + $0x378] sm:$0xff]
      %v335 = vld [vmem:[%s1 + $0x380] sm:$0xff]
      %v336 = vld [vmem:[%s1 + $0x388] sm:$0xff]
      %v337 = vld [vmem:[%s1 + $0x390] sm:$0xff]
      %v338 = vld [vmem:[%s1 + $0x398] sm:$0xff]
      %v339 = vld [vmem:[%s1 + $0x3a0] sm:$0xff]
      %v340 = vld [vmem:[%s1 + $0x3a8] sm:$0xff]
      %v341 = vld [vmem:[%s1 + $0x3b0] sm:$0xff]
      %v342 = vld [vmem:[%s1 + $0x3b8] sm:$0xff]
      %v343 = vld [vmem:[%s1 + $0x3c0] sm:$0xff]
      %v344 = vld [vmem:[%s1 + $0x3c8] sm:$0xff]
      %v345 = vld [vmem:[%s1 + $0x3d0] sm:$0xff]
      %v346 = vld [vmem:[%s1 + $0x3d8] sm:$0xff]
      %v347 = vld [vmem:[%s1 + $0x3e0] sm:$0xff]
      %v348 = vld [vmem:[%s1 + $0x3e8] sm:$0xff]
      %v349 = vld [vmem:[%s1 + $0x3f0] sm:$0xff]
      %v350 = vld [vmem:[%s1 + $0x3f8] sm:$0xff]
      %v351 = vld [vmem:[%s2] sm:$0x3]
      %v353 = vperm.slane %v351, 0
      %v354 = vperm.slane %v351, 1
      %v409 = vunpack.c.l.b16 %v171
      %v410 = vunpack.c.h.b16 %v171
      %v411 = vunpack.c.l.b16 %v172
      %v412 = vunpack.c.h.b16 %v172
      %v413 = vunpack.c.l.b16 %v173
      %v414 = vunpack.c.h.b16 %v173
      %v415 = vunpack.c.l.b16 %v174
      %v416 = vunpack.c.h.b16 %v174
      %v417 = vunpack.c.l.b16 %v175
      %v418 = vunpack.c.h.b16 %v175
      %v419 = vunpack.c.l.b16 %v176
      %v420 = vunpack.c.h.b16 %v176
      %v421 = vunpack.c.l.b16 %v177
      %v422 = vunpack.c.h.b16 %v177
      %v423 = vunpack.c.l.b16 %v178
      %v424 = vunpack.c.h.b16 %v178
      %v425 = vunpack.c.l.b16 %v179
      %v426 = vunpack.c.h.b16 %v179
      %v427 = vunpack.c.l.b16 %v180
      %v428 = vunpack.c.h.b16 %v180
      %v429 = vunpack.c.l.b16 %v181
      %v430 = vunpack.c.h.b16 %v181
      %v431 = vunpack.c.l.b16 %v182
      %v432 = vunpack.c.h.b16 %v182
      %v433 = vunpack.c.l.b16 %v183
      %v434 = vunpack.c.h.b16 %v183
      %v435 = vunpack.c.l.b16 %v184
      %v436 = vunpack.c.h.b16 %v184
      %v437 = vunpack.c.l.b16 %v185
      %v438 = vunpack.c.h.b16 %v185
      %v439 = vunpack.c.l.b16 %v186
      %v440 = vunpack.c.h.b16 %v186
      %v441 = vunpack.c.l.b16 %v187
      %v442 = vunpack.c.h.b16 %v187
      %v443 = vunpack.c.l.b16 %v188
      %v444 = vunpack.c.h.b16 %v188
      %v445 = vunpack.c.l.b16 %v189
      %v446 = vunpack.c.h.b16 %v189
      %v447 = vunpack.c.l.b16 %v190
      %v448 = vunpack.c.h.b16 %v190
      %v449 = vunpack.c.l.b16 %v191
      %v450 = vunpack.c.h.b16 %v191
      %v451 = vunpack.c.l.b16 %v192
      %v452 = vunpack.c.h.b16 %v192
      %v453 = vunpack.c.l.b16 %v193
      %v454 = vunpack.c.h.b16 %v193
      %v455 = vunpack.c.l.b16 %v194
      %v456 = vunpack.c.h.b16 %v194
      %v457 = vunpack.c.l.b16 %v195
      %v458 = vunpack.c.h.b16 %v195
      %v459 = vunpack.c.l.b16 %v196
      %v460 = vunpack.c.h.b16 %v196
      %v461 = vunpack.c.l.b16 %v197
      %v462 = vunpack.c.h.b16 %v197
      %v463 = vunpack.c.l.b16 %v198
      %v464 = vunpack.c.h.b16 %v198
      %v465 = vunpack.c.l.b16 %v199
      %v466 = vunpack.c.h.b16 %v199
      %v467 = vunpack.c.l.b16 %v200
      %v468 = vunpack.c.h.b16 %v200
      %v469 = vunpack.c.l.b16 %v201
      %v470 = vunpack.c.h.b16 %v201
      %v471 = vunpack.c.l.b16 %v202
      %v472 = vunpack.c.h.b16 %v202
      %v473 = vunpack.c.l.b16 %v203
      %v474 = vunpack.c.h.b16 %v203
      %v475 = vunpack.c.l.b16 %v204
      %v476 = vunpack.c.h.b16 %v204
      %v477 = vunpack.c.l.b16 %v205
      %v478 = vunpack.c.h.b16 %v205
      %v479 = vunpack.c.l.b16 %v206
      %v480 = vunpack.c.h.b16 %v206
      %v481 = vunpack.c.l.b16 %v207
      %v482 = vunpack.c.h.b16 %v207
      %v483 = vunpack.c.l.b16 %v208
      %v484 = vunpack.c.h.b16 %v208
      %v485 = vunpack.c.l.b16 %v209
      %v486 = vunpack.c.h.b16 %v209
      %v487 = vunpack.c.l.b16 %v210
      %v488 = vunpack.c.h.b16 %v210
      %v489 = vunpack.c.l.b16 %v211
      %v490 = vunpack.c.h.b16 %v211
      %v491 = vunpack.c.l.b16 %v212
      %v492 = vunpack.c.h.b16 %v212
      %v493 = vunpack.c.l.b16 %v213
      %v494 = vunpack.c.h.b16 %v213
      %v495 = vunpack.c.l.b16 %v214
      %v496 = vunpack.c.h.b16 %v214
      %v497 = vunpack.c.l.b16 %v215
      %v498 = vunpack.c.h.b16 %v215
      %v499 = vunpack.c.l.b16 %v216
      %v500 = vunpack.c.h.b16 %v216
      %v501 = vunpack.c.l.b16 %v217
      %v502 = vunpack.c.h.b16 %v217
      %v503 = vunpack.c.l.b16 %v218
      %v504 = vunpack.c.h.b16 %v218
      %v505 = vunpack.c.l.b16 %v219
      %v506 = vunpack.c.h.b16 %v219
      %v507 = vunpack.c.l.b16 %v220
      %v508 = vunpack.c.h.b16 %v220
      %v509 = vunpack.c.l.b16 %v221
      %v510 = vunpack.c.h.b16 %v221
      %v511 = vunpack.c.l.b16 %v222
      %v512 = vunpack.c.h.b16 %v222
      %v513 = vpack.c.b16 %v417, %v409
      %v514 = vpack.c.b16 %v418, %v410
      %v515 = vpack.c.b16 %v419, %v411
      %v516 = vpack.c.b16 %v420, %v412
      %v517 = vpack.c.b16 %v421, %v413
      %v518 = vpack.c.b16 %v422, %v414
      %v519 = vpack.c.b16 %v423, %v415
      %v520 = vpack.c.b16 %v424, %v416
      %v521 = vpack.c.b16 %v433, %v425
      %v522 = vpack.c.b16 %v434, %v426
      %v523 = vpack.c.b16 %v435, %v427
      %v524 = vpack.c.b16 %v436, %v428
      %v525 = vpack.c.b16 %v437, %v429
      %v526 = vpack.c.b16 %v438, %v430
      %v527 = vpack.c.b16 %v439, %v431
      %v528 = vpack.c.b16 %v440, %v432
      %v529 = vpack.c.b16 %v449, %v441
      %v530 = vpack.c.b16 %v450, %v442
      %v531 = vpack.c.b16 %v451, %v443
      %v532 = vpack.c.b16 %v452, %v444
      %v533 = vpack.c.b16 %v453, %v445
      %v534 = vpack.c.b16 %v454, %v446
      %v535 = vpack.c.b16 %v455, %v447
      %v536 = vpack.c.b16 %v456, %v448
      %v537 = vpack.c.b16 %v465, %v457
      %v538 = vpack.c.b16 %v466, %v458
      %v539 = vpack.c.b16 %v467, %v459
      %v540 = vpack.c.b16 %v468, %v460
      %v541 = vpack.c.b16 %v469, %v461
      %v542 = vpack.c.b16 %v470, %v462
      %v543 = vpack.c.b16 %v471, %v463
      %v544 = vpack.c.b16 %v472, %v464
      %v545 = vpack.c.b16 %v481, %v473
      %v546 = vpack.c.b16 %v482, %v474
      %v547 = vpack.c.b16 %v483, %v475
      %v548 = vpack.c.b16 %v484, %v476
      %v549 = vpack.c.b16 %v485, %v477
      %v550 = vpack.c.b16 %v486, %v478
      %v551 = vpack.c.b16 %v487, %v479
      %v552 = vpack.c.b16 %v488, %v480
      %v553 = vpack.c.b16 %v497, %v489
      %v554 = vpack.c.b16 %v498, %v490
      %v555 = vpack.c.b16 %v499, %v491
      %v556 = vpack.c.b16 %v500, %v492
      %v557 = vpack.c.b16 %v501, %v493
      %v558 = vpack.c.b16 %v502, %v494
      %v559 = vpack.c.b16 %v503, %v495
      %v560 = vpack.c.b16 %v504, %v496
      %v561 = vpack.c.b16 %v505, %v505
      %v562 = vpack.c.b16 %v506, %v506
      %v563 = vpack.c.b16 %v507, %v507
      %v564 = vpack.c.b16 %v508, %v508
      %v565 = vpack.c.b16 %v509, %v509
      %v566 = vpack.c.b16 %v510, %v510
      %v567 = vpack.c.b16 %v511, %v511
      %v568 = vpack.c.b16 %v512, %v512
      %v753 = vunpack.c.l.b16 %v223
      %v754 = vunpack.c.h.b16 %v223
      %v755 = vunpack.c.l.b16 %v224
      %v756 = vunpack.c.h.b16 %v224
      %v757 = vunpack.c.l.b16 %v225
      %v758 = vunpack.c.h.b16 %v225
      %v759 = vunpack.c.l.b16 %v226
      %v760 = vunpack.c.h.b16 %v226
      %v761 = vunpack.c.l.b16 %v227
      %v762 = vunpack.c.h.b16 %v227
      %v763 = vunpack.c.l.b16 %v228
      %v764 = vunpack.c.h.b16 %v228
      %v765 = vunpack.c.l.b16 %v229
      %v766 = vunpack.c.h.b16 %v229
      %v767 = vunpack.c.l.b16 %v230
      %v768 = vunpack.c.h.b16 %v230
      %v769 = vunpack.c.l.b16 %v231
      %v770 = vunpack.c.h.b16 %v231
      %v771 = vunpack.c.l.b16 %v232
      %v772 = vunpack.c.h.b16 %v232
      %v773 = vunpack.c.l.b16 %v233
      %v774 = vunpack.c.h.b16 %v233
      %v775 = vunpack.c.l.b16 %v234
      %v776 = vunpack.c.h.b16 %v234
      %v777 = vunpack.c.l.b16 %v235
      %v778 = vunpack.c.h.b16 %v235
      %v779 = vunpack.c.l.b16 %v236
      %v780 = vunpack.c.h.b16 %v236
      %v781 = vunpack.c.l.b16 %v237
      %v782 = vunpack.c.h.b16 %v237
      %v783 = vunpack.c.l.b16 %v238
      %v784 = vunpack.c.h.b16 %v238
      %v785 = vunpack.c.l.b16 %v239
      %v786 = vunpack.c.h.b16 %v239
      %v787 = vunpack.c.l.b16 %v240
      %v788 = vunpack.c.h.b16 %v240
      %v789 = vunpack.c.l.b16 %v241
      %v790 = vunpack.c.h.b16 %v241
      %v791 = vunpack.c.l.b16 %v242
      %v792 = vunpack.c.h.b16 %v242
      %v793 = vunpack.c.l.b16 %v243
      %v794 = vunpack.c.h.b16 %v243
      %v795 = vunpack.c.l.b16 %v244
      %v796 = vunpack.c.h.b16 %v244
      %v797 = vunpack.c.l.b16 %v245
      %v798 = vunpack.c.h.b16 %v245
      %v799 = vunpack.c.l.b16 %v246
      %v800 = vunpack.c.h.b16 %v246
      %v801 = vunpack.c.l.b16 %v247
      %v802 = vunpack.c.h.b16 %v247
      %v803 = vunpack.c.l.b16 %v248
      %v804 = vunpack.c.h.b16 %v248
      %v805 = vunpack.c.l.b16 %v249
      %v806 = vunpack.c.h.b16 %v249
      %v807 = vunpack.c.l.b16 %v250
      %v808 = vunpack.c.h.b16 %v250
      %v809 = vunpack.c.l.b16 %v251
      %v810 = vunpack.c.h.b16 %v251
      %v811 = vunpack.c.l.b16 %v252
      %v812 = vunpack.c.h.b16 %v252
      %v813 = vunpack.c.l.b16 %v253
      %v814 = vunpack.c.h.b16 %v253
      %v815 = vunpack.c.l.b16 %v254
      %v816 = vunpack.c.h.b16 %v254
      %v817 = vunpack.c.l.b16 %v255
      %v818 = vunpack.c.h.b16 %v255
      %v819 = vunpack.c.l.b16 %v256
      %v820 = vunpack.c.h.b16 %v256
      %v821 = vunpack.c.l.b16 %v257
      %v822 = vunpack.c.h.b16 %v257
      %v823 = vunpack.c.l.b16 %v258
      %v824 = vunpack.c.h.b16 %v258
      %v825 = vunpack.c.l.b16 %v259
      %v826 = vunpack.c.h.b16 %v259
      %v827 = vunpack.c.l.b16 %v260
      %v828 = vunpack.c.h.b16 %v260
      %v829 = vunpack.c.l.b16 %v261
      %v830 = vunpack.c.h.b16 %v261
      %v831 = vunpack.c.l.b16 %v262
      %v832 = vunpack.c.h.b16 %v262
      %v833 = vunpack.c.l.b16 %v263
      %v834 = vunpack.c.h.b16 %v263
      %v835 = vunpack.c.l.b16 %v264
      %v836 = vunpack.c.h.b16 %v264
      %v837 = vunpack.c.l.b16 %v265
      %v838 = vunpack.c.h.b16 %v265
      %v839 = vunpack.c.l.b16 %v266
      %v840 = vunpack.c.h.b16 %v266
      %v841 = vunpack.c.l.b16 %v267
      %v842 = vunpack.c.h.b16 %v267
      %v843 = vunpack.c.l.b16 %v268
      %v844 = vunpack.c.h.b16 %v268
      %v845 = vunpack.c.l.b16 %v269
      %v846 = vunpack.c.h.b16 %v269
      %v847 = vunpack.c.l.b16 %v270
      %v848 = vunpack.c.h.b16 %v270
      %v849 = vunpack.c.l.b16 %v271
      %v850 = vunpack.c.h.b16 %v271
      %v851 = vunpack.c.l.b16 %v272
      %v852 = vunpack.c.h.b16 %v272
      %v853 = vunpack.c.l.b16 %v273
      %v854 = vunpack.c.h.b16 %v273
      %v855 = vunpack.c.l.b16 %v274
      %v856 = vunpack.c.h.b16 %v274
      %v857 = vunpack.c.l.b16 %v275
      %v858 = vunpack.c.h.b16 %v275
      %v859 = vunpack.c.l.b16 %v276
      %v860 = vunpack.c.h.b16 %v276
      %v861 = vunpack.c.l.b16 %v277
      %v862 = vunpack.c.h.b16 %v277
      %v863 = vunpack.c.l.b16 %v278
      %v864 = vunpack.c.h.b16 %v278
      %v865 = vunpack.c.l.b16 %v279
      %v866 = vunpack.c.h.b16 %v279
      %v867 = vunpack.c.l.b16 %v280
      %v868 = vunpack.c.h.b16 %v280
      %v869 = vunpack.c.l.b16 %v281
      %v870 = vunpack.c.h.b16 %v281
      %v871 = vunpack.c.l.b16 %v282
      %v872 = vunpack.c.h.b16 %v282
      %v873 = vunpack.c.l.b16 %v283
      %v874 = vunpack.c.h.b16 %v283
      %v875 = vunpack.c.l.b16 %v284
      %v876 = vunpack.c.h.b16 %v284
      %v877 = vunpack.c.l.b16 %v285
      %v878 = vunpack.c.h.b16 %v285
      %v879 = vunpack.c.l.b16 %v286
      %v880 = vunpack.c.h.b16 %v286
      %v881 = vunpack.c.l.b16 %v287
      %v882 = vunpack.c.h.b16 %v287
      %v883 = vunpack.c.l.b16 %v288
      %v884 = vunpack.c.h.b16 %v288
      %v885 = vunpack.c.l.b16 %v289
      %v886 = vunpack.c.h.b16 %v289
      %v887 = vunpack.c.l.b16 %v290
      %v888 = vunpack.c.h.b16 %v290
      %v889 = vunpack.c.l.b16 %v291
      %v890 = vunpack.c.h.b16 %v291
      %v891 = vunpack.c.l.b16 %v292
      %v892 = vunpack.c.h.b16 %v292
      %v893 = vunpack.c.l.b16 %v293
      %v894 = vunpack.c.h.b16 %v293
      %v895 = vunpack.c.l.b16 %v294
      %v896 = vunpack.c.h.b16 %v294
      %v897 = vunpack.c.l.b16 %v295
      %v898 = vunpack.c.h.b16 %v295
      %v899 = vunpack.c.l.b16 %v296
      %v900 = vunpack.c.h.b16 %v296
      %v901 = vunpack.c.l.b16 %v297
      %v902 = vunpack.c.h.b16 %v297
      %v903 = vunpack.c.l.b16 %v298
      %v904 = vunpack.c.h.b16 %v298
      %v905 = vunpack.c.l.b16 %v299
      %v906 = vunpack.c.h.b16 %v299
      %v907 = vunpack.c.l.b16 %v300
      %v908 = vunpack.c.h.b16 %v300
      %v909 = vunpack.c.l.b16 %v301
      %v910 = vunpack.c.h.b16 %v301
      %v911 = vunpack.c.l.b16 %v302
      %v912 = vunpack.c.h.b16 %v302
      %v913 = vunpack.c.l.b16 %v303
      %v914 = vunpack.c.h.b16 %v303
      %v915 = vunpack.c.l.b16 %v304
      %v916 = vunpack.c.h.b16 %v304
      %v917 = vunpack.c.l.b16 %v305
      %v918 = vunpack.c.h.b16 %v305
      %v919 = vunpack.c.l.b16 %v306
      %v920 = vunpack.c.h.b16 %v306
      %v921 = vunpack.c.l.b16 %v307
      %v922 = vunpack.c.h.b16 %v307
      %v923 = vunpack.c.l.b16 %v308
      %v924 = vunpack.c.h.b16 %v308
      %v925 = vunpack.c.l.b16 %v309
      %v926 = vunpack.c.h.b16 %v309
      %v927 = vunpack.c.l.b16 %v310
      %v928 = vunpack.c.h.b16 %v310
      %v929 = vunpack.c.l.b16 %v311
      %v930 = vunpack.c.h.b16 %v311
      %v931 = vunpack.c.l.b16 %v312
      %v932 = vunpack.c.h.b16 %v312
      %v933 = vunpack.c.l.b16 %v313
      %v934 = vunpack.c.h.b16 %v313
      %v935 = vunpack.c.l.b16 %v314
      %v936 = vunpack.c.h.b16 %v314
      %v937 = vunpack.c.l.b16 %v315
      %v938 = vunpack.c.h.b16 %v315
      %v939 = vunpack.c.l.b16 %v316
      %v940 = vunpack.c.h.b16 %v316
      %v941 = vunpack.c.l.b16 %v317
      %v942 = vunpack.c.h.b16 %v317
      %v943 = vunpack.c.l.b16 %v318
      %v944 = vunpack.c.h.b16 %v318
      %v945 = vunpack.c.l.b16 %v319
      %v946 = vunpack.c.h.b16 %v319
      %v947 = vunpack.c.l.b16 %v320
      %v948 = vunpack.c.h.b16 %v320
      %v949 = vunpack.c.l.b16 %v321
      %v950 = vunpack.c.h.b16 %v321
      %v951 = vunpack.c.l.b16 %v322
      %v952 = vunpack.c.h.b16 %v322
      %v953 = vunpack.c.l.b16 %v323
      %v954 = vunpack.c.h.b16 %v323
      %v955 = vunpack.c.l.b16 %v324
      %v956 = vunpack.c.h.b16 %v324
      %v957 = vunpack.c.l.b16 %v325
      %v958 = vunpack.c.h.b16 %v325
      %v959 = vunpack.c.l.b16 %v326
      %v960 = vunpack.c.h.b16 %v326
      %v961 = vunpack.c.l.b16 %v327
      %v962 = vunpack.c.h.b16 %v327
      %v963 = vunpack.c.l.b16 %v328
      %v964 = vunpack.c.h.b16 %v328
      %v965 = vunpack.c.l.b16 %v329
      %v966 = vunpack.c.h.b16 %v329
      %v967 = vunpack.c.l.b16 %v330
      %v968 = vunpack.c.h.b16 %v330
      %v969 = vunpack.c.l.b16 %v331
      %v970 = vunpack.c.h.b16 %v331
      %v971 = vunpack.c.l.b16 %v332
      %v972 = vunpack.c.h.b16 %v332
      %v973 = vunpack.c.l.b16 %v333
      %v974 = vunpack.c.h.b16 %v333
      %v975 = vunpack.c.l.b16 %v334
      %v976 = vunpack.c.h.b16 %v334
      %v977 = vunpack.c.l.b16 %v335
      %v978 = vunpack.c.h.b16 %v335
      %v979 = vunpack.c.l.b16 %v336
      %v980 = vunpack.c.h.b16 %v336
      %v981 = vunpack.c.l.b16 %v337
      %v982 = vunpack.c.h.b16 %v337
      %v983 = vunpack.c.l.b16 %v338
      %v984 = vunpack.c.h.b16 %v338
      %v985 = vunpack.c.l.b16 %v339
      %v986 = vunpack.c.h.b16 %v339
      %v987 = vunpack.c.l.b16 %v340
      %v988 = vunpack.c.h.b16 %v340
      %v989 = vunpack.c.l.b16 %v341
      %v990 = vunpack.c.h.b16 %v341
      %v991 = vunpack.c.l.b16 %v342
      %v992 = vunpack.c.h.b16 %v342
      %v993 = vunpack.c.l.b16 %v343
      %v994 = vunpack.c.h.b16 %v343
      %v995 = vunpack.c.l.b16 %v344
      %v996 = vunpack.c.h.b16 %v344
      %v997 = vunpack.c.l.b16 %v345
      %v998 = vunpack.c.h.b16 %v345
      %v999 = vunpack.c.l.b16 %v346
      %v1000 = vunpack.c.h.b16 %v346
      %v1001 = vunpack.c.l.b16 %v347
      %v1002 = vunpack.c.h.b16 %v347
      %v1003 = vunpack.c.l.b16 %v348
      %v1004 = vunpack.c.h.b16 %v348
      %v1005 = vunpack.c.l.b16 %v349
      %v1006 = vunpack.c.h.b16 %v349
      %v1007 = vunpack.c.l.b16 %v350
      %v1008 = vunpack.c.h.b16 %v350
      %v1009 = vpack.c.b16 %v755, %v753
      %v1010 = vpack.c.b16 %v756, %v754
      %v1011 = vpack.c.b16 %v759, %v757
      %v1012 = vpack.c.b16 %v760, %v758
      %v1013 = vpack.c.b16 %v763, %v761
      %v1014 = vpack.c.b16 %v764, %v762
      %v1015 = vpack.c.b16 %v767, %v765
      %v1016 = vpack.c.b16 %v768, %v766
      %v1017 = vpack.c.b16 %v771, %v769
      %v1018 = vpack.c.b16 %v772, %v770
      %v1019 = vpack.c.b16 %v775, %v773
      %v1020 = vpack.c.b16 %v776, %v774
      %v1021 = vpack.c.b16 %v779, %v777
      %v1022 = vpack.c.b16 %v780, %v778
      %v1023 = vpack.c.b16 %v783, %v781
      %v1024 = vpack.c.b16 %v784, %v782
      %v1025 = vpack.c.b16 %v787, %v785
      %v1026 = vpack.c.b16 %v788, %v786
      %v1027 = vpack.c.b16 %v791, %v789
      %v1028 = vpack.c.b16 %v792, %v790
      %v1029 = vpack.c.b16 %v795, %v793
      %v1030 = vpack.c.b16 %v796, %v794
      %v1031 = vpack.c.b16 %v799, %v797
      %v1032 = vpack.c.b16 %v800, %v798
      %v1033 = vpack.c.b16 %v803, %v801
      %v1034 = vpack.c.b16 %v804, %v802
      %v1035 = vpack.c.b16 %v807, %v805
      %v1036 = vpack.c.b16 %v808, %v806
      %v1037 = vpack.c.b16 %v811, %v809
      %v1038 = vpack.c.b16 %v812, %v810
      %v1039 = vpack.c.b16 %v815, %v813
      %v1040 = vpack.c.b16 %v816, %v814
      %v1041 = vpack.c.b16 %v819, %v817
      %v1042 = vpack.c.b16 %v820, %v818
      %v1043 = vpack.c.b16 %v823, %v821
      %v1044 = vpack.c.b16 %v824, %v822
      %v1045 = vpack.c.b16 %v827, %v825
      %v1046 = vpack.c.b16 %v828, %v826
      %v1047 = vpack.c.b16 %v831, %v829
      %v1048 = vpack.c.b16 %v832, %v830
      %v1049 = vpack.c.b16 %v835, %v833
      %v1050 = vpack.c.b16 %v836, %v834
      %v1051 = vpack.c.b16 %v839, %v837
      %v1052 = vpack.c.b16 %v840, %v838
      %v1053 = vpack.c.b16 %v843, %v841
      %v1054 = vpack.c.b16 %v844, %v842
      %v1055 = vpack.c.b16 %v847, %v845
      %v1056 = vpack.c.b16 %v848, %v846
      %v1057 = vpack.c.b16 %v851, %v849
      %v1058 = vpack.c.b16 %v852, %v850
      %v1059 = vpack.c.b16 %v855, %v853
      %v1060 = vpack.c.b16 %v856, %v854
      %v1061 = vpack.c.b16 %v859, %v857
      %v1062 = vpack.c.b16 %v860, %v858
      %v1063 = vpack.c.b16 %v863, %v861
      %v1064 = vpack.c.b16 %v864, %v862
      %v1065 = vpack.c.b16 %v867, %v865
      %v1066 = vpack.c.b16 %v868, %v866
      %v1067 = vpack.c.b16 %v871, %v869
      %v1068 = vpack.c.b16 %v872, %v870
      %v1069 = vpack.c.b16 %v875, %v873
      %v1070 = vpack.c.b16 %v876, %v874
      %v1071 = vpack.c.b16 %v879, %v877
      %v1072 = vpack.c.b16 %v880, %v878
      %v1073 = vpack.c.b16 %v883, %v881
      %v1074 = vpack.c.b16 %v884, %v882
      %v1075 = vpack.c.b16 %v887, %v885
      %v1076 = vpack.c.b16 %v888, %v886
      %v1077 = vpack.c.b16 %v891, %v889
      %v1078 = vpack.c.b16 %v892, %v890
      %v1079 = vpack.c.b16 %v895, %v893
      %v1080 = vpack.c.b16 %v896, %v894
      %v1081 = vpack.c.b16 %v899, %v897
      %v1082 = vpack.c.b16 %v900, %v898
      %v1083 = vpack.c.b16 %v903, %v901
      %v1084 = vpack.c.b16 %v904, %v902
      %v1085 = vpack.c.b16 %v907, %v905
      %v1086 = vpack.c.b16 %v908, %v906
      %v1087 = vpack.c.b16 %v911, %v909
      %v1088 = vpack.c.b16 %v912, %v910
      %v1089 = vpack.c.b16 %v915, %v913
      %v1090 = vpack.c.b16 %v916, %v914
      %v1091 = vpack.c.b16 %v919, %v917
      %v1092 = vpack.c.b16 %v920, %v918
      %v1093 = vpack.c.b16 %v923, %v921
      %v1094 = vpack.c.b16 %v924, %v922
      %v1095 = vpack.c.b16 %v927, %v925
      %v1096 = vpack.c.b16 %v928, %v926
      %v1097 = vpack.c.b16 %v931, %v929
      %v1098 = vpack.c.b16 %v932, %v930
      %v1099 = vpack.c.b16 %v935, %v933
      %v1100 = vpack.c.b16 %v936, %v934
      %v1101 = vpack.c.b16 %v939, %v937
      %v1102 = vpack.c.b16 %v940, %v938
      %v1103 = vpack.c.b16 %v943, %v941
      %v1104 = vpack.c.b16 %v944, %v942
      %v1105 = vpack.c.b16 %v947, %v945
      %v1106 = vpack.c.b16 %v948, %v946
      %v1107 = vpack.c.b16 %v951, %v949
      %v1108 = vpack.c.b16 %v952, %v950
      %v1109 = vpack.c.b16 %v955, %v953
      %v1110 = vpack.c.b16 %v956, %v954
      %v1111 = vpack.c.b16 %v959, %v957
      %v1112 = vpack.c.b16 %v960, %v958
      %v1113 = vpack.c.b16 %v963, %v961
      %v1114 = vpack.c.b16 %v964, %v962
      %v1115 = vpack.c.b16 %v967, %v965
      %v1116 = vpack.c.b16 %v968, %v966
      %v1117 = vpack.c.b16 %v971, %v969
      %v1118 = vpack.c.b16 %v972, %v970
      %v1119 = vpack.c.b16 %v975, %v973
      %v1120 = vpack.c.b16 %v976, %v974
      %v1121 = vpack.c.b16 %v979, %v977
      %v1122 = vpack.c.b16 %v980, %v978
      %v1123 = vpack.c.b16 %v983, %v981
      %v1124 = vpack.c.b16 %v984, %v982
      %v1125 = vpack.c.b16 %v987, %v985
      %v1126 = vpack.c.b16 %v988, %v986
      %v1127 = vpack.c.b16 %v991, %v989
      %v1128 = vpack.c.b16 %v992, %v990
      %v1129 = vpack.c.b16 %v995, %v993
      %v1130 = vpack.c.b16 %v996, %v994
      %v1131 = vpack.c.b16 %v999, %v997
      %v1132 = vpack.c.b16 %v1000, %v998
      %v1133 = vpack.c.b16 %v1003, %v1001
      %v1134 = vpack.c.b16 %v1004, %v1002
      %v1135 = vpack.c.b16 %v1007, %v1005
      %v1136 = vpack.c.b16 %v1008, %v1006
      %1265 = vmatpush.bf16.msra.mxu0 %v1023
      %1266 = vmatpush.bf16.msra.mxu0 %v1021
      %1267 = vmatpush.bf16.msra.mxu0 %v1019
      %1268 = vmatpush.bf16.msra.mxu0 %v1017
      %1269 = vmatpush.bf16.msra.mxu0 %v1015
      %1270 = vmatpush.bf16.msra.mxu0 %v1013
      %1271 = vmatpush.bf16.msra.mxu0 %v1011
      %1272 = vmatpush.bf16.msra.mxu0 %v1009
      %1273 = vmatmul.bf16.gmra.mxu0 %v513
      %v1274 = vpop.f32.mrf.mxu0
      %v1275 = vadd.f32 %v353, %v1274
      %v1276 = vpop.f32.mrf.mxu0
      %v1277 = vadd.f32 %v353, %v1276
      %1278 = vmatmul.bf16.gmra.mxu0 %v521
      %v1279 = vpop.f32.mrf.mxu0
      %v1280 = vadd.f32 %v353, %v1279
      %v1281 = vpop.f32.mrf.mxu0
      %v1282 = vadd.f32 %v353, %v1281
      %1283 = vmatmul.bf16.gmra.mxu0 %v529
      %v1284 = vpop.f32.mrf.mxu0
      %v1285 = vadd.f32 %v353, %v1284
      %v1286 = vpop.f32.mrf.mxu0
      %v1287 = vadd.f32 %v353, %v1286
      %1288 = vmatmul.bf16.gmra.mxu0 %v537
      %v1289 = vpop.f32.mrf.mxu0
      %v1290 = vadd.f32 %v353, %v1289
      %v1291 = vpop.f32.mrf.mxu0
      %v1292 = vadd.f32 %v353, %v1291
      %1293 = vmatmul.bf16.gmra.mxu0 %v545
      %v1294 = vpop.f32.mrf.mxu0
      %v1295 = vadd.f32 %v353, %v1294
      %v1296 = vpop.f32.mrf.mxu0
      %v1297 = vadd.f32 %v353, %v1296
      %1298 = vmatmul.bf16.gmra.mxu0 %v553
      %v1299 = vpop.f32.mrf.mxu0
      %v1300 = vadd.f32 %v353, %v1299
      %v1301 = vpop.f32.mrf.mxu0
      %v1302 = vadd.f32 %v353, %v1301
      %1303 = vmatmul.bf16.gmra.mxu0 %v561
      %v1304 = vpop.f32.mrf.mxu0
      %v1305 = vadd.f32 %v353, %v1304
      %v1306 = vpop.f32.mrf.mxu0
      %1307 = vdwg.mxu0
      %1308 = vmatpush.bf16.msra.mxu0 %v1039
      %1309 = vmatpush.bf16.msra.mxu0 %v1037
      %1310 = vmatpush.bf16.msra.mxu0 %v1035
      %1311 = vmatpush.bf16.msra.mxu0 %v1033
      %1312 = vmatpush.bf16.msra.mxu0 %v1031
      %1313 = vmatpush.bf16.msra.mxu0 %v1029
      %1314 = vmatpush.bf16.msra.mxu0 %v1027
      %1315 = vmatpush.bf16.msra.mxu0 %v1025
      %1316 = vmatmul.bf16.gmra.mxu0 %v514
      %v1317 = vpop.f32.mrf.mxu0
      %v1318 = vadd.f32 %v1275, %v1317
      %v1319 = vpop.f32.mrf.mxu0
      %v1320 = vadd.f32 %v1277, %v1319
      %1321 = vmatmul.bf16.gmra.mxu0 %v522
      %v1322 = vpop.f32.mrf.mxu0
      %v1323 = vadd.f32 %v1280, %v1322
      %v1324 = vpop.f32.mrf.mxu0
      %v1325 = vadd.f32 %v1282, %v1324
      %1326 = vmatmul.bf16.gmra.mxu0 %v530
      %v1327 = vpop.f32.mrf.mxu0
      %v1328 = vadd.f32 %v1285, %v1327
      %v1329 = vpop.f32.mrf.mxu0
      %v1330 = vadd.f32 %v1287, %v1329
      %1331 = vmatmul.bf16.gmra.mxu0 %v538
      %v1332 = vpop.f32.mrf.mxu0
      %v1333 = vadd.f32 %v1290, %v1332
      %v1334 = vpop.f32.mrf.mxu0
      %v1335 = vadd.f32 %v1292, %v1334
      %1336 = vmatmul.bf16.gmra.mxu0 %v546
      %v1337 = vpop.f32.mrf.mxu0
      %v1338 = vadd.f32 %v1295, %v1337
      %v1339 = vpop.f32.mrf.mxu0
      %v1340 = vadd.f32 %v1297, %v1339
      %1341 = vmatmul.bf16.gmra.mxu0 %v554
      %v1342 = vpop.f32.mrf.mxu0
      %v1343 = vadd.f32 %v1300, %v1342
      %v1344 = vpop.f32.mrf.mxu0
      %v1345 = vadd.f32 %v1302, %v1344
      %1346 = vmatmul.bf16.gmra.mxu0 %v562
      %v1347 = vpop.f32.mrf.mxu0
      %v1348 = vadd.f32 %v1305, %v1347
      %v1349 = vpop.f32.mrf.mxu0
      %1350 = vdwg.mxu0
      %1351 = vmatpush.bf16.msra.mxu0 %v1055
      %1352 = vmatpush.bf16.msra.mxu0 %v1053
      %1353 = vmatpush.bf16.msra.mxu0 %v1051
      %1354 = vmatpush.bf16.msra.mxu0 %v1049
      %1355 = vmatpush.bf16.msra.mxu0 %v1047
      %1356 = vmatpush.bf16.msra.mxu0 %v1045
      %1357 = vmatpush.bf16.msra.mxu0 %v1043
      %1358 = vmatpush.bf16.msra.mxu0 %v1041
      %1359 = vmatmul.bf16.gmra.mxu0 %v515
      %v1360 = vpop.f32.mrf.mxu0
      %v1361 = vadd.f32 %v1318, %v1360
      %v1362 = vpop.f32.mrf.mxu0
      %v1363 = vadd.f32 %v1320, %v1362
      %1364 = vmatmul.bf16.gmra.mxu0 %v523
      %v1365 = vpop.f32.mrf.mxu0
      %v1366 = vadd.f32 %v1323, %v1365
      %v1367 = vpop.f32.mrf.mxu0
      %v1368 = vadd.f32 %v1325, %v1367
      %1369 = vmatmul.bf16.gmra.mxu0 %v531
      %v1370 = vpop.f32.mrf.mxu0
      %v1371 = vadd.f32 %v1328, %v1370
      %v1372 = vpop.f32.mrf.mxu0
      %v1373 = vadd.f32 %v1330, %v1372
      %1374 = vmatmul.bf16.gmra.mxu0 %v539
      %v1375 = vpop.f32.mrf.mxu0
      %v1376 = vadd.f32 %v1333, %v1375
      %v1377 = vpop.f32.mrf.mxu0
      %v1378 = vadd.f32 %v1335, %v1377
      %1379 = vmatmul.bf16.gmra.mxu0 %v547
      %v1380 = vpop.f32.mrf.mxu0
      %v1381 = vadd.f32 %v1338, %v1380
      %v1382 = vpop.f32.mrf.mxu0
      %v1383 = vadd.f32 %v1340, %v1382
      %1384 = vmatmul.bf16.gmra.mxu0 %v555
      %v1385 = vpop.f32.mrf.mxu0
      %v1386 = vadd.f32 %v1343, %v1385
      %v1387 = vpop.f32.mrf.mxu0
      %v1388 = vadd.f32 %v1345, %v1387
      %1389 = vmatmul.bf16.gmra.mxu0 %v563
      %v1390 = vpop.f32.mrf.mxu0
      %v1391 = vadd.f32 %v1348, %v1390
      %v1392 = vpop.f32.mrf.mxu0
      %1393 = vdwg.mxu0
      %1394 = vmatpush.bf16.msra.mxu0 %v1071
      %1395 = vmatpush.bf16.msra.mxu0 %v1069
      %1396 = vmatpush.bf16.msra.mxu0 %v1067
      %1397 = vmatpush.bf16.msra.mxu0 %v1065
      %1398 = vmatpush.bf16.msra.mxu0 %v1063
      %1399 = vmatpush.bf16.msra.mxu0 %v1061
      %1400 = vmatpush.bf16.msra.mxu0 %v1059
      %1401 = vmatpush.bf16.msra.mxu0 %v1057
      %1402 = vmatmul.bf16.gmra.mxu0 %v516
      %v1403 = vpop.f32.mrf.mxu0
      %v1404 = vadd.f32 %v1361, %v1403
      %v1405 = vpop.f32.mrf.mxu0
      %v1406 = vadd.f32 %v1363, %v1405
      %1407 = vmatmul.bf16.gmra.mxu0 %v524
      %v1408 = vpop.f32.mrf.mxu0
      %v1409 = vadd.f32 %v1366, %v1408
      %v1410 = vpop.f32.mrf.mxu0
      %v1411 = vadd.f32 %v1368, %v1410
      %1412 = vmatmul.bf16.gmra.mxu0 %v532
      %v1413 = vpop.f32.mrf.mxu0
      %v1414 = vadd.f32 %v1371, %v1413
      %v1415 = vpop.f32.mrf.mxu0
      %v1416 = vadd.f32 %v1373, %v1415
      %1417 = vmatmul.bf16.gmra.mxu0 %v540
      %v1418 = vpop.f32.mrf.mxu0
      %v1419 = vadd.f32 %v1376, %v1418
      %v1420 = vpop.f32.mrf.mxu0
      %v1421 = vadd.f32 %v1378, %v1420
      %1422 = vmatmul.bf16.gmra.mxu0 %v548
      %v1423 = vpop.f32.mrf.mxu0
      %v1424 = vadd.f32 %v1381, %v1423
      %v1425 = vpop.f32.mrf.mxu0
      %v1426 = vadd.f32 %v1383, %v1425
      %1427 = vmatmul.bf16.gmra.mxu0 %v556
      %v1428 = vpop.f32.mrf.mxu0
      %v1429 = vadd.f32 %v1386, %v1428
      %v1430 = vpop.f32.mrf.mxu0
      %v1431 = vadd.f32 %v1388, %v1430
      %1432 = vmatmul.bf16.gmra.mxu0 %v564
      %v1433 = vpop.f32.mrf.mxu0
      %v1434 = vadd.f32 %v1391, %v1433
      %v1435 = vpop.f32.mrf.mxu0
      %1436 = vdwg.mxu0
      %1437 = vmatpush.bf16.msra.mxu0 %v1087
      %1438 = vmatpush.bf16.msra.mxu0 %v1085
      %1439 = vmatpush.bf16.msra.mxu0 %v1083
      %1440 = vmatpush.bf16.msra.mxu0 %v1081
      %1441 = vmatpush.bf16.msra.mxu0 %v1079
      %1442 = vmatpush.bf16.msra.mxu0 %v1077
      %1443 = vmatpush.bf16.msra.mxu0 %v1075
      %1444 = vmatpush.bf16.msra.mxu0 %v1073
      %1445 = vmatmul.bf16.gmra.mxu0 %v517
      %v1446 = vpop.f32.mrf.mxu0
      %v1447 = vadd.f32 %v1404, %v1446
      %v1448 = vpop.f32.mrf.mxu0
      %v1449 = vadd.f32 %v1406, %v1448
      %1450 = vmatmul.bf16.gmra.mxu0 %v525
      %v1451 = vpop.f32.mrf.mxu0
      %v1452 = vadd.f32 %v1409, %v1451
      %v1453 = vpop.f32.mrf.mxu0
      %v1454 = vadd.f32 %v1411, %v1453
      %1455 = vmatmul.bf16.gmra.mxu0 %v533
      %v1456 = vpop.f32.mrf.mxu0
      %v1457 = vadd.f32 %v1414, %v1456
      %v1458 = vpop.f32.mrf.mxu0
      %v1459 = vadd.f32 %v1416, %v1458
      %1460 = vmatmul.bf16.gmra.mxu0 %v541
      %v1461 = vpop.f32.mrf.mxu0
      %v1462 = vadd.f32 %v1419, %v1461
      %v1463 = vpop.f32.mrf.mxu0
      %v1464 = vadd.f32 %v1421, %v1463
      %1465 = vmatmul.bf16.gmra.mxu0 %v549
      %v1466 = vpop.f32.mrf.mxu0
      %v1467 = vadd.f32 %v1424, %v1466
      %v1468 = vpop.f32.mrf.mxu0
      %v1469 = vadd.f32 %v1426, %v1468
      %1470 = vmatmul.bf16.gmra.mxu0 %v557
      %v1471 = vpop.f32.mrf.mxu0
      %v1472 = vadd.f32 %v1429, %v1471
      %v1473 = vpop.f32.mrf.mxu0
      %v1474 = vadd.f32 %v1431, %v1473
      %1475 = vmatmul.bf16.gmra.mxu0 %v565
      %v1476 = vpop.f32.mrf.mxu0
      %v1477 = vadd.f32 %v1434, %v1476
      %v1478 = vpop.f32.mrf.mxu0
      %1479 = vdwg.mxu0
      %1480 = vmatpush.bf16.msra.mxu0 %v1103
      %1481 = vmatpush.bf16.msra.mxu0 %v1101
      %1482 = vmatpush.bf16.msra.mxu0 %v1099
      %1483 = vmatpush.bf16.msra.mxu0 %v1097
      %1484 = vmatpush.bf16.msra.mxu0 %v1095
      %1485 = vmatpush.bf16.msra.mxu0 %v1093
      %1486 = vmatpush.bf16.msra.mxu0 %v1091
      %1487 = vmatpush.bf16.msra.mxu0 %v1089
      %1488 = vmatmul.bf16.gmra.mxu0 %v518
      %v1489 = vpop.f32.mrf.mxu0
      %v1490 = vadd.f32 %v1447, %v1489
      %v1491 = vpop.f32.mrf.mxu0
      %v1492 = vadd.f32 %v1449, %v1491
      %1493 = vmatmul.bf16.gmra.mxu0 %v526
      %v1494 = vpop.f32.mrf.mxu0
      %v1495 = vadd.f32 %v1452, %v1494
      %v1496 = vpop.f32.mrf.mxu0
      %v1497 = vadd.f32 %v1454, %v1496
      %1498 = vmatmul.bf16.gmra.mxu0 %v534
      %v1499 = vpop.f32.mrf.mxu0
      %v1500 = vadd.f32 %v1457, %v1499
      %v1501 = vpop.f32.mrf.mxu0
      %v1502 = vadd.f32 %v1459, %v1501
      %1503 = vmatmul.bf16.gmra.mxu0 %v542
      %v1504 = vpop.f32.mrf.mxu0
      %v1505 = vadd.f32 %v1462, %v1504
      %v1506 = vpop.f32.mrf.mxu0
      %v1507 = vadd.f32 %v1464, %v1506
      %1508 = vmatmul.bf16.gmra.mxu0 %v550
      %v1509 = vpop.f32.mrf.mxu0
      %v1510 = vadd.f32 %v1467, %v1509
      %v1511 = vpop.f32.mrf.mxu0
      %v1512 = vadd.f32 %v1469, %v1511
      %1513 = vmatmul.bf16.gmra.mxu0 %v558
      %v1514 = vpop.f32.mrf.mxu0
      %v1515 = vadd.f32 %v1472, %v1514
      %v1516 = vpop.f32.mrf.mxu0
      %v1517 = vadd.f32 %v1474, %v1516
      %1518 = vmatmul.bf16.gmra.mxu0 %v566
      %v1519 = vpop.f32.mrf.mxu0
      %v1520 = vadd.f32 %v1477, %v1519
      %v1521 = vpop.f32.mrf.mxu0
      %1522 = vdwg.mxu0
      %1523 = vmatpush.bf16.msra.mxu0 %v1119
      %1524 = vmatpush.bf16.msra.mxu0 %v1117
      %1525 = vmatpush.bf16.msra.mxu0 %v1115
      %1526 = vmatpush.bf16.msra.mxu0 %v1113
      %1527 = vmatpush.bf16.msra.mxu0 %v1111
      %1528 = vmatpush.bf16.msra.mxu0 %v1109
      %1529 = vmatpush.bf16.msra.mxu0 %v1107
      %1530 = vmatpush.bf16.msra.mxu0 %v1105
      %1531 = vmatmul.bf16.gmra.mxu0 %v519
      %v1532 = vpop.f32.mrf.mxu0
      %v1533 = vadd.f32 %v1490, %v1532
      %v1534 = vpop.f32.mrf.mxu0
      %v1535 = vadd.f32 %v1492, %v1534
      %1536 = vmatmul.bf16.gmra.mxu0 %v527
      %v1537 = vpop.f32.mrf.mxu0
      %v1538 = vadd.f32 %v1495, %v1537
      %v1539 = vpop.f32.mrf.mxu0
      %v1540 = vadd.f32 %v1497, %v1539
      %1541 = vmatmul.bf16.gmra.mxu0 %v535
      %v1542 = vpop.f32.mrf.mxu0
      %v1543 = vadd.f32 %v1500, %v1542
      %v1544 = vpop.f32.mrf.mxu0
      %v1545 = vadd.f32 %v1502, %v1544
      %1546 = vmatmul.bf16.gmra.mxu0 %v543
      %v1547 = vpop.f32.mrf.mxu0
      %v1548 = vadd.f32 %v1505, %v1547
      %v1549 = vpop.f32.mrf.mxu0
      %v1550 = vadd.f32 %v1507, %v1549
      %1551 = vmatmul.bf16.gmra.mxu0 %v551
      %v1552 = vpop.f32.mrf.mxu0
      %v1553 = vadd.f32 %v1510, %v1552
      %v1554 = vpop.f32.mrf.mxu0
      %v1555 = vadd.f32 %v1512, %v1554
      %1556 = vmatmul.bf16.gmra.mxu0 %v559
      %v1557 = vpop.f32.mrf.mxu0
      %v1558 = vadd.f32 %v1515, %v1557
      %v1559 = vpop.f32.mrf.mxu0
      %v1560 = vadd.f32 %v1517, %v1559
      %1561 = vmatmul.bf16.gmra.mxu0 %v567
      %v1562 = vpop.f32.mrf.mxu0
      %v1563 = vadd.f32 %v1520, %v1562
      %v1564 = vpop.f32.mrf.mxu0
      %1565 = vdwg.mxu0
      %1566 = vmatpush.bf16.msra.mxu0 %v1135
      %1567 = vmatpush.bf16.msra.mxu0 %v1133
      %1568 = vmatpush.bf16.msra.mxu0 %v1131
      %1569 = vmatpush.bf16.msra.mxu0 %v1129
      %1570 = vmatpush.bf16.msra.mxu0 %v1127
      %1571 = vmatpush.bf16.msra.mxu0 %v1125
      %1572 = vmatpush.bf16.msra.mxu0 %v1123
      %1573 = vmatpush.bf16.msra.mxu0 %v1121
      %1574 = vmatmul.bf16.gmra.mxu0 %v520
      %v1575 = vpop.f32.mrf.mxu0
      %v1576 = vadd.f32 %v1533, %v1575
      %v1577 = vpop.f32.mrf.mxu0
      %v1578 = vadd.f32 %v1535, %v1577
      %1579 = vmatmul.bf16.gmra.mxu0 %v528
      %v1580 = vpop.f32.mrf.mxu0
      %v1581 = vadd.f32 %v1538, %v1580
      %v1582 = vpop.f32.mrf.mxu0
      %v1583 = vadd.f32 %v1540, %v1582
      %1584 = vmatmul.bf16.gmra.mxu0 %v536
      %v1585 = vpop.f32.mrf.mxu0
      %v1586 = vadd.f32 %v1543, %v1585
      %v1587 = vpop.f32.mrf.mxu0
      %v1588 = vadd.f32 %v1545, %v1587
      %1589 = vmatmul.bf16.gmra.mxu0 %v544
      %v1590 = vpop.f32.mrf.mxu0
      %v1591 = vadd.f32 %v1548, %v1590
      %v1592 = vpop.f32.mrf.mxu0
      %v1593 = vadd.f32 %v1550, %v1592
      %1594 = vmatmul.bf16.gmra.mxu0 %v552
      %v1595 = vpop.f32.mrf.mxu0
      %v1596 = vadd.f32 %v1553, %v1595
      %v1597 = vpop.f32.mrf.mxu0
      %v1598 = vadd.f32 %v1555, %v1597
      %1599 = vmatmul.bf16.gmra.mxu0 %v560
      %v1600 = vpop.f32.mrf.mxu0
      %v1601 = vadd.f32 %v1558, %v1600
      %v1602 = vpop.f32.mrf.mxu0
      %v1603 = vadd.f32 %v1560, %v1602
      %1604 = vmatmul.bf16.gmra.mxu0 %v568
      %v1605 = vpop.f32.mrf.mxu0
      %v1606 = vadd.f32 %v1563, %v1605
      %v1607 = vpop.f32.mrf.mxu0
      %1608 = vdwg.mxu0
      %1609 = vmatpush.bf16.msra.mxu0 %v1024
      %1610 = vmatpush.bf16.msra.mxu0 %v1022
      %1611 = vmatpush.bf16.msra.mxu0 %v1020
      %1612 = vmatpush.bf16.msra.mxu0 %v1018
      %1613 = vmatpush.bf16.msra.mxu0 %v1016
      %1614 = vmatpush.bf16.msra.mxu0 %v1014
      %1615 = vmatpush.bf16.msra.mxu0 %v1012
      %1616 = vmatpush.bf16.msra.mxu0 %v1010
      %1617 = vmatmul.bf16.gmra.mxu0 %v513
      %v1618 = vpop.f32.mrf.mxu0
      %v1619 = vadd.f32 %v354, %v1618
      %v1620 = vpop.f32.mrf.mxu0
      %v1621 = vadd.f32 %v354, %v1620
      %1622 = vmatmul.bf16.gmra.mxu0 %v521
      %v1623 = vpop.f32.mrf.mxu0
      %v1624 = vadd.f32 %v354, %v1623
      %v1625 = vpop.f32.mrf.mxu0
      %v1626 = vadd.f32 %v354, %v1625
      %1627 = vmatmul.bf16.gmra.mxu0 %v529
      %v1628 = vpop.f32.mrf.mxu0
      %v1629 = vadd.f32 %v354, %v1628
      %v1630 = vpop.f32.mrf.mxu0
      %v1631 = vadd.f32 %v354, %v1630
      %1632 = vmatmul.bf16.gmra.mxu0 %v537
      %v1633 = vpop.f32.mrf.mxu0
      %v1634 = vadd.f32 %v354, %v1633
      %v1635 = vpop.f32.mrf.mxu0
      %v1636 = vadd.f32 %v354, %v1635
      %1637 = vmatmul.bf16.gmra.mxu0 %v545
      %v1638 = vpop.f32.mrf.mxu0
      %v1639 = vadd.f32 %v354, %v1638
      %v1640 = vpop.f32.mrf.mxu0
      %v1641 = vadd.f32 %v354, %v1640
      %1642 = vmatmul.bf16.gmra.mxu0 %v553
      %v1643 = vpop.f32.mrf.mxu0
      %v1644 = vadd.f32 %v354, %v1643
      %v1645 = vpop.f32.mrf.mxu0
      %v1646 = vadd.f32 %v354, %v1645
      %1647 = vmatmul.bf16.gmra.mxu0 %v561
      %v1648 = vpop.f32.mrf.mxu0
      %v1649 = vadd.f32 %v354, %v1648
      %v1650 = vpop.f32.mrf.mxu0
      %1651 = vdwg.mxu0
      %1652 = vmatpush.bf16.msra.mxu0 %v1040
      %1653 = vmatpush.bf16.msra.mxu0 %v1038
      %1654 = vmatpush.bf16.msra.mxu0 %v1036
      %1655 = vmatpush.bf16.msra.mxu0 %v1034
      %1656 = vmatpush.bf16.msra.mxu0 %v1032
      %1657 = vmatpush.bf16.msra.mxu0 %v1030
      %1658 = vmatpush.bf16.msra.mxu0 %v1028
      %1659 = vmatpush.bf16.msra.mxu0 %v1026
      %1660 = vmatmul.bf16.gmra.mxu0 %v514
      %v1661 = vpop.f32.mrf.mxu0
      %v1662 = vadd.f32 %v1619, %v1661
      %v1663 = vpop.f32.mrf.mxu0
      %v1664 = vadd.f32 %v1621, %v1663
      %1665 = vmatmul.bf16.gmra.mxu0 %v522
      %v1666 = vpop.f32.mrf.mxu0
      %v1667 = vadd.f32 %v1624, %v1666
      %v1668 = vpop.f32.mrf.mxu0
      %v1669 = vadd.f32 %v1626, %v1668
      %1670 = vmatmul.bf16.gmra.mxu0 %v530
      %v1671 = vpop.f32.mrf.mxu0
      %v1672 = vadd.f32 %v1629, %v1671
      %v1673 = vpop.f32.mrf.mxu0
      %v1674 = vadd.f32 %v1631, %v1673
      %1675 = vmatmul.bf16.gmra.mxu0 %v538
      %v1676 = vpop.f32.mrf.mxu0
      %v1677 = vadd.f32 %v1634, %v1676
      %v1678 = vpop.f32.mrf.mxu0
      %v1679 = vadd.f32 %v1636, %v1678
      %1680 = vmatmul.bf16.gmra.mxu0 %v546
      %v1681 = vpop.f32.mrf.mxu0
      %v1682 = vadd.f32 %v1639, %v1681
      %v1683 = vpop.f32.mrf.mxu0
      %v1684 = vadd.f32 %v1641, %v1683
      %1685 = vmatmul.bf16.gmra.mxu0 %v554
      %v1686 = vpop.f32.mrf.mxu0
      %v1687 = vadd.f32 %v1644, %v1686
      %v1688 = vpop.f32.mrf.mxu0
      %v1689 = vadd.f32 %v1646, %v1688
      %1690 = vmatmul.bf16.gmra.mxu0 %v562
      %v1691 = vpop.f32.mrf.mxu0
      %v1692 = vadd.f32 %v1649, %v1691
      %v1693 = vpop.f32.mrf.mxu0
      %1694 = vdwg.mxu0
      %1695 = vmatpush.bf16.msra.mxu0 %v1056
      %1696 = vmatpush.bf16.msra.mxu0 %v1054
      %1697 = vmatpush.bf16.msra.mxu0 %v1052
      %1698 = vmatpush.bf16.msra.mxu0 %v1050
      %1699 = vmatpush.bf16.msra.mxu0 %v1048
      %1700 = vmatpush.bf16.msra.mxu0 %v1046
      %1701 = vmatpush.bf16.msra.mxu0 %v1044
      %1702 = vmatpush.bf16.msra.mxu0 %v1042
      %1703 = vmatmul.bf16.gmra.mxu0 %v515
      %v1704 = vpop.f32.mrf.mxu0
      %v1705 = vadd.f32 %v1662, %v1704
      %v1706 = vpop.f32.mrf.mxu0
      %v1707 = vadd.f32 %v1664, %v1706
      %1708 = vmatmul.bf16.gmra.mxu0 %v523
      %v1709 = vpop.f32.mrf.mxu0
      %v1710 = vadd.f32 %v1667, %v1709
      %v1711 = vpop.f32.mrf.mxu0
      %v1712 = vadd.f32 %v1669, %v1711
      %1713 = vmatmul.bf16.gmra.mxu0 %v531
      %v1714 = vpop.f32.mrf.mxu0
      %v1715 = vadd.f32 %v1672, %v1714
      %v1716 = vpop.f32.mrf.mxu0
      %v1717 = vadd.f32 %v1674, %v1716
      %1718 = vmatmul.bf16.gmra.mxu0 %v539
      %v1719 = vpop.f32.mrf.mxu0
      %v1720 = vadd.f32 %v1677, %v1719
      %v1721 = vpop.f32.mrf.mxu0
      %v1722 = vadd.f32 %v1679, %v1721
      %1723 = vmatmul.bf16.gmra.mxu0 %v547
      %v1724 = vpop.f32.mrf.mxu0
      %v1725 = vadd.f32 %v1682, %v1724
      %v1726 = vpop.f32.mrf.mxu0
      %v1727 = vadd.f32 %v1684, %v1726
      %1728 = vmatmul.bf16.gmra.mxu0 %v555
      %v1729 = vpop.f32.mrf.mxu0
      %v1730 = vadd.f32 %v1687, %v1729
      %v1731 = vpop.f32.mrf.mxu0
      %v1732 = vadd.f32 %v1689, %v1731
      %1733 = vmatmul.bf16.gmra.mxu0 %v563
      %v1734 = vpop.f32.mrf.mxu0
      %v1735 = vadd.f32 %v1692, %v1734
      %v1736 = vpop.f32.mrf.mxu0
      %1737 = vdwg.mxu0
      %1738 = vmatpush.bf16.msra.mxu0 %v1072
      %1739 = vmatpush.bf16.msra.mxu0 %v1070
      %1740 = vmatpush.bf16.msra.mxu0 %v1068
      %1741 = vmatpush.bf16.msra.mxu0 %v1066
      %1742 = vmatpush.bf16.msra.mxu0 %v1064
      %1743 = vmatpush.bf16.msra.mxu0 %v1062
      %1744 = vmatpush.bf16.msra.mxu0 %v1060
      %1745 = vmatpush.bf16.msra.mxu0 %v1058
      %1746 = vmatmul.bf16.gmra.mxu0 %v516
      %v1747 = vpop.f32.mrf.mxu0
      %v1748 = vadd.f32 %v1705, %v1747
      %v1749 = vpop.f32.mrf.mxu0
      %v1750 = vadd.f32 %v1707, %v1749
      %1751 = vmatmul.bf16.gmra.mxu0 %v524
      %v1752 = vpop.f32.mrf.mxu0
      %v1753 = vadd.f32 %v1710, %v1752
      %v1754 = vpop.f32.mrf.mxu0
      %v1755 = vadd.f32 %v1712, %v1754
      %1756 = vmatmul.bf16.gmra.mxu0 %v532
      %v1757 = vpop.f32.mrf.mxu0
      %v1758 = vadd.f32 %v1715, %v1757
      %v1759 = vpop.f32.mrf.mxu0
      %v1760 = vadd.f32 %v1717, %v1759
      %1761 = vmatmul.bf16.gmra.mxu0 %v540
      %v1762 = vpop.f32.mrf.mxu0
      %v1763 = vadd.f32 %v1720, %v1762
      %v1764 = vpop.f32.mrf.mxu0
      %v1765 = vadd.f32 %v1722, %v1764
      %1766 = vmatmul.bf16.gmra.mxu0 %v548
      %v1767 = vpop.f32.mrf.mxu0
      %v1768 = vadd.f32 %v1725, %v1767
      %v1769 = vpop.f32.mrf.mxu0
      %v1770 = vadd.f32 %v1727, %v1769
      %1771 = vmatmul.bf16.gmra.mxu0 %v556
      %v1772 = vpop.f32.mrf.mxu0
      %v1773 = vadd.f32 %v1730, %v1772
      %v1774 = vpop.f32.mrf.mxu0
      %v1775 = vadd.f32 %v1732, %v1774
      %1776 = vmatmul.bf16.gmra.mxu0 %v564
      %v1777 = vpop.f32.mrf.mxu0
      %v1778 = vadd.f32 %v1735, %v1777
      %v1779 = vpop.f32.mrf.mxu0
      %1780 = vdwg.mxu0
      %1781 = vmatpush.bf16.msra.mxu0 %v1088
      %1782 = vmatpush.bf16.msra.mxu0 %v1086
      %1783 = vmatpush.bf16.msra.mxu0 %v1084
      %1784 = vmatpush.bf16.msra.mxu0 %v1082
      %1785 = vmatpush.bf16.msra.mxu0 %v1080
      %1786 = vmatpush.bf16.msra.mxu0 %v1078
      %1787 = vmatpush.bf16.msra.mxu0 %v1076
      %1788 = vmatpush.bf16.msra.mxu0 %v1074
      %1789 = vmatmul.bf16.gmra.mxu0 %v517
      %v1790 = vpop.f32.mrf.mxu0
      %v1791 = vadd.f32 %v1748, %v1790
      %v1792 = vpop.f32.mrf.mxu0
      %v1793 = vadd.f32 %v1750, %v1792
      %1794 = vmatmul.bf16.gmra.mxu0 %v525
      %v1795 = vpop.f32.mrf.mxu0
      %v1796 = vadd.f32 %v1753, %v1795
      %v1797 = vpop.f32.mrf.mxu0
      %v1798 = vadd.f32 %v1755, %v1797
      %1799 = vmatmul.bf16.gmra.mxu0 %v533
      %v1800 = vpop.f32.mrf.mxu0
      %v1801 = vadd.f32 %v1758, %v1800
      %v1802 = vpop.f32.mrf.mxu0
      %v1803 = vadd.f32 %v1760, %v1802
      %1804 = vmatmul.bf16.gmra.mxu0 %v541
      %v1805 = vpop.f32.mrf.mxu0
      %v1806 = vadd.f32 %v1763, %v1805
      %v1807 = vpop.f32.mrf.mxu0
      %v1808 = vadd.f32 %v1765, %v1807
      %1809 = vmatmul.bf16.gmra.mxu0 %v549
      %v1810 = vpop.f32.mrf.mxu0
      %v1811 = vadd.f32 %v1768, %v1810
      %v1812 = vpop.f32.mrf.mxu0
      %v1813 = vadd.f32 %v1770, %v1812
      %1814 = vmatmul.bf16.gmra.mxu0 %v557
      %v1815 = vpop.f32.mrf.mxu0
      %v1816 = vadd.f32 %v1773, %v1815
      %v1817 = vpop.f32.mrf.mxu0
      %v1818 = vadd.f32 %v1775, %v1817
      %1819 = vmatmul.bf16.gmra.mxu0 %v565
      %v1820 = vpop.f32.mrf.mxu0
      %v1821 = vadd.f32 %v1778, %v1820
      %v1822 = vpop.f32.mrf.mxu0
      %1823 = vdwg.mxu0
      %1824 = vmatpush.bf16.msra.mxu0 %v1104
      %1825 = vmatpush.bf16.msra.mxu0 %v1102
      %1826 = vmatpush.bf16.msra.mxu0 %v1100
      %1827 = vmatpush.bf16.msra.mxu0 %v1098
      %1828 = vmatpush.bf16.msra.mxu0 %v1096
      %1829 = vmatpush.bf16.msra.mxu0 %v1094
      %1830 = vmatpush.bf16.msra.mxu0 %v1092
      %1831 = vmatpush.bf16.msra.mxu0 %v1090
      %1832 = vmatmul.bf16.gmra.mxu0 %v518
      %v1833 = vpop.f32.mrf.mxu0
      %v1834 = vadd.f32 %v1791, %v1833
      %v1835 = vpop.f32.mrf.mxu0
      %v1836 = vadd.f32 %v1793, %v1835
      %1837 = vmatmul.bf16.gmra.mxu0 %v526
      %v1838 = vpop.f32.mrf.mxu0
      %v1839 = vadd.f32 %v1796, %v1838
      %v1840 = vpop.f32.mrf.mxu0
      %v1841 = vadd.f32 %v1798, %v1840
      %1842 = vmatmul.bf16.gmra.mxu0 %v534
      %v1843 = vpop.f32.mrf.mxu0
      %v1844 = vadd.f32 %v1801, %v1843
      %v1845 = vpop.f32.mrf.mxu0
      %v1846 = vadd.f32 %v1803, %v1845
      %1847 = vmatmul.bf16.gmra.mxu0 %v542
      %v1848 = vpop.f32.mrf.mxu0
      %v1849 = vadd.f32 %v1806, %v1848
      %v1850 = vpop.f32.mrf.mxu0
      %v1851 = vadd.f32 %v1808, %v1850
      %1852 = vmatmul.bf16.gmra.mxu0 %v550
      %v1853 = vpop.f32.mrf.mxu0
      %v1854 = vadd.f32 %v1811, %v1853
      %v1855 = vpop.f32.mrf.mxu0
      %v1856 = vadd.f32 %v1813, %v1855
      %1857 = vmatmul.bf16.gmra.mxu0 %v558
      %v1858 = vpop.f32.mrf.mxu0
      %v1859 = vadd.f32 %v1816, %v1858
      %v1860 = vpop.f32.mrf.mxu0
      %v1861 = vadd.f32 %v1818, %v1860
      %1862 = vmatmul.bf16.gmra.mxu0 %v566
      %v1863 = vpop.f32.mrf.mxu0
      %v1864 = vadd.f32 %v1821, %v1863
      %v1865 = vpop.f32.mrf.mxu0
      %1866 = vdwg.mxu0
      %1867 = vmatpush.bf16.msra.mxu0 %v1120
      %1868 = vmatpush.bf16.msra.mxu0 %v1118
      %1869 = vmatpush.bf16.msra.mxu0 %v1116
      %1870 = vmatpush.bf16.msra.mxu0 %v1114
      %1871 = vmatpush.bf16.msra.mxu0 %v1112
      %1872 = vmatpush.bf16.msra.mxu0 %v1110
      %1873 = vmatpush.bf16.msra.mxu0 %v1108
      %1874 = vmatpush.bf16.msra.mxu0 %v1106
      %1875 = vmatmul.bf16.gmra.mxu0 %v519
      %v1876 = vpop.f32.mrf.mxu0
      %v1877 = vadd.f32 %v1834, %v1876
      %v1878 = vpop.f32.mrf.mxu0
      %v1879 = vadd.f32 %v1836, %v1878
      %1880 = vmatmul.bf16.gmra.mxu0 %v527
      %v1881 = vpop.f32.mrf.mxu0
      %v1882 = vadd.f32 %v1839, %v1881
      %v1883 = vpop.f32.mrf.mxu0
      %v1884 = vadd.f32 %v1841, %v1883
      %1885 = vmatmul.bf16.gmra.mxu0 %v535
      %v1886 = vpop.f32.mrf.mxu0
      %v1887 = vadd.f32 %v1844, %v1886
      %v1888 = vpop.f32.mrf.mxu0
      %v1889 = vadd.f32 %v1846, %v1888
      %1890 = vmatmul.bf16.gmra.mxu0 %v543
      %v1891 = vpop.f32.mrf.mxu0
      %v1892 = vadd.f32 %v1849, %v1891
      %v1893 = vpop.f32.mrf.mxu0
      %v1894 = vadd.f32 %v1851, %v1893
      %1895 = vmatmul.bf16.gmra.mxu0 %v551
      %v1896 = vpop.f32.mrf.mxu0
      %v1897 = vadd.f32 %v1854, %v1896
      %v1898 = vpop.f32.mrf.mxu0
      %v1899 = vadd.f32 %v1856, %v1898
      %1900 = vmatmul.bf16.gmra.mxu0 %v559
      %v1901 = vpop.f32.mrf.mxu0
      %v1902 = vadd.f32 %v1859, %v1901
      %v1903 = vpop.f32.mrf.mxu0
      %v1904 = vadd.f32 %v1861, %v1903
      %1905 = vmatmul.bf16.gmra.mxu0 %v567
      %v1906 = vpop.f32.mrf.mxu0
      %v1907 = vadd.f32 %v1864, %v1906
      %v1908 = vpop.f32.mrf.mxu0
      %1909 = vdwg.mxu0
      %1910 = vmatpush.bf16.msra.mxu0 %v1136
      %1911 = vmatpush.bf16.msra.mxu0 %v1134
      %1912 = vmatpush.bf16.msra.mxu0 %v1132
      %1913 = vmatpush.bf16.msra.mxu0 %v1130
      %1914 = vmatpush.bf16.msra.mxu0 %v1128
      %1915 = vmatpush.bf16.msra.mxu0 %v1126
      %1916 = vmatpush.bf16.msra.mxu0 %v1124
      %1917 = vmatpush.bf16.msra.mxu0 %v1122
      %1918 = vmatmul.bf16.gmra.mxu0 %v520
      %v1919 = vpop.f32.mrf.mxu0
      %v1920 = vadd.f32 %v1877, %v1919
      %v1921 = vpop.f32.mrf.mxu0
      %v1922 = vadd.f32 %v1879, %v1921
      %1923 = vmatmul.bf16.gmra.mxu0 %v528
      %v1924 = vpop.f32.mrf.mxu0
      %v1925 = vadd.f32 %v1882, %v1924
      %v1926 = vpop.f32.mrf.mxu0
      %v1927 = vadd.f32 %v1884, %v1926
      %1928 = vmatmul.bf16.gmra.mxu0 %v536
      %v1929 = vpop.f32.mrf.mxu0
      %v1930 = vadd.f32 %v1887, %v1929
      %v1931 = vpop.f32.mrf.mxu0
      %v1932 = vadd.f32 %v1889, %v1931
      %1933 = vmatmul.bf16.gmra.mxu0 %v544
      %v1934 = vpop.f32.mrf.mxu0
      %v1935 = vadd.f32 %v1892, %v1934
      %v1936 = vpop.f32.mrf.mxu0
      %v1937 = vadd.f32 %v1894, %v1936
      %1938 = vmatmul.bf16.gmra.mxu0 %v552
      %v1939 = vpop.f32.mrf.mxu0
      %v1940 = vadd.f32 %v1897, %v1939
      %v1941 = vpop.f32.mrf.mxu0
      %v1942 = vadd.f32 %v1899, %v1941
      %1943 = vmatmul.bf16.gmra.mxu0 %v560
      %v1944 = vpop.f32.mrf.mxu0
      %v1945 = vadd.f32 %v1902, %v1944
      %v1946 = vpop.f32.mrf.mxu0
      %v1947 = vadd.f32 %v1904, %v1946
      %1948 = vmatmul.bf16.gmra.mxu0 %v568
      %v1949 = vpop.f32.mrf.mxu0
      %v1950 = vadd.f32 %v1907, %v1949
      %v1951 = vpop.f32.mrf.mxu0
      %1952 = vdwg.mxu0
      %v1953 = vmax.f32 %v1576, 0.0
      %v1954 = vmax.f32 %v1920, 0.0
      %v1955 = vmax.f32 %v1578, 0.0
      %v1956 = vmax.f32 %v1922, 0.0
      %v1957 = vmax.f32 %v1581, 0.0
      %v1958 = vmax.f32 %v1925, 0.0
      %v1959 = vmax.f32 %v1583, 0.0
      %v1960 = vmax.f32 %v1927, 0.0
      %v1961 = vmax.f32 %v1586, 0.0
      %v1962 = vmax.f32 %v1930, 0.0
      %v1963 = vmax.f32 %v1588, 0.0
      %v1964 = vmax.f32 %v1932, 0.0
      %v1965 = vmax.f32 %v1591, 0.0
      %v1966 = vmax.f32 %v1935, 0.0
      %v1967 = vmax.f32 %v1593, 0.0
      %v1968 = vmax.f32 %v1937, 0.0
      %v1969 = vmax.f32 %v1596, 0.0
      %v1970 = vmax.f32 %v1940, 0.0
      %v1971 = vmax.f32 %v1598, 0.0
      %v1972 = vmax.f32 %v1942, 0.0
      %v1973 = vmax.f32 %v1601, 0.0
      %v1974 = vmax.f32 %v1945, 0.0
      %v1975 = vmax.f32 %v1603, 0.0
      %v1976 = vmax.f32 %v1947, 0.0
      %v1977 = vmax.f32 %v1606, 0.0
      %v1978 = vmax.f32 %v1950, 0.0
      %v1979 = vpack.c.bf16 %v1954, %v1953
      %v1980 = vpack.c.bf16 %v1956, %v1955
      %v1981 = vpack.c.bf16 %v1958, %v1957
      %v1982 = vpack.c.bf16 %v1960, %v1959
      %v1983 = vpack.c.bf16 %v1962, %v1961
      %v1984 = vpack.c.bf16 %v1964, %v1963
      %v1985 = vpack.c.bf16 %v1966, %v1965
      %v1986 = vpack.c.bf16 %v1968, %v1967
      %v1987 = vpack.c.bf16 %v1970, %v1969
      %v1988 = vpack.c.bf16 %v1972, %v1971
      %v1989 = vpack.c.bf16 %v1974, %v1973
      %v1990 = vpack.c.bf16 %v1976, %v1975
      %v1991 = vpack.c.bf16 %v1978, %v1977
      %1992 = vst [vmem:[%s170] sm:$0xff] %v1979
      %1993 = vst [vmem:[%s170 + $0x8] sm:$0xff] %v1980
      %1994 = vst [vmem:[%s170 + $0x10] sm:$0xff] %v1981
      %1995 = vst [vmem:[%s170 + $0x18] sm:$0xff] %v1982
      %1996 = vst [vmem:[%s170 + $0x20] sm:$0xff] %v1983
      %1997 = vst [vmem:[%s170 + $0x28] sm:$0xff] %v1984
      %1998 = vst [vmem:[%s170 + $0x30] sm:$0xff] %v1985
      %1999 = vst [vmem:[%s170 + $0x38] sm:$0xff] %v1986
      %2000 = vst [vmem:[%s170 + $0x40] sm:$0xff] %v1987
      %2001 = vst [vmem:[%s170 + $0x48] sm:$0xff] %v1988
      %2002 = vst [vmem:[%s170 + $0x50] sm:$0xff] %v1989
      %2003 = vst [vmem:[%s170 + $0x58] sm:$0xff] %v1990
      %2004 = vst [vmem:[%s170 + $0x60] sm:$0x33] %v1991
      %p2005 = scmp.lt.s32.totalorder %s14, 1
      %s2006 = scalar_select %p2005, %s14, 1
      %s2007 = smul.addr %s2006, 26
      %s2008 = smul.addr %s2007, 4
      %s2009 = scalar_lea.vmem %s3, %s2008
      // Predicated region
      $region33: #{auxiliary_convolutions_forward.3} parent=31 // pred_check
        %p2010 = pneg %p100
      $region34: #{auxiliary_convolutions_forward.3} parent=31 // pred_check_branch
        %2012 = sbr.rel (%p2010) target = $region36
      $region35: #{auxiliary_convolutions_forward.3} parent=31 // pred_region
        _
      $region36: #{auxiliary_convolutions_forward.3} parent=31 // pred_fallthru
        _
    $region32: #{auxiliary_convolutions_forward.3} parent=5 // pred_fallthru
      _
    %p2013 = scmp.le.s32.totalorder 2, %s9
    // Predicated region
    $region37: #{auxiliary_convolutions_forward.3} parent=5 // pred_check
      %p2014 = pneg %p2013
    $region38: #{auxiliary_convolutions_forward.3} parent=5 // pred_check_branch
      %2016 = sbr.rel (%p2014) target = $region40
    $region39: #{auxiliary_convolutions_forward.3} parent=5 // pred_region
      %s2017 = ssub.s32 %s9, 2
      // Predicated region
      $region41: #{auxiliary_convolutions_forward.3} parent=39 // pred_check
        %p2018 = pneg %p106
      $region42: #{auxiliary_convolutions_forward.3} parent=39 // pred_check_branch
        %2020 = sbr.rel (%p2018) target = $region44
      $region43: #{auxiliary_convolutions_forward.3} parent=39 // pred_region
        %p2021 = scmp.lt.s32.totalorder %s15, 1
        %s2022 = scalar_select %p2021, %s15, 1
        %s2023 = smul.addr %s2022, 26
        %s2024 = smul.addr %s2023, 4
        %s2025 = scalar_lea.vmem %s3, %s2024
      $region44: #{auxiliary_convolutions_forward.3} parent=39 // pred_fallthru
        _
    $region40: #{auxiliary_convolutions_forward.3} parent=5 // pred_fallthru
      _
  $region6: #{auxiliary_convolutions_forward.3} parent=0 // loop_footer
    %s13 = sadd.s32 1, %s9
  $region7: #{auxiliary_convolutions_forward.3} parent=0 // loop_footer_branch
    %8 = sbr.rel target = $region3
  $region8: #{auxiliary_convolutions_forward.3} parent=0 // loop_exit
    _

// kernel: auxiliary_convolutions_forward.5
$region0: #{auxiliary_convolutions_forward.5}
  #allocation0 [shape = 'u32[]', space=smem, size = 0x4, offset = 0x4, fixed_abs, tag = 'smem constant byte address 0x4 - core index']
  #allocation1 [shape = 'u32[72,128]{1,0:T(1,128)}', space=vmem, size = 0x9000, scoped, tag = 'internal scratch']
  %s0 = inlined_call_operand.vmem [shape: bf16[2,9,9,128], index: 0, kind: input, shape index: {}]
  %s1 = inlined_call_operand.vmem [shape: bf16[9,128,256], index: 1, kind: input, shape index: {}]
  %s2 = inlined_call_operand.vmem [shape: f32[1,256], index: 2, kind: input, shape index: {}]
  %s3 = inlined_call_operand.vmem [shape: f32[2,9,256], index: 3, kind: output, shape index: {}]
  %s4 = sld [smem:[#allocation0]]
  $region45: #{auxiliary_convolutions_forward.5} parent=0
    _
  %s6 = ssub.s32 1, %s4
  %s7 = scalar_select 0, %s6, %s4
  loop: start=0, step=1, limit=4
  $region2: #{auxiliary_convolutions_forward.5} parent=0 // loop_pre_header
    _
  $region3: #{auxiliary_convolutions_forward.5} parent=0 // loop_header
    %s9 = sphi 0, %s13
    %p10 = scmp.ge.s32.totalorder %s9, 4
    %s19 = sphi 0, %s21
    %s22 = sphi 0, %s19
    %s23 = sphi 0, %s22
    %s39 = sphi 0, %s23
    %s43 = sphi 0, %s43
    %s45 = sphi 0, %s43
    %s46 = sphi 0, %s45
    %s60 = sphi 0, %s46
    %s64 = sphi 0, %s64
    %s66 = sphi 0, %s64
    %s67 = sphi 0, %s66
    %s81 = sphi 0, %s67
    %s87 = sphi 0, %s89
    %s90 = sphi 0, %s87
    %s91 = sphi 0, %s90
    %s107 = sphi 0, %s91
  $region4: #{auxiliary_convolutions_forward.5} parent=0 // loop_header_branch
    %12 = sbr.rel (%p10) target = $region8
  $region5: #{auxiliary_convolutions_forward.5} parent=0 // loop_body
    %s14 = ssub.s32 %s9, 1
    %s15 = ssub.s32 %s9, 2
    %s16 = sadd.s32 %s9, 1
    %s17 = ssub.s32 %s9, %s16
    %p18 = scmp.eq.s32.totalorder %s17, 0
    %s20 = sadd.s32 %s19, 1
    %s21 = scalar_select %p18, %s19, %s20
    %p24 = pneg %p18
    %p25 = scmp.eq.s32.totalorder %s9, 1
    %p26 = por %p24, %p25
    %p27 = scmp.ne.s32.totalorder %s19, %s22
    %p28 = scmp.eq.s32.totalorder %s9, 0
    %p29 = por %p27, %p28
    %p30 = scmp.ne.s32.totalorder %s19, %s22
    %p31 = scmp.eq.s32.totalorder %s14, 1
    %p32 = por %p30, %p31
    %p33 = scmp.ne.s32.totalorder %s22, %s23
    %p34 = scmp.eq.s32.totalorder %s14, 0
    %p35 = por %p33, %p34
    %p36 = scmp.ne.s32.totalorder %s22, %s23
    %p37 = scmp.eq.s32.totalorder %s15, 1
    %p38 = por %p36, %p37
    %p40 = scmp.ne.s32.totalorder %s23, %s39
    %p41 = scmp.eq.s32.totalorder %s15, 0
    %p42 = por %p40, %p41
    %s44 = sadd.s32 %s43, 1
    %p47 = scmp.eq.s32.totalorder %s9, 1
    %p48 = scmp.ne.s32.totalorder %s43, %s45
    %p49 = scmp.eq.s32.totalorder %s9, 0
    %p50 = por %p48, %p49
    %p51 = scmp.ne.s32.totalorder %s43, %s45
    %p52 = scmp.eq.s32.totalorder %s14, 1
    %p53 = por %p51, %p52
    %p54 = scmp.ne.s32.totalorder %s45, %s46
    %p55 = scmp.eq.s32.totalorder %s14, 0
    %p56 = por %p54, %p55
    %p57 = scmp.ne.s32.totalorder %s45, %s46
    %p58 = scmp.eq.s32.totalorder %s15, 1
    %p59 = por %p57, %p58
    %p61 = scmp.ne.s32.totalorder %s46, %s60
    %p62 = scmp.eq.s32.totalorder %s15, 0
    %p63 = por %p61, %p62
    %s65 = sadd.s32 %s64, 1
    %p68 = scmp.eq.s32.totalorder %s9, 1
    %p69 = scmp.ne.s32.totalorder %s64, %s66
    %p70 = scmp.eq.s32.totalorder %s9, 0
    %p71 = por %p69, %p70
    %p72 = scmp.ne.s32.totalorder %s64, %s66
    %p73 = scmp.eq.s32.totalorder %s14, 1
    %p74 = por %p72, %p73
    %p75 = scmp.ne.s32.totalorder %s66, %s67
    %p76 = scmp.eq.s32.totalorder %s14, 0
    %p77 = por %p75, %p76
    %p78 = scmp.ne.s32.totalorder %s66, %s67
    %p79 = scmp.eq.s32.totalorder %s15, 1
    %p80 = por %p78, %p79
    %p82 = scmp.ne.s32.totalorder %s67, %s81
    %p83 = scmp.eq.s32.totalorder %s15, 0
    %p84 = por %p82, %p83
    %s85 = ssub.s32 %s9, %s16
    %p86 = scmp.eq.s32.totalorder %s85, 0
    %s88 = sadd.s32 %s87, 1
    %s89 = scalar_select %p86, %s87, %s88
    %p92 = pneg %p86
    %p93 = scmp.eq.s32.totalorder %s9, 1
    %p94 = por %p92, %p93
    %p95 = scmp.ne.s32.totalorder %s87, %s90
    %p96 = scmp.eq.s32.totalorder %s9, 0
    %p97 = por %p95, %p96
    %p98 = scmp.ne.s32.totalorder %s87, %s90
    %p99 = scmp.eq.s32.totalorder %s14, 1
    %p100 = por %p98, %p99
    %p101 = scmp.ne.s32.totalorder %s90, %s91
    %p102 = scmp.eq.s32.totalorder %s14, 0
    %p103 = por %p101, %p102
    %p104 = scmp.ne.s32.totalorder %s90, %s91
    %p105 = scmp.eq.s32.totalorder %s15, 1
    %p106 = por %p104, %p105
    %p108 = scmp.ne.s32.totalorder %s91, %s107
    %p109 = scmp.eq.s32.totalorder %s15, 0
    %p110 = por %p108, %p109
    %p111 = scmp.le.s32.totalorder 1, %s9
    %p112 = scmp.lt.s32.totalorder %s9, 3
    %p113 = pnand %p111, %p112
    %p114 = pneg %p113
    // Predicated region
    $region9: #{auxiliary_convolutions_forward.5} parent=5 // pred_check
      _
    $region10: #{auxiliary_convolutions_forward.5} parent=5 // pred_check_branch
      %116 = sbr.rel (%p113) target = $region12
    $region11: #{auxiliary_convolutions_forward.5} parent=5 // pred_region
      %s117 = ssub.s32 %s9, 1
      // Predicated region
      $region13: #{auxiliary_convolutions_forward.5} parent=11 // pred_check
        %p118 = pneg %p56
      $region14: #{auxiliary_convolutions_forward.5} parent=11 // pred_check_branch
        %120 = sbr.rel (%p118) target = $region16
      $region15: #{auxiliary_convolutions_forward.5} parent=11 // pred_region
        _
      $region16: #{auxiliary_convolutions_forward.5} parent=11 // pred_fallthru
        _
      // Predicated region
      $region17: #{auxiliary_convolutions_forward.5} parent=11 // pred_check
        %p121 = pneg %p77
      $region18: #{auxiliary_convolutions_forward.5} parent=11 // pred_check_branch
        %123 = sbr.rel (%p121) target = $region20
      $region19: #{auxiliary_convolutions_forward.5} parent=11 // pred_region
        _
      $region20: #{auxiliary_convolutions_forward.5} parent=11 // pred_fallthru
        _
    $region12: #{auxiliary_convolutions_forward.5} parent=5 // pred_fallthru
      _
    %p124 = scmp.lt.s32.totalorder %s9, 2
    // Predicated region
    $region21: #{auxiliary_convolutions_forward.5} parent=5 // pred_check
      %p125 = pneg %p124
    $region22: #{auxiliary_convolutions_forward.5} parent=5 // pred_check_branch
      %127 = sbr.rel (%p125) target = $region24
    $region23: #{auxiliary_convolutions_forward.5} parent=5 // pred_region
      // Predicated region
      $region25: #{auxiliary_convolutions_forward.5} parent=23 // pred_check
        %p128 = pneg %p29
      $region26: #{auxiliary_convolutions_forward.5} parent=23 // pred_check_branch
        %130 = sbr.rel (%p128) target = $region28
      $region27: #{auxiliary_convolutions_forward.5} parent=23 // pred_region
        %p131 = scmp.lt.s32.totalorder %s9, 1
        %s132 = scalar_select %p131, %s9, 1
        %s133 = smul.addr %s132, 18
        %s134 = smul.addr %s133, 4
        %s135 = scalar_lea.vmem %s0, %s134
      $region28: #{auxiliary_convolutions_forward.5} parent=23 // pred_fallthru
        _
    $region24: #{auxiliary_convolutions_forward.5} parent=5 // pred_fallthru
      _
    %p136 = scmp.le.s32.totalorder 1, %s9
    %p137 = scmp.lt.s32.totalorder %s9, 3
    %p138 = pnand %p136, %p137
    %p139 = pneg %p138
    // Predicated region
    $region29: #{auxiliary_convolutions_forward.5} parent=5 // pred_check
      _
    $region30: #{auxiliary_convolutions_forward.5} parent=5 // pred_check_branch
      %141 = sbr.rel (%p138) target = $region32
    $region31: #{auxiliary_convolutions_forward.5} parent=5 // pred_region
      %s142 = ssub.s32 %s9, 1
      %p143 = scmp.lt.s32.totalorder %s14, 1
      %s144 = scalar_select %p143, %s14, 1
      %s145 = smul.addr %s144, 18
      %s146 = smul.addr %s145, 4
      %s147 = scalar_lea.vmem %s0, %s146
      %p148 = pneg %p35
      %p149 = pneg %p32
      %p150 = pneg %p56
      %p151 = pneg %p53
      %p152 = pneg %p77
      %p153 = pneg %p74
      %p154 = pneg %p103
      %p155 = pneg %p100
      %p156 = scmp.lt.s32.totalorder %s14, 1
      %s157 = scalar_select %p156, %s14, 1
      %s158 = smul.addr %s157, 4
      %s159 = smul.addr %s158, 8
      %s160 = scalar_lea.vmem %s3, %s159
      %p161 = scmp.lt.s32.totalorder %s14, 1
      %s162 = scalar_select %p161, %s14, 1
      %s163 = smul.addr %s162, 18
      %s164 = smul.addr %s163, 4
      %s165 = scalar_lea.vmem %s0, %s164
      %p166 = scmp.lt.s32.totalorder %s14, 1
      %s167 = scalar_select %p166, %s14, 1
      %s168 = smul.addr %s167, 4
      %s169 = smul.addr %s168, 8
      %s170 = scalar_lea.vmem %s3, %s169
      %v171 = vld [vmem:[%s165] sm:$0xf]
      %v172 = vld [vmem:[%s165 + $0x4] sm:$0x1]
      %v173 = vld [vmem:[%s1] sm:$0xff]
      %v174 = vld [vmem:[%s1 + $0x8] sm:$0xff]
      %v175 = vld [vmem:[%s1 + $0x10] sm:$0xff]
      %v176 = vld [vmem:[%s1 + $0x18] sm:$0xff]
      %v177 = vld [vmem:[%s1 + $0x20] sm:$0xff]
      %v178 = vld [vmem:[%s1 + $0x28] sm:$0xff]
      %v179 = vld [vmem:[%s1 + $0x30] sm:$0xff]
      %v180 = vld [vmem:[%s1 + $0x38] sm:$0xff]
      %v181 = vld [vmem:[%s1 + $0x40] sm:$0xff]
      %v182 = vld [vmem:[%s1 + $0x48] sm:$0xff]
      %v183 = vld [vmem:[%s1 + $0x50] sm:$0xff]
      %v184 = vld [vmem:[%s1 + $0x58] sm:$0xff]
      %v185 = vld [vmem:[%s1 + $0x60] sm:$0xff]
      %v186 = vld [vmem:[%s1 + $0x68] sm:$0xff]
      %v187 = vld [vmem:[%s1 + $0x70] sm:$0xff]
      %v188 = vld [vmem:[%s1 + $0x78] sm:$0xff]
      %s189 = scalar_lea.vmem %s165, 8
      %v190 = vld [vmem:[%s189] sm:$0xf]
      %v191 = vld [vmem:[%s189 + $0x4] sm:$0x1]
      %s192 = scalar_lea.vmem %s1, 128
      %v193 = vld [vmem:[%s192] sm:$0xff]
      %v194 = vld [vmem:[%s192 + $0x8] sm:$0xff]
      %v195 = vld [vmem:[%s192 + $0x10] sm:$0xff]
      %v196 = vld [vmem:[%s192 + $0x18] sm:$0xff]
      %v197 = vld [vmem:[%s192 + $0x20] sm:$0xff]
      %v198 = vld [vmem:[%s192 + $0x28] sm:$0xff]
      %v199 = vld [vmem:[%s192 + $0x30] sm:$0xff]
      %v200 = vld [vmem:[%s192 + $0x38] sm:$0xff]
      %v201 = vld [vmem:[%s192 + $0x40] sm:$0xff]
      %v202 = vld [vmem:[%s192 + $0x48] sm:$0xff]
      %v203 = vld [vmem:[%s192 + $0x50] sm:$0xff]
      %v204 = vld [vmem:[%s192 + $0x58] sm:$0xff]
      %v205 = vld [vmem:[%s192 + $0x60] sm:$0xff]
      %v206 = vld [vmem:[%s192 + $0x68] sm:$0xff]
      %v207 = vld [vmem:[%s192 + $0x70] sm:$0xff]
      %v208 = vld [vmem:[%s192 + $0x78] sm:$0xff]
      %v211 = vunpack.c.l.b16 %v190
      %v212 = vunpack.c.l.b16 %v191
      %v213 = vpack.c.b16 %v212, %v211
      %v231 = vunpack.c.l.b16 %v193
      %v232 = vunpack.c.h.b16 %v193
      %v233 = vunpack.c.l.b16 %v194
      %v234 = vunpack.c.h.b16 %v194
      %v235 = vunpack.c.l.b16 %v195
      %v236 = vunpack.c.h.b16 %v195
      %v237 = vunpack.c.l.b16 %v196
      %v238 = vunpack.c.h.b16 %v196
      %v239 = vunpack.c.l.b16 %v197
      %v240 = vunpack.c.h.b16 %v197
      %v241 = vunpack.c.l.b16 %v198
      %v242 = vunpack.c.h.b16 %v198
      %v243 = vunpack.c.l.b16 %v199
      %v244 = vunpack.c.h.b16 %v199
      %v245 = vunpack.c.l.b16 %v200
      %v246 = vunpack.c.h.b16 %v200
      %v247 = vunpack.c.l.b16 %v201
      %v248 = vunpack.c.h.b16 %v201
      %v249 = vunpack.c.l.b16 %v202
      %v250 = vunpack.c.h.b16 %v202
      %v251 = vunpack.c.l.b16 %v203
      %v252 = vunpack.c.h.b16 %v203
      %v253 = vunpack.c.l.b16 %v204
      %v254 = vunpack.c.h.b16 %v204
      %v255 = vunpack.c.l.b16 %v205
      %v256 = vunpack.c.h.b16 %v205
      %v257 = vunpack.c.l.b16 %v206
      %v258 = vunpack.c.h.b16 %v206
      %v259 = vunpack.c.l.b16 %v207
      %v260 = vunpack.c.h.b16 %v207
      %v261 = vunpack.c.l.b16 %v208
      %v262 = vunpack.c.h.b16 %v208
      %v263 = vpack.c.b16 %v233, %v231
      %v264 = vpack.c.b16 %v234, %v232
      %v265 = vpack.c.b16 %v237, %v235
      %v266 = vpack.c.b16 %v238, %v236
      %v267 = vpack.c.b16 %v241, %v239
      %v268 = vpack.c.b16 %v242, %v240
      %v269 = vpack.c.b16 %v245, %v243
      %v270 = vpack.c.b16 %v246, %v244
      %v271 = vpack.c.b16 %v249, %v247
      %v272 = vpack.c.b16 %v250, %v248
      %v273 = vpack.c.b16 %v253, %v251
      %v274 = vpack.c.b16 %v254, %v252
      %v275 = vpack.c.b16 %v257, %v255
      %v276 = vpack.c.b16 %v258, %v256
      %v277 = vpack.c.b16 %v261, %v259
      %v278 = vpack.c.b16 %v262, %v260
      %295 = vmatpush.bf16.msra.mxu0 %v277
      %296 = vmatpush.bf16.msra.mxu0 %v275
      %297 = vmatpush.bf16.msra.mxu0 %v273
      %298 = vmatpush.bf16.msra.mxu0 %v271
      %299 = vmatpush.bf16.msra.mxu0 %v269
      %300 = vmatpush.bf16.msra.mxu0 %v267
      %301 = vmatpush.bf16.msra.mxu0 %v265
      %302 = vmatpush.bf16.msra.mxu0 %v263
      %303 = vmatmul.bf16.gmra.mxu0 %v213
      %v304 = vpop.f32.mrf.mxu0
      %v305 = vadd.f32 0.0, %v304
      %v306 = vpop.f32.mrf.mxu0
      %v307 = vadd.f32 0.0, %v306
      %308 = vdwg.mxu0
      %309 = vmatpush.bf16.msra.mxu0 %v278
      %310 = vmatpush.bf16.msra.mxu0 %v276
      %311 = vmatpush.bf16.msra.mxu0 %v274
      %312 = vmatpush.bf16.msra.mxu0 %v272
      %313 = vmatpush.bf16.msra.mxu0 %v270
      %314 = vmatpush.bf16.msra.mxu0 %v268
      %315 = vmatpush.bf16.msra.mxu0 %v266
      %316 = vmatpush.bf16.msra.mxu0 %v264
      %317 = vmatmul.bf16.gmra.mxu0 %v213
      %v318 = vpop.f32.mrf.mxu0
      %v319 = vadd.f32 0.0, %v318
      %v320 = vpop.f32.mrf.mxu0
      %v321 = vadd.f32 0.0, %v320
      %322 = vdwg.mxu0
      %v325 = vunpack.c.l.b16 %v171
      %v326 = vunpack.c.l.b16 %v172
      %v327 = vpack.c.b16 %v326, %v325
      %v345 = vunpack.c.l.b16 %v173
      %v346 = vunpack.c.h.b16 %v173
      %v347 = vunpack.c.l.b16 %v174
      %v348 = vunpack.c.h.b16 %v174
      %v349 = vunpack.c.l.b16 %v175
      %v350 = vunpack.c.h.b16 %v175
      %v351 = vunpack.c.l.b16 %v176
      %v352 = vunpack.c.h.b16 %v176
      %v353 = vunpack.c.l.b16 %v177
      %v354 = vunpack.c.h.b16 %v177
      %v355 = vunpack.c.l.b16 %v178
      %v356 = vunpack.c.h.b16 %v178
      %v357 = vunpack.c.l.b16 %v179
      %v358 = vunpack.c.h.b16 %v179
      %v359 = vunpack.c.l.b16 %v180
      %v360 = vunpack.c.h.b16 %v180
      %v361 = vunpack.c.l.b16 %v181
      %v362 = vunpack.c.h.b16 %v181
      %v363 = vunpack.c.l.b16 %v182
      %v364 = vunpack.c.h.b16 %v182
      %v365 = vunpack.c.l.b16 %v183
      %v366 = vunpack.c.h.b16 %v183
      %v367 = vunpack.c.l.b16 %v184
      %v368 = vunpack.c.h.b16 %v184
      %v369 = vunpack.c.l.b16 %v185
      %v370 = vunpack.c.h.b16 %v185
      %v371 = vunpack.c.l.b16 %v186
      %v372 = vunpack.c.h.b16 %v186
      %v373 = vunpack.c.l.b16 %v187
      %v374 = vunpack.c.h.b16 %v187
      %v375 = vunpack.c.l.b16 %v188
      %v376 = vunpack.c.h.b16 %v188
      %v377 = vpack.c.b16 %v347, %v345
      %v378 = vpack.c.b16 %v348, %v346
      %v379 = vpack.c.b16 %v351, %v349
      %v380 = vpack.c.b16 %v352, %v350
      %v381 = vpack.c.b16 %v355, %v353
      %v382 = vpack.c.b16 %v356, %v354
      %v383 = vpack.c.b16 %v359, %v357
      %v384 = vpack.c.b16 %v360, %v358
      %v385 = vpack.c.b16 %v363, %v361
      %v386 = vpack.c.b16 %v364, %v362
      %v387 = vpack.c.b16 %v367, %v365
      %v388 = vpack.c.b16 %v368, %v366
      %v389 = vpack.c.b16 %v371, %v369
      %v390 = vpack.c.b16 %v372, %v370
      %v391 = vpack.c.b16 %v375, %v373
      %v392 = vpack.c.b16 %v376, %v374
      %409 = vmatpush.bf16.msra.mxu0 %v391
      %410 = vmatpush.bf16.msra.mxu0 %v389
      %411 = vmatpush.bf16.msra.mxu0 %v387
      %412 = vmatpush.bf16.msra.mxu0 %v385
      %413 = vmatpush.bf16.msra.mxu0 %v383
      %414 = vmatpush.bf16.msra.mxu0 %v381
      %415 = vmatpush.bf16.msra.mxu0 %v379
      %416 = vmatpush.bf16.msra.mxu0 %v377
      %417 = vmatmul.bf16.gmra.mxu0 %v327
      %v418 = vpop.f32.mrf.mxu0
      %v419 = vadd.f32 %v305, %v418
      %v420 = vpop.f32.mrf.mxu0
      %v421 = vadd.f32 %v307, %v420
      %422 = vdwg.mxu0
      %423 = vmatpush.bf16.msra.mxu0 %v392
      %424 = vmatpush.bf16.msra.mxu0 %v390
      %425 = vmatpush.bf16.msra.mxu0 %v388
      %426 = vmatpush.bf16.msra.mxu0 %v386
      %427 = vmatpush.bf16.msra.mxu0 %v384
      %428 = vmatpush.bf16.msra.mxu0 %v382
      %429 = vmatpush.bf16.msra.mxu0 %v380
      %430 = vmatpush.bf16.msra.mxu0 %v378
      %431 = vmatmul.bf16.gmra.mxu0 %v327
      %v432 = vpop.f32.mrf.mxu0
      %v433 = vadd.f32 %v319, %v432
      %v434 = vpop.f32.mrf.mxu0
      %v435 = vadd.f32 %v321, %v434
      %436 = vdwg.mxu0
      %s437 = scalar_lea.vmem %s165, 16
      %v438 = vld [vmem:[%s437] sm:$0xf]
      %v439 = vld [vmem:[%s437 + $0x4] sm:$0x1]
      %s440 = scalar_lea.vmem %s1, 256
      %v441 = vld [vmem:[%s440] sm:$0xff]
      %v442 = vld [vmem:[%s440 + $0x8] sm:$0xff]
      %v443 = vld [vmem:[%s440 + $0x10] sm:$0xff]
      %v444 = vld [vmem:[%s440 + $0x18] sm:$0xff]
      %v445 = vld [vmem:[%s440 + $0x20] sm:$0xff]
      %v446 = vld [vmem:[%s440 + $0x28] sm:$0xff]
      %v447 = vld [vmem:[%s440 + $0x30] sm:$0xff]
      %v448 = vld [vmem:[%s440 + $0x38] sm:$0xff]
      %v449 = vld [vmem:[%s440 + $0x40] sm:$0xff]
      %v450 = vld [vmem:[%s440 + $0x48] sm:$0xff]
      %v451 = vld [vmem:[%s440 + $0x50] sm:$0xff]
      %v452 = vld [vmem:[%s440 + $0x58] sm:$0xff]
      %v453 = vld [vmem:[%s440 + $0x60] sm:$0xff]
      %v454 = vld [vmem:[%s440 + $0x68] sm:$0xff]
      %v455 = vld [vmem:[%s440 + $0x70] sm:$0xff]
      %v456 = vld [vmem:[%s440 + $0x78] sm:$0xff]
      %v459 = vunpack.c.l.b16 %v438
      %v460 = vunpack.c.l.b16 %v439
      %v461 = vpack.c.b16 %v460, %v459
      %v479 = vunpack.c.l.b16 %v441
      %v480 = vunpack.c.h.b16 %v441
      %v481 = vunpack.c.l.b16 %v442
      %v482 = vunpack.c.h.b16 %v442
      %v483 = vunpack.c.l.b16 %v443
      %v484 = vunpack.c.h.b16 %v443
      %v485 = vunpack.c.l.b16 %v444
      %v486 = vunpack.c.h.b16 %v444
      %v487 = vunpack.c.l.b16 %v445
      %v488 = vunpack.c.h.b16 %v445
      %v489 = vunpack.c.l.b16 %v446
      %v490 = vunpack.c.h.b16 %v446
      %v491 = vunpack.c.l.b16 %v447
      %v492 = vunpack.c.h.b16 %v447
      %v493 = vunpack.c.l.b16 %v448
      %v494 = vunpack.c.h.b16 %v448
      %v495 = vunpack.c.l.b16 %v449
      %v496 = vunpack.c.h.b16 %v449
      %v497 = vunpack.c.l.b16 %v450
      %v498 = vunpack.c.h.b16 %v450
      %v499 = vunpack.c.l.b16 %v451
      %v500 = vunpack.c.h.b16 %v451
      %v501 = vunpack.c.l.b16 %v452
      %v502 = vunpack.c.h.b16 %v452
      %v503 = vunpack.c.l.b16 %v453
      %v504 = vunpack.c.h.b16 %v453
      %v505 = vunpack.c.l.b16 %v454
      %v506 = vunpack.c.h.b16 %v454
      %v507 = vunpack.c.l.b16 %v455
      %v508 = vunpack.c.h.b16 %v455
      %v509 = vunpack.c.l.b16 %v456
      %v510 = vunpack.c.h.b16 %v456
      %v511 = vpack.c.b16 %v481, %v479
      %v512 = vpack.c.b16 %v482, %v480
      %v513 = vpack.c.b16 %v485, %v483
      %v514 = vpack.c.b16 %v486, %v484
      %v515 = vpack.c.b16 %v489, %v487
      %v516 = vpack.c.b16 %v490, %v488
      %v517 = vpack.c.b16 %v493, %v491
      %v518 = vpack.c.b16 %v494, %v492
      %v519 = vpack.c.b16 %v497, %v495
      %v520 = vpack.c.b16 %v498, %v496
      %v521 = vpack.c.b16 %v501, %v499
      %v522 = vpack.c.b16 %v502, %v500
      %v523 = vpack.c.b16 %v505, %v503
      %v524 = vpack.c.b16 %v506, %v504
      %v525 = vpack.c.b16 %v509, %v507
      %v526 = vpack.c.b16 %v510, %v508
      %543 = vmatpush.bf16.msra.mxu0 %v525
      %544 = vmatpush.bf16.msra.mxu0 %v523
      %545 = vmatpush.bf16.msra.mxu0 %v521
      %546 = vmatpush.bf16.msra.mxu0 %v519
      %547 = vmatpush.bf16.msra.mxu0 %v517
      %548 = vmatpush.bf16.msra.mxu0 %v515
      %549 = vmatpush.bf16.msra.mxu0 %v513
      %550 = vmatpush.bf16.msra.mxu0 %v511
      %551 = vmatmul.bf16.gmra.mxu0 %v461
      %v552 = vpop.f32.mrf.mxu0
      %v553 = vadd.f32 0.0, %v552
      %v554 = vpop.f32.mrf.mxu0
      %v555 = vadd.f32 0.0, %v554
      %556 = vdwg.mxu0
      %557 = vmatpush.bf16.msra.mxu0 %v526
      %558 = vmatpush.bf16.msra.mxu0 %v524
      %559 = vmatpush.bf16.msra.mxu0 %v522
      %560 = vmatpush.bf16.msra.mxu0 %v520
      %561 = vmatpush.bf16.msra.mxu0 %v518
      %562 = vmatpush.bf16.msra.mxu0 %v516
      %563 = vmatpush.bf16.msra.mxu0 %v514
      %564 = vmatpush.bf16.msra.mxu0 %v512
      %565 = vmatmul.bf16.gmra.mxu0 %v461
      %v566 = vpop.f32.mrf.mxu0
      %v567 = vadd.f32 0.0, %v566
      %v568 = vpop.f32.mrf.mxu0
      %v569 = vadd.f32 0.0, %v568
      %570 = vdwg.mxu0
      %v571 = vadd.f32 %v419, %v553
      %v572 = vadd.f32 %v433, %v567
      %v573 = vadd.f32 %v421, %v555
      %v574 = vadd.f32 %v435, %v569
      %s575 = scalar_lea.vmem %s165, 24
      %v576 = vld [vmem:[%s575] sm:$0xf]
      %v577 = vld [vmem:[%s575 + $0x4] sm:$0x1]
      %s578 = scalar_lea.vmem %s1, 384
      %v579 = vld [vmem:[%s578] sm:$0xff]
      %v580 = vld [vmem:[%s578 + $0x8] sm:$0xff]
      %v581 = vld [vmem:[%s578 + $0x10] sm:$0xff]
      %v582 = vld [vmem:[%s578 + $0x18] sm:$0xff]
      %v583 = vld [vmem:[%s578 + $0x20] sm:$0xff]
      %v584 = vld [vmem:[%s578 + $0x28] sm:$0xff]
      %v585 = vld [vmem:[%s578 + $0x30] sm:$0xff]
      %v586 = vld [vmem:[%s578 + $0x38] sm:$0xff]
      %v587 = vld [vmem:[%s578 + $0x40] sm:$0xff]
      %v588 = vld [vmem:[%s578 + $0x48] sm:$0xff]
      %v589 = vld [vmem:[%s578 + $0x50] sm:$0xff]
      %v590 = vld [vmem:[%s578 + $0x58] sm:$0xff]
      %v591 = vld [vmem:[%s578 + $0x60] sm:$0xff]
      %v592 = vld [vmem:[%s578 + $0x68] sm:$0xff]
      %v593 = vld [vmem:[%s578 + $0x70] sm:$0xff]
      %v594 = vld [vmem:[%s578 + $0x78] sm:$0xff]
      %v597 = vunpack.c.l.b16 %v576
      %v598 = vunpack.c.l.b16 %v577
      %v599 = vpack.c.b16 %v598, %v597
      %v617 = vunpack.c.l.b16 %v579
      %v618 = vunpack.c.h.b16 %v579
      %v619 = vunpack.c.l.b16 %v580
      %v620 = vunpack.c.h.b16 %v580
      %v621 = vunpack.c.l.b16 %v581
      %v622 = vunpack.c.h.b16 %v581
      %v623 = vunpack.c.l.b16 %v582
      %v624 = vunpack.c.h.b16 %v582
      %v625 = vunpack.c.l.b16 %v583
      %v626 = vunpack.c.h.b16 %v583
      %v627 = vunpack.c.l.b16 %v584
      %v628 = vunpack.c.h.b16 %v584
      %v629 = vunpack.c.l.b16 %v585
      %v630 = vunpack.c.h.b16 %v585
      %v631 = vunpack.c.l.b16 %v586
      %v632 = vunpack.c.h.b16 %v586
      %v633 = vunpack.c.l.b16 %v587
      %v634 = vunpack.c.h.b16 %v587
      %v635 = vunpack.c.l.b16 %v588
      %v636 = vunpack.c.h.b16 %v588
      %v637 = vunpack.c.l.b16 %v589
      %v638 = vunpack.c.h.b16 %v589
      %v639 = vunpack.c.l.b16 %v590
      %v640 = vunpack.c.h.b16 %v590
      %v641 = vunpack.c.l.b16 %v591
      %v642 = vunpack.c.h.b16 %v591
      %v643 = vunpack.c.l.b16 %v592
      %v644 = vunpack.c.h.b16 %v592
      %v645 = vunpack.c.l.b16 %v593
      %v646 = vunpack.c.h.b16 %v593
      %v647 = vunpack.c.l.b16 %v594
      %v648 = vunpack.c.h.b16 %v594
      %v649 = vpack.c.b16 %v619, %v617
      %v650 = vpack.c.b16 %v620, %v618
      %v651 = vpack.c.b16 %v623, %v621
      %v652 = vpack.c.b16 %v624, %v622
      %v653 = vpack.c.b16 %v627, %v625
      %v654 = vpack.c.b16 %v628, %v626
      %v655 = vpack.c.b16 %v631, %v629
      %v656 = vpack.c.b16 %v632, %v630
      %v657 = vpack.c.b16 %v635, %v633
      %v658 = vpack.c.b16 %v636, %v634
      %v659 = vpack.c.b16 %v639, %v637
      %v660 = vpack.c.b16 %v640, %v638
      %v661 = vpack.c.b16 %v643, %v641
      %v662 = vpack.c.b16 %v644, %v642
      %v663 = vpack.c.b16 %v647, %v645
      %v664 = vpack.c.b16 %v648, %v646
      %681 = vmatpush.bf16.msra.mxu0 %v663
      %682 = vmatpush.bf16.msra.mxu0 %v661
      %683 = vmatpush.bf16.msra.mxu0 %v659
      %684 = vmatpush.bf16.msra.mxu0 %v657
      %685 = vmatpush.bf16.msra.mxu0 %v655
      %686 = vmatpush.bf16.msra.mxu0 %v653
      %687 = vmatpush.bf16.msra.mxu0 %v651
      %688 = vmatpush.bf16.msra.mxu0 %v649
      %689 = vmatmul.bf16.gmra.mxu0 %v599
      %v690 = vpop.f32.mrf.mxu0
      %v691 = vadd.f32 0.0, %v690
      %v692 = vpop.f32.mrf.mxu0
      %v693 = vadd.f32 0.0, %v692
      %694 = vdwg.mxu0
      %695 = vmatpush.bf16.msra.mxu0 %v664
      %696 = vmatpush.bf16.msra.mxu0 %v662
      %697 = vmatpush.bf16.msra.mxu0 %v660
      %698 = vmatpush.bf16.msra.mxu0 %v658
      %699 = vmatpush.bf16.msra.mxu0 %v656
      %700 = vmatpush.bf16.msra.mxu0 %v654
      %701 = vmatpush.bf16.msra.mxu0 %v652
      %702 = vmatpush.bf16.msra.mxu0 %v650
      %703 = vmatmul.bf16.gmra.mxu0 %v599
      %v704 = vpop.f32.mrf.mxu0
      %v705 = vadd.f32 0.0, %v704
      %v706 = vpop.f32.mrf.mxu0
      %v707 = vadd.f32 0.0, %v706
      %708 = vdwg.mxu0
      %v709 = vadd.f32 %v571, %v691
      %v710 = vadd.f32 %v572, %v705
      %v711 = vadd.f32 %v573, %v693
      %v712 = vadd.f32 %v574, %v707
      %s713 = scalar_lea.vmem %s165, 32
      %v714 = vld [vmem:[%s713] sm:$0xf]
      %v715 = vld [vmem:[%s713 + $0x4] sm:$0x1]
      %s716 = scalar_lea.vmem %s1, 512
      %v717 = vld [vmem:[%s716] sm:$0xff]
      %v718 = vld [vmem:[%s716 + $0x8] sm:$0xff]
      %v719 = vld [vmem:[%s716 + $0x10] sm:$0xff]
      %v720 = vld [vmem:[%s716 + $0x18] sm:$0xff]
      %v721 = vld [vmem:[%s716 + $0x20] sm:$0xff]
      %v722 = vld [vmem:[%s716 + $0x28] sm:$0xff]
      %v723 = vld [vmem:[%s716 + $0x30] sm:$0xff]
      %v724 = vld [vmem:[%s716 + $0x38] sm:$0xff]
      %v725 = vld [vmem:[%s716 + $0x40] sm:$0xff]
      %v726 = vld [vmem:[%s716 + $0x48] sm:$0xff]
      %v727 = vld [vmem:[%s716 + $0x50] sm:$0xff]
      %v728 = vld [vmem:[%s716 + $0x58] sm:$0xff]
      %v729 = vld [vmem:[%s716 + $0x60] sm:$0xff]
      %v730 = vld [vmem:[%s716 + $0x68] sm:$0xff]
      %v731 = vld [vmem:[%s716 + $0x70] sm:$0xff]
      %v732 = vld [vmem:[%s716 + $0x78] sm:$0xff]
      %v735 = vunpack.c.l.b16 %v714
      %v736 = vunpack.c.l.b16 %v715
      %v737 = vpack.c.b16 %v736, %v735
      %v755 = vunpack.c.l.b16 %v717
      %v756 = vunpack.c.h.b16 %v717
      %v757 = vunpack.c.l.b16 %v718
      %v758 = vunpack.c.h.b16 %v718
      %v759 = vunpack.c.l.b16 %v719
      %v760 = vunpack.c.h.b16 %v719
      %v761 = vunpack.c.l.b16 %v720
      %v762 = vunpack.c.h.b16 %v720
      %v763 = vunpack.c.l.b16 %v721
      %v764 = vunpack.c.h.b16 %v721
      %v765 = vunpack.c.l.b16 %v722
      %v766 = vunpack.c.h.b16 %v722
      %v767 = vunpack.c.l.b16 %v723
      %v768 = vunpack.c.h.b16 %v723
      %v769 = vunpack.c.l.b16 %v724
      %v770 = vunpack.c.h.b16 %v724
      %v771 = vunpack.c.l.b16 %v725
      %v772 = vunpack.c.h.b16 %v725
      %v773 = vunpack.c.l.b16 %v726
      %v774 = vunpack.c.h.b16 %v726
      %v775 = vunpack.c.l.b16 %v727
      %v776 = vunpack.c.h.b16 %v727
      %v777 = vunpack.c.l.b16 %v728
      %v778 = vunpack.c.h.b16 %v728
      %v779 = vunpack.c.l.b16 %v729
      %v780 = vunpack.c.h.b16 %v729
      %v781 = vunpack.c.l.b16 %v730
      %v782 = vunpack.c.h.b16 %v730
      %v783 = vunpack.c.l.b16 %v731
      %v784 = vunpack.c.h.b16 %v731
      %v785 = vunpack.c.l.b16 %v732
      %v786 = vunpack.c.h.b16 %v732
      %v787 = vpack.c.b16 %v757, %v755
      %v788 = vpack.c.b16 %v758, %v756
      %v789 = vpack.c.b16 %v761, %v759
      %v790 = vpack.c.b16 %v762, %v760
      %v791 = vpack.c.b16 %v765, %v763
      %v792 = vpack.c.b16 %v766, %v764
      %v793 = vpack.c.b16 %v769, %v767
      %v794 = vpack.c.b16 %v770, %v768
      %v795 = vpack.c.b16 %v773, %v771
      %v796 = vpack.c.b16 %v774, %v772
      %v797 = vpack.c.b16 %v777, %v775
      %v798 = vpack.c.b16 %v778, %v776
      %v799 = vpack.c.b16 %v781, %v779
      %v800 = vpack.c.b16 %v782, %v780
      %v801 = vpack.c.b16 %v785, %v783
      %v802 = vpack.c.b16 %v786, %v784
      %819 = vmatpush.bf16.msra.mxu0 %v801
      %820 = vmatpush.bf16.msra.mxu0 %v799
      %821 = vmatpush.bf16.msra.mxu0 %v797
      %822 = vmatpush.bf16.msra.mxu0 %v795
      %823 = vmatpush.bf16.msra.mxu0 %v793
      %824 = vmatpush.bf16.msra.mxu0 %v791
      %825 = vmatpush.bf16.msra.mxu0 %v789
      %826 = vmatpush.bf16.msra.mxu0 %v787
      %827 = vmatmul.bf16.gmra.mxu0 %v737
      %v828 = vpop.f32.mrf.mxu0
      %v829 = vadd.f32 0.0, %v828
      %v830 = vpop.f32.mrf.mxu0
      %v831 = vadd.f32 0.0, %v830
      %832 = vdwg.mxu0
      %833 = vmatpush.bf16.msra.mxu0 %v802
      %834 = vmatpush.bf16.msra.mxu0 %v800
      %835 = vmatpush.bf16.msra.mxu0 %v798
      %836 = vmatpush.bf16.msra.mxu0 %v796
      %837 = vmatpush.bf16.msra.mxu0 %v794
      %838 = vmatpush.bf16.msra.mxu0 %v792
      %839 = vmatpush.bf16.msra.mxu0 %v790
      %840 = vmatpush.bf16.msra.mxu0 %v788
      %841 = vmatmul.bf16.gmra.mxu0 %v737
      %v842 = vpop.f32.mrf.mxu0
      %v843 = vadd.f32 0.0, %v842
      %v844 = vpop.f32.mrf.mxu0
      %v845 = vadd.f32 0.0, %v844
      %846 = vdwg.mxu0
      %v847 = vadd.f32 %v709, %v829
      %v848 = vadd.f32 %v710, %v843
      %v849 = vadd.f32 %v711, %v831
      %v850 = vadd.f32 %v712, %v845
      %s851 = scalar_lea.vmem %s165, 40
      %v852 = vld [vmem:[%s851] sm:$0xf]
      %v853 = vld [vmem:[%s851 + $0x4] sm:$0x1]
      %s854 = scalar_lea.vmem %s1, 640
      %v855 = vld [vmem:[%s854] sm:$0xff]
      %v856 = vld [vmem:[%s854 + $0x8] sm:$0xff]
      %v857 = vld [vmem:[%s854 + $0x10] sm:$0xff]
      %v858 = vld [vmem:[%s854 + $0x18] sm:$0xff]
      %v859 = vld [vmem:[%s854 + $0x20] sm:$0xff]
      %v860 = vld [vmem:[%s854 + $0x28] sm:$0xff]
      %v861 = vld [vmem:[%s854 + $0x30] sm:$0xff]
      %v862 = vld [vmem:[%s854 + $0x38] sm:$0xff]
      %v863 = vld [vmem:[%s854 + $0x40] sm:$0xff]
      %v864 = vld [vmem:[%s854 + $0x48] sm:$0xff]
      %v865 = vld [vmem:[%s854 + $0x50] sm:$0xff]
      %v866 = vld [vmem:[%s854 + $0x58] sm:$0xff]
      %v867 = vld [vmem:[%s854 + $0x60] sm:$0xff]
      %v868 = vld [vmem:[%s854 + $0x68] sm:$0xff]
      %v869 = vld [vmem:[%s854 + $0x70] sm:$0xff]
      %v870 = vld [vmem:[%s854 + $0x78] sm:$0xff]
      %v873 = vunpack.c.l.b16 %v852
      %v874 = vunpack.c.l.b16 %v853
      %v875 = vpack.c.b16 %v874, %v873
      %v893 = vunpack.c.l.b16 %v855
      %v894 = vunpack.c.h.b16 %v855
      %v895 = vunpack.c.l.b16 %v856
      %v896 = vunpack.c.h.b16 %v856
      %v897 = vunpack.c.l.b16 %v857
      %v898 = vunpack.c.h.b16 %v857
      %v899 = vunpack.c.l.b16 %v858
      %v900 = vunpack.c.h.b16 %v858
      %v901 = vunpack.c.l.b16 %v859
      %v902 = vunpack.c.h.b16 %v859
      %v903 = vunpack.c.l.b16 %v860
      %v904 = vunpack.c.h.b16 %v860
      %v905 = vunpack.c.l.b16 %v861
      %v906 = vunpack.c.h.b16 %v861
      %v907 = vunpack.c.l.b16 %v862
      %v908 = vunpack.c.h.b16 %v862
      %v909 = vunpack.c.l.b16 %v863
      %v910 = vunpack.c.h.b16 %v863
      %v911 = vunpack.c.l.b16 %v864
      %v912 = vunpack.c.h.b16 %v864
      %v913 = vunpack.c.l.b16 %v865
      %v914 = vunpack.c.h.b16 %v865
      %v915 = vunpack.c.l.b16 %v866
      %v916 = vunpack.c.h.b16 %v866
      %v917 = vunpack.c.l.b16 %v867
      %v918 = vunpack.c.h.b16 %v867
      %v919 = vunpack.c.l.b16 %v868
      %v920 = vunpack.c.h.b16 %v868
      %v921 = vunpack.c.l.b16 %v869
      %v922 = vunpack.c.h.b16 %v869
      %v923 = vunpack.c.l.b16 %v870
      %v924 = vunpack.c.h.b16 %v870
      %v925 = vpack.c.b16 %v895, %v893
      %v926 = vpack.c.b16 %v896, %v894
      %v927 = vpack.c.b16 %v899, %v897
      %v928 = vpack.c.b16 %v900, %v898
      %v929 = vpack.c.b16 %v903, %v901
      %v930 = vpack.c.b16 %v904, %v902
      %v931 = vpack.c.b16 %v907, %v905
      %v932 = vpack.c.b16 %v908, %v906
      %v933 = vpack.c.b16 %v911, %v909
      %v934 = vpack.c.b16 %v912, %v910
      %v935 = vpack.c.b16 %v915, %v913
      %v936 = vpack.c.b16 %v916, %v914
      %v937 = vpack.c.b16 %v919, %v917
      %v938 = vpack.c.b16 %v920, %v918
      %v939 = vpack.c.b16 %v923, %v921
      %v940 = vpack.c.b16 %v924, %v922
      %957 = vmatpush.bf16.msra.mxu0 %v939
      %958 = vmatpush.bf16.msra.mxu0 %v937
      %959 = vmatpush.bf16.msra.mxu0 %v935
      %960 = vmatpush.bf16.msra.mxu0 %v933
      %961 = vmatpush.bf16.msra.mxu0 %v931
      %962 = vmatpush.bf16.msra.mxu0 %v929
      %963 = vmatpush.bf16.msra.mxu0 %v927
      %964 = vmatpush.bf16.msra.mxu0 %v925
      %965 = vmatmul.bf16.gmra.mxu0 %v875
      %v966 = vpop.f32.mrf.mxu0
      %v967 = vadd.f32 0.0, %v966
      %v968 = vpop.f32.mrf.mxu0
      %v969 = vadd.f32 0.0, %v968
      %970 = vdwg.mxu0
      %971 = vmatpush.bf16.msra.mxu0 %v940
      %972 = vmatpush.bf16.msra.mxu0 %v938
      %973 = vmatpush.bf16.msra.mxu0 %v936
      %974 = vmatpush.bf16.msra.mxu0 %v934
      %975 = vmatpush.bf16.msra.mxu0 %v932
      %976 = vmatpush.bf16.msra.mxu0 %v930
      %977 = vmatpush.bf16.msra.mxu0 %v928
      %978 = vmatpush.bf16.msra.mxu0 %v926
      %979 = vmatmul.bf16.gmra.mxu0 %v875
      %v980 = vpop.f32.mrf.mxu0
      %v981 = vadd.f32 0.0, %v980
      %v982 = vpop.f32.mrf.mxu0
      %v983 = vadd.f32 0.0, %v982
      %984 = vdwg.mxu0
      %v985 = vadd.f32 %v847, %v967
      %v986 = vadd.f32 %v848, %v981
      %v987 = vadd.f32 %v849, %v969
      %v988 = vadd.f32 %v850, %v983
      %s989 = scalar_lea.vmem %s165, 48
      %v990 = vld [vmem:[%s989] sm:$0xf]
      %v991 = vld [vmem:[%s989 + $0x4] sm:$0x1]
      %s992 = scalar_lea.vmem %s1, 768
      %v993 = vld [vmem:[%s992] sm:$0xff]
      %v994 = vld [vmem:[%s992 + $0x8] sm:$0xff]
      %v995 = vld [vmem:[%s992 + $0x10] sm:$0xff]
      %v996 = vld [vmem:[%s992 + $0x18] sm:$0xff]
      %v997 = vld [vmem:[%s992 + $0x20] sm:$0xff]
      %v998 = vld [vmem:[%s992 + $0x28] sm:$0xff]
      %v999 = vld [vmem:[%s992 + $0x30] sm:$0xff]
      %v1000 = vld [vmem:[%s992 + $0x38] sm:$0xff]
      %v1001 = vld [vmem:[%s992 + $0x40] sm:$0xff]
      %v1002 = vld [vmem:[%s992 + $0x48] sm:$0xff]
      %v1003 = vld [vmem:[%s992 + $0x50] sm:$0xff]
      %v1004 = vld [vmem:[%s992 + $0x58] sm:$0xff]
      %v1005 = vld [vmem:[%s992 + $0x60] sm:$0xff]
      %v1006 = vld [vmem:[%s992 + $0x68] sm:$0xff]
      %v1007 = vld [vmem:[%s992 + $0x70] sm:$0xff]
      %v1008 = vld [vmem:[%s992 + $0x78] sm:$0xff]
      %v1011 = vunpack.c.l.b16 %v990
      %v1012 = vunpack.c.l.b16 %v991
      %v1013 = vpack.c.b16 %v1012, %v1011
      %v1031 = vunpack.c.l.b16 %v993
      %v1032 = vunpack.c.h.b16 %v993
      %v1033 = vunpack.c.l.b16 %v994
      %v1034 = vunpack.c.h.b16 %v994
      %v1035 = vunpack.c.l.b16 %v995
      %v1036 = vunpack.c.h.b16 %v995
      %v1037 = vunpack.c.l.b16 %v996
      %v1038 = vunpack.c.h.b16 %v996
      %v1039 = vunpack.c.l.b16 %v997
      %v1040 = vunpack.c.h.b16 %v997
      %v1041 = vunpack.c.l.b16 %v998
      %v1042 = vunpack.c.h.b16 %v998
      %v1043 = vunpack.c.l.b16 %v999
      %v1044 = vunpack.c.h.b16 %v999
      %v1045 = vunpack.c.l.b16 %v1000
      %v1046 = vunpack.c.h.b16 %v1000
      %v1047 = vunpack.c.l.b16 %v1001
      %v1048 = vunpack.c.h.b16 %v1001
      %v1049 = vunpack.c.l.b16 %v1002
      %v1050 = vunpack.c.h.b16 %v1002
      %v1051 = vunpack.c.l.b16 %v1003
      %v1052 = vunpack.c.h.b16 %v1003
      %v1053 = vunpack.c.l.b16 %v1004
      %v1054 = vunpack.c.h.b16 %v1004
      %v1055 = vunpack.c.l.b16 %v1005
      %v1056 = vunpack.c.h.b16 %v1005
      %v1057 = vunpack.c.l.b16 %v1006
      %v1058 = vunpack.c.h.b16 %v1006
      %v1059 = vunpack.c.l.b16 %v1007
      %v1060 = vunpack.c.h.b16 %v1007
      %v1061 = vunpack.c.l.b16 %v1008
      %v1062 = vunpack.c.h.b16 %v1008
      %v1063 = vpack.c.b16 %v1033, %v1031
      %v1064 = vpack.c.b16 %v1034, %v1032
      %v1065 = vpack.c.b16 %v1037, %v1035
      %v1066 = vpack.c.b16 %v1038, %v1036
      %v1067 = vpack.c.b16 %v1041, %v1039
      %v1068 = vpack.c.b16 %v1042, %v1040
      %v1069 = vpack.c.b16 %v1045, %v1043
      %v1070 = vpack.c.b16 %v1046, %v1044
      %v1071 = vpack.c.b16 %v1049, %v1047
      %v1072 = vpack.c.b16 %v1050, %v1048
      %v1073 = vpack.c.b16 %v1053, %v1051
      %v1074 = vpack.c.b16 %v1054, %v1052
      %v1075 = vpack.c.b16 %v1057, %v1055
      %v1076 = vpack.c.b16 %v1058, %v1056
      %v1077 = vpack.c.b16 %v1061, %v1059
      %v1078 = vpack.c.b16 %v1062, %v1060
      %1095 = vmatpush.bf16.msra.mxu0 %v1077
      %1096 = vmatpush.bf16.msra.mxu0 %v1075
      %1097 = vmatpush.bf16.msra.mxu0 %v1073
      %1098 = vmatpush.bf16.msra.mxu0 %v1071
      %1099 = vmatpush.bf16.msra.mxu0 %v1069
      %1100 = vmatpush.bf16.msra.mxu0 %v1067
      %1101 = vmatpush.bf16.msra.mxu0 %v1065
      %1102 = vmatpush.bf16.msra.mxu0 %v1063
      %1103 = vmatmul.bf16.gmra.mxu0 %v1013
      %v1104 = vpop.f32.mrf.mxu0
      %v1105 = vadd.f32 0.0, %v1104
      %v1106 = vpop.f32.mrf.mxu0
      %v1107 = vadd.f32 0.0, %v1106
      %1108 = vdwg.mxu0
      %1109 = vmatpush.bf16.msra.mxu0 %v1078
      %1110 = vmatpush.bf16.msra.mxu0 %v1076
      %1111 = vmatpush.bf16.msra.mxu0 %v1074
      %1112 = vmatpush.bf16.msra.mxu0 %v1072
      %1113 = vmatpush.bf16.msra.mxu0 %v1070
      %1114 = vmatpush.bf16.msra.mxu0 %v1068
      %1115 = vmatpush.bf16.msra.mxu0 %v1066
      %1116 = vmatpush.bf16.msra.mxu0 %v1064
      %1117 = vmatmul.bf16.gmra.mxu0 %v1013
      %v1118 = vpop.f32.mrf.mxu0
      %v1119 = vadd.f32 0.0, %v1118
      %v1120 = vpop.f32.mrf.mxu0
      %v1121 = vadd.f32 0.0, %v1120
      %1122 = vdwg.mxu0
      %v1123 = vadd.f32 %v985, %v1105
      %v1124 = vadd.f32 %v986, %v1119
      %v1125 = vadd.f32 %v987, %v1107
      %v1126 = vadd.f32 %v988, %v1121
      %s1127 = scalar_lea.vmem %s165, 56
      %v1128 = vld [vmem:[%s1127] sm:$0xf]
      %v1129 = vld [vmem:[%s1127 + $0x4] sm:$0x1]
      %s1130 = scalar_lea.vmem %s1, 896
      %v1131 = vld [vmem:[%s1130] sm:$0xff]
      %v1132 = vld [vmem:[%s1130 + $0x8] sm:$0xff]
      %v1133 = vld [vmem:[%s1130 + $0x10] sm:$0xff]
      %v1134 = vld [vmem:[%s1130 + $0x18] sm:$0xff]
      %v1135 = vld [vmem:[%s1130 + $0x20] sm:$0xff]
      %v1136 = vld [vmem:[%s1130 + $0x28] sm:$0xff]
      %v1137 = vld [vmem:[%s1130 + $0x30] sm:$0xff]
      %v1138 = vld [vmem:[%s1130 + $0x38] sm:$0xff]
      %v1139 = vld [vmem:[%s1130 + $0x40] sm:$0xff]
      %v1140 = vld [vmem:[%s1130 + $0x48] sm:$0xff]
      %v1141 = vld [vmem:[%s1130 + $0x50] sm:$0xff]
      %v1142 = vld [vmem:[%s1130 + $0x58] sm:$0xff]
      %v1143 = vld [vmem:[%s1130 + $0x60] sm:$0xff]
      %v1144 = vld [vmem:[%s1130 + $0x68] sm:$0xff]
      %v1145 = vld [vmem:[%s1130 + $0x70] sm:$0xff]
      %v1146 = vld [vmem:[%s1130 + $0x78] sm:$0xff]
      %v1149 = vunpack.c.l.b16 %v1128
      %v1150 = vunpack.c.l.b16 %v1129
      %v1151 = vpack.c.b16 %v1150, %v1149
      %v1169 = vunpack.c.l.b16 %v1131
      %v1170 = vunpack.c.h.b16 %v1131
      %v1171 = vunpack.c.l.b16 %v1132
      %v1172 = vunpack.c.h.b16 %v1132
      %v1173 = vunpack.c.l.b16 %v1133
      %v1174 = vunpack.c.h.b16 %v1133
      %v1175 = vunpack.c.l.b16 %v1134
      %v1176 = vunpack.c.h.b16 %v1134
      %v1177 = vunpack.c.l.b16 %v1135
      %v1178 = vunpack.c.h.b16 %v1135
      %v1179 = vunpack.c.l.b16 %v1136
      %v1180 = vunpack.c.h.b16 %v1136
      %v1181 = vunpack.c.l.b16 %v1137
      %v1182 = vunpack.c.h.b16 %v1137
      %v1183 = vunpack.c.l.b16 %v1138
      %v1184 = vunpack.c.h.b16 %v1138
      %v1185 = vunpack.c.l.b16 %v1139
      %v1186 = vunpack.c.h.b16 %v1139
      %v1187 = vunpack.c.l.b16 %v1140
      %v1188 = vunpack.c.h.b16 %v1140
      %v1189 = vunpack.c.l.b16 %v1141
      %v1190 = vunpack.c.h.b16 %v1141
      %v1191 = vunpack.c.l.b16 %v1142
      %v1192 = vunpack.c.h.b16 %v1142
      %v1193 = vunpack.c.l.b16 %v1143
      %v1194 = vunpack.c.h.b16 %v1143
      %v1195 = vunpack.c.l.b16 %v1144
      %v1196 = vunpack.c.h.b16 %v1144
      %v1197 = vunpack.c.l.b16 %v1145
      %v1198 = vunpack.c.h.b16 %v1145
      %v1199 = vunpack.c.l.b16 %v1146
      %v1200 = vunpack.c.h.b16 %v1146
      %v1201 = vpack.c.b16 %v1171, %v1169
      %v1202 = vpack.c.b16 %v1172, %v1170
      %v1203 = vpack.c.b16 %v1175, %v1173
      %v1204 = vpack.c.b16 %v1176, %v1174
      %v1205 = vpack.c.b16 %v1179, %v1177
      %v1206 = vpack.c.b16 %v1180, %v1178
      %v1207 = vpack.c.b16 %v1183, %v1181
      %v1208 = vpack.c.b16 %v1184, %v1182
      %v1209 = vpack.c.b16 %v1187, %v1185
      %v1210 = vpack.c.b16 %v1188, %v1186
      %v1211 = vpack.c.b16 %v1191, %v1189
      %v1212 = vpack.c.b16 %v1192, %v1190
      %v1213 = vpack.c.b16 %v1195, %v1193
      %v1214 = vpack.c.b16 %v1196, %v1194
      %v1215 = vpack.c.b16 %v1199, %v1197
      %v1216 = vpack.c.b16 %v1200, %v1198
      %1233 = vmatpush.bf16.msra.mxu0 %v1215
      %1234 = vmatpush.bf16.msra.mxu0 %v1213
      %1235 = vmatpush.bf16.msra.mxu0 %v1211
      %1236 = vmatpush.bf16.msra.mxu0 %v1209
      %1237 = vmatpush.bf16.msra.mxu0 %v1207
      %1238 = vmatpush.bf16.msra.mxu0 %v1205
      %1239 = vmatpush.bf16.msra.mxu0 %v1203
      %1240 = vmatpush.bf16.msra.mxu0 %v1201
      %1241 = vmatmul.bf16.gmra.mxu0 %v1151
      %v1242 = vpop.f32.mrf.mxu0
      %v1243 = vadd.f32 0.0, %v1242
      %v1244 = vpop.f32.mrf.mxu0
      %v1245 = vadd.f32 0.0, %v1244
      %1246 = vdwg.mxu0
      %1247 = vmatpush.bf16.msra.mxu0 %v1216
      %1248 = vmatpush.bf16.msra.mxu0 %v1214
      %1249 = vmatpush.bf16.msra.mxu0 %v1212
      %1250 = vmatpush.bf16.msra.mxu0 %v1210
      %1251 = vmatpush.bf16.msra.mxu0 %v1208
      %1252 = vmatpush.bf16.msra.mxu0 %v1206
      %1253 = vmatpush.bf16.msra.mxu0 %v1204
      %1254 = vmatpush.bf16.msra.mxu0 %v1202
      %1255 = vmatmul.bf16.gmra.mxu0 %v1151
      %v1256 = vpop.f32.mrf.mxu0
      %v1257 = vadd.f32 0.0, %v1256
      %v1258 = vpop.f32.mrf.mxu0
      %v1259 = vadd.f32 0.0, %v1258
      %1260 = vdwg.mxu0
      %v1261 = vadd.f32 %v1123, %v1243
      %v1262 = vadd.f32 %v1124, %v1257
      %v1263 = vadd.f32 %v1125, %v1245
      %v1264 = vadd.f32 %v1126, %v1259
      %s1265 = scalar_lea.vmem %s165, 64
      %v1266 = vld [vmem:[%s1265] sm:$0xf]
      %v1267 = vld [vmem:[%s1265 + $0x4] sm:$0x1]
      %s1268 = scalar_lea.vmem %s1, 1024
      %v1269 = vld [vmem:[%s1268] sm:$0xff]
      %v1270 = vld [vmem:[%s1268 + $0x8] sm:$0xff]
      %v1271 = vld [vmem:[%s1268 + $0x10] sm:$0xff]
      %v1272 = vld [vmem:[%s1268 + $0x18] sm:$0xff]
      %v1273 = vld [vmem:[%s1268 + $0x20] sm:$0xff]
      %v1274 = vld [vmem:[%s1268 + $0x28] sm:$0xff]
      %v1275 = vld [vmem:[%s1268 + $0x30] sm:$0xff]
      %v1276 = vld [vmem:[%s1268 + $0x38] sm:$0xff]
      %v1277 = vld [vmem:[%s1268 + $0x40] sm:$0xff]
      %v1278 = vld [vmem:[%s1268 + $0x48] sm:$0xff]
      %v1279 = vld [vmem:[%s1268 + $0x50] sm:$0xff]
      %v1280 = vld [vmem:[%s1268 + $0x58] sm:$0xff]
      %v1281 = vld [vmem:[%s1268 + $0x60] sm:$0xff]
      %v1282 = vld [vmem:[%s1268 + $0x68] sm:$0xff]
      %v1283 = vld [vmem:[%s1268 + $0x70] sm:$0xff]
      %v1284 = vld [vmem:[%s1268 + $0x78] sm:$0xff]
      %v1287 = vunpack.c.l.b16 %v1266
      %v1288 = vunpack.c.l.b16 %v1267
      %v1289 = vpack.c.b16 %v1288, %v1287
      %v1307 = vunpack.c.l.b16 %v1269
      %v1308 = vunpack.c.h.b16 %v1269
      %v1309 = vunpack.c.l.b16 %v1270
      %v1310 = vunpack.c.h.b16 %v1270
      %v1311 = vunpack.c.l.b16 %v1271
      %v1312 = vunpack.c.h.b16 %v1271
      %v1313 = vunpack.c.l.b16 %v1272
      %v1314 = vunpack.c.h.b16 %v1272
      %v1315 = vunpack.c.l.b16 %v1273
      %v1316 = vunpack.c.h.b16 %v1273
      %v1317 = vunpack.c.l.b16 %v1274
      %v1318 = vunpack.c.h.b16 %v1274
      %v1319 = vunpack.c.l.b16 %v1275
      %v1320 = vunpack.c.h.b16 %v1275
      %v1321 = vunpack.c.l.b16 %v1276
      %v1322 = vunpack.c.h.b16 %v1276
      %v1323 = vunpack.c.l.b16 %v1277
      %v1324 = vunpack.c.h.b16 %v1277
      %v1325 = vunpack.c.l.b16 %v1278
      %v1326 = vunpack.c.h.b16 %v1278
      %v1327 = vunpack.c.l.b16 %v1279
      %v1328 = vunpack.c.h.b16 %v1279
      %v1329 = vunpack.c.l.b16 %v1280
      %v1330 = vunpack.c.h.b16 %v1280
      %v1331 = vunpack.c.l.b16 %v1281
      %v1332 = vunpack.c.h.b16 %v1281
      %v1333 = vunpack.c.l.b16 %v1282
      %v1334 = vunpack.c.h.b16 %v1282
      %v1335 = vunpack.c.l.b16 %v1283
      %v1336 = vunpack.c.h.b16 %v1283
      %v1337 = vunpack.c.l.b16 %v1284
      %v1338 = vunpack.c.h.b16 %v1284
      %v1339 = vpack.c.b16 %v1309, %v1307
      %v1340 = vpack.c.b16 %v1310, %v1308
      %v1341 = vpack.c.b16 %v1313, %v1311
      %v1342 = vpack.c.b16 %v1314, %v1312
      %v1343 = vpack.c.b16 %v1317, %v1315
      %v1344 = vpack.c.b16 %v1318, %v1316
      %v1345 = vpack.c.b16 %v1321, %v1319
      %v1346 = vpack.c.b16 %v1322, %v1320
      %v1347 = vpack.c.b16 %v1325, %v1323
      %v1348 = vpack.c.b16 %v1326, %v1324
      %v1349 = vpack.c.b16 %v1329, %v1327
      %v1350 = vpack.c.b16 %v1330, %v1328
      %v1351 = vpack.c.b16 %v1333, %v1331
      %v1352 = vpack.c.b16 %v1334, %v1332
      %v1353 = vpack.c.b16 %v1337, %v1335
      %v1354 = vpack.c.b16 %v1338, %v1336
      %1371 = vmatpush.bf16.msra.mxu0 %v1353
      %1372 = vmatpush.bf16.msra.mxu0 %v1351
      %1373 = vmatpush.bf16.msra.mxu0 %v1349
      %1374 = vmatpush.bf16.msra.mxu0 %v1347
      %1375 = vmatpush.bf16.msra.mxu0 %v1345
      %1376 = vmatpush.bf16.msra.mxu0 %v1343
      %1377 = vmatpush.bf16.msra.mxu0 %v1341
      %1378 = vmatpush.bf16.msra.mxu0 %v1339
      %1379 = vmatmul.bf16.gmra.mxu0 %v1289
      %v1380 = vpop.f32.mrf.mxu0
      %v1381 = vadd.f32 0.0, %v1380
      %v1382 = vpop.f32.mrf.mxu0
      %v1383 = vadd.f32 0.0, %v1382
      %1384 = vdwg.mxu0
      %1385 = vmatpush.bf16.msra.mxu0 %v1354
      %1386 = vmatpush.bf16.msra.mxu0 %v1352
      %1387 = vmatpush.bf16.msra.mxu0 %v1350
      %1388 = vmatpush.bf16.msra.mxu0 %v1348
      %1389 = vmatpush.bf16.msra.mxu0 %v1346
      %1390 = vmatpush.bf16.msra.mxu0 %v1344
      %1391 = vmatpush.bf16.msra.mxu0 %v1342
      %1392 = vmatpush.bf16.msra.mxu0 %v1340
      %1393 = vmatmul.bf16.gmra.mxu0 %v1289
      %v1394 = vpop.f32.mrf.mxu0
      %v1395 = vadd.f32 0.0, %v1394
      %v1396 = vpop.f32.mrf.mxu0
      %v1397 = vadd.f32 0.0, %v1396
      %1398 = vdwg.mxu0
      %v1399 = vadd.f32 %v1261, %v1381
      %v1400 = vadd.f32 %v1262, %v1395
      %v1401 = vadd.f32 %v1263, %v1383
      %v1402 = vadd.f32 %v1264, %v1397
      %v1403 = vld [vmem:[%s2] sm:$0x3]
      %v1405 = vperm.slane %v1403, 0
      %v1406 = vperm.slane %v1403, 1
      %v1409 = vadd.f32 %v1399, %v1405
      %v1410 = vadd.f32 %v1400, %v1406
      %v1411 = vadd.f32 %v1401, %v1405
      %v1412 = vadd.f32 %v1402, %v1406
      %v1413 = vmax.f32 %v1409, 0.0
      %v1414 = vmax.f32 %v1410, 0.0
      %v1415 = vmax.f32 %v1411, 0.0
      %v1416 = vmax.f32 %v1412, 0.0
      %1417 = vst [vmem:[%s170] sm:$0xff] %v1413
      %1418 = vst [vmem:[%s170 + $0x8] sm:$0xff] %v1414
      %1419 = vst [vmem:[%s170 + $0x10] sm:$0x1] %v1415
      %1420 = vst [vmem:[%s170 + $0x18] sm:$0x1] %v1416
      %p1421 = scmp.lt.s32.totalorder %s14, 1
      %s1422 = scalar_select %p1421, %s14, 1
      %s1423 = smul.addr %s1422, 4
      %s1424 = smul.addr %s1423, 8
      %s1425 = scalar_lea.vmem %s3, %s1424
      // Predicated region
      $region33: #{auxiliary_convolutions_forward.5} parent=31 // pred_check
        %p1426 = pneg %p100
      $region34: #{auxiliary_convolutions_forward.5} parent=31 // pred_check_branch
        %1428 = sbr.rel (%p1426) target = $region36
      $region35: #{auxiliary_convolutions_forward.5} parent=31 // pred_region
        _
      $region36: #{auxiliary_convolutions_forward.5} parent=31 // pred_fallthru
        _
    $region32: #{auxiliary_convolutions_forward.5} parent=5 // pred_fallthru
      _
    %p1429 = scmp.le.s32.totalorder 2, %s9
    // Predicated region
    $region37: #{auxiliary_convolutions_forward.5} parent=5 // pred_check
      %p1430 = pneg %p1429
    $region38: #{auxiliary_convolutions_forward.5} parent=5 // pred_check_branch
      %1432 = sbr.rel (%p1430) target = $region40
    $region39: #{auxiliary_convolutions_forward.5} parent=5 // pred_region
      %s1433 = ssub.s32 %s9, 2
      // Predicated region
      $region41: #{auxiliary_convolutions_forward.5} parent=39 // pred_check
        %p1434 = pneg %p106
      $region42: #{auxiliary_convolutions_forward.5} parent=39 // pred_check_branch
        %1436 = sbr.rel (%p1434) target = $region44
      $region43: #{auxiliary_convolutions_forward.5} parent=39 // pred_region
        %p1437 = scmp.lt.s32.totalorder %s15, 1
        %s1438 = scalar_select %p1437, %s15, 1
        %s1439 = smul.addr %s1438, 4
        %s1440 = smul.addr %s1439, 8
        %s1441 = scalar_lea.vmem %s3, %s1440
      $region44: #{auxiliary_convolutions_forward.5} parent=39 // pred_fallthru
        _
    $region40: #{auxiliary_convolutions_forward.5} parent=5 // pred_fallthru
      _
  $region6: #{auxiliary_convolutions_forward.5} parent=0 // loop_footer
    %s13 = sadd.s32 1, %s9
  $region7: #{auxiliary_convolutions_forward.5} parent=0 // loop_footer_branch
    %8 = sbr.rel target = $region3
  $region8: #{auxiliary_convolutions_forward.5} parent=0 // loop_exit
    _

// kernel: auxiliary_convolutions_forward.4
$region0: #{auxiliary_convolutions_forward.4}
  #allocation0 [shape = 'u32[]', space=smem, size = 0x4, offset = 0x4, fixed_abs, tag = 'smem constant byte address 0x4 - core index']
  #allocation1 [shape = 'u32[72,128]{1,0:T(1,128)}', space=vmem, size = 0x9000, scoped, tag = 'internal scratch']
  %s0 = inlined_call_operand.vmem [shape: bf16[2,9,25,256], index: 0, kind: input, shape index: {}]
  %s1 = inlined_call_operand.vmem [shape: bf16[9,256,512], index: 1, kind: input, shape index: {}]
  %s2 = inlined_call_operand.vmem [shape: f32[1,512], index: 2, kind: input, shape index: {}]
  %s3 = inlined_call_operand.vmem [shape: bf16[512,128], index: 3, kind: input, shape index: {}]
  %s4 = inlined_call_operand.vmem [shape: f32[1,128], index: 4, kind: input, shape index: {}]
  %s5 = inlined_call_operand.vmem [shape: f32[2,25,512], index: 5, kind: output, shape index: {0}]
  %s6 = inlined_call_operand.vmem [shape: bf16[2,25,128], index: 6, kind: output, shape index: {1}]
  %7 = xla_tuple %s5, %s6
  %s8 = sld [smem:[#allocation0]]
  $region61: #{auxiliary_convolutions_forward.4} parent=0
    _
  %s10 = ssub.s32 1, %s8
  %s11 = scalar_select 0, %s10, %s8
  loop: start=0, step=1, limit=4
  $region2: #{auxiliary_convolutions_forward.4} parent=0 // loop_pre_header
    _
  $region3: #{auxiliary_convolutions_forward.4} parent=0 // loop_header
    %s13 = sphi 0, %s17
    %p14 = scmp.ge.s32.totalorder %s13, 4
    %s23 = sphi 0, %s25
    %s26 = sphi 0, %s23
    %s27 = sphi 0, %s26
    %s43 = sphi 0, %s27
    %s47 = sphi 0, %s47
    %s49 = sphi 0, %s47
    %s50 = sphi 0, %s49
    %s64 = sphi 0, %s50
    %s68 = sphi 0, %s68
    %s70 = sphi 0, %s68
    %s71 = sphi 0, %s70
    %s85 = sphi 0, %s71
    %s89 = sphi 0, %s89
    %s91 = sphi 0, %s89
    %s92 = sphi 0, %s91
    %s106 = sphi 0, %s92
    %s110 = sphi 0, %s110
    %s112 = sphi 0, %s110
    %s113 = sphi 0, %s112
    %s127 = sphi 0, %s113
    %s133 = sphi 0, %s135
    %s136 = sphi 0, %s133
    %s137 = sphi 0, %s136
    %s153 = sphi 0, %s137
    %s159 = sphi 0, %s161
    %s162 = sphi 0, %s159
    %s163 = sphi 0, %s162
    %s179 = sphi 0, %s163
  $region4: #{auxiliary_convolutions_forward.4} parent=0 // loop_header_branch
    %16 = sbr.rel (%p14) target = $region8
  $region5: #{auxiliary_convolutions_forward.4} parent=0 // loop_body
    %s18 = ssub.s32 %s13, 1
    %s19 = ssub.s32 %s13, 2
    %s20 = sadd.s32 %s13, 1
    %s21 = ssub.s32 %s13, %s20
    %p22 = scmp.eq.s32.totalorder %s21, 0
    %s24 = sadd.s32 %s23, 1
    %s25 = scalar_select %p22, %s23, %s24
    %p28 = pneg %p22
    %p29 = scmp.eq.s32.totalorder %s13, 1
    %p30 = por %p28, %p29
    %p31 = scmp.ne.s32.totalorder %s23, %s26
    %p32 = scmp.eq.s32.totalorder %s13, 0
    %p33 = por %p31, %p32
    %p34 = scmp.ne.s32.totalorder %s23, %s26
    %p35 = scmp.eq.s32.totalorder %s18, 1
    %p36 = por %p34, %p35
    %p37 = scmp.ne.s32.totalorder %s26, %s27
    %p38 = scmp.eq.s32.totalorder %s18, 0
    %p39 = por %p37, %p38
    %p40 = scmp.ne.s32.totalorder %s26, %s27
    %p41 = scmp.eq.s32.totalorder %s19, 1
    %p42 = por %p40, %p41
    %p44 = scmp.ne.s32.totalorder %s27, %s43
    %p45 = scmp.eq.s32.totalorder %s19, 0
    %p46 = por %p44, %p45
    %s48 = sadd.s32 %s47, 1
    %p51 = scmp.eq.s32.totalorder %s13, 1
    %p52 = scmp.ne.s32.totalorder %s47, %s49
    %p53 = scmp.eq.s32.totalorder %s13, 0
    %p54 = por %p52, %p53
    %p55 = scmp.ne.s32.totalorder %s47, %s49
    %p56 = scmp.eq.s32.totalorder %s18, 1
    %p57 = por %p55, %p56
    %p58 = scmp.ne.s32.totalorder %s49, %s50
    %p59 = scmp.eq.s32.totalorder %s18, 0
    %p60 = por %p58, %p59
    %p61 = scmp.ne.s32.totalorder %s49, %s50
    %p62 = scmp.eq.s32.totalorder %s19, 1
    %p63 = por %p61, %p62
    %p65 = scmp.ne.s32.totalorder %s50, %s64
    %p66 = scmp.eq.s32.totalorder %s19, 0
    %p67 = por %p65, %p66
    %s69 = sadd.s32 %s68, 1
    %p72 = scmp.eq.s32.totalorder %s13, 1
    %p73 = scmp.ne.s32.totalorder %s68, %s70
    %p74 = scmp.eq.s32.totalorder %s13, 0
    %p75 = por %p73, %p74
    %p76 = scmp.ne.s32.totalorder %s68, %s70
    %p77 = scmp.eq.s32.totalorder %s18, 1
    %p78 = por %p76, %p77
    %p79 = scmp.ne.s32.totalorder %s70, %s71
    %p80 = scmp.eq.s32.totalorder %s18, 0
    %p81 = por %p79, %p80
    %p82 = scmp.ne.s32.totalorder %s70, %s71
    %p83 = scmp.eq.s32.totalorder %s19, 1
    %p84 = por %p82, %p83
    %p86 = scmp.ne.s32.totalorder %s71, %s85
    %p87 = scmp.eq.s32.totalorder %s19, 0
    %p88 = por %p86, %p87
    %s90 = sadd.s32 %s89, 1
    %p93 = scmp.eq.s32.totalorder %s13, 1
    %p94 = scmp.ne.s32.totalorder %s89, %s91
    %p95 = scmp.eq.s32.totalorder %s13, 0
    %p96 = por %p94, %p95
    %p97 = scmp.ne.s32.totalorder %s89, %s91
    %p98 = scmp.eq.s32.totalorder %s18, 1
    %p99 = por %p97, %p98
    %p100 = scmp.ne.s32.totalorder %s91, %s92
    %p101 = scmp.eq.s32.totalorder %s18, 0
    %p102 = por %p100, %p101
    %p103 = scmp.ne.s32.totalorder %s91, %s92
    %p104 = scmp.eq.s32.totalorder %s19, 1
    %p105 = por %p103, %p104
    %p107 = scmp.ne.s32.totalorder %s92, %s106
    %p108 = scmp.eq.s32.totalorder %s19, 0
    %p109 = por %p107, %p108
    %s111 = sadd.s32 %s110, 1
    %p114 = scmp.eq.s32.totalorder %s13, 1
    %p115 = scmp.ne.s32.totalorder %s110, %s112
    %p116 = scmp.eq.s32.totalorder %s13, 0
    %p117 = por %p115, %p116
    %p118 = scmp.ne.s32.totalorder %s110, %s112
    %p119 = scmp.eq.s32.totalorder %s18, 1
    %p120 = por %p118, %p119
    %p121 = scmp.ne.s32.totalorder %s112, %s113
    %p122 = scmp.eq.s32.totalorder %s18, 0
    %p123 = por %p121, %p122
    %p124 = scmp.ne.s32.totalorder %s112, %s113
    %p125 = scmp.eq.s32.totalorder %s19, 1
    %p126 = por %p124, %p125
    %p128 = scmp.ne.s32.totalorder %s113, %s127
    %p129 = scmp.eq.s32.totalorder %s19, 0
    %p130 = por %p128, %p129
    %s131 = ssub.s32 %s13, %s20
    %p132 = scmp.eq.s32.totalorder %s131, 0
    %s134 = sadd.s32 %s133, 1
    %s135 = scalar_select %p132, %s133, %s134
    %p138 = pneg %p132
    %p139 = scmp.eq.s32.totalorder %s13, 1
    %p140 = por %p138, %p139
    %p141 = scmp.ne.s32.totalorder %s133, %s136
    %p142 = scmp.eq.s32.totalorder %s13, 0
    %p143 = por %p141, %p142
    %p144 = scmp.ne.s32.totalorder %s133, %s136
    %p145 = scmp.eq.s32.totalorder %s18, 1
    %p146 = por %p144, %p145
    %p147 = scmp.ne.s32.totalorder %s136, %s137
    %p148 = scmp.eq.s32.totalorder %s18, 0
    %p149 = por %p147, %p148
    %p150 = scmp.ne.s32.totalorder %s136, %s137
    %p151 = scmp.eq.s32.totalorder %s19, 1
    %p152 = por %p150, %p151
    %p154 = scmp.ne.s32.totalorder %s137, %s153
    %p155 = scmp.eq.s32.totalorder %s19, 0
    %p156 = por %p154, %p155
    %s157 = ssub.s32 %s13, %s20
    %p158 = scmp.eq.s32.totalorder %s157, 0
    %s160 = sadd.s32 %s159, 1
    %s161 = scalar_select %p158, %s159, %s160
    %p164 = pneg %p158
    %p165 = scmp.eq.s32.totalorder %s13, 1
    %p166 = por %p164, %p165
    %p167 = scmp.ne.s32.totalorder %s159, %s162
    %p168 = scmp.eq.s32.totalorder %s13, 0
    %p169 = por %p167, %p168
    %p170 = scmp.ne.s32.totalorder %s159, %s162
    %p171 = scmp.eq.s32.totalorder %s18, 1
    %p172 = por %p170, %p171
    %p173 = scmp.ne.s32.totalorder %s162, %s163
    %p174 = scmp.eq.s32.totalorder %s18, 0
    %p175 = por %p173, %p174
    %p176 = scmp.ne.s32.totalorder %s162, %s163
    %p177 = scmp.eq.s32.totalorder %s19, 1
    %p178 = por %p176, %p177
    %p180 = scmp.ne.s32.totalorder %s163, %s179
    %p181 = scmp.eq.s32.totalorder %s19, 0
    %p182 = por %p180, %p181
    %p183 = scmp.le.s32.totalorder 1, %s13
    %p184 = scmp.lt.s32.totalorder %s13, 3
    %p185 = pnand %p183, %p184
    %p186 = pneg %p185
    // Predicated region
    $region9: #{auxiliary_convolutions_forward.4} parent=5 // pred_check
      _
    $region10: #{auxiliary_convolutions_forward.4} parent=5 // pred_check_branch
      %188 = sbr.rel (%p185) target = $region12
    $region11: #{auxiliary_convolutions_forward.4} parent=5 // pred_region
      %s189 = ssub.s32 %s13, 1
      // Predicated region
      $region13: #{auxiliary_convolutions_forward.4} parent=11 // pred_check
        %p190 = pneg %p60
      $region14: #{auxiliary_convolutions_forward.4} parent=11 // pred_check_branch
        %192 = sbr.rel (%p190) target = $region16
      $region15: #{auxiliary_convolutions_forward.4} parent=11 // pred_region
        _
      $region16: #{auxiliary_convolutions_forward.4} parent=11 // pred_fallthru
        _
      // Predicated region
      $region17: #{auxiliary_convolutions_forward.4} parent=11 // pred_check
        %p193 = pneg %p81
      $region18: #{auxiliary_convolutions_forward.4} parent=11 // pred_check_branch
        %195 = sbr.rel (%p193) target = $region20
      $region19: #{auxiliary_convolutions_forward.4} parent=11 // pred_region
        _
      $region20: #{auxiliary_convolutions_forward.4} parent=11 // pred_fallthru
        _
      // Predicated region
      $region21: #{auxiliary_convolutions_forward.4} parent=11 // pred_check
        %p196 = pneg %p102
      $region22: #{auxiliary_convolutions_forward.4} parent=11 // pred_check_branch
        %198 = sbr.rel (%p196) target = $region24
      $region23: #{auxiliary_convolutions_forward.4} parent=11 // pred_region
        _
      $region24: #{auxiliary_convolutions_forward.4} parent=11 // pred_fallthru
        _
      // Predicated region
      $region25: #{auxiliary_convolutions_forward.4} parent=11 // pred_check
        %p199 = pneg %p123
      $region26: #{auxiliary_convolutions_forward.4} parent=11 // pred_check_branch
        %201 = sbr.rel (%p199) target = $region28
      $region27: #{auxiliary_convolutions_forward.4} parent=11 // pred_region
        _
      $region28: #{auxiliary_convolutions_forward.4} parent=11 // pred_fallthru
        _
    $region12: #{auxiliary_convolutions_forward.4} parent=5 // pred_fallthru
      _
    %p202 = scmp.lt.s32.totalorder %s13, 2
    // Predicated region
    $region29: #{auxiliary_convolutions_forward.4} parent=5 // pred_check
      %p203 = pneg %p202
    $region30: #{auxiliary_convolutions_forward.4} parent=5 // pred_check_branch
      %205 = sbr.rel (%p203) target = $region32
    $region31: #{auxiliary_convolutions_forward.4} parent=5 // pred_region
      // Predicated region
      $region33: #{auxiliary_convolutions_forward.4} parent=31 // pred_check
        %p206 = pneg %p33
      $region34: #{auxiliary_convolutions_forward.4} parent=31 // pred_check_branch
        %208 = sbr.rel (%p206) target = $region36
      $region35: #{auxiliary_convolutions_forward.4} parent=31 // pred_region
        %p209 = scmp.lt.s32.totalorder %s13, 1
        %s210 = scalar_select %p209, %s13, 1
        %s211 = smul.addr %s210, 72
        %s212 = smul.addr %s211, 4
        %s213 = scalar_lea.vmem %s0, %s212
      $region36: #{auxiliary_convolutions_forward.4} parent=31 // pred_fallthru
        _
    $region32: #{auxiliary_convolutions_forward.4} parent=5 // pred_fallthru
      _
    %p214 = scmp.le.s32.totalorder 1, %s13
    %p215 = scmp.lt.s32.totalorder %s13, 3
    %p216 = pnand %p214, %p215
    %p217 = pneg %p216
    // Predicated region
    $region37: #{auxiliary_convolutions_forward.4} parent=5 // pred_check
      _
    $region38: #{auxiliary_convolutions_forward.4} parent=5 // pred_check_branch
      %219 = sbr.rel (%p216) target = $region40
    $region39: #{auxiliary_convolutions_forward.4} parent=5 // pred_region
      %s220 = ssub.s32 %s13, 1
      %p221 = scmp.lt.s32.totalorder %s18, 1
      %s222 = scalar_select %p221, %s18, 1
      %s223 = smul.addr %s222, 72
      %s224 = smul.addr %s223, 4
      %s225 = scalar_lea.vmem %s0, %s224
      %p226 = pneg %p39
      %p227 = pneg %p36
      %p228 = pneg %p60
      %p229 = pneg %p57
      %p230 = pneg %p81
      %p231 = pneg %p78
      %p232 = pneg %p102
      %p233 = pneg %p99
      %p234 = pneg %p123
      %p235 = pneg %p120
      %p236 = pneg %p149
      %p237 = pneg %p146
      %p238 = scmp.lt.s32.totalorder %s18, 1
      %s239 = scalar_select %p238, %s18, 1
      %s240 = smul.addr %s239, 16
      %s241 = smul.addr %s240, 8
      %s242 = scalar_lea.vmem %s5, %s241
      %p243 = pneg %p175
      %p244 = pneg %p172
      %p245 = scmp.lt.s32.totalorder %s18, 1
      %s246 = scalar_select %p245, %s18, 1
      %s247 = smul.addr %s246, 4
      %s248 = smul.addr %s247, 4
      %s249 = scalar_lea.vmem %s6, %s248
      %p250 = scmp.lt.s32.totalorder %s18, 1
      %s251 = scalar_select %p250, %s18, 1
      %s252 = smul.addr %s251, 72
      %s253 = smul.addr %s252, 4
      %s254 = scalar_lea.vmem %s0, %s253
      %p255 = scmp.lt.s32.totalorder %s18, 1
      %s256 = scalar_select %p255, %s18, 1
      %s257 = smul.addr %s256, 16
      %s258 = smul.addr %s257, 8
      %s259 = scalar_lea.vmem %s5, %s258
      %p260 = scmp.lt.s32.totalorder %s18, 1
      %s261 = scalar_select %p260, %s18, 1
      %s262 = smul.addr %s261, 4
      %s263 = smul.addr %s262, 4
      %s264 = scalar_lea.vmem %s6, %s263
      %v265 = vld [vmem:[%s254] sm:$0xff]
      %v266 = vld [vmem:[%s254 + $0x8] sm:$0xff]
      %v267 = vld [vmem:[%s254 + $0x10] sm:$0xff]
      %v268 = vld [vmem:[%s254 + $0x18] sm:$0x11]
      %v269 = vld [vmem:[%s1] sm:$0xff]
      %v270 = vld [vmem:[%s1 + $0x8] sm:$0xff]
      %v271 = vld [vmem:[%s1 + $0x10] sm:$0xff]
      %v272 = vld [vmem:[%s1 + $0x18] sm:$0xff]
      %v273 = vld [vmem:[%s1 + $0x20] sm:$0xff]
      %v274 = vld [vmem:[%s1 + $0x28] sm:$0xff]
      %v275 = vld [vmem:[%s1 + $0x30] sm:$0xff]
      %v276 = vld [vmem:[%s1 + $0x38] sm:$0xff]
      %v277 = vld [vmem:[%s1 + $0x40] sm:$0xff]
      %v278 = vld [vmem:[%s1 + $0x48] sm:$0xff]
      %v279 = vld [vmem:[%s1 + $0x50] sm:$0xff]
      %v280 = vld [vmem:[%s1 + $0x58] sm:$0xff]
      %v281 = vld [vmem:[%s1 + $0x60] sm:$0xff]
      %v282 = vld [vmem:[%s1 + $0x68] sm:$0xff]
      %v283 = vld [vmem:[%s1 + $0x70] sm:$0xff]
      %v284 = vld [vmem:[%s1 + $0x78] sm:$0xff]
      %v285 = vld [vmem:[%s1 + $0x80] sm:$0xff]
      %v286 = vld [vmem:[%s1 + $0x88] sm:$0xff]
      %v287 = vld [vmem:[%s1 + $0x90] sm:$0xff]
      %v288 = vld [vmem:[%s1 + $0x98] sm:$0xff]
      %v289 = vld [vmem:[%s1 + $0xa0] sm:$0xff]
      %v290 = vld [vmem:[%s1 + $0xa8] sm:$0xff]
      %v291 = vld [vmem:[%s1 + $0xb0] sm:$0xff]
      %v292 = vld [vmem:[%s1 + $0xb8] sm:$0xff]
      %v293 = vld [vmem:[%s1 + $0xc0] sm:$0xff]
      %v294 = vld [vmem:[%s1 + $0xc8] sm:$0xff]
      %v295 = vld [vmem:[%s1 + $0xd0] sm:$0xff]
      %v296 = vld [vmem:[%s1 + $0xd8] sm:$0xff]
      %v297 = vld [vmem:[%s1 + $0xe0] sm:$0xff]
      %v298 = vld [vmem:[%s1 + $0xe8] sm:$0xff]
      %v299 = vld [vmem:[%s1 + $0xf0] sm:$0xff]
      %v300 = vld [vmem:[%s1 + $0xf8] sm:$0xff]
      %v301 = vld [vmem:[%s1 + $0x100] sm:$0xff]
      %v302 = vld [vmem:[%s1 + $0x108] sm:$0xff]
      %v303 = vld [vmem:[%s1 + $0x110] sm:$0xff]
      %v304 = vld [vmem:[%s1 + $0x118] sm:$0xff]
      %v305 = vld [vmem:[%s1 + $0x120] sm:$0xff]
      %v306 = vld [vmem:[%s1 + $0x128] sm:$0xff]
      %v307 = vld [vmem:[%s1 + $0x130] sm:$0xff]
      %v308 = vld [vmem:[%s1 + $0x138] sm:$0xff]
      %v309 = vld [vmem:[%s1 + $0x140] sm:$0xff]
      %v310 = vld [vmem:[%s1 + $0x148] sm:$0xff]
      %v311 = vld [vmem:[%s1 + $0x150] sm:$0xff]
      %v312 = vld [vmem:[%s1 + $0x158] sm:$0xff]
      %v313 = vld [vmem:[%s1 + $0x160] sm:$0xff]
      %v314 = vld [vmem:[%s1 + $0x168] sm:$0xff]
      %v315 = vld [vmem:[%s1 + $0x170] sm:$0xff]
      %v316 = vld [vmem:[%s1 + $0x178] sm:$0xff]
      %v317 = vld [vmem:[%s1 + $0x180] sm:$0xff]
      %v318 = vld [vmem:[%s1 + $0x188] sm:$0xff]
      %v319 = vld [vmem:[%s1 + $0x190] sm:$0xff]
      %v320 = vld [vmem:[%s1 + $0x198] sm:$0xff]
      %v321 = vld [vmem:[%s1 + $0x1a0] sm:$0xff]
      %v322 = vld [vmem:[%s1 + $0x1a8] sm:$0xff]
      %v323 = vld [vmem:[%s1 + $0x1b0] sm:$0xff]
      %v324 = vld [vmem:[%s1 + $0x1b8] sm:$0xff]
      %v325 = vld [vmem:[%s1 + $0x1c0] sm:$0xff]
      %v326 = vld [vmem:[%s1 + $0x1c8] sm:$0xff]
      %v327 = vld [vmem:[%s1 + $0x1d0] sm:$0xff]
      %v328 = vld [vmem:[%s1 + $0x1d8] sm:$0xff]
      %v329 = vld [vmem:[%s1 + $0x1e0] sm:$0xff]
      %v330 = vld [vmem:[%s1 + $0x1e8] sm:$0xff]
      %v331 = vld [vmem:[%s1 + $0x1f0] sm:$0xff]
      %v332 = vld [vmem:[%s1 + $0x1f8] sm:$0xff]
      %s333 = scalar_lea.vmem %s254, 32
      %v334 = vld [vmem:[%s333] sm:$0xff]
      %v335 = vld [vmem:[%s333 + $0x8] sm:$0xff]
      %v336 = vld [vmem:[%s333 + $0x10] sm:$0xff]
      %v337 = vld [vmem:[%s333 + $0x18] sm:$0x11]
      %s338 = scalar_lea.vmem %s1, 512
      %v339 = vld [vmem:[%s338] sm:$0xff]
      %v340 = vld [vmem:[%s338 + $0x8] sm:$0xff]
      %v341 = vld [vmem:[%s338 + $0x10] sm:$0xff]
      %v342 = vld [vmem:[%s338 + $0x18] sm:$0xff]
      %v343 = vld [vmem:[%s338 + $0x20] sm:$0xff]
      %v344 = vld [vmem:[%s338 + $0x28] sm:$0xff]
      %v345 = vld [vmem:[%s338 + $0x30] sm:$0xff]
      %v346 = vld [vmem:[%s338 + $0x38] sm:$0xff]
      %v347 = vld [vmem:[%s338 + $0x40] sm:$0xff]
      %v348 = vld [vmem:[%s338 + $0x48] sm:$0xff]
      %v349 = vld [vmem:[%s338 + $0x50] sm:$0xff]
      %v350 = vld [vmem:[%s338 + $0x58] sm:$0xff]
      %v351 = vld [vmem:[%s338 + $0x60] sm:$0xff]
      %v352 = vld [vmem:[%s338 + $0x68] sm:$0xff]
      %v353 = vld [vmem:[%s338 + $0x70] sm:$0xff]
      %v354 = vld [vmem:[%s338 + $0x78] sm:$0xff]
      %v355 = vld [vmem:[%s338 + $0x80] sm:$0xff]
      %v356 = vld [vmem:[%s338 + $0x88] sm:$0xff]
      %v357 = vld [vmem:[%s338 + $0x90] sm:$0xff]
      %v358 = vld [vmem:[%s338 + $0x98] sm:$0xff]
      %v359 = vld [vmem:[%s338 + $0xa0] sm:$0xff]
      %v360 = vld [vmem:[%s338 + $0xa8] sm:$0xff]
      %v361 = vld [vmem:[%s338 + $0xb0] sm:$0xff]
      %v362 = vld [vmem:[%s338 + $0xb8] sm:$0xff]
      %v363 = vld [vmem:[%s338 + $0xc0] sm:$0xff]
      %v364 = vld [vmem:[%s338 + $0xc8] sm:$0xff]
      %v365 = vld [vmem:[%s338 + $0xd0] sm:$0xff]
      %v366 = vld [vmem:[%s338 + $0xd8] sm:$0xff]
      %v367 = vld [vmem:[%s338 + $0xe0] sm:$0xff]
      %v368 = vld [vmem:[%s338 + $0xe8] sm:$0xff]
      %v369 = vld [vmem:[%s338 + $0xf0] sm:$0xff]
      %v370 = vld [vmem:[%s338 + $0xf8] sm:$0xff]
      %v371 = vld [vmem:[%s338 + $0x100] sm:$0xff]
      %v372 = vld [vmem:[%s338 + $0x108] sm:$0xff]
      %v373 = vld [vmem:[%s338 + $0x110] sm:$0xff]
      %v374 = vld [vmem:[%s338 + $0x118] sm:$0xff]
      %v375 = vld [vmem:[%s338 + $0x120] sm:$0xff]
      %v376 = vld [vmem:[%s338 + $0x128] sm:$0xff]
      %v377 = vld [vmem:[%s338 + $0x130] sm:$0xff]
      %v378 = vld [vmem:[%s338 + $0x138] sm:$0xff]
      %v379 = vld [vmem:[%s338 + $0x140] sm:$0xff]
      %v380 = vld [vmem:[%s338 + $0x148] sm:$0xff]
      %v381 = vld [vmem:[%s338 + $0x150] sm:$0xff]
      %v382 = vld [vmem:[%s338 + $0x158] sm:$0xff]
      %v383 = vld [vmem:[%s338 + $0x160] sm:$0xff]
      %v384 = vld [vmem:[%s338 + $0x168] sm:$0xff]
      %v385 = vld [vmem:[%s338 + $0x170] sm:$0xff]
      %v386 = vld [vmem:[%s338 + $0x178] sm:$0xff]
      %v387 = vld [vmem:[%s338 + $0x180] sm:$0xff]
      %v388 = vld [vmem:[%s338 + $0x188] sm:$0xff]
      %v389 = vld [vmem:[%s338 + $0x190] sm:$0xff]
      %v390 = vld [vmem:[%s338 + $0x198] sm:$0xff]
      %v391 = vld [vmem:[%s338 + $0x1a0] sm:$0xff]
      %v392 = vld [vmem:[%s338 + $0x1a8] sm:$0xff]
      %v393 = vld [vmem:[%s338 + $0x1b0] sm:$0xff]
      %v394 = vld [vmem:[%s338 + $0x1b8] sm:$0xff]
      %v395 = vld [vmem:[%s338 + $0x1c0] sm:$0xff]
      %v396 = vld [vmem:[%s338 + $0x1c8] sm:$0xff]
      %v397 = vld [vmem:[%s338 + $0x1d0] sm:$0xff]
      %v398 = vld [vmem:[%s338 + $0x1d8] sm:$0xff]
      %v399 = vld [vmem:[%s338 + $0x1e0] sm:$0xff]
      %v400 = vld [vmem:[%s338 + $0x1e8] sm:$0xff]
      %v401 = vld [vmem:[%s338 + $0x1f0] sm:$0xff]
      %v402 = vld [vmem:[%s338 + $0x1f8] sm:$0xff]
      %v407 = vunpack.c.l.b16 %v334
      %v408 = vunpack.c.h.b16 %v334
      %v409 = vunpack.c.l.b16 %v335
      %v410 = vunpack.c.h.b16 %v335
      %v411 = vunpack.c.l.b16 %v336
      %v412 = vunpack.c.h.b16 %v336
      %v413 = vunpack.c.l.b16 %v337
      %v414 = vunpack.c.h.b16 %v337
      %v415 = vpack.c.b16 %v409, %v407
      %v416 = vpack.c.b16 %v410, %v408
      %v417 = vpack.c.b16 %v413, %v411
      %v418 = vpack.c.b16 %v414, %v412
      %v487 = vunpack.c.l.b16 %v339
      %v488 = vunpack.c.h.b16 %v339
      %v489 = vunpack.c.l.b16 %v340
      %v490 = vunpack.c.h.b16 %v340
      %v491 = vunpack.c.l.b16 %v341
      %v492 = vunpack.c.h.b16 %v341
      %v493 = vunpack.c.l.b16 %v342
      %v494 = vunpack.c.h.b16 %v342
      %v495 = vunpack.c.l.b16 %v343
      %v496 = vunpack.c.h.b16 %v343
      %v497 = vunpack.c.l.b16 %v344
      %v498 = vunpack.c.h.b16 %v344
      %v499 = vunpack.c.l.b16 %v345
      %v500 = vunpack.c.h.b16 %v345
      %v501 = vunpack.c.l.b16 %v346
      %v502 = vunpack.c.h.b16 %v346
      %v503 = vunpack.c.l.b16 %v347
      %v504 = vunpack.c.h.b16 %v347
      %v505 = vunpack.c.l.b16 %v348
      %v506 = vunpack.c.h.b16 %v348
      %v507 = vunpack.c.l.b16 %v349
      %v508 = vunpack.c.h.b16 %v349
      %v509 = vunpack.c.l.b16 %v350
      %v510 = vunpack.c.h.b16 %v350
      %v511 = vunpack.c.l.b16 %v351
      %v512 = vunpack.c.h.b16 %v351
      %v513 = vunpack.c.l.b16 %v352
      %v514 = vunpack.c.h.b16 %v352
      %v515 = vunpack.c.l.b16 %v353
      %v516 = vunpack.c.h.b16 %v353
      %v517 = vunpack.c.l.b16 %v354
      %v518 = vunpack.c.h.b16 %v354
      %v519 = vunpack.c.l.b16 %v355
      %v520 = vunpack.c.h.b16 %v355
      %v521 = vunpack.c.l.b16 %v356
      %v522 = vunpack.c.h.b16 %v356
      %v523 = vunpack.c.l.b16 %v357
      %v524 = vunpack.c.h.b16 %v357
      %v525 = vunpack.c.l.b16 %v358
      %v526 = vunpack.c.h.b16 %v358
      %v527 = vunpack.c.l.b16 %v359
      %v528 = vunpack.c.h.b16 %v359
      %v529 = vunpack.c.l.b16 %v360
      %v530 = vunpack.c.h.b16 %v360
      %v531 = vunpack.c.l.b16 %v361
      %v532 = vunpack.c.h.b16 %v361
      %v533 = vunpack.c.l.b16 %v362
      %v534 = vunpack.c.h.b16 %v362
      %v535 = vunpack.c.l.b16 %v363
      %v536 = vunpack.c.h.b16 %v363
      %v537 = vunpack.c.l.b16 %v364
      %v538 = vunpack.c.h.b16 %v364
      %v539 = vunpack.c.l.b16 %v365
      %v540 = vunpack.c.h.b16 %v365
      %v541 = vunpack.c.l.b16 %v366
      %v542 = vunpack.c.h.b16 %v366
      %v543 = vunpack.c.l.b16 %v367
      %v544 = vunpack.c.h.b16 %v367
      %v545 = vunpack.c.l.b16 %v368
      %v546 = vunpack.c.h.b16 %v368
      %v547 = vunpack.c.l.b16 %v369
      %v548 = vunpack.c.h.b16 %v369
      %v549 = vunpack.c.l.b16 %v370
      %v550 = vunpack.c.h.b16 %v370
      %v551 = vunpack.c.l.b16 %v371
      %v552 = vunpack.c.h.b16 %v371
      %v553 = vunpack.c.l.b16 %v372
      %v554 = vunpack.c.h.b16 %v372
      %v555 = vunpack.c.l.b16 %v373
      %v556 = vunpack.c.h.b16 %v373
      %v557 = vunpack.c.l.b16 %v374
      %v558 = vunpack.c.h.b16 %v374
      %v559 = vunpack.c.l.b16 %v375
      %v560 = vunpack.c.h.b16 %v375
      %v561 = vunpack.c.l.b16 %v376
      %v562 = vunpack.c.h.b16 %v376
      %v563 = vunpack.c.l.b16 %v377
      %v564 = vunpack.c.h.b16 %v377
      %v565 = vunpack.c.l.b16 %v378
      %v566 = vunpack.c.h.b16 %v378
      %v567 = vunpack.c.l.b16 %v379
      %v568 = vunpack.c.h.b16 %v379
      %v569 = vunpack.c.l.b16 %v380
      %v570 = vunpack.c.h.b16 %v380
      %v571 = vunpack.c.l.b16 %v381
      %v572 = vunpack.c.h.b16 %v381
      %v573 = vunpack.c.l.b16 %v382
      %v574 = vunpack.c.h.b16 %v382
      %v575 = vunpack.c.l.b16 %v383
      %v576 = vunpack.c.h.b16 %v383
      %v577 = vunpack.c.l.b16 %v384
      %v578 = vunpack.c.h.b16 %v384
      %v579 = vunpack.c.l.b16 %v385
      %v580 = vunpack.c.h.b16 %v385
      %v581 = vunpack.c.l.b16 %v386
      %v582 = vunpack.c.h.b16 %v386
      %v583 = vunpack.c.l.b16 %v387
      %v584 = vunpack.c.h.b16 %v387
      %v585 = vunpack.c.l.b16 %v388
      %v586 = vunpack.c.h.b16 %v388
      %v587 = vunpack.c.l.b16 %v389
      %v588 = vunpack.c.h.b16 %v389
      %v589 = vunpack.c.l.b16 %v390
      %v590 = vunpack.c.h.b16 %v390
      %v591 = vunpack.c.l.b16 %v391
      %v592 = vunpack.c.h.b16 %v391
      %v593 = vunpack.c.l.b16 %v392
      %v594 = vunpack.c.h.b16 %v392
      %v595 = vunpack.c.l.b16 %v393
      %v596 = vunpack.c.h.b16 %v393
      %v597 = vunpack.c.l.b16 %v394
      %v598 = vunpack.c.h.b16 %v394
      %v599 = vunpack.c.l.b16 %v395
      %v600 = vunpack.c.h.b16 %v395
      %v601 = vunpack.c.l.b16 %v396
      %v602 = vunpack.c.h.b16 %v396
      %v603 = vunpack.c.l.b16 %v397
      %v604 = vunpack.c.h.b16 %v397
      %v605 = vunpack.c.l.b16 %v398
      %v606 = vunpack.c.h.b16 %v398
      %v607 = vunpack.c.l.b16 %v399
      %v608 = vunpack.c.h.b16 %v399
      %v609 = vunpack.c.l.b16 %v400
      %v610 = vunpack.c.h.b16 %v400
      %v611 = vunpack.c.l.b16 %v401
      %v612 = vunpack.c.h.b16 %v401
      %v613 = vunpack.c.l.b16 %v402
      %v614 = vunpack.c.h.b16 %v402
      %v615 = vpack.c.b16 %v491, %v487
      %v616 = vpack.c.b16 %v492, %v488
      %v617 = vpack.c.b16 %v493, %v489
      %v618 = vpack.c.b16 %v494, %v490
      %v619 = vpack.c.b16 %v499, %v495
      %v620 = vpack.c.b16 %v500, %v496
      %v621 = vpack.c.b16 %v501, %v497
      %v622 = vpack.c.b16 %v502, %v498
      %v623 = vpack.c.b16 %v507, %v503
      %v624 = vpack.c.b16 %v508, %v504
      %v625 = vpack.c.b16 %v509, %v505
      %v626 = vpack.c.b16 %v510, %v506
      %v627 = vpack.c.b16 %v515, %v511
      %v628 = vpack.c.b16 %v516, %v512
      %v629 = vpack.c.b16 %v517, %v513
      %v630 = vpack.c.b16 %v518, %v514
      %v631 = vpack.c.b16 %v523, %v519
      %v632 = vpack.c.b16 %v524, %v520
      %v633 = vpack.c.b16 %v525, %v521
      %v634 = vpack.c.b16 %v526, %v522
      %v635 = vpack.c.b16 %v531, %v527
      %v636 = vpack.c.b16 %v532, %v528
      %v637 = vpack.c.b16 %v533, %v529
      %v638 = vpack.c.b16 %v534, %v530
      %v639 = vpack.c.b16 %v539, %v535
      %v640 = vpack.c.b16 %v540, %v536
      %v641 = vpack.c.b16 %v541, %v537
      %v642 = vpack.c.b16 %v542, %v538
      %v643 = vpack.c.b16 %v547, %v543
      %v644 = vpack.c.b16 %v548, %v544
      %v645 = vpack.c.b16 %v549, %v545
      %v646 = vpack.c.b16 %v550, %v546
      %v647 = vpack.c.b16 %v555, %v551
      %v648 = vpack.c.b16 %v556, %v552
      %v649 = vpack.c.b16 %v557, %v553
      %v650 = vpack.c.b16 %v558, %v554
      %v651 = vpack.c.b16 %v563, %v559
      %v652 = vpack.c.b16 %v564, %v560
      %v653 = vpack.c.b16 %v565, %v561
      %v654 = vpack.c.b16 %v566, %v562
      %v655 = vpack.c.b16 %v571, %v567
      %v656 = vpack.c.b16 %v572, %v568
      %v657 = vpack.c.b16 %v573, %v569
      %v658 = vpack.c.b16 %v574, %v570
      %v659 = vpack.c.b16 %v579, %v575
      %v660 = vpack.c.b16 %v580, %v576
      %v661 = vpack.c.b16 %v581, %v577
      %v662 = vpack.c.b16 %v582, %v578
      %v663 = vpack.c.b16 %v587, %v583
      %v664 = vpack.c.b16 %v588, %v584
      %v665 = vpack.c.b16 %v589, %v585
      %v666 = vpack.c.b16 %v590, %v586
      %v667 = vpack.c.b16 %v595, %v591
      %v668 = vpack.c.b16 %v596, %v592
      %v669 = vpack.c.b16 %v597, %v593
      %v670 = vpack.c.b16 %v598, %v594
      %v671 = vpack.c.b16 %v603, %v599
      %v672 = vpack.c.b16 %v604, %v600
      %v673 = vpack.c.b16 %v605, %v601
      %v674 = vpack.c.b16 %v606, %v602
      %v675 = vpack.c.b16 %v611, %v607
      %v676 = vpack.c.b16 %v612, %v608
      %v677 = vpack.c.b16 %v613, %v609
      %v678 = vpack.c.b16 %v614, %v610
      %743 = vmatpush.bf16.msra.mxu0 %v643
      %744 = vmatpush.bf16.msra.mxu0 %v639
      %745 = vmatpush.bf16.msra.mxu0 %v635
      %746 = vmatpush.bf16.msra.mxu0 %v631
      %747 = vmatpush.bf16.msra.mxu0 %v627
      %748 = vmatpush.bf16.msra.mxu0 %v623
      %749 = vmatpush.bf16.msra.mxu0 %v619
      %750 = vmatpush.bf16.msra.mxu0 %v615
      %751 = vmatmul.bf16.gmra.mxu0 %v415
      %v752 = vpop.f32.mrf.mxu0
      %v753 = vadd.f32 0.0, %v752
      %v754 = vpop.f32.mrf.mxu0
      %v755 = vadd.f32 0.0, %v754
      %756 = vmatmul.bf16.gmra.mxu0 %v417
      %v757 = vpop.f32.mrf.mxu0
      %v758 = vadd.f32 0.0, %v757
      %v759 = vpop.f32.mrf.mxu0
      %v760 = vadd.f32 0.0, %v759
      %761 = vdwg.mxu0
      %762 = vmatpush.bf16.msra.mxu0 %v675
      %763 = vmatpush.bf16.msra.mxu0 %v671
      %764 = vmatpush.bf16.msra.mxu0 %v667
      %765 = vmatpush.bf16.msra.mxu0 %v663
      %766 = vmatpush.bf16.msra.mxu0 %v659
      %767 = vmatpush.bf16.msra.mxu0 %v655
      %768 = vmatpush.bf16.msra.mxu0 %v651
      %769 = vmatpush.bf16.msra.mxu0 %v647
      %770 = vmatmul.bf16.gmra.mxu0 %v416
      %v771 = vpop.f32.mrf.mxu0
      %v772 = vadd.f32 %v753, %v771
      %v773 = vpop.f32.mrf.mxu0
      %v774 = vadd.f32 %v755, %v773
      %775 = vmatmul.bf16.gmra.mxu0 %v418
      %v776 = vpop.f32.mrf.mxu0
      %v777 = vadd.f32 %v758, %v776
      %v778 = vpop.f32.mrf.mxu0
      %v779 = vadd.f32 %v760, %v778
      %780 = vdwg.mxu0
      %781 = vmatpush.bf16.msra.mxu0 %v644
      %782 = vmatpush.bf16.msra.mxu0 %v640
      %783 = vmatpush.bf16.msra.mxu0 %v636
      %784 = vmatpush.bf16.msra.mxu0 %v632
      %785 = vmatpush.bf16.msra.mxu0 %v628
      %786 = vmatpush.bf16.msra.mxu0 %v624
      %787 = vmatpush.bf16.msra.mxu0 %v620
      %788 = vmatpush.bf16.msra.mxu0 %v616
      %789 = vmatmul.bf16.gmra.mxu0 %v415
      %v790 = vpop.f32.mrf.mxu0
      %v791 = vadd.f32 0.0, %v790
      %v792 = vpop.f32.mrf.mxu0
      %v793 = vadd.f32 0.0, %v792
      %794 = vmatmul.bf16.gmra.mxu0 %v417
      %v795 = vpop.f32.mrf.mxu0
      %v796 = vadd.f32 0.0, %v795
      %v797 = vpop.f32.mrf.mxu0
      %v798 = vadd.f32 0.0, %v797
      %799 = vdwg.mxu0
      %800 = vmatpush.bf16.msra.mxu0 %v676
      %801 = vmatpush.bf16.msra.mxu0 %v672
      %802 = vmatpush.bf16.msra.mxu0 %v668
      %803 = vmatpush.bf16.msra.mxu0 %v664
      %804 = vmatpush.bf16.msra.mxu0 %v660
      %805 = vmatpush.bf16.msra.mxu0 %v656
      %806 = vmatpush.bf16.msra.mxu0 %v652
      %807 = vmatpush.bf16.msra.mxu0 %v648
      %808 = vmatmul.bf16.gmra.mxu0 %v416
      %v809 = vpop.f32.mrf.mxu0
      %v810 = vadd.f32 %v791, %v809
      %v811 = vpop.f32.mrf.mxu0
      %v812 = vadd.f32 %v793, %v811
      %813 = vmatmul.bf16.gmra.mxu0 %v418
      %v814 = vpop.f32.mrf.mxu0
      %v815 = vadd.f32 %v796, %v814
      %v816 = vpop.f32.mrf.mxu0
      %v817 = vadd.f32 %v798, %v816
      %818 = vdwg.mxu0
      %819 = vmatpush.bf16.msra.mxu0 %v645
      %820 = vmatpush.bf16.msra.mxu0 %v641
      %821 = vmatpush.bf16.msra.mxu0 %v637
      %822 = vmatpush.bf16.msra.mxu0 %v633
      %823 = vmatpush.bf16.msra.mxu0 %v629
      %824 = vmatpush.bf16.msra.mxu0 %v625
      %825 = vmatpush.bf16.msra.mxu0 %v621
      %826 = vmatpush.bf16.msra.mxu0 %v617
      %827 = vmatmul.bf16.gmra.mxu0 %v415
      %v828 = vpop.f32.mrf.mxu0
      %v829 = vadd.f32 0.0, %v828
      %v830 = vpop.f32.mrf.mxu0
      %v831 = vadd.f32 0.0, %v830
      %832 = vmatmul.bf16.gmra.mxu0 %v417
      %v833 = vpop.f32.mrf.mxu0
      %v834 = vadd.f32 0.0, %v833
      %v835 = vpop.f32.mrf.mxu0
      %v836 = vadd.f32 0.0, %v835
      %837 = vdwg.mxu0
      %838 = vmatpush.bf16.msra.mxu0 %v677
      %839 = vmatpush.bf16.msra.mxu0 %v673
      %840 = vmatpush.bf16.msra.mxu0 %v669
      %841 = vmatpush.bf16.msra.mxu0 %v665
      %842 = vmatpush.bf16.msra.mxu0 %v661
      %843 = vmatpush.bf16.msra.mxu0 %v657
      %844 = vmatpush.bf16.msra.mxu0 %v653
      %845 = vmatpush.bf16.msra.mxu0 %v649
      %846 = vmatmul.bf16.gmra.mxu0 %v416
      %v847 = vpop.f32.mrf.mxu0
      %v848 = vadd.f32 %v829, %v847
      %v849 = vpop.f32.mrf.mxu0
      %v850 = vadd.f32 %v831, %v849
      %851 = vmatmul.bf16.gmra.mxu0 %v418
      %v852 = vpop.f32.mrf.mxu0
      %v853 = vadd.f32 %v834, %v852
      %v854 = vpop.f32.mrf.mxu0
      %v855 = vadd.f32 %v836, %v854
      %856 = vdwg.mxu0
      %857 = vmatpush.bf16.msra.mxu0 %v646
      %858 = vmatpush.bf16.msra.mxu0 %v642
      %859 = vmatpush.bf16.msra.mxu0 %v638
      %860 = vmatpush.bf16.msra.mxu0 %v634
      %861 = vmatpush.bf16.msra.mxu0 %v630
      %862 = vmatpush.bf16.msra.mxu0 %v626
      %863 = vmatpush.bf16.msra.mxu0 %v622
      %864 = vmatpush.bf16.msra.mxu0 %v618
      %865 = vmatmul.bf16.gmra.mxu0 %v415
      %v866 = vpop.f32.mrf.mxu0
      %v867 = vadd.f32 0.0, %v866
      %v868 = vpop.f32.mrf.mxu0
      %v869 = vadd.f32 0.0, %v868
      %870 = vmatmul.bf16.gmra.mxu0 %v417
      %v871 = vpop.f32.mrf.mxu0
      %v872 = vadd.f32 0.0, %v871
      %v873 = vpop.f32.mrf.mxu0
      %v874 = vadd.f32 0.0, %v873
      %875 = vdwg.mxu0
      %876 = vmatpush.bf16.msra.mxu0 %v678
      %877 = vmatpush.bf16.msra.mxu0 %v674
      %878 = vmatpush.bf16.msra.mxu0 %v670
      %879 = vmatpush.bf16.msra.mxu0 %v666
      %880 = vmatpush.bf16.msra.mxu0 %v662
      %881 = vmatpush.bf16.msra.mxu0 %v658
      %882 = vmatpush.bf16.msra.mxu0 %v654
      %883 = vmatpush.bf16.msra.mxu0 %v650
      %884 = vmatmul.bf16.gmra.mxu0 %v416
      %v885 = vpop.f32.mrf.mxu0
      %v886 = vadd.f32 %v867, %v885
      %v887 = vpop.f32.mrf.mxu0
      %v888 = vadd.f32 %v869, %v887
      %889 = vmatmul.bf16.gmra.mxu0 %v418
      %v890 = vpop.f32.mrf.mxu0
      %v891 = vadd.f32 %v872, %v890
      %v892 = vpop.f32.mrf.mxu0
      %v893 = vadd.f32 %v874, %v892
      %894 = vdwg.mxu0
      %v899 = vunpack.c.l.b16 %v265
      %v900 = vunpack.c.h.b16 %v265
      %v901 = vunpack.c.l.b16 %v266
      %v902 = vunpack.c.h.b16 %v266
      %v903 = vunpack.c.l.b16 %v267
      %v904 = vunpack.c.h.b16 %v267
      %v905 = vunpack.c.l.b16 %v268
      %v906 = vunpack.c.h.b16 %v268
      %v907 = vpack.c.b16 %v901, %v899
      %v908 = vpack.c.b16 %v902, %v900
      %v909 = vpack.c.b16 %v905, %v903
      %v910 = vpack.c.b16 %v906, %v904
      %v979 = vunpack.c.l.b16 %v269
      %v980 = vunpack.c.h.b16 %v269
      %v981 = vunpack.c.l.b16 %v270
      %v982 = vunpack.c.h.b16 %v270
      %v983 = vunpack.c.l.b16 %v271
      %v984 = vunpack.c.h.b16 %v271
      %v985 = vunpack.c.l.b16 %v272
      %v986 = vunpack.c.h.b16 %v272
      %v987 = vunpack.c.l.b16 %v273
      %v988 = vunpack.c.h.b16 %v273
      %v989 = vunpack.c.l.b16 %v274
      %v990 = vunpack.c.h.b16 %v274
      %v991 = vunpack.c.l.b16 %v275
      %v992 = vunpack.c.h.b16 %v275
      %v993 = vunpack.c.l.b16 %v276
      %v994 = vunpack.c.h.b16 %v276
      %v995 = vunpack.c.l.b16 %v277
      %v996 = vunpack.c.h.b16 %v277
      %v997 = vunpack.c.l.b16 %v278
      %v998 = vunpack.c.h.b16 %v278
      %v999 = vunpack.c.l.b16 %v279
      %v1000 = vunpack.c.h.b16 %v279
      %v1001 = vunpack.c.l.b16 %v280
      %v1002 = vunpack.c.h.b16 %v280
      %v1003 = vunpack.c.l.b16 %v281
      %v1004 = vunpack.c.h.b16 %v281
      %v1005 = vunpack.c.l.b16 %v282
      %v1006 = vunpack.c.h.b16 %v282
      %v1007 = vunpack.c.l.b16 %v283
      %v1008 = vunpack.c.h.b16 %v283
      %v1009 = vunpack.c.l.b16 %v284
      %v1010 = vunpack.c.h.b16 %v284
      %v1011 = vunpack.c.l.b16 %v285
      %v1012 = vunpack.c.h.b16 %v285
      %v1013 = vunpack.c.l.b16 %v286
      %v1014 = vunpack.c.h.b16 %v286
      %v1015 = vunpack.c.l.b16 %v287
      %v1016 = vunpack.c.h.b16 %v287
      %v1017 = vunpack.c.l.b16 %v288
      %v1018 = vunpack.c.h.b16 %v288
      %v1019 = vunpack.c.l.b16 %v289
      %v1020 = vunpack.c.h.b16 %v289
      %v1021 = vunpack.c.l.b16 %v290
      %v1022 = vunpack.c.h.b16 %v290
      %v1023 = vunpack.c.l.b16 %v291
      %v1024 = vunpack.c.h.b16 %v291
      %v1025 = vunpack.c.l.b16 %v292
      %v1026 = vunpack.c.h.b16 %v292
      %v1027 = vunpack.c.l.b16 %v293
      %v1028 = vunpack.c.h.b16 %v293
      %v1029 = vunpack.c.l.b16 %v294
      %v1030 = vunpack.c.h.b16 %v294
      %v1031 = vunpack.c.l.b16 %v295
      %v1032 = vunpack.c.h.b16 %v295
      %v1033 = vunpack.c.l.b16 %v296
      %v1034 = vunpack.c.h.b16 %v296
      %v1035 = vunpack.c.l.b16 %v297
      %v1036 = vunpack.c.h.b16 %v297
      %v1037 = vunpack.c.l.b16 %v298
      %v1038 = vunpack.c.h.b16 %v298
      %v1039 = vunpack.c.l.b16 %v299
      %v1040 = vunpack.c.h.b16 %v299
      %v1041 = vunpack.c.l.b16 %v300
      %v1042 = vunpack.c.h.b16 %v300
      %v1043 = vunpack.c.l.b16 %v301
      %v1044 = vunpack.c.h.b16 %v301
      %v1045 = vunpack.c.l.b16 %v302
      %v1046 = vunpack.c.h.b16 %v302
      %v1047 = vunpack.c.l.b16 %v303
      %v1048 = vunpack.c.h.b16 %v303
      %v1049 = vunpack.c.l.b16 %v304
      %v1050 = vunpack.c.h.b16 %v304
      %v1051 = vunpack.c.l.b16 %v305
      %v1052 = vunpack.c.h.b16 %v305
      %v1053 = vunpack.c.l.b16 %v306
      %v1054 = vunpack.c.h.b16 %v306
      %v1055 = vunpack.c.l.b16 %v307
      %v1056 = vunpack.c.h.b16 %v307
      %v1057 = vunpack.c.l.b16 %v308
      %v1058 = vunpack.c.h.b16 %v308
      %v1059 = vunpack.c.l.b16 %v309
      %v1060 = vunpack.c.h.b16 %v309
      %v1061 = vunpack.c.l.b16 %v310
      %v1062 = vunpack.c.h.b16 %v310
      %v1063 = vunpack.c.l.b16 %v311
      %v1064 = vunpack.c.h.b16 %v311
      %v1065 = vunpack.c.l.b16 %v312
      %v1066 = vunpack.c.h.b16 %v312
      %v1067 = vunpack.c.l.b16 %v313
      %v1068 = vunpack.c.h.b16 %v313
      %v1069 = vunpack.c.l.b16 %v314
      %v1070 = vunpack.c.h.b16 %v314
      %v1071 = vunpack.c.l.b16 %v315
      %v1072 = vunpack.c.h.b16 %v315
      %v1073 = vunpack.c.l.b16 %v316
      %v1074 = vunpack.c.h.b16 %v316
      %v1075 = vunpack.c.l.b16 %v317
      %v1076 = vunpack.c.h.b16 %v317
      %v1077 = vunpack.c.l.b16 %v318
      %v1078 = vunpack.c.h.b16 %v318
      %v1079 = vunpack.c.l.b16 %v319
      %v1080 = vunpack.c.h.b16 %v319
      %v1081 = vunpack.c.l.b16 %v320
      %v1082 = vunpack.c.h.b16 %v320
      %v1083 = vunpack.c.l.b16 %v321
      %v1084 = vunpack.c.h.b16 %v321
      %v1085 = vunpack.c.l.b16 %v322
      %v1086 = vunpack.c.h.b16 %v322
      %v1087 = vunpack.c.l.b16 %v323
      %v1088 = vunpack.c.h.b16 %v323
      %v1089 = vunpack.c.l.b16 %v324
      %v1090 = vunpack.c.h.b16 %v324
      %v1091 = vunpack.c.l.b16 %v325
      %v1092 = vunpack.c.h.b16 %v325
      %v1093 = vunpack.c.l.b16 %v326
      %v1094 = vunpack.c.h.b16 %v326
      %v1095 = vunpack.c.l.b16 %v327
      %v1096 = vunpack.c.h.b16 %v327
      %v1097 = vunpack.c.l.b16 %v328
      %v1098 = vunpack.c.h.b16 %v328
      %v1099 = vunpack.c.l.b16 %v329
      %v1100 = vunpack.c.h.b16 %v329
      %v1101 = vunpack.c.l.b16 %v330
      %v1102 = vunpack.c.h.b16 %v330
      %v1103 = vunpack.c.l.b16 %v331
      %v1104 = vunpack.c.h.b16 %v331
      %v1105 = vunpack.c.l.b16 %v332
      %v1106 = vunpack.c.h.b16 %v332
      %v1107 = vpack.c.b16 %v983, %v979
      %v1108 = vpack.c.b16 %v984, %v980
      %v1109 = vpack.c.b16 %v985, %v981
      %v1110 = vpack.c.b16 %v986, %v982
      %v1111 = vpack.c.b16 %v991, %v987
      %v1112 = vpack.c.b16 %v992, %v988
      %v1113 = vpack.c.b16 %v993, %v989
      %v1114 = vpack.c.b16 %v994, %v990
      %v1115 = vpack.c.b16 %v999, %v995
      %v1116 = vpack.c.b16 %v1000, %v996
      %v1117 = vpack.c.b16 %v1001, %v997
      %v1118 = vpack.c.b16 %v1002, %v998
      %v1119 = vpack.c.b16 %v1007, %v1003
      %v1120 = vpack.c.b16 %v1008, %v1004
      %v1121 = vpack.c.b16 %v1009, %v1005
      %v1122 = vpack.c.b16 %v1010, %v1006
      %v1123 = vpack.c.b16 %v1015, %v1011
      %v1124 = vpack.c.b16 %v1016, %v1012
      %v1125 = vpack.c.b16 %v1017, %v1013
      %v1126 = vpack.c.b16 %v1018, %v1014
      %v1127 = vpack.c.b16 %v1023, %v1019
      %v1128 = vpack.c.b16 %v1024, %v1020
      %v1129 = vpack.c.b16 %v1025, %v1021
      %v1130 = vpack.c.b16 %v1026, %v1022
      %v1131 = vpack.c.b16 %v1031, %v1027
      %v1132 = vpack.c.b16 %v1032, %v1028
      %v1133 = vpack.c.b16 %v1033, %v1029
      %v1134 = vpack.c.b16 %v1034, %v1030
      %v1135 = vpack.c.b16 %v1039, %v1035
      %v1136 = vpack.c.b16 %v1040, %v1036
      %v1137 = vpack.c.b16 %v1041, %v1037
      %v1138 = vpack.c.b16 %v1042, %v1038
      %v1139 = vpack.c.b16 %v1047, %v1043
      %v1140 = vpack.c.b16 %v1048, %v1044
      %v1141 = vpack.c.b16 %v1049, %v1045
      %v1142 = vpack.c.b16 %v1050, %v1046
      %v1143 = vpack.c.b16 %v1055, %v1051
      %v1144 = vpack.c.b16 %v1056, %v1052
      %v1145 = vpack.c.b16 %v1057, %v1053
      %v1146 = vpack.c.b16 %v1058, %v1054
      %v1147 = vpack.c.b16 %v1063, %v1059
      %v1148 = vpack.c.b16 %v1064, %v1060
      %v1149 = vpack.c.b16 %v1065, %v1061
      %v1150 = vpack.c.b16 %v1066, %v1062
      %v1151 = vpack.c.b16 %v1071, %v1067
      %v1152 = vpack.c.b16 %v1072, %v1068
      %v1153 = vpack.c.b16 %v1073, %v1069
      %v1154 = vpack.c.b16 %v1074, %v1070
      %v1155 = vpack.c.b16 %v1079, %v1075
      %v1156 = vpack.c.b16 %v1080, %v1076
      %v1157 = vpack.c.b16 %v1081, %v1077
      %v1158 = vpack.c.b16 %v1082, %v1078
      %v1159 = vpack.c.b16 %v1087, %v1083
      %v1160 = vpack.c.b16 %v1088, %v1084
      %v1161 = vpack.c.b16 %v1089, %v1085
      %v1162 = vpack.c.b16 %v1090, %v1086
      %v1163 = vpack.c.b16 %v1095, %v1091
      %v1164 = vpack.c.b16 %v1096, %v1092
      %v1165 = vpack.c.b16 %v1097, %v1093
      %v1166 = vpack.c.b16 %v1098, %v1094
      %v1167 = vpack.c.b16 %v1103, %v1099
      %v1168 = vpack.c.b16 %v1104, %v1100
      %v1169 = vpack.c.b16 %v1105, %v1101
      %v1170 = vpack.c.b16 %v1106, %v1102
      %1235 = vmatpush.bf16.msra.mxu0 %v1135
      %1236 = vmatpush.bf16.msra.mxu0 %v1131
      %1237 = vmatpush.bf16.msra.mxu0 %v1127
      %1238 = vmatpush.bf16.msra.mxu0 %v1123
      %1239 = vmatpush.bf16.msra.mxu0 %v1119
      %1240 = vmatpush.bf16.msra.mxu0 %v1115
      %1241 = vmatpush.bf16.msra.mxu0 %v1111
      %1242 = vmatpush.bf16.msra.mxu0 %v1107
      %1243 = vmatmul.bf16.gmra.mxu0 %v907
      %v1244 = vpop.f32.mrf.mxu0
      %v1245 = vadd.f32 %v772, %v1244
      %v1246 = vpop.f32.mrf.mxu0
      %v1247 = vadd.f32 %v774, %v1246
      %1248 = vmatmul.bf16.gmra.mxu0 %v909
      %v1249 = vpop.f32.mrf.mxu0
      %v1250 = vadd.f32 %v777, %v1249
      %v1251 = vpop.f32.mrf.mxu0
      %v1252 = vadd.f32 %v779, %v1251
      %1253 = vdwg.mxu0
      %1254 = vmatpush.bf16.msra.mxu0 %v1167
      %1255 = vmatpush.bf16.msra.mxu0 %v1163
      %1256 = vmatpush.bf16.msra.mxu0 %v1159
      %1257 = vmatpush.bf16.msra.mxu0 %v1155
      %1258 = vmatpush.bf16.msra.mxu0 %v1151
      %1259 = vmatpush.bf16.msra.mxu0 %v1147
      %1260 = vmatpush.bf16.msra.mxu0 %v1143
      %1261 = vmatpush.bf16.msra.mxu0 %v1139
      %1262 = vmatmul.bf16.gmra.mxu0 %v908
      %v1263 = vpop.f32.mrf.mxu0
      %v1264 = vadd.f32 %v1245, %v1263
      %v1265 = vpop.f32.mrf.mxu0
      %v1266 = vadd.f32 %v1247, %v1265
      %1267 = vmatmul.bf16.gmra.mxu0 %v910
      %v1268 = vpop.f32.mrf.mxu0
      %v1269 = vadd.f32 %v1250, %v1268
      %v1270 = vpop.f32.mrf.mxu0
      %v1271 = vadd.f32 %v1252, %v1270
      %1272 = vdwg.mxu0
      %1273 = vmatpush.bf16.msra.mxu0 %v1136
      %1274 = vmatpush.bf16.msra.mxu0 %v1132
      %1275 = vmatpush.bf16.msra.mxu0 %v1128
      %1276 = vmatpush.bf16.msra.mxu0 %v1124
      %1277 = vmatpush.bf16.msra.mxu0 %v1120
      %1278 = vmatpush.bf16.msra.mxu0 %v1116
      %1279 = vmatpush.bf16.msra.mxu0 %v1112
      %1280 = vmatpush.bf16.msra.mxu0 %v1108
      %1281 = vmatmul.bf16.gmra.mxu0 %v907
      %v1282 = vpop.f32.mrf.mxu0
      %v1283 = vadd.f32 %v810, %v1282
      %v1284 = vpop.f32.mrf.mxu0
      %v1285 = vadd.f32 %v812, %v1284
      %1286 = vmatmul.bf16.gmra.mxu0 %v909
      %v1287 = vpop.f32.mrf.mxu0
      %v1288 = vadd.f32 %v815, %v1287
      %v1289 = vpop.f32.mrf.mxu0
      %v1290 = vadd.f32 %v817, %v1289
      %1291 = vdwg.mxu0
      %1292 = vmatpush.bf16.msra.mxu0 %v1168
      %1293 = vmatpush.bf16.msra.mxu0 %v1164
      %1294 = vmatpush.bf16.msra.mxu0 %v1160
      %1295 = vmatpush.bf16.msra.mxu0 %v1156
      %1296 = vmatpush.bf16.msra.mxu0 %v1152
      %1297 = vmatpush.bf16.msra.mxu0 %v1148
      %1298 = vmatpush.bf16.msra.mxu0 %v1144
      %1299 = vmatpush.bf16.msra.mxu0 %v1140
      %1300 = vmatmul.bf16.gmra.mxu0 %v908
      %v1301 = vpop.f32.mrf.mxu0
      %v1302 = vadd.f32 %v1283, %v1301
      %v1303 = vpop.f32.mrf.mxu0
      %v1304 = vadd.f32 %v1285, %v1303
      %1305 = vmatmul.bf16.gmra.mxu0 %v910
      %v1306 = vpop.f32.mrf.mxu0
      %v1307 = vadd.f32 %v1288, %v1306
      %v1308 = vpop.f32.mrf.mxu0
      %v1309 = vadd.f32 %v1290, %v1308
      %1310 = vdwg.mxu0
      %1311 = vmatpush.bf16.msra.mxu0 %v1137
      %1312 = vmatpush.bf16.msra.mxu0 %v1133
      %1313 = vmatpush.bf16.msra.mxu0 %v1129
      %1314 = vmatpush.bf16.msra.mxu0 %v1125
      %1315 = vmatpush.bf16.msra.mxu0 %v1121
      %1316 = vmatpush.bf16.msra.mxu0 %v1117
      %1317 = vmatpush.bf16.msra.mxu0 %v1113
      %1318 = vmatpush.bf16.msra.mxu0 %v1109
      %1319 = vmatmul.bf16.gmra.mxu0 %v907
      %v1320 = vpop.f32.mrf.mxu0
      %v1321 = vadd.f32 %v848, %v1320
      %v1322 = vpop.f32.mrf.mxu0
      %v1323 = vadd.f32 %v850, %v1322
      %1324 = vmatmul.bf16.gmra.mxu0 %v909
      %v1325 = vpop.f32.mrf.mxu0
      %v1326 = vadd.f32 %v853, %v1325
      %v1327 = vpop.f32.mrf.mxu0
      %v1328 = vadd.f32 %v855, %v1327
      %1329 = vdwg.mxu0
      %1330 = vmatpush.bf16.msra.mxu0 %v1169
      %1331 = vmatpush.bf16.msra.mxu0 %v1165
      %1332 = vmatpush.bf16.msra.mxu0 %v1161
      %1333 = vmatpush.bf16.msra.mxu0 %v1157
      %1334 = vmatpush.bf16.msra.mxu0 %v1153
      %1335 = vmatpush.bf16.msra.mxu0 %v1149
      %1336 = vmatpush.bf16.msra.mxu0 %v1145
      %1337 = vmatpush.bf16.msra.mxu0 %v1141
      %1338 = vmatmul.bf16.gmra.mxu0 %v908
      %v1339 = vpop.f32.mrf.mxu0
      %v1340 = vadd.f32 %v1321, %v1339
      %v1341 = vpop.f32.mrf.mxu0
      %v1342 = vadd.f32 %v1323, %v1341
      %1343 = vmatmul.bf16.gmra.mxu0 %v910
      %v1344 = vpop.f32.mrf.mxu0
      %v1345 = vadd.f32 %v1326, %v1344
      %v1346 = vpop.f32.mrf.mxu0
      %v1347 = vadd.f32 %v1328, %v1346
      %1348 = vdwg.mxu0
      %1349 = vmatpush.bf16.msra.mxu0 %v1138
      %1350 = vmatpush.bf16.msra.mxu0 %v1134
      %1351 = vmatpush.bf16.msra.mxu0 %v1130
      %1352 = vmatpush.bf16.msra.mxu0 %v1126
      %1353 = vmatpush.bf16.msra.mxu0 %v1122
      %1354 = vmatpush.bf16.msra.mxu0 %v1118
      %1355 = vmatpush.bf16.msra.mxu0 %v1114
      %1356 = vmatpush.bf16.msra.mxu0 %v1110
      %1357 = vmatmul.bf16.gmra.mxu0 %v907
      %v1358 = vpop.f32.mrf.mxu0
      %v1359 = vadd.f32 %v886, %v1358
      %v1360 = vpop.f32.mrf.mxu0
      %v1361 = vadd.f32 %v888, %v1360
      %1362 = vmatmul.bf16.gmra.mxu0 %v909
      %v1363 = vpop.f32.mrf.mxu0
      %v1364 = vadd.f32 %v891, %v1363
      %v1365 = vpop.f32.mrf.mxu0
      %v1366 = vadd.f32 %v893, %v1365
      %1367 = vdwg.mxu0
      %1368 = vmatpush.bf16.msra.mxu0 %v1170
      %1369 = vmatpush.bf16.msra.mxu0 %v1166
      %1370 = vmatpush.bf16.msra.mxu0 %v1162
      %1371 = vmatpush.bf16.msra.mxu0 %v1158
      %1372 = vmatpush.bf16.msra.mxu0 %v1154
      %1373 = vmatpush.bf16.msra.mxu0 %v1150
      %1374 = vmatpush.bf16.msra.mxu0 %v1146
      %1375 = vmatpush.bf16.msra.mxu0 %v1142
      %1376 = vmatmul.bf16.gmra.mxu0 %v908
      %v1377 = vpop.f32.mrf.mxu0
      %v1378 = vadd.f32 %v1359, %v1377
      %v1379 = vpop.f32.mrf.mxu0
      %v1380 = vadd.f32 %v1361, %v1379
      %1381 = vmatmul.bf16.gmra.mxu0 %v910
      %v1382 = vpop.f32.mrf.mxu0
      %v1383 = vadd.f32 %v1364, %v1382
      %v1384 = vpop.f32.mrf.mxu0
      %v1385 = vadd.f32 %v1366, %v1384
      %1386 = vdwg.mxu0
      %s1387 = scalar_lea.vmem %s254, 64
      %v1388 = vld [vmem:[%s1387] sm:$0xff]
      %v1389 = vld [vmem:[%s1387 + $0x8] sm:$0xff]
      %v1390 = vld [vmem:[%s1387 + $0x10] sm:$0xff]
      %v1391 = vld [vmem:[%s1387 + $0x18] sm:$0x11]
      %s1392 = scalar_lea.vmem %s1, 1024
      %v1393 = vld [vmem:[%s1392] sm:$0xff]
      %v1394 = vld [vmem:[%s1392 + $0x8] sm:$0xff]
      %v1395 = vld [vmem:[%s1392 + $0x10] sm:$0xff]
      %v1396 = vld [vmem:[%s1392 + $0x18] sm:$0xff]
      %v1397 = vld [vmem:[%s1392 + $0x20] sm:$0xff]
      %v1398 = vld [vmem:[%s1392 + $0x28] sm:$0xff]
      %v1399 = vld [vmem:[%s1392 + $0x30] sm:$0xff]
      %v1400 = vld [vmem:[%s1392 + $0x38] sm:$0xff]
      %v1401 = vld [vmem:[%s1392 + $0x40] sm:$0xff]
      %v1402 = vld [vmem:[%s1392 + $0x48] sm:$0xff]
      %v1403 = vld [vmem:[%s1392 + $0x50] sm:$0xff]
      %v1404 = vld [vmem:[%s1392 + $0x58] sm:$0xff]
      %v1405 = vld [vmem:[%s1392 + $0x60] sm:$0xff]
      %v1406 = vld [vmem:[%s1392 + $0x68] sm:$0xff]
      %v1407 = vld [vmem:[%s1392 + $0x70] sm:$0xff]
      %v1408 = vld [vmem:[%s1392 + $0x78] sm:$0xff]
      %v1409 = vld [vmem:[%s1392 + $0x80] sm:$0xff]
      %v1410 = vld [vmem:[%s1392 + $0x88] sm:$0xff]
      %v1411 = vld [vmem:[%s1392 + $0x90] sm:$0xff]
      %v1412 = vld [vmem:[%s1392 + $0x98] sm:$0xff]
      %v1413 = vld [vmem:[%s1392 + $0xa0] sm:$0xff]
      %v1414 = vld [vmem:[%s1392 + $0xa8] sm:$0xff]
      %v1415 = vld [vmem:[%s1392 + $0xb0] sm:$0xff]
      %v1416 = vld [vmem:[%s1392 + $0xb8] sm:$0xff]
      %v1417 = vld [vmem:[%s1392 + $0xc0] sm:$0xff]
      %v1418 = vld [vmem:[%s1392 + $0xc8] sm:$0xff]
      %v1419 = vld [vmem:[%s1392 + $0xd0] sm:$0xff]
      %v1420 = vld [vmem:[%s1392 + $0xd8] sm:$0xff]
      %v1421 = vld [vmem:[%s1392 + $0xe0] sm:$0xff]
      %v1422 = vld [vmem:[%s1392 + $0xe8] sm:$0xff]
      %v1423 = vld [vmem:[%s1392 + $0xf0] sm:$0xff]
      %v1424 = vld [vmem:[%s1392 + $0xf8] sm:$0xff]
      %v1425 = vld [vmem:[%s1392 + $0x100] sm:$0xff]
      %v1426 = vld [vmem:[%s1392 + $0x108] sm:$0xff]
      %v1427 = vld [vmem:[%s1392 + $0x110] sm:$0xff]
      %v1428 = vld [vmem:[%s1392 + $0x118] sm:$0xff]
      %v1429 = vld [vmem:[%s1392 + $0x120] sm:$0xff]
      %v1430 = vld [vmem:[%s1392 + $0x128] sm:$0xff]
      %v1431 = vld [vmem:[%s1392 + $0x130] sm:$0xff]
      %v1432 = vld [vmem:[%s1392 + $0x138] sm:$0xff]
      %v1433 = vld [vmem:[%s1392 + $0x140] sm:$0xff]
      %v1434 = vld [vmem:[%s1392 + $0x148] sm:$0xff]
      %v1435 = vld [vmem:[%s1392 + $0x150] sm:$0xff]
      %v1436 = vld [vmem:[%s1392 + $0x158] sm:$0xff]
      %v1437 = vld [vmem:[%s1392 + $0x160] sm:$0xff]
      %v1438 = vld [vmem:[%s1392 + $0x168] sm:$0xff]
      %v1439 = vld [vmem:[%s1392 + $0x170] sm:$0xff]
      %v1440 = vld [vmem:[%s1392 + $0x178] sm:$0xff]
      %v1441 = vld [vmem:[%s1392 + $0x180] sm:$0xff]
      %v1442 = vld [vmem:[%s1392 + $0x188] sm:$0xff]
      %v1443 = vld [vmem:[%s1392 + $0x190] sm:$0xff]
      %v1444 = vld [vmem:[%s1392 + $0x198] sm:$0xff]
      %v1445 = vld [vmem:[%s1392 + $0x1a0] sm:$0xff]
      %v1446 = vld [vmem:[%s1392 + $0x1a8] sm:$0xff]
      %v1447 = vld [vmem:[%s1392 + $0x1b0] sm:$0xff]
      %v1448 = vld [vmem:[%s1392 + $0x1b8] sm:$0xff]
      %v1449 = vld [vmem:[%s1392 + $0x1c0] sm:$0xff]
      %v1450 = vld [vmem:[%s1392 + $0x1c8] sm:$0xff]
      %v1451 = vld [vmem:[%s1392 + $0x1d0] sm:$0xff]
      %v1452 = vld [vmem:[%s1392 + $0x1d8] sm:$0xff]
      %v1453 = vld [vmem:[%s1392 + $0x1e0] sm:$0xff]
      %v1454 = vld [vmem:[%s1392 + $0x1e8] sm:$0xff]
      %v1455 = vld [vmem:[%s1392 + $0x1f0] sm:$0xff]
      %v1456 = vld [vmem:[%s1392 + $0x1f8] sm:$0xff]
      %v1461 = vunpack.c.l.b16 %v1388
      %v1462 = vunpack.c.h.b16 %v1388
      %v1463 = vunpack.c.l.b16 %v1389
      %v1464 = vunpack.c.h.b16 %v1389
      %v1465 = vunpack.c.l.b16 %v1390
      %v1466 = vunpack.c.h.b16 %v1390
      %v1467 = vunpack.c.l.b16 %v1391
      %v1468 = vunpack.c.h.b16 %v1391
      %v1469 = vpack.c.b16 %v1463, %v1461
      %v1470 = vpack.c.b16 %v1464, %v1462
      %v1471 = vpack.c.b16 %v1467, %v1465
      %v1472 = vpack.c.b16 %v1468, %v1466
      %v1541 = vunpack.c.l.b16 %v1393
      %v1542 = vunpack.c.h.b16 %v1393
      %v1543 = vunpack.c.l.b16 %v1394
      %v1544 = vunpack.c.h.b16 %v1394
      %v1545 = vunpack.c.l.b16 %v1395
      %v1546 = vunpack.c.h.b16 %v1395
      %v1547 = vunpack.c.l.b16 %v1396
      %v1548 = vunpack.c.h.b16 %v1396
      %v1549 = vunpack.c.l.b16 %v1397
      %v1550 = vunpack.c.h.b16 %v1397
      %v1551 = vunpack.c.l.b16 %v1398
      %v1552 = vunpack.c.h.b16 %v1398
      %v1553 = vunpack.c.l.b16 %v1399
      %v1554 = vunpack.c.h.b16 %v1399
      %v1555 = vunpack.c.l.b16 %v1400
      %v1556 = vunpack.c.h.b16 %v1400
      %v1557 = vunpack.c.l.b16 %v1401
      %v1558 = vunpack.c.h.b16 %v1401
      %v1559 = vunpack.c.l.b16 %v1402
      %v1560 = vunpack.c.h.b16 %v1402
      %v1561 = vunpack.c.l.b16 %v1403
      %v1562 = vunpack.c.h.b16 %v1403
      %v1563 = vunpack.c.l.b16 %v1404
      %v1564 = vunpack.c.h.b16 %v1404
      %v1565 = vunpack.c.l.b16 %v1405
      %v1566 = vunpack.c.h.b16 %v1405
      %v1567 = vunpack.c.l.b16 %v1406
      %v1568 = vunpack.c.h.b16 %v1406
      %v1569 = vunpack.c.l.b16 %v1407
      %v1570 = vunpack.c.h.b16 %v1407
      %v1571 = vunpack.c.l.b16 %v1408
      %v1572 = vunpack.c.h.b16 %v1408
      %v1573 = vunpack.c.l.b16 %v1409
      %v1574 = vunpack.c.h.b16 %v1409
      %v1575 = vunpack.c.l.b16 %v1410
      %v1576 = vunpack.c.h.b16 %v1410
      %v1577 = vunpack.c.l.b16 %v1411
      %v1578 = vunpack.c.h.b16 %v1411
      %v1579 = vunpack.c.l.b16 %v1412
      %v1580 = vunpack.c.h.b16 %v1412
      %v1581 = vunpack.c.l.b16 %v1413
      %v1582 = vunpack.c.h.b16 %v1413
      %v1583 = vunpack.c.l.b16 %v1414
      %v1584 = vunpack.c.h.b16 %v1414
      %v1585 = vunpack.c.l.b16 %v1415
      %v1586 = vunpack.c.h.b16 %v1415
      %v1587 = vunpack.c.l.b16 %v1416
      %v1588 = vunpack.c.h.b16 %v1416
      %v1589 = vunpack.c.l.b16 %v1417
      %v1590 = vunpack.c.h.b16 %v1417
      %v1591 = vunpack.c.l.b16 %v1418
      %v1592 = vunpack.c.h.b16 %v1418
      %v1593 = vunpack.c.l.b16 %v1419
      %v1594 = vunpack.c.h.b16 %v1419
      %v1595 = vunpack.c.l.b16 %v1420
      %v1596 = vunpack.c.h.b16 %v1420
      %v1597 = vunpack.c.l.b16 %v1421
      %v1598 = vunpack.c.h.b16 %v1421
      %v1599 = vunpack.c.l.b16 %v1422
      %v1600 = vunpack.c.h.b16 %v1422
      %v1601 = vunpack.c.l.b16 %v1423
      %v1602 = vunpack.c.h.b16 %v1423
      %v1603 = vunpack.c.l.b16 %v1424
      %v1604 = vunpack.c.h.b16 %v1424
      %v1605 = vunpack.c.l.b16 %v1425
      %v1606 = vunpack.c.h.b16 %v1425
      %v1607 = vunpack.c.l.b16 %v1426
      %v1608 = vunpack.c.h.b16 %v1426
      %v1609 = vunpack.c.l.b16 %v1427
      %v1610 = vunpack.c.h.b16 %v1427
      %v1611 = vunpack.c.l.b16 %v1428
      %v1612 = vunpack.c.h.b16 %v1428
      %v1613 = vunpack.c.l.b16 %v1429
      %v1614 = vunpack.c.h.b16 %v1429
      %v1615 = vunpack.c.l.b16 %v1430
      %v1616 = vunpack.c.h.b16 %v1430
      %v1617 = vunpack.c.l.b16 %v1431
      %v1618 = vunpack.c.h.b16 %v1431
      %v1619 = vunpack.c.l.b16 %v1432
      %v1620 = vunpack.c.h.b16 %v1432
      %v1621 = vunpack.c.l.b16 %v1433
      %v1622 = vunpack.c.h.b16 %v1433
      %v1623 = vunpack.c.l.b16 %v1434
      %v1624 = vunpack.c.h.b16 %v1434
      %v1625 = vunpack.c.l.b16 %v1435
      %v1626 = vunpack.c.h.b16 %v1435
      %v1627 = vunpack.c.l.b16 %v1436
      %v1628 = vunpack.c.h.b16 %v1436
      %v1629 = vunpack.c.l.b16 %v1437
      %v1630 = vunpack.c.h.b16 %v1437
      %v1631 = vunpack.c.l.b16 %v1438
      %v1632 = vunpack.c.h.b16 %v1438
      %v1633 = vunpack.c.l.b16 %v1439
      %v1634 = vunpack.c.h.b16 %v1439
      %v1635 = vunpack.c.l.b16 %v1440
      %v1636 = vunpack.c.h.b16 %v1440
      %v1637 = vunpack.c.l.b16 %v1441
      %v1638 = vunpack.c.h.b16 %v1441
      %v1639 = vunpack.c.l.b16 %v1442
      %v1640 = vunpack.c.h.b16 %v1442
      %v1641 = vunpack.c.l.b16 %v1443
      %v1642 = vunpack.c.h.b16 %v1443
      %v1643 = vunpack.c.l.b16 %v1444
      %v1644 = vunpack.c.h.b16 %v1444
      %v1645 = vunpack.c.l.b16 %v1445
      %v1646 = vunpack.c.h.b16 %v1445
      %v1647 = vunpack.c.l.b16 %v1446
      %v1648 = vunpack.c.h.b16 %v1446
      %v1649 = vunpack.c.l.b16 %v1447
      %v1650 = vunpack.c.h.b16 %v1447
      %v1651 = vunpack.c.l.b16 %v1448
      %v1652 = vunpack.c.h.b16 %v1448
      %v1653 = vunpack.c.l.b16 %v1449
      %v1654 = vunpack.c.h.b16 %v1449
      %v1655 = vunpack.c.l.b16 %v1450
      %v1656 = vunpack.c.h.b16 %v1450
      %v1657 = vunpack.c.l.b16 %v1451
      %v1658 = vunpack.c.h.b16 %v1451
      %v1659 = vunpack.c.l.b16 %v1452
      %v1660 = vunpack.c.h.b16 %v1452
      %v1661 = vunpack.c.l.b16 %v1453
      %v1662 = vunpack.c.h.b16 %v1453
      %v1663 = vunpack.c.l.b16 %v1454
      %v1664 = vunpack.c.h.b16 %v1454
      %v1665 = vunpack.c.l.b16 %v1455
      %v1666 = vunpack.c.h.b16 %v1455
      %v1667 = vunpack.c.l.b16 %v1456
      %v1668 = vunpack.c.h.b16 %v1456
      %v1669 = vpack.c.b16 %v1545, %v1541
      %v1670 = vpack.c.b16 %v1546, %v1542
      %v1671 = vpack.c.b16 %v1547, %v1543
      %v1672 = vpack.c.b16 %v1548, %v1544
      %v1673 = vpack.c.b16 %v1553, %v1549
      %v1674 = vpack.c.b16 %v1554, %v1550
      %v1675 = vpack.c.b16 %v1555, %v1551
      %v1676 = vpack.c.b16 %v1556, %v1552
      %v1677 = vpack.c.b16 %v1561, %v1557
      %v1678 = vpack.c.b16 %v1562, %v1558
      %v1679 = vpack.c.b16 %v1563, %v1559
      %v1680 = vpack.c.b16 %v1564, %v1560
      %v1681 = vpack.c.b16 %v1569, %v1565
      %v1682 = vpack.c.b16 %v1570, %v1566
      %v1683 = vpack.c.b16 %v1571, %v1567
      %v1684 = vpack.c.b16 %v1572, %v1568
      %v1685 = vpack.c.b16 %v1577, %v1573
      %v1686 = vpack.c.b16 %v1578, %v1574
      %v1687 = vpack.c.b16 %v1579, %v1575
      %v1688 = vpack.c.b16 %v1580, %v1576
      %v1689 = vpack.c.b16 %v1585, %v1581
      %v1690 = vpack.c.b16 %v1586, %v1582
      %v1691 = vpack.c.b16 %v1587, %v1583
      %v1692 = vpack.c.b16 %v1588, %v1584
      %v1693 = vpack.c.b16 %v1593, %v1589
      %v1694 = vpack.c.b16 %v1594, %v1590
      %v1695 = vpack.c.b16 %v1595, %v1591
      %v1696 = vpack.c.b16 %v1596, %v1592
      %v1697 = vpack.c.b16 %v1601, %v1597
      %v1698 = vpack.c.b16 %v1602, %v1598
      %v1699 = vpack.c.b16 %v1603, %v1599
      %v1700 = vpack.c.b16 %v1604, %v1600
      %v1701 = vpack.c.b16 %v1609, %v1605
      %v1702 = vpack.c.b16 %v1610, %v1606
      %v1703 = vpack.c.b16 %v1611, %v1607
      %v1704 = vpack.c.b16 %v1612, %v1608
      %v1705 = vpack.c.b16 %v1617, %v1613
      %v1706 = vpack.c.b16 %v1618, %v1614
      %v1707 = vpack.c.b16 %v1619, %v1615
      %v1708 = vpack.c.b16 %v1620, %v1616
      %v1709 = vpack.c.b16 %v1625, %v1621
      %v1710 = vpack.c.b16 %v1626, %v1622
      %v1711 = vpack.c.b16 %v1627, %v1623
      %v1712 = vpack.c.b16 %v1628, %v1624
      %v1713 = vpack.c.b16 %v1633, %v1629
      %v1714 = vpack.c.b16 %v1634, %v1630
      %v1715 = vpack.c.b16 %v1635, %v1631
      %v1716 = vpack.c.b16 %v1636, %v1632
      %v1717 = vpack.c.b16 %v1641, %v1637
      %v1718 = vpack.c.b16 %v1642, %v1638
      %v1719 = vpack.c.b16 %v1643, %v1639
      %v1720 = vpack.c.b16 %v1644, %v1640
      %v1721 = vpack.c.b16 %v1649, %v1645
      %v1722 = vpack.c.b16 %v1650, %v1646
      %v1723 = vpack.c.b16 %v1651, %v1647
      %v1724 = vpack.c.b16 %v1652, %v1648
      %v1725 = vpack.c.b16 %v1657, %v1653
      %v1726 = vpack.c.b16 %v1658, %v1654
      %v1727 = vpack.c.b16 %v1659, %v1655
      %v1728 = vpack.c.b16 %v1660, %v1656
      %v1729 = vpack.c.b16 %v1665, %v1661
      %v1730 = vpack.c.b16 %v1666, %v1662
      %v1731 = vpack.c.b16 %v1667, %v1663
      %v1732 = vpack.c.b16 %v1668, %v1664
      %1797 = vmatpush.bf16.msra.mxu0 %v1697
      %1798 = vmatpush.bf16.msra.mxu0 %v1693
      %1799 = vmatpush.bf16.msra.mxu0 %v1689
      %1800 = vmatpush.bf16.msra.mxu0 %v1685
      %1801 = vmatpush.bf16.msra.mxu0 %v1681
      %1802 = vmatpush.bf16.msra.mxu0 %v1677
      %1803 = vmatpush.bf16.msra.mxu0 %v1673
      %1804 = vmatpush.bf16.msra.mxu0 %v1669
      %1805 = vmatmul.bf16.gmra.mxu0 %v1469
      %v1806 = vpop.f32.mrf.mxu0
      %v1807 = vadd.f32 0.0, %v1806
      %v1808 = vpop.f32.mrf.mxu0
      %v1809 = vadd.f32 0.0, %v1808
      %1810 = vmatmul.bf16.gmra.mxu0 %v1471
      %v1811 = vpop.f32.mrf.mxu0
      %v1812 = vadd.f32 0.0, %v1811
      %v1813 = vpop.f32.mrf.mxu0
      %v1814 = vadd.f32 0.0, %v1813
      %1815 = vdwg.mxu0
      %1816 = vmatpush.bf16.msra.mxu0 %v1729
      %1817 = vmatpush.bf16.msra.mxu0 %v1725
      %1818 = vmatpush.bf16.msra.mxu0 %v1721
      %1819 = vmatpush.bf16.msra.mxu0 %v1717
      %1820 = vmatpush.bf16.msra.mxu0 %v1713
      %1821 = vmatpush.bf16.msra.mxu0 %v1709
      %1822 = vmatpush.bf16.msra.mxu0 %v1705
      %1823 = vmatpush.bf16.msra.mxu0 %v1701
      %1824 = vmatmul.bf16.gmra.mxu0 %v1470
      %v1825 = vpop.f32.mrf.mxu0
      %v1826 = vadd.f32 %v1807, %v1825
      %v1827 = vpop.f32.mrf.mxu0
      %v1828 = vadd.f32 %v1809, %v1827
      %1829 = vmatmul.bf16.gmra.mxu0 %v1472
      %v1830 = vpop.f32.mrf.mxu0
      %v1831 = vadd.f32 %v1812, %v1830
      %v1832 = vpop.f32.mrf.mxu0
      %v1833 = vadd.f32 %v1814, %v1832
      %1834 = vdwg.mxu0
      %1835 = vmatpush.bf16.msra.mxu0 %v1698
      %1836 = vmatpush.bf16.msra.mxu0 %v1694
      %1837 = vmatpush.bf16.msra.mxu0 %v1690
      %1838 = vmatpush.bf16.msra.mxu0 %v1686
      %1839 = vmatpush.bf16.msra.mxu0 %v1682
      %1840 = vmatpush.bf16.msra.mxu0 %v1678
      %1841 = vmatpush.bf16.msra.mxu0 %v1674
      %1842 = vmatpush.bf16.msra.mxu0 %v1670
      %1843 = vmatmul.bf16.gmra.mxu0 %v1469
      %v1844 = vpop.f32.mrf.mxu0
      %v1845 = vadd.f32 0.0, %v1844
      %v1846 = vpop.f32.mrf.mxu0
      %v1847 = vadd.f32 0.0, %v1846
      %1848 = vmatmul.bf16.gmra.mxu0 %v1471
      %v1849 = vpop.f32.mrf.mxu0
      %v1850 = vadd.f32 0.0, %v1849
      %v1851 = vpop.f32.mrf.mxu0
      %v1852 = vadd.f32 0.0, %v1851
      %1853 = vdwg.mxu0
      %1854 = vmatpush.bf16.msra.mxu0 %v1730
      %1855 = vmatpush.bf16.msra.mxu0 %v1726
      %1856 = vmatpush.bf16.msra.mxu0 %v1722
      %1857 = vmatpush.bf16.msra.mxu0 %v1718
      %1858 = vmatpush.bf16.msra.mxu0 %v1714
      %1859 = vmatpush.bf16.msra.mxu0 %v1710
      %1860 = vmatpush.bf16.msra.mxu0 %v1706
      %1861 = vmatpush.bf16.msra.mxu0 %v1702
      %1862 = vmatmul.bf16.gmra.mxu0 %v1470
      %v1863 = vpop.f32.mrf.mxu0
      %v1864 = vadd.f32 %v1845, %v1863
      %v1865 = vpop.f32.mrf.mxu0
      %v1866 = vadd.f32 %v1847, %v1865
      %1867 = vmatmul.bf16.gmra.mxu0 %v1472
      %v1868 = vpop.f32.mrf.mxu0
      %v1869 = vadd.f32 %v1850, %v1868
      %v1870 = vpop.f32.mrf.mxu0
      %v1871 = vadd.f32 %v1852, %v1870
      %1872 = vdwg.mxu0
      %1873 = vmatpush.bf16.msra.mxu0 %v1699
      %1874 = vmatpush.bf16.msra.mxu0 %v1695
      %1875 = vmatpush.bf16.msra.mxu0 %v1691
      %1876 = vmatpush.bf16.msra.mxu0 %v1687
      %1877 = vmatpush.bf16.msra.mxu0 %v1683
      %1878 = vmatpush.bf16.msra.mxu0 %v1679
      %1879 = vmatpush.bf16.msra.mxu0 %v1675
      %1880 = vmatpush.bf16.msra.mxu0 %v1671
      %1881 = vmatmul.bf16.gmra.mxu0 %v1469
      %v1882 = vpop.f32.mrf.mxu0
      %v1883 = vadd.f32 0.0, %v1882
      %v1884 = vpop.f32.mrf.mxu0
      %v1885 = vadd.f32 0.0, %v1884
      %1886 = vmatmul.bf16.gmra.mxu0 %v1471
      %v1887 = vpop.f32.mrf.mxu0
      %v1888 = vadd.f32 0.0, %v1887
      %v1889 = vpop.f32.mrf.mxu0
      %v1890 = vadd.f32 0.0, %v1889
      %1891 = vdwg.mxu0
      %1892 = vmatpush.bf16.msra.mxu0 %v1731
      %1893 = vmatpush.bf16.msra.mxu0 %v1727
      %1894 = vmatpush.bf16.msra.mxu0 %v1723
      %1895 = vmatpush.bf16.msra.mxu0 %v1719
      %1896 = vmatpush.bf16.msra.mxu0 %v1715
      %1897 = vmatpush.bf16.msra.mxu0 %v1711
      %1898 = vmatpush.bf16.msra.mxu0 %v1707
      %1899 = vmatpush.bf16.msra.mxu0 %v1703
      %1900 = vmatmul.bf16.gmra.mxu0 %v1470
      %v1901 = vpop.f32.mrf.mxu0
      %v1902 = vadd.f32 %v1883, %v1901
      %v1903 = vpop.f32.mrf.mxu0
      %v1904 = vadd.f32 %v1885, %v1903
      %1905 = vmatmul.bf16.gmra.mxu0 %v1472
      %v1906 = vpop.f32.mrf.mxu0
      %v1907 = vadd.f32 %v1888, %v1906
      %v1908 = vpop.f32.mrf.mxu0
      %v1909 = vadd.f32 %v1890, %v1908
      %1910 = vdwg.mxu0
      %1911 = vmatpush.bf16.msra.mxu0 %v1700
      %1912 = vmatpush.bf16.msra.mxu0 %v1696
      %1913 = vmatpush.bf16.msra.mxu0 %v1692
      %1914 = vmatpush.bf16.msra.mxu0 %v1688
      %1915 = vmatpush.bf16.msra.mxu0 %v1684
      %1916 = vmatpush.bf16.msra.mxu0 %v1680
      %1917 = vmatpush.bf16.msra.mxu0 %v1676
      %1918 = vmatpush.bf16.msra.mxu0 %v1672
      %1919 = vmatmul.bf16.gmra.mxu0 %v1469
      %v1920 = vpop.f32.mrf.mxu0
      %v1921 = vadd.f32 0.0, %v1920
      %v1922 = vpop.f32.mrf.mxu0
      %v1923 = vadd.f32 0.0, %v1922
      %1924 = vmatmul.bf16.gmra.mxu0 %v1471
      %v1925 = vpop.f32.mrf.mxu0
      %v1926 = vadd.f32 0.0, %v1925
      %v1927 = vpop.f32.mrf.mxu0
      %v1928 = vadd.f32 0.0, %v1927
      %1929 = vdwg.mxu0
      %1930 = vmatpush.bf16.msra.mxu0 %v1732
      %1931 = vmatpush.bf16.msra.mxu0 %v1728
      %1932 = vmatpush.bf16.msra.mxu0 %v1724
      %1933 = vmatpush.bf16.msra.mxu0 %v1720
      %1934 = vmatpush.bf16.msra.mxu0 %v1716
      %1935 = vmatpush.bf16.msra.mxu0 %v1712
      %1936 = vmatpush.bf16.msra.mxu0 %v1708
      %1937 = vmatpush.bf16.msra.mxu0 %v1704
      %1938 = vmatmul.bf16.gmra.mxu0 %v1470
      %v1939 = vpop.f32.mrf.mxu0
      %v1940 = vadd.f32 %v1921, %v1939
      %v1941 = vpop.f32.mrf.mxu0
      %v1942 = vadd.f32 %v1923, %v1941
      %1943 = vmatmul.bf16.gmra.mxu0 %v1472
      %v1944 = vpop.f32.mrf.mxu0
      %v1945 = vadd.f32 %v1926, %v1944
      %v1946 = vpop.f32.mrf.mxu0
      %v1947 = vadd.f32 %v1928, %v1946
      %1948 = vdwg.mxu0
      %v1949 = vadd.f32 %v1264, %v1826
      %v1950 = vadd.f32 %v1302, %v1864
      %v1951 = vadd.f32 %v1340, %v1902
      %v1952 = vadd.f32 %v1378, %v1940
      %v1953 = vadd.f32 %v1266, %v1828
      %v1954 = vadd.f32 %v1304, %v1866
      %v1955 = vadd.f32 %v1342, %v1904
      %v1956 = vadd.f32 %v1380, %v1942
      %v1957 = vadd.f32 %v1269, %v1831
      %v1958 = vadd.f32 %v1307, %v1869
      %v1959 = vadd.f32 %v1345, %v1907
      %v1960 = vadd.f32 %v1383, %v1945
      %v1961 = vadd.f32 %v1271, %v1833
      %v1962 = vadd.f32 %v1309, %v1871
      %v1963 = vadd.f32 %v1347, %v1909
      %v1964 = vadd.f32 %v1385, %v1947
      %s1965 = scalar_lea.vmem %s254, 96
      %v1966 = vld [vmem:[%s1965] sm:$0xff]
      %v1967 = vld [vmem:[%s1965 + $0x8] sm:$0xff]
      %v1968 = vld [vmem:[%s1965 + $0x10] sm:$0xff]
      %v1969 = vld [vmem:[%s1965 + $0x18] sm:$0x11]
      %s1970 = scalar_lea.vmem %s1, 1536
      %v1971 = vld [vmem:[%s1970] sm:$0xff]
      %v1972 = vld [vmem:[%s1970 + $0x8] sm:$0xff]
      %v1973 = vld [vmem:[%s1970 + $0x10] sm:$0xff]
      %v1974 = vld [vmem:[%s1970 + $0x18] sm:$0xff]
      %v1975 = vld [vmem:[%s1970 + $0x20] sm:$0xff]
      %v1976 = vld [vmem:[%s1970 + $0x28] sm:$0xff]
      %v1977 = vld [vmem:[%s1970 + $0x30] sm:$0xff]
      %v1978 = vld [vmem:[%s1970 + $0x38] sm:$0xff]
      %v1979 = vld [vmem:[%s1970 + $0x40] sm:$0xff]
      %v1980 = vld [vmem:[%s1970 + $0x48] sm:$0xff]
      %v1981 = vld [vmem:[%s1970 + $0x50] sm:$0xff]
      %v1982 = vld [vmem:[%s1970 + $0x58] sm:$0xff]
      %v1983 = vld [vmem:[%s1970 + $0x60] sm:$0xff]
      %v1984 = vld [vmem:[%s1970 + $0x68] sm:$0xff]
      %v1985 = vld [vmem:[%s1970 + $0x70] sm:$0xff]
      %v1986 = vld [vmem:[%s1970 + $0x78] sm:$0xff]
      %v1987 = vld [vmem:[%s1970 + $0x80] sm:$0xff]
      %v1988 = vld [vmem:[%s1970 + $0x88] sm:$0xff]
      %v1989 = vld [vmem:[%s1970 + $0x90] sm:$0xff]
      %v1990 = vld [vmem:[%s1970 + $0x98] sm:$0xff]
      %v1991 = vld [vmem:[%s1970 + $0xa0] sm:$0xff]
      %v1992 = vld [vmem:[%s1970 + $0xa8] sm:$0xff]
      %v1993 = vld [vmem:[%s1970 + $0xb0] sm:$0xff]
      %v1994 = vld [vmem:[%s1970 + $0xb8] sm:$0xff]
      %v1995 = vld [vmem:[%s1970 + $0xc0] sm:$0xff]
      %v1996 = vld [vmem:[%s1970 + $0xc8] sm:$0xff]
      %v1997 = vld [vmem:[%s1970 + $0xd0] sm:$0xff]
      %v1998 = vld [vmem:[%s1970 + $0xd8] sm:$0xff]
      %v1999 = vld [vmem:[%s1970 + $0xe0] sm:$0xff]
      %v2000 = vld [vmem:[%s1970 + $0xe8] sm:$0xff]
      %v2001 = vld [vmem:[%s1970 + $0xf0] sm:$0xff]
      %v2002 = vld [vmem:[%s1970 + $0xf8] sm:$0xff]
      %v2003 = vld [vmem:[%s1970 + $0x100] sm:$0xff]
      %v2004 = vld [vmem:[%s1970 + $0x108] sm:$0xff]
      %v2005 = vld [vmem:[%s1970 + $0x110] sm:$0xff]
      %v2006 = vld [vmem:[%s1970 + $0x118] sm:$0xff]
      %v2007 = vld [vmem:[%s1970 + $0x120] sm:$0xff]
      %v2008 = vld [vmem:[%s1970 + $0x128] sm:$0xff]
      %v2009 = vld [vmem:[%s1970 + $0x130] sm:$0xff]
      %v2010 = vld [vmem:[%s1970 + $0x138] sm:$0xff]
      %v2011 = vld [vmem:[%s1970 + $0x140] sm:$0xff]
      %v2012 = vld [vmem:[%s1970 + $0x148] sm:$0xff]
      %v2013 = vld [vmem:[%s1970 + $0x150] sm:$0xff]
      %v2014 = vld [vmem:[%s1970 + $0x158] sm:$0xff]
      %v2015 = vld [vmem:[%s1970 + $0x160] sm:$0xff]
      %v2016 = vld [vmem:[%s1970 + $0x168] sm:$0xff]
      %v2017 = vld [vmem:[%s1970 + $0x170] sm:$0xff]
      %v2018 = vld [vmem:[%s1970 + $0x178] sm:$0xff]
      %v2019 = vld [vmem:[%s1970 + $0x180] sm:$0xff]
      %v2020 = vld [vmem:[%s1970 + $0x188] sm:$0xff]
      %v2021 = vld [vmem:[%s1970 + $0x190] sm:$0xff]
      %v2022 = vld [vmem:[%s1970 + $0x198] sm:$0xff]
      %v2023 = vld [vmem:[%s1970 + $0x1a0] sm:$0xff]
      %v2024 = vld [vmem:[%s1970 + $0x1a8] sm:$0xff]
      %v2025 = vld [vmem:[%s1970 + $0x1b0] sm:$0xff]
      %v2026 = vld [vmem:[%s1970 + $0x1b8] sm:$0xff]
      %v2027 = vld [vmem:[%s1970 + $0x1c0] sm:$0xff]
      %v2028 = vld [vmem:[%s1970 + $0x1c8] sm:$0xff]
      %v2029 = vld [vmem:[%s1970 + $0x1d0] sm:$0xff]
      %v2030 = vld [vmem:[%s1970 + $0x1d8] sm:$0xff]
      %v2031 = vld [vmem:[%s1970 + $0x1e0] sm:$0xff]
      %v2032 = vld [vmem:[%s1970 + $0x1e8] sm:$0xff]
      %v2033 = vld [vmem:[%s1970 + $0x1f0] sm:$0xff]
      %v2034 = vld [vmem:[%s1970 + $0x1f8] sm:$0xff]
      %v2039 = vunpack.c.l.b16 %v1966
      %v2040 = vunpack.c.h.b16 %v1966
      %v2041 = vunpack.c.l.b16 %v1967
      %v2042 = vunpack.c.h.b16 %v1967
      %v2043 = vunpack.c.l.b16 %v1968
      %v2044 = vunpack.c.h.b16 %v1968
      %v2045 = vunpack.c.l.b16 %v1969
      %v2046 = vunpack.c.h.b16 %v1969
      %v2047 = vpack.c.b16 %v2041, %v2039
      %v2048 = vpack.c.b16 %v2042, %v2040
      %v2049 = vpack.c.b16 %v2045, %v2043
      %v2050 = vpack.c.b16 %v2046, %v2044
      %v2119 = vunpack.c.l.b16 %v1971
      %v2120 = vunpack.c.h.b16 %v1971
      %v2121 = vunpack.c.l.b16 %v1972
      %v2122 = vunpack.c.h.b16 %v1972
      %v2123 = vunpack.c.l.b16 %v1973
      %v2124 = vunpack.c.h.b16 %v1973
      %v2125 = vunpack.c.l.b16 %v1974
      %v2126 = vunpack.c.h.b16 %v1974
      %v2127 = vunpack.c.l.b16 %v1975
      %v2128 = vunpack.c.h.b16 %v1975
      %v2129 = vunpack.c.l.b16 %v1976
      %v2130 = vunpack.c.h.b16 %v1976
      %v2131 = vunpack.c.l.b16 %v1977
      %v2132 = vunpack.c.h.b16 %v1977
      %v2133 = vunpack.c.l.b16 %v1978
      %v2134 = vunpack.c.h.b16 %v1978
      %v2135 = vunpack.c.l.b16 %v1979
      %v2136 = vunpack.c.h.b16 %v1979
      %v2137 = vunpack.c.l.b16 %v1980
      %v2138 = vunpack.c.h.b16 %v1980
      %v2139 = vunpack.c.l.b16 %v1981
      %v2140 = vunpack.c.h.b16 %v1981
      %v2141 = vunpack.c.l.b16 %v1982
      %v2142 = vunpack.c.h.b16 %v1982
      %v2143 = vunpack.c.l.b16 %v1983
      %v2144 = vunpack.c.h.b16 %v1983
      %v2145 = vunpack.c.l.b16 %v1984
      %v2146 = vunpack.c.h.b16 %v1984
      %v2147 = vunpack.c.l.b16 %v1985
      %v2148 = vunpack.c.h.b16 %v1985
      %v2149 = vunpack.c.l.b16 %v1986
      %v2150 = vunpack.c.h.b16 %v1986
      %v2151 = vunpack.c.l.b16 %v1987
      %v2152 = vunpack.c.h.b16 %v1987
      %v2153 = vunpack.c.l.b16 %v1988
      %v2154 = vunpack.c.h.b16 %v1988
      %v2155 = vunpack.c.l.b16 %v1989
      %v2156 = vunpack.c.h.b16 %v1989
      %v2157 = vunpack.c.l.b16 %v1990
      %v2158 = vunpack.c.h.b16 %v1990
      %v2159 = vunpack.c.l.b16 %v1991
      %v2160 = vunpack.c.h.b16 %v1991
      %v2161 = vunpack.c.l.b16 %v1992
      %v2162 = vunpack.c.h.b16 %v1992
      %v2163 = vunpack.c.l.b16 %v1993
      %v2164 = vunpack.c.h.b16 %v1993
      %v2165 = vunpack.c.l.b16 %v1994
      %v2166 = vunpack.c.h.b16 %v1994
      %v2167 = vunpack.c.l.b16 %v1995
      %v2168 = vunpack.c.h.b16 %v1995
      %v2169 = vunpack.c.l.b16 %v1996
      %v2170 = vunpack.c.h.b16 %v1996
      %v2171 = vunpack.c.l.b16 %v1997
      %v2172 = vunpack.c.h.b16 %v1997
      %v2173 = vunpack.c.l.b16 %v1998
      %v2174 = vunpack.c.h.b16 %v1998
      %v2175 = vunpack.c.l.b16 %v1999
      %v2176 = vunpack.c.h.b16 %v1999
      %v2177 = vunpack.c.l.b16 %v2000
      %v2178 = vunpack.c.h.b16 %v2000
      %v2179 = vunpack.c.l.b16 %v2001
      %v2180 = vunpack.c.h.b16 %v2001
      %v2181 = vunpack.c.l.b16 %v2002
      %v2182 = vunpack.c.h.b16 %v2002
      %v2183 = vunpack.c.l.b16 %v2003
      %v2184 = vunpack.c.h.b16 %v2003
      %v2185 = vunpack.c.l.b16 %v2004
      %v2186 = vunpack.c.h.b16 %v2004
      %v2187 = vunpack.c.l.b16 %v2005
      %v2188 = vunpack.c.h.b16 %v2005
      %v2189 = vunpack.c.l.b16 %v2006
      %v2190 = vunpack.c.h.b16 %v2006
      %v2191 = vunpack.c.l.b16 %v2007
      %v2192 = vunpack.c.h.b16 %v2007
      %v2193 = vunpack.c.l.b16 %v2008
      %v2194 = vunpack.c.h.b16 %v2008
      %v2195 = vunpack.c.l.b16 %v2009
      %v2196 = vunpack.c.h.b16 %v2009
      %v2197 = vunpack.c.l.b16 %v2010
      %v2198 = vunpack.c.h.b16 %v2010
      %v2199 = vunpack.c.l.b16 %v2011
      %v2200 = vunpack.c.h.b16 %v2011
      %v2201 = vunpack.c.l.b16 %v2012
      %v2202 = vunpack.c.h.b16 %v2012
      %v2203 = vunpack.c.l.b16 %v2013
      %v2204 = vunpack.c.h.b16 %v2013
      %v2205 = vunpack.c.l.b16 %v2014
      %v2206 = vunpack.c.h.b16 %v2014
      %v2207 = vunpack.c.l.b16 %v2015
      %v2208 = vunpack.c.h.b16 %v2015
      %v2209 = vunpack.c.l.b16 %v2016
      %v2210 = vunpack.c.h.b16 %v2016
      %v2211 = vunpack.c.l.b16 %v2017
      %v2212 = vunpack.c.h.b16 %v2017
      %v2213 = vunpack.c.l.b16 %v2018
      %v2214 = vunpack.c.h.b16 %v2018
      %v2215 = vunpack.c.l.b16 %v2019
      %v2216 = vunpack.c.h.b16 %v2019
      %v2217 = vunpack.c.l.b16 %v2020
      %v2218 = vunpack.c.h.b16 %v2020
      %v2219 = vunpack.c.l.b16 %v2021
      %v2220 = vunpack.c.h.b16 %v2021
      %v2221 = vunpack.c.l.b16 %v2022
      %v2222 = vunpack.c.h.b16 %v2022
      %v2223 = vunpack.c.l.b16 %v2023
      %v2224 = vunpack.c.h.b16 %v2023
      %v2225 = vunpack.c.l.b16 %v2024
      %v2226 = vunpack.c.h.b16 %v2024
      %v2227 = vunpack.c.l.b16 %v2025
      %v2228 = vunpack.c.h.b16 %v2025
      %v2229 = vunpack.c.l.b16 %v2026
      %v2230 = vunpack.c.h.b16 %v2026
      %v2231 = vunpack.c.l.b16 %v2027
      %v2232 = vunpack.c.h.b16 %v2027
      %v2233 = vunpack.c.l.b16 %v2028
      %v2234 = vunpack.c.h.b16 %v2028
      %v2235 = vunpack.c.l.b16 %v2029
      %v2236 = vunpack.c.h.b16 %v2029
      %v2237 = vunpack.c.l.b16 %v2030
      %v2238 = vunpack.c.h.b16 %v2030
      %v2239 = vunpack.c.l.b16 %v2031
      %v2240 = vunpack.c.h.b16 %v2031
      %v2241 = vunpack.c.l.b16 %v2032
      %v2242 = vunpack.c.h.b16 %v2032
      %v2243 = vunpack.c.l.b16 %v2033
      %v2244 = vunpack.c.h.b16 %v2033
      %v2245 = vunpack.c.l.b16 %v2034
      %v2246 = vunpack.c.h.b16 %v2034
      %v2247 = vpack.c.b16 %v2123, %v2119
      %v2248 = vpack.c.b16 %v2124, %v2120
      %v2249 = vpack.c.b16 %v2125, %v2121
      %v2250 = vpack.c.b16 %v2126, %v2122
      %v2251 = vpack.c.b16 %v2131, %v2127
      %v2252 = vpack.c.b16 %v2132, %v2128
      %v2253 = vpack.c.b16 %v2133, %v2129
      %v2254 = vpack.c.b16 %v2134, %v2130
      %v2255 = vpack.c.b16 %v2139, %v2135
      %v2256 = vpack.c.b16 %v2140, %v2136
      %v2257 = vpack.c.b16 %v2141, %v2137
      %v2258 = vpack.c.b16 %v2142, %v2138
      %v2259 = vpack.c.b16 %v2147, %v2143
      %v2260 = vpack.c.b16 %v2148, %v2144
      %v2261 = vpack.c.b16 %v2149, %v2145
      %v2262 = vpack.c.b16 %v2150, %v2146
      %v2263 = vpack.c.b16 %v2155, %v2151
      %v2264 = vpack.c.b16 %v2156, %v2152
      %v2265 = vpack.c.b16 %v2157, %v2153
      %v2266 = vpack.c.b16 %v2158, %v2154
      %v2267 = vpack.c.b16 %v2163, %v2159
      %v2268 = vpack.c.b16 %v2164, %v2160
      %v2269 = vpack.c.b16 %v2165, %v2161
      %v2270 = vpack.c.b16 %v2166, %v2162
      %v2271 = vpack.c.b16 %v2171, %v2167
      %v2272 = vpack.c.b16 %v2172, %v2168
      %v2273 = vpack.c.b16 %v2173, %v2169
      %v2274 = vpack.c.b16 %v2174, %v2170
      %v2275 = vpack.c.b16 %v2179, %v2175
      %v2276 = vpack.c.b16 %v2180, %v2176
      %v2277 = vpack.c.b16 %v2181, %v2177
      %v2278 = vpack.c.b16 %v2182, %v2178
      %v2279 = vpack.c.b16 %v2187, %v2183
      %v2280 = vpack.c.b16 %v2188, %v2184
      %v2281 = vpack.c.b16 %v2189, %v2185
      %v2282 = vpack.c.b16 %v2190, %v2186
      %v2283 = vpack.c.b16 %v2195, %v2191
      %v2284 = vpack.c.b16 %v2196, %v2192
      %v2285 = vpack.c.b16 %v2197, %v2193
      %v2286 = vpack.c.b16 %v2198, %v2194
      %v2287 = vpack.c.b16 %v2203, %v2199
      %v2288 = vpack.c.b16 %v2204, %v2200
      %v2289 = vpack.c.b16 %v2205, %v2201
      %v2290 = vpack.c.b16 %v2206, %v2202
      %v2291 = vpack.c.b16 %v2211, %v2207
      %v2292 = vpack.c.b16 %v2212, %v2208
      %v2293 = vpack.c.b16 %v2213, %v2209
      %v2294 = vpack.c.b16 %v2214, %v2210
      %v2295 = vpack.c.b16 %v2219, %v2215
      %v2296 = vpack.c.b16 %v2220, %v2216
      %v2297 = vpack.c.b16 %v2221, %v2217
      %v2298 = vpack.c.b16 %v2222, %v2218
      %v2299 = vpack.c.b16 %v2227, %v2223
      %v2300 = vpack.c.b16 %v2228, %v2224
      %v2301 = vpack.c.b16 %v2229, %v2225
      %v2302 = vpack.c.b16 %v2230, %v2226
      %v2303 = vpack.c.b16 %v2235, %v2231
      %v2304 = vpack.c.b16 %v2236, %v2232
      %v2305 = vpack.c.b16 %v2237, %v2233
      %v2306 = vpack.c.b16 %v2238, %v2234
      %v2307 = vpack.c.b16 %v2243, %v2239
      %v2308 = vpack.c.b16 %v2244, %v2240
      %v2309 = vpack.c.b16 %v2245, %v2241
      %v2310 = vpack.c.b16 %v2246, %v2242
      %2375 = vmatpush.bf16.msra.mxu0 %v2275
      %2376 = vmatpush.bf16.msra.mxu0 %v2271
      %2377 = vmatpush.bf16.msra.mxu0 %v2267
      %2378 = vmatpush.bf16.msra.mxu0 %v2263
      %2379 = vmatpush.bf16.msra.mxu0 %v2259
      %2380 = vmatpush.bf16.msra.mxu0 %v2255
      %2381 = vmatpush.bf16.msra.mxu0 %v2251
      %2382 = vmatpush.bf16.msra.mxu0 %v2247
      %2383 = vmatmul.bf16.gmra.mxu0 %v2047
      %v2384 = vpop.f32.mrf.mxu0
      %v2385 = vadd.f32 0.0, %v2384
      %v2386 = vpop.f32.mrf.mxu0
      %v2387 = vadd.f32 0.0, %v2386
      %2388 = vmatmul.bf16.gmra.mxu0 %v2049
      %v2389 = vpop.f32.mrf.mxu0
      %v2390 = vadd.f32 0.0, %v2389
      %v2391 = vpop.f32.mrf.mxu0
      %v2392 = vadd.f32 0.0, %v2391
      %2393 = vdwg.mxu0
      %2394 = vmatpush.bf16.msra.mxu0 %v2307
      %2395 = vmatpush.bf16.msra.mxu0 %v2303
      %2396 = vmatpush.bf16.msra.mxu0 %v2299
      %2397 = vmatpush.bf16.msra.mxu0 %v2295
      %2398 = vmatpush.bf16.msra.mxu0 %v2291
      %2399 = vmatpush.bf16.msra.mxu0 %v2287
      %2400 = vmatpush.bf16.msra.mxu0 %v2283
      %2401 = vmatpush.bf16.msra.mxu0 %v2279
      %2402 = vmatmul.bf16.gmra.mxu0 %v2048
      %v2403 = vpop.f32.mrf.mxu0
      %v2404 = vadd.f32 %v2385, %v2403
      %v2405 = vpop.f32.mrf.mxu0
      %v2406 = vadd.f32 %v2387, %v2405
      %2407 = vmatmul.bf16.gmra.mxu0 %v2050
      %v2408 = vpop.f32.mrf.mxu0
      %v2409 = vadd.f32 %v2390, %v2408
      %v2410 = vpop.f32.mrf.mxu0
      %v2411 = vadd.f32 %v2392, %v2410
      %2412 = vdwg.mxu0
      %2413 = vmatpush.bf16.msra.mxu0 %v2276
      %2414 = vmatpush.bf16.msra.mxu0 %v2272
      %2415 = vmatpush.bf16.msra.mxu0 %v2268
      %2416 = vmatpush.bf16.msra.mxu0 %v2264
      %2417 = vmatpush.bf16.msra.mxu0 %v2260
      %2418 = vmatpush.bf16.msra.mxu0 %v2256
      %2419 = vmatpush.bf16.msra.mxu0 %v2252
      %2420 = vmatpush.bf16.msra.mxu0 %v2248
      %2421 = vmatmul.bf16.gmra.mxu0 %v2047
      %v2422 = vpop.f32.mrf.mxu0
      %v2423 = vadd.f32 0.0, %v2422
      %v2424 = vpop.f32.mrf.mxu0
      %v2425 = vadd.f32 0.0, %v2424
      %2426 = vmatmul.bf16.gmra.mxu0 %v2049
      %v2427 = vpop.f32.mrf.mxu0
      %v2428 = vadd.f32 0.0, %v2427
      %v2429 = vpop.f32.mrf.mxu0
      %v2430 = vadd.f32 0.0, %v2429
      %2431 = vdwg.mxu0
      %2432 = vmatpush.bf16.msra.mxu0 %v2308
      %2433 = vmatpush.bf16.msra.mxu0 %v2304
      %2434 = vmatpush.bf16.msra.mxu0 %v2300
      %2435 = vmatpush.bf16.msra.mxu0 %v2296
      %2436 = vmatpush.bf16.msra.mxu0 %v2292
      %2437 = vmatpush.bf16.msra.mxu0 %v2288
      %2438 = vmatpush.bf16.msra.mxu0 %v2284
      %2439 = vmatpush.bf16.msra.mxu0 %v2280
      %2440 = vmatmul.bf16.gmra.mxu0 %v2048
      %v2441 = vpop.f32.mrf.mxu0
      %v2442 = vadd.f32 %v2423, %v2441
      %v2443 = vpop.f32.mrf.mxu0
      %v2444 = vadd.f32 %v2425, %v2443
      %2445 = vmatmul.bf16.gmra.mxu0 %v2050
      %v2446 = vpop.f32.mrf.mxu0
      %v2447 = vadd.f32 %v2428, %v2446
      %v2448 = vpop.f32.mrf.mxu0
      %v2449 = vadd.f32 %v2430, %v2448
      %2450 = vdwg.mxu0
      %2451 = vmatpush.bf16.msra.mxu0 %v2277
      %2452 = vmatpush.bf16.msra.mxu0 %v2273
      %2453 = vmatpush.bf16.msra.mxu0 %v2269
      %2454 = vmatpush.bf16.msra.mxu0 %v2265
      %2455 = vmatpush.bf16.msra.mxu0 %v2261
      %2456 = vmatpush.bf16.msra.mxu0 %v2257
      %2457 = vmatpush.bf16.msra.mxu0 %v2253
      %2458 = vmatpush.bf16.msra.mxu0 %v2249
      %2459 = vmatmul.bf16.gmra.mxu0 %v2047
      %v2460 = vpop.f32.mrf.mxu0
      %v2461 = vadd.f32 0.0, %v2460
      %v2462 = vpop.f32.mrf.mxu0
      %v2463 = vadd.f32 0.0, %v2462
      %2464 = vmatmul.bf16.gmra.mxu0 %v2049
      %v2465 = vpop.f32.mrf.mxu0
      %v2466 = vadd.f32 0.0, %v2465
      %v2467 = vpop.f32.mrf.mxu0
      %v2468 = vadd.f32 0.0, %v2467
      %2469 = vdwg.mxu0
      %2470 = vmatpush.bf16.msra.mxu0 %v2309
      %2471 = vmatpush.bf16.msra.mxu0 %v2305
      %2472 = vmatpush.bf16.msra.mxu0 %v2301
      %2473 = vmatpush.bf16.msra.mxu0 %v2297
      %2474 = vmatpush.bf16.msra.mxu0 %v2293
      %2475 = vmatpush.bf16.msra.mxu0 %v2289
      %2476 = vmatpush.bf16.msra.mxu0 %v2285
      %2477 = vmatpush.bf16.msra.mxu0 %v2281
      %2478 = vmatmul.bf16.gmra.mxu0 %v2048
      %v2479 = vpop.f32.mrf.mxu0
      %v2480 = vadd.f32 %v2461, %v2479
      %v2481 = vpop.f32.mrf.mxu0
      %v2482 = vadd.f32 %v2463, %v2481
      %2483 = vmatmul.bf16.gmra.mxu0 %v2050
      %v2484 = vpop.f32.mrf.mxu0
      %v2485 = vadd.f32 %v2466, %v2484
      %v2486 = vpop.f32.mrf.mxu0
      %v2487 = vadd.f32 %v2468, %v2486
      %2488 = vdwg.mxu0
      %2489 = vmatpush.bf16.msra.mxu0 %v2278
      %2490 = vmatpush.bf16.msra.mxu0 %v2274
      %2491 = vmatpush.bf16.msra.mxu0 %v2270
      %2492 = vmatpush.bf16.msra.mxu0 %v2266
      %2493 = vmatpush.bf16.msra.mxu0 %v2262
      %2494 = vmatpush.bf16.msra.mxu0 %v2258
      %2495 = vmatpush.bf16.msra.mxu0 %v2254
      %2496 = vmatpush.bf16.msra.mxu0 %v2250
      %2497 = vmatmul.bf16.gmra.mxu0 %v2047
      %v2498 = vpop.f32.mrf.mxu0
      %v2499 = vadd.f32 0.0, %v2498
      %v2500 = vpop.f32.mrf.mxu0
      %v2501 = vadd.f32 0.0, %v2500
      %2502 = vmatmul.bf16.gmra.mxu0 %v2049
      %v2503 = vpop.f32.mrf.mxu0
      %v2504 = vadd.f32 0.0, %v2503
      %v2505 = vpop.f32.mrf.mxu0
      %v2506 = vadd.f32 0.0, %v2505
      %2507 = vdwg.mxu0
      %2508 = vmatpush.bf16.msra.mxu0 %v2310
      %2509 = vmatpush.bf16.msra.mxu0 %v2306
      %2510 = vmatpush.bf16.msra.mxu0 %v2302
      %2511 = vmatpush.bf16.msra.mxu0 %v2298
      %2512 = vmatpush.bf16.msra.mxu0 %v2294
      %2513 = vmatpush.bf16.msra.mxu0 %v2290
      %2514 = vmatpush.bf16.msra.mxu0 %v2286
      %2515 = vmatpush.bf16.msra.mxu0 %v2282
      %2516 = vmatmul.bf16.gmra.mxu0 %v2048
      %v2517 = vpop.f32.mrf.mxu0
      %v2518 = vadd.f32 %v2499, %v2517
      %v2519 = vpop.f32.mrf.mxu0
      %v2520 = vadd.f32 %v2501, %v2519
      %2521 = vmatmul.bf16.gmra.mxu0 %v2050
      %v2522 = vpop.f32.mrf.mxu0
      %v2523 = vadd.f32 %v2504, %v2522
      %v2524 = vpop.f32.mrf.mxu0
      %v2525 = vadd.f32 %v2506, %v2524
      %2526 = vdwg.mxu0
      %v2527 = vadd.f32 %v1949, %v2404
      %v2528 = vadd.f32 %v1950, %v2442
      %v2529 = vadd.f32 %v1951, %v2480
      %v2530 = vadd.f32 %v1952, %v2518
      %v2531 = vadd.f32 %v1953, %v2406
      %v2532 = vadd.f32 %v1954, %v2444
      %v2533 = vadd.f32 %v1955, %v2482
      %v2534 = vadd.f32 %v1956, %v2520
      %v2535 = vadd.f32 %v1957, %v2409
      %v2536 = vadd.f32 %v1958, %v2447
      %v2537 = vadd.f32 %v1959, %v2485
      %v2538 = vadd.f32 %v1960, %v2523
      %v2539 = vadd.f32 %v1961, %v2411
      %v2540 = vadd.f32 %v1962, %v2449
      %v2541 = vadd.f32 %v1963, %v2487
      %v2542 = vadd.f32 %v1964, %v2525
      %s2543 = scalar_lea.vmem %s254, 128
      %v2544 = vld [vmem:[%s2543] sm:$0xff]
      %v2545 = vld [vmem:[%s2543 + $0x8] sm:$0xff]
      %v2546 = vld [vmem:[%s2543 + $0x10] sm:$0xff]
      %v2547 = vld [vmem:[%s2543 + $0x18] sm:$0x11]
      %s2548 = scalar_lea.vmem %s1, 2048
      %v2549 = vld [vmem:[%s2548] sm:$0xff]
      %v2550 = vld [vmem:[%s2548 + $0x8] sm:$0xff]
      %v2551 = vld [vmem:[%s2548 + $0x10] sm:$0xff]
      %v2552 = vld [vmem:[%s2548 + $0x18] sm:$0xff]
      %v2553 = vld [vmem:[%s2548 + $0x20] sm:$0xff]
      %v2554 = vld [vmem:[%s2548 + $0x28] sm:$0xff]
      %v2555 = vld [vmem:[%s2548 + $0x30] sm:$0xff]
      %v2556 = vld [vmem:[%s2548 + $0x38] sm:$0xff]
      %v2557 = vld [vmem:[%s2548 + $0x40] sm:$0xff]
      %v2558 = vld [vmem:[%s2548 + $0x48] sm:$0xff]
      %v2559 = vld [vmem:[%s2548 + $0x50] sm:$0xff]
      %v2560 = vld [vmem:[%s2548 + $0x58] sm:$0xff]
      %v2561 = vld [vmem:[%s2548 + $0x60] sm:$0xff]
      %v2562 = vld [vmem:[%s2548 + $0x68] sm:$0xff]
      %v2563 = vld [vmem:[%s2548 + $0x70] sm:$0xff]
      %v2564 = vld [vmem:[%s2548 + $0x78] sm:$0xff]
      %v2565 = vld [vmem:[%s2548 + $0x80] sm:$0xff]
      %v2566 = vld [vmem:[%s2548 + $0x88] sm:$0xff]
      %v2567 = vld [vmem:[%s2548 + $0x90] sm:$0xff]
      %v2568 = vld [vmem:[%s2548 + $0x98] sm:$0xff]
      %v2569 = vld [vmem:[%s2548 + $0xa0] sm:$0xff]
      %v2570 = vld [vmem:[%s2548 + $0xa8] sm:$0xff]
      %v2571 = vld [vmem:[%s2548 + $0xb0] sm:$0xff]
      %v2572 = vld [vmem:[%s2548 + $0xb8] sm:$0xff]
      %v2573 = vld [vmem:[%s2548 + $0xc0] sm:$0xff]
      %v2574 = vld [vmem:[%s2548 + $0xc8] sm:$0xff]
      %v2575 = vld [vmem:[%s2548 + $0xd0] sm:$0xff]
      %v2576 = vld [vmem:[%s2548 + $0xd8] sm:$0xff]
      %v2577 = vld [vmem:[%s2548 + $0xe0] sm:$0xff]
      %v2578 = vld [vmem:[%s2548 + $0xe8] sm:$0xff]
      %v2579 = vld [vmem:[%s2548 + $0xf0] sm:$0xff]
      %v2580 = vld [vmem:[%s2548 + $0xf8] sm:$0xff]
      %v2581 = vld [vmem:[%s2548 + $0x100] sm:$0xff]
      %v2582 = vld [vmem:[%s2548 + $0x108] sm:$0xff]
      %v2583 = vld [vmem:[%s2548 + $0x110] sm:$0xff]
      %v2584 = vld [vmem:[%s2548 + $0x118] sm:$0xff]
      %v2585 = vld [vmem:[%s2548 + $0x120] sm:$0xff]
      %v2586 = vld [vmem:[%s2548 + $0x128] sm:$0xff]
      %v2587 = vld [vmem:[%s2548 + $0x130] sm:$0xff]
      %v2588 = vld [vmem:[%s2548 + $0x138] sm:$0xff]
      %v2589 = vld [vmem:[%s2548 + $0x140] sm:$0xff]
      %v2590 = vld [vmem:[%s2548 + $0x148] sm:$0xff]
      %v2591 = vld [vmem:[%s2548 + $0x150] sm:$0xff]
      %v2592 = vld [vmem:[%s2548 + $0x158] sm:$0xff]
      %v2593 = vld [vmem:[%s2548 + $0x160] sm:$0xff]
      %v2594 = vld [vmem:[%s2548 + $0x168] sm:$0xff]
      %v2595 = vld [vmem:[%s2548 + $0x170] sm:$0xff]
      %v2596 = vld [vmem:[%s2548 + $0x178] sm:$0xff]
      %v2597 = vld [vmem:[%s2548 + $0x180] sm:$0xff]
      %v2598 = vld [vmem:[%s2548 + $0x188] sm:$0xff]
      %v2599 = vld [vmem:[%s2548 + $0x190] sm:$0xff]
      %v2600 = vld [vmem:[%s2548 + $0x198] sm:$0xff]
      %v2601 = vld [vmem:[%s2548 + $0x1a0] sm:$0xff]
      %v2602 = vld [vmem:[%s2548 + $0x1a8] sm:$0xff]
      %v2603 = vld [vmem:[%s2548 + $0x1b0] sm:$0xff]
      %v2604 = vld [vmem:[%s2548 + $0x1b8] sm:$0xff]
      %v2605 = vld [vmem:[%s2548 + $0x1c0] sm:$0xff]
      %v2606 = vld [vmem:[%s2548 + $0x1c8] sm:$0xff]
      %v2607 = vld [vmem:[%s2548 + $0x1d0] sm:$0xff]
      %v2608 = vld [vmem:[%s2548 + $0x1d8] sm:$0xff]
      %v2609 = vld [vmem:[%s2548 + $0x1e0] sm:$0xff]
      %v2610 = vld [vmem:[%s2548 + $0x1e8] sm:$0xff]
      %v2611 = vld [vmem:[%s2548 + $0x1f0] sm:$0xff]
      %v2612 = vld [vmem:[%s2548 + $0x1f8] sm:$0xff]
      %v2617 = vunpack.c.l.b16 %v2544
      %v2618 = vunpack.c.h.b16 %v2544
      %v2619 = vunpack.c.l.b16 %v2545
      %v2620 = vunpack.c.h.b16 %v2545
      %v2621 = vunpack.c.l.b16 %v2546
      %v2622 = vunpack.c.h.b16 %v2546
      %v2623 = vunpack.c.l.b16 %v2547
      %v2624 = vunpack.c.h.b16 %v2547
      %v2625 = vpack.c.b16 %v2619, %v2617
      %v2626 = vpack.c.b16 %v2620, %v2618
      %v2627 = vpack.c.b16 %v2623, %v2621
      %v2628 = vpack.c.b16 %v2624, %v2622
      %v2697 = vunpack.c.l.b16 %v2549
      %v2698 = vunpack.c.h.b16 %v2549
      %v2699 = vunpack.c.l.b16 %v2550
      %v2700 = vunpack.c.h.b16 %v2550
      %v2701 = vunpack.c.l.b16 %v2551
      %v2702 = vunpack.c.h.b16 %v2551
      %v2703 = vunpack.c.l.b16 %v2552
      %v2704 = vunpack.c.h.b16 %v2552
      %v2705 = vunpack.c.l.b16 %v2553
      %v2706 = vunpack.c.h.b16 %v2553
      %v2707 = vunpack.c.l.b16 %v2554
      %v2708 = vunpack.c.h.b16 %v2554
      %v2709 = vunpack.c.l.b16 %v2555
      %v2710 = vunpack.c.h.b16 %v2555
      %v2711 = vunpack.c.l.b16 %v2556
      %v2712 = vunpack.c.h.b16 %v2556
      %v2713 = vunpack.c.l.b16 %v2557
      %v2714 = vunpack.c.h.b16 %v2557
      %v2715 = vunpack.c.l.b16 %v2558
      %v2716 = vunpack.c.h.b16 %v2558
      %v2717 = vunpack.c.l.b16 %v2559
      %v2718 = vunpack.c.h.b16 %v2559
      %v2719 = vunpack.c.l.b16 %v2560
      %v2720 = vunpack.c.h.b16 %v2560
      %v2721 = vunpack.c.l.b16 %v2561
      %v2722 = vunpack.c.h.b16 %v2561
      %v2723 = vunpack.c.l.b16 %v2562
      %v2724 = vunpack.c.h.b16 %v2562
      %v2725 = vunpack.c.l.b16 %v2563
      %v2726 = vunpack.c.h.b16 %v2563
      %v2727 = vunpack.c.l.b16 %v2564
      %v2728 = vunpack.c.h.b16 %v2564
      %v2729 = vunpack.c.l.b16 %v2565
      %v2730 = vunpack.c.h.b16 %v2565
      %v2731 = vunpack.c.l.b16 %v2566
      %v2732 = vunpack.c.h.b16 %v2566
      %v2733 = vunpack.c.l.b16 %v2567
      %v2734 = vunpack.c.h.b16 %v2567
      %v2735 = vunpack.c.l.b16 %v2568
      %v2736 = vunpack.c.h.b16 %v2568
      %v2737 = vunpack.c.l.b16 %v2569
      %v2738 = vunpack.c.h.b16 %v2569
      %v2739 = vunpack.c.l.b16 %v2570
      %v2740 = vunpack.c.h.b16 %v2570
      %v2741 = vunpack.c.l.b16 %v2571
      %v2742 = vunpack.c.h.b16 %v2571
      %v2743 = vunpack.c.l.b16 %v2572
      %v2744 = vunpack.c.h.b16 %v2572
      %v2745 = vunpack.c.l.b16 %v2573
      %v2746 = vunpack.c.h.b16 %v2573
      %v2747 = vunpack.c.l.b16 %v2574
      %v2748 = vunpack.c.h.b16 %v2574
      %v2749 = vunpack.c.l.b16 %v2575
      %v2750 = vunpack.c.h.b16 %v2575
      %v2751 = vunpack.c.l.b16 %v2576
      %v2752 = vunpack.c.h.b16 %v2576
      %v2753 = vunpack.c.l.b16 %v2577
      %v2754 = vunpack.c.h.b16 %v2577
      %v2755 = vunpack.c.l.b16 %v2578
      %v2756 = vunpack.c.h.b16 %v2578
      %v2757 = vunpack.c.l.b16 %v2579
      %v2758 = vunpack.c.h.b16 %v2579
      %v2759 = vunpack.c.l.b16 %v2580
      %v2760 = vunpack.c.h.b16 %v2580
      %v2761 = vunpack.c.l.b16 %v2581
      %v2762 = vunpack.c.h.b16 %v2581
      %v2763 = vunpack.c.l.b16 %v2582
      %v2764 = vunpack.c.h.b16 %v2582
      %v2765 = vunpack.c.l.b16 %v2583
      %v2766 = vunpack.c.h.b16 %v2583
      %v2767 = vunpack.c.l.b16 %v2584
      %v2768 = vunpack.c.h.b16 %v2584
      %v2769 = vunpack.c.l.b16 %v2585
      %v2770 = vunpack.c.h.b16 %v2585
      %v2771 = vunpack.c.l.b16 %v2586
      %v2772 = vunpack.c.h.b16 %v2586
      %v2773 = vunpack.c.l.b16 %v2587
      %v2774 = vunpack.c.h.b16 %v2587
      %v2775 = vunpack.c.l.b16 %v2588
      %v2776 = vunpack.c.h.b16 %v2588
      %v2777 = vunpack.c.l.b16 %v2589
      %v2778 = vunpack.c.h.b16 %v2589
      %v2779 = vunpack.c.l.b16 %v2590
      %v2780 = vunpack.c.h.b16 %v2590
      %v2781 = vunpack.c.l.b16 %v2591
      %v2782 = vunpack.c.h.b16 %v2591
      %v2783 = vunpack.c.l.b16 %v2592
      %v2784 = vunpack.c.h.b16 %v2592
      %v2785 = vunpack.c.l.b16 %v2593
      %v2786 = vunpack.c.h.b16 %v2593
      %v2787 = vunpack.c.l.b16 %v2594
      %v2788 = vunpack.c.h.b16 %v2594
      %v2789 = vunpack.c.l.b16 %v2595
      %v2790 = vunpack.c.h.b16 %v2595
      %v2791 = vunpack.c.l.b16 %v2596
      %v2792 = vunpack.c.h.b16 %v2596
      %v2793 = vunpack.c.l.b16 %v2597
      %v2794 = vunpack.c.h.b16 %v2597
      %v2795 = vunpack.c.l.b16 %v2598
      %v2796 = vunpack.c.h.b16 %v2598
      %v2797 = vunpack.c.l.b16 %v2599
      %v2798 = vunpack.c.h.b16 %v2599
      %v2799 = vunpack.c.l.b16 %v2600
      %v2800 = vunpack.c.h.b16 %v2600
      %v2801 = vunpack.c.l.b16 %v2601
      %v2802 = vunpack.c.h.b16 %v2601
      %v2803 = vunpack.c.l.b16 %v2602
      %v2804 = vunpack.c.h.b16 %v2602
      %v2805 = vunpack.c.l.b16 %v2603
      %v2806 = vunpack.c.h.b16 %v2603
      %v2807 = vunpack.c.l.b16 %v2604
      %v2808 = vunpack.c.h.b16 %v2604
      %v2809 = vunpack.c.l.b16 %v2605
      %v2810 = vunpack.c.h.b16 %v2605
      %v2811 = vunpack.c.l.b16 %v2606
      %v2812 = vunpack.c.h.b16 %v2606
      %v2813 = vunpack.c.l.b16 %v2607
      %v2814 = vunpack.c.h.b16 %v2607
      %v2815 = vunpack.c.l.b16 %v2608
      %v2816 = vunpack.c.h.b16 %v2608
      %v2817 = vunpack.c.l.b16 %v2609
      %v2818 = vunpack.c.h.b16 %v2609
      %v2819 = vunpack.c.l.b16 %v2610
      %v2820 = vunpack.c.h.b16 %v2610
      %v2821 = vunpack.c.l.b16 %v2611
      %v2822 = vunpack.c.h.b16 %v2611
      %v2823 = vunpack.c.l.b16 %v2612
      %v2824 = vunpack.c.h.b16 %v2612
      %v2825 = vpack.c.b16 %v2701, %v2697
      %v2826 = vpack.c.b16 %v2702, %v2698
      %v2827 = vpack.c.b16 %v2703, %v2699
      %v2828 = vpack.c.b16 %v2704, %v2700
      %v2829 = vpack.c.b16 %v2709, %v2705
      %v2830 = vpack.c.b16 %v2710, %v2706
      %v2831 = vpack.c.b16 %v2711, %v2707
      %v2832 = vpack.c.b16 %v2712, %v2708
      %v2833 = vpack.c.b16 %v2717, %v2713
      %v2834 = vpack.c.b16 %v2718, %v2714
      %v2835 = vpack.c.b16 %v2719, %v2715
      %v2836 = vpack.c.b16 %v2720, %v2716
      %v2837 = vpack.c.b16 %v2725, %v2721
      %v2838 = vpack.c.b16 %v2726, %v2722
      %v2839 = vpack.c.b16 %v2727, %v2723
      %v2840 = vpack.c.b16 %v2728, %v2724
      %v2841 = vpack.c.b16 %v2733, %v2729
      %v2842 = vpack.c.b16 %v2734, %v2730
      %v2843 = vpack.c.b16 %v2735, %v2731
      %v2844 = vpack.c.b16 %v2736, %v2732
      %v2845 = vpack.c.b16 %v2741, %v2737
      %v2846 = vpack.c.b16 %v2742, %v2738
      %v2847 = vpack.c.b16 %v2743, %v2739
      %v2848 = vpack.c.b16 %v2744, %v2740
      %v2849 = vpack.c.b16 %v2749, %v2745
      %v2850 = vpack.c.b16 %v2750, %v2746
      %v2851 = vpack.c.b16 %v2751, %v2747
      %v2852 = vpack.c.b16 %v2752, %v2748
      %v2853 = vpack.c.b16 %v2757, %v2753
      %v2854 = vpack.c.b16 %v2758, %v2754
      %v2855 = vpack.c.b16 %v2759, %v2755
      %v2856 = vpack.c.b16 %v2760, %v2756
      %v2857 = vpack.c.b16 %v2765, %v2761
      %v2858 = vpack.c.b16 %v2766, %v2762
      %v2859 = vpack.c.b16 %v2767, %v2763
      %v2860 = vpack.c.b16 %v2768, %v2764
      %v2861 = vpack.c.b16 %v2773, %v2769
      %v2862 = vpack.c.b16 %v2774, %v2770
      %v2863 = vpack.c.b16 %v2775, %v2771
      %v2864 = vpack.c.b16 %v2776, %v2772
      %v2865 = vpack.c.b16 %v2781, %v2777
      %v2866 = vpack.c.b16 %v2782, %v2778
      %v2867 = vpack.c.b16 %v2783, %v2779
      %v2868 = vpack.c.b16 %v2784, %v2780
      %v2869 = vpack.c.b16 %v2789, %v2785
      %v2870 = vpack.c.b16 %v2790, %v2786
      %v2871 = vpack.c.b16 %v2791, %v2787
      %v2872 = vpack.c.b16 %v2792, %v2788
      %v2873 = vpack.c.b16 %v2797, %v2793
      %v2874 = vpack.c.b16 %v2798, %v2794
      %v2875 = vpack.c.b16 %v2799, %v2795
      %v2876 = vpack.c.b16 %v2800, %v2796
      %v2877 = vpack.c.b16 %v2805, %v2801
      %v2878 = vpack.c.b16 %v2806, %v2802
      %v2879 = vpack.c.b16 %v2807, %v2803
      %v2880 = vpack.c.b16 %v2808, %v2804
      %v2881 = vpack.c.b16 %v2813, %v2809
      %v2882 = vpack.c.b16 %v2814, %v2810
      %v2883 = vpack.c.b16 %v2815, %v2811
      %v2884 = vpack.c.b16 %v2816, %v2812
      %v2885 = vpack.c.b16 %v2821, %v2817
      %v2886 = vpack.c.b16 %v2822, %v2818
      %v2887 = vpack.c.b16 %v2823, %v2819
      %v2888 = vpack.c.b16 %v2824, %v2820
      %2953 = vmatpush.bf16.msra.mxu0 %v2853
      %2954 = vmatpush.bf16.msra.mxu0 %v2849
      %2955 = vmatpush.bf16.msra.mxu0 %v2845
      %2956 = vmatpush.bf16.msra.mxu0 %v2841
      %2957 = vmatpush.bf16.msra.mxu0 %v2837
      %2958 = vmatpush.bf16.msra.mxu0 %v2833
      %2959 = vmatpush.bf16.msra.mxu0 %v2829
      %2960 = vmatpush.bf16.msra.mxu0 %v2825
      %2961 = vmatmul.bf16.gmra.mxu0 %v2625
      %v2962 = vpop.f32.mrf.mxu0
      %v2963 = vadd.f32 0.0, %v2962
      %v2964 = vpop.f32.mrf.mxu0
      %v2965 = vadd.f32 0.0, %v2964
      %2966 = vmatmul.bf16.gmra.mxu0 %v2627
      %v2967 = vpop.f32.mrf.mxu0
      %v2968 = vadd.f32 0.0, %v2967
      %v2969 = vpop.f32.mrf.mxu0
      %v2970 = vadd.f32 0.0, %v2969
      %2971 = vdwg.mxu0
      %2972 = vmatpush.bf16.msra.mxu0 %v2885
      %2973 = vmatpush.bf16.msra.mxu0 %v2881
      %2974 = vmatpush.bf16.msra.mxu0 %v2877
      %2975 = vmatpush.bf16.msra.mxu0 %v2873
      %2976 = vmatpush.bf16.msra.mxu0 %v2869
      %2977 = vmatpush.bf16.msra.mxu0 %v2865
      %2978 = vmatpush.bf16.msra.mxu0 %v2861
      %2979 = vmatpush.bf16.msra.mxu0 %v2857
      %2980 = vmatmul.bf16.gmra.mxu0 %v2626
      %v2981 = vpop.f32.mrf.mxu0
      %v2982 = vadd.f32 %v2963, %v2981
      %v2983 = vpop.f32.mrf.mxu0
      %v2984 = vadd.f32 %v2965, %v2983
      %2985 = vmatmul.bf16.gmra.mxu0 %v2628
      %v2986 = vpop.f32.mrf.mxu0
      %v2987 = vadd.f32 %v2968, %v2986
      %v2988 = vpop.f32.mrf.mxu0
      %v2989 = vadd.f32 %v2970, %v2988
      %2990 = vdwg.mxu0
      %2991 = vmatpush.bf16.msra.mxu0 %v2854
      %2992 = vmatpush.bf16.msra.mxu0 %v2850
      %2993 = vmatpush.bf16.msra.mxu0 %v2846
      %2994 = vmatpush.bf16.msra.mxu0 %v2842
      %2995 = vmatpush.bf16.msra.mxu0 %v2838
      %2996 = vmatpush.bf16.msra.mxu0 %v2834
      %2997 = vmatpush.bf16.msra.mxu0 %v2830
      %2998 = vmatpush.bf16.msra.mxu0 %v2826
      %2999 = vmatmul.bf16.gmra.mxu0 %v2625
      %v3000 = vpop.f32.mrf.mxu0
      %v3001 = vadd.f32 0.0, %v3000
      %v3002 = vpop.f32.mrf.mxu0
      %v3003 = vadd.f32 0.0, %v3002
      %3004 = vmatmul.bf16.gmra.mxu0 %v2627
      %v3005 = vpop.f32.mrf.mxu0
      %v3006 = vadd.f32 0.0, %v3005
      %v3007 = vpop.f32.mrf.mxu0
      %v3008 = vadd.f32 0.0, %v3007
      %3009 = vdwg.mxu0
      %3010 = vmatpush.bf16.msra.mxu0 %v2886
      %3011 = vmatpush.bf16.msra.mxu0 %v2882
      %3012 = vmatpush.bf16.msra.mxu0 %v2878
      %3013 = vmatpush.bf16.msra.mxu0 %v2874
      %3014 = vmatpush.bf16.msra.mxu0 %v2870
      %3015 = vmatpush.bf16.msra.mxu0 %v2866
      %3016 = vmatpush.bf16.msra.mxu0 %v2862
      %3017 = vmatpush.bf16.msra.mxu0 %v2858
      %3018 = vmatmul.bf16.gmra.mxu0 %v2626
      %v3019 = vpop.f32.mrf.mxu0
      %v3020 = vadd.f32 %v3001, %v3019
      %v3021 = vpop.f32.mrf.mxu0
      %v3022 = vadd.f32 %v3003, %v3021
      %3023 = vmatmul.bf16.gmra.mxu0 %v2628
      %v3024 = vpop.f32.mrf.mxu0
      %v3025 = vadd.f32 %v3006, %v3024
      %v3026 = vpop.f32.mrf.mxu0
      %v3027 = vadd.f32 %v3008, %v3026
      %3028 = vdwg.mxu0
      %3029 = vmatpush.bf16.msra.mxu0 %v2855
      %3030 = vmatpush.bf16.msra.mxu0 %v2851
      %3031 = vmatpush.bf16.msra.mxu0 %v2847
      %3032 = vmatpush.bf16.msra.mxu0 %v2843
      %3033 = vmatpush.bf16.msra.mxu0 %v2839
      %3034 = vmatpush.bf16.msra.mxu0 %v2835
      %3035 = vmatpush.bf16.msra.mxu0 %v2831
      %3036 = vmatpush.bf16.msra.mxu0 %v2827
      %3037 = vmatmul.bf16.gmra.mxu0 %v2625
      %v3038 = vpop.f32.mrf.mxu0
      %v3039 = vadd.f32 0.0, %v3038
      %v3040 = vpop.f32.mrf.mxu0
      %v3041 = vadd.f32 0.0, %v3040
      %3042 = vmatmul.bf16.gmra.mxu0 %v2627
      %v3043 = vpop.f32.mrf.mxu0
      %v3044 = vadd.f32 0.0, %v3043
      %v3045 = vpop.f32.mrf.mxu0
      %v3046 = vadd.f32 0.0, %v3045
      %3047 = vdwg.mxu0
      %3048 = vmatpush.bf16.msra.mxu0 %v2887
      %3049 = vmatpush.bf16.msra.mxu0 %v2883
      %3050 = vmatpush.bf16.msra.mxu0 %v2879
      %3051 = vmatpush.bf16.msra.mxu0 %v2875
      %3052 = vmatpush.bf16.msra.mxu0 %v2871
      %3053 = vmatpush.bf16.msra.mxu0 %v2867
      %3054 = vmatpush.bf16.msra.mxu0 %v2863
      %3055 = vmatpush.bf16.msra.mxu0 %v2859
      %3056 = vmatmul.bf16.gmra.mxu0 %v2626
      %v3057 = vpop.f32.mrf.mxu0
      %v3058 = vadd.f32 %v3039, %v3057
      %v3059 = vpop.f32.mrf.mxu0
      %v3060 = vadd.f32 %v3041, %v3059
      %3061 = vmatmul.bf16.gmra.mxu0 %v2628
      %v3062 = vpop.f32.mrf.mxu0
      %v3063 = vadd.f32 %v3044, %v3062
      %v3064 = vpop.f32.mrf.mxu0
      %v3065 = vadd.f32 %v3046, %v3064
      %3066 = vdwg.mxu0
      %3067 = vmatpush.bf16.msra.mxu0 %v2856
      %3068 = vmatpush.bf16.msra.mxu0 %v2852
      %3069 = vmatpush.bf16.msra.mxu0 %v2848
      %3070 = vmatpush.bf16.msra.mxu0 %v2844
      %3071 = vmatpush.bf16.msra.mxu0 %v2840
      %3072 = vmatpush.bf16.msra.mxu0 %v2836
      %3073 = vmatpush.bf16.msra.mxu0 %v2832
      %3074 = vmatpush.bf16.msra.mxu0 %v2828
      %3075 = vmatmul.bf16.gmra.mxu0 %v2625
      %v3076 = vpop.f32.mrf.mxu0
      %v3077 = vadd.f32 0.0, %v3076
      %v3078 = vpop.f32.mrf.mxu0
      %v3079 = vadd.f32 0.0, %v3078
      %3080 = vmatmul.bf16.gmra.mxu0 %v2627
      %v3081 = vpop.f32.mrf.mxu0
      %v3082 = vadd.f32 0.0, %v3081
      %v3083 = vpop.f32.mrf.mxu0
      %v3084 = vadd.f32 0.0, %v3083
      %3085 = vdwg.mxu0
      %3086 = vmatpush.bf16.msra.mxu0 %v2888
      %3087 = vmatpush.bf16.msra.mxu0 %v2884
      %3088 = vmatpush.bf16.msra.mxu0 %v2880
      %3089 = vmatpush.bf16.msra.mxu0 %v2876
      %3090 = vmatpush.bf16.msra.mxu0 %v2872
      %3091 = vmatpush.bf16.msra.mxu0 %v2868
      %3092 = vmatpush.bf16.msra.mxu0 %v2864
      %3093 = vmatpush.bf16.msra.mxu0 %v2860
      %3094 = vmatmul.bf16.gmra.mxu0 %v2626
      %v3095 = vpop.f32.mrf.mxu0
      %v3096 = vadd.f32 %v3077, %v3095
      %v3097 = vpop.f32.mrf.mxu0
      %v3098 = vadd.f32 %v3079, %v3097
      %3099 = vmatmul.bf16.gmra.mxu0 %v2628
      %v3100 = vpop.f32.mrf.mxu0
      %v3101 = vadd.f32 %v3082, %v3100
      %v3102 = vpop.f32.mrf.mxu0
      %v3103 = vadd.f32 %v3084, %v3102
      %3104 = vdwg.mxu0
      %v3105 = vadd.f32 %v2527, %v2982
      %v3106 = vadd.f32 %v2528, %v3020
      %v3107 = vadd.f32 %v2529, %v3058
      %v3108 = vadd.f32 %v2530, %v3096
      %v3109 = vadd.f32 %v2531, %v2984
      %v3110 = vadd.f32 %v2532, %v3022
      %v3111 = vadd.f32 %v2533, %v3060
      %v3112 = vadd.f32 %v2534, %v3098
      %v3113 = vadd.f32 %v2535, %v2987
      %v3114 = vadd.f32 %v2536, %v3025
      %v3115 = vadd.f32 %v2537, %v3063
      %v3116 = vadd.f32 %v2538, %v3101
      %v3117 = vadd.f32 %v2539, %v2989
      %v3118 = vadd.f32 %v2540, %v3027
      %v3119 = vadd.f32 %v2541, %v3065
      %v3120 = vadd.f32 %v2542, %v3103
      %s3121 = scalar_lea.vmem %s254, 160
      %v3122 = vld [vmem:[%s3121] sm:$0xff]
      %v3123 = vld [vmem:[%s3121 + $0x8] sm:$0xff]
      %v3124 = vld [vmem:[%s3121 + $0x10] sm:$0xff]
      %v3125 = vld [vmem:[%s3121 + $0x18] sm:$0x11]
      %s3126 = scalar_lea.vmem %s1, 2560
      %v3127 = vld [vmem:[%s3126] sm:$0xff]
      %v3128 = vld [vmem:[%s3126 + $0x8] sm:$0xff]
      %v3129 = vld [vmem:[%s3126 + $0x10] sm:$0xff]
      %v3130 = vld [vmem:[%s3126 + $0x18] sm:$0xff]
      %v3131 = vld [vmem:[%s3126 + $0x20] sm:$0xff]
      %v3132 = vld [vmem:[%s3126 + $0x28] sm:$0xff]
      %v3133 = vld [vmem:[%s3126 + $0x30] sm:$0xff]
      %v3134 = vld [vmem:[%s3126 + $0x38] sm:$0xff]
      %v3135 = vld [vmem:[%s3126 + $0x40] sm:$0xff]
      %v3136 = vld [vmem:[%s3126 + $0x48] sm:$0xff]
      %v3137 = vld [vmem:[%s3126 + $0x50] sm:$0xff]
      %v3138 = vld [vmem:[%s3126 + $0x58] sm:$0xff]
      %v3139 = vld [vmem:[%s3126 + $0x60] sm:$0xff]
      %v3140 = vld [vmem:[%s3126 + $0x68] sm:$0xff]
      %v3141 = vld [vmem:[%s3126 + $0x70] sm:$0xff]
      %v3142 = vld [vmem:[%s3126 + $0x78] sm:$0xff]
      %v3143 = vld [vmem:[%s3126 + $0x80] sm:$0xff]
      %v3144 = vld [vmem:[%s3126 + $0x88] sm:$0xff]
      %v3145 = vld [vmem:[%s3126 + $0x90] sm:$0xff]
      %v3146 = vld [vmem:[%s3126 + $0x98] sm:$0xff]
      %v3147 = vld [vmem:[%s3126 + $0xa0] sm:$0xff]
      %v3148 = vld [vmem:[%s3126 + $0xa8] sm:$0xff]
      %v3149 = vld [vmem:[%s3126 + $0xb0] sm:$0xff]
      %v3150 = vld [vmem:[%s3126 + $0xb8] sm:$0xff]
      %v3151 = vld [vmem:[%s3126 + $0xc0] sm:$0xff]
      %v3152 = vld [vmem:[%s3126 + $0xc8] sm:$0xff]
      %v3153 = vld [vmem:[%s3126 + $0xd0] sm:$0xff]
      %v3154 = vld [vmem:[%s3126 + $0xd8] sm:$0xff]
      %v3155 = vld [vmem:[%s3126 + $0xe0] sm:$0xff]
      %v3156 = vld [vmem:[%s3126 + $0xe8] sm:$0xff]
      %v3157 = vld [vmem:[%s3126 + $0xf0] sm:$0xff]
      %v3158 = vld [vmem:[%s3126 + $0xf8] sm:$0xff]
      %v3159 = vld [vmem:[%s3126 + $0x100] sm:$0xff]
      %v3160 = vld [vmem:[%s3126 + $0x108] sm:$0xff]
      %v3161 = vld [vmem:[%s3126 + $0x110] sm:$0xff]
      %v3162 = vld [vmem:[%s3126 + $0x118] sm:$0xff]
      %v3163 = vld [vmem:[%s3126 + $0x120] sm:$0xff]
      %v3164 = vld [vmem:[%s3126 + $0x128] sm:$0xff]
      %v3165 = vld [vmem:[%s3126 + $0x130] sm:$0xff]
      %v3166 = vld [vmem:[%s3126 + $0x138] sm:$0xff]
      %v3167 = vld [vmem:[%s3126 + $0x140] sm:$0xff]
      %v3168 = vld [vmem:[%s3126 + $0x148] sm:$0xff]
      %v3169 = vld [vmem:[%s3126 + $0x150] sm:$0xff]
      %v3170 = vld [vmem:[%s3126 + $0x158] sm:$0xff]
      %v3171 = vld [vmem:[%s3126 + $0x160] sm:$0xff]
      %v3172 = vld [vmem:[%s3126 + $0x168] sm:$0xff]
      %v3173 = vld [vmem:[%s3126 + $0x170] sm:$0xff]
      %v3174 = vld [vmem:[%s3126 + $0x178] sm:$0xff]
      %v3175 = vld [vmem:[%s3126 + $0x180] sm:$0xff]
      %v3176 = vld [vmem:[%s3126 + $0x188] sm:$0xff]
      %v3177 = vld [vmem:[%s3126 + $0x190] sm:$0xff]
      %v3178 = vld [vmem:[%s3126 + $0x198] sm:$0xff]
      %v3179 = vld [vmem:[%s3126 + $0x1a0] sm:$0xff]
      %v3180 = vld [vmem:[%s3126 + $0x1a8] sm:$0xff]
      %v3181 = vld [vmem:[%s3126 + $0x1b0] sm:$0xff]
      %v3182 = vld [vmem:[%s3126 + $0x1b8] sm:$0xff]
      %v3183 = vld [vmem:[%s3126 + $0x1c0] sm:$0xff]
      %v3184 = vld [vmem:[%s3126 + $0x1c8] sm:$0xff]
      %v3185 = vld [vmem:[%s3126 + $0x1d0] sm:$0xff]
      %v3186 = vld [vmem:[%s3126 + $0x1d8] sm:$0xff]
      %v3187 = vld [vmem:[%s3126 + $0x1e0] sm:$0xff]
      %v3188 = vld [vmem:[%s3126 + $0x1e8] sm:$0xff]
      %v3189 = vld [vmem:[%s3126 + $0x1f0] sm:$0xff]
      %v3190 = vld [vmem:[%s3126 + $0x1f8] sm:$0xff]
      %v3195 = vunpack.c.l.b16 %v3122
      %v3196 = vunpack.c.h.b16 %v3122
      %v3197 = vunpack.c.l.b16 %v3123
      %v3198 = vunpack.c.h.b16 %v3123
      %v3199 = vunpack.c.l.b16 %v3124
      %v3200 = vunpack.c.h.b16 %v3124
      %v3201 = vunpack.c.l.b16 %v3125
      %v3202 = vunpack.c.h.b16 %v3125
      %v3203 = vpack.c.b16 %v3197, %v3195
      %v3204 = vpack.c.b16 %v3198, %v3196
      %v3205 = vpack.c.b16 %v3201, %v3199
      %v3206 = vpack.c.b16 %v3202, %v3200
      %v3275 = vunpack.c.l.b16 %v3127
      %v3276 = vunpack.c.h.b16 %v3127
      %v3277 = vunpack.c.l.b16 %v3128
      %v3278 = vunpack.c.h.b16 %v3128
      %v3279 = vunpack.c.l.b16 %v3129
      %v3280 = vunpack.c.h.b16 %v3129
      %v3281 = vunpack.c.l.b16 %v3130
      %v3282 = vunpack.c.h.b16 %v3130
      %v3283 = vunpack.c.l.b16 %v3131
      %v3284 = vunpack.c.h.b16 %v3131
      %v3285 = vunpack.c.l.b16 %v3132
      %v3286 = vunpack.c.h.b16 %v3132
      %v3287 = vunpack.c.l.b16 %v3133
      %v3288 = vunpack.c.h.b16 %v3133
      %v3289 = vunpack.c.l.b16 %v3134
      %v3290 = vunpack.c.h.b16 %v3134
      %v3291 = vunpack.c.l.b16 %v3135
      %v3292 = vunpack.c.h.b16 %v3135
      %v3293 = vunpack.c.l.b16 %v3136
      %v3294 = vunpack.c.h.b16 %v3136
      %v3295 = vunpack.c.l.b16 %v3137
      %v3296 = vunpack.c.h.b16 %v3137
      %v3297 = vunpack.c.l.b16 %v3138
      %v3298 = vunpack.c.h.b16 %v3138
      %v3299 = vunpack.c.l.b16 %v3139
      %v3300 = vunpack.c.h.b16 %v3139
      %v3301 = vunpack.c.l.b16 %v3140
      %v3302 = vunpack.c.h.b16 %v3140
      %v3303 = vunpack.c.l.b16 %v3141
      %v3304 = vunpack.c.h.b16 %v3141
      %v3305 = vunpack.c.l.b16 %v3142
      %v3306 = vunpack.c.h.b16 %v3142
      %v3307 = vunpack.c.l.b16 %v3143
      %v3308 = vunpack.c.h.b16 %v3143
      %v3309 = vunpack.c.l.b16 %v3144
      %v3310 = vunpack.c.h.b16 %v3144
      %v3311 = vunpack.c.l.b16 %v3145
      %v3312 = vunpack.c.h.b16 %v3145
      %v3313 = vunpack.c.l.b16 %v3146
      %v3314 = vunpack.c.h.b16 %v3146
      %v3315 = vunpack.c.l.b16 %v3147
      %v3316 = vunpack.c.h.b16 %v3147
      %v3317 = vunpack.c.l.b16 %v3148
      %v3318 = vunpack.c.h.b16 %v3148
      %v3319 = vunpack.c.l.b16 %v3149
      %v3320 = vunpack.c.h.b16 %v3149
      %v3321 = vunpack.c.l.b16 %v3150
      %v3322 = vunpack.c.h.b16 %v3150
      %v3323 = vunpack.c.l.b16 %v3151
      %v3324 = vunpack.c.h.b16 %v3151
      %v3325 = vunpack.c.l.b16 %v3152
      %v3326 = vunpack.c.h.b16 %v3152
      %v3327 = vunpack.c.l.b16 %v3153
      %v3328 = vunpack.c.h.b16 %v3153
      %v3329 = vunpack.c.l.b16 %v3154
      %v3330 = vunpack.c.h.b16 %v3154
      %v3331 = vunpack.c.l.b16 %v3155
      %v3332 = vunpack.c.h.b16 %v3155
      %v3333 = vunpack.c.l.b16 %v3156
      %v3334 = vunpack.c.h.b16 %v3156
      %v3335 = vunpack.c.l.b16 %v3157
      %v3336 = vunpack.c.h.b16 %v3157
      %v3337 = vunpack.c.l.b16 %v3158
      %v3338 = vunpack.c.h.b16 %v3158
      %v3339 = vunpack.c.l.b16 %v3159
      %v3340 = vunpack.c.h.b16 %v3159
      %v3341 = vunpack.c.l.b16 %v3160
      %v3342 = vunpack.c.h.b16 %v3160
      %v3343 = vunpack.c.l.b16 %v3161
      %v3344 = vunpack.c.h.b16 %v3161
      %v3345 = vunpack.c.l.b16 %v3162
      %v3346 = vunpack.c.h.b16 %v3162
      %v3347 = vunpack.c.l.b16 %v3163
      %v3348 = vunpack.c.h.b16 %v3163
      %v3349 = vunpack.c.l.b16 %v3164
      %v3350 = vunpack.c.h.b16 %v3164
      %v3351 = vunpack.c.l.b16 %v3165
      %v3352 = vunpack.c.h.b16 %v3165
      %v3353 = vunpack.c.l.b16 %v3166
      %v3354 = vunpack.c.h.b16 %v3166
      %v3355 = vunpack.c.l.b16 %v3167
      %v3356 = vunpack.c.h.b16 %v3167
      %v3357 = vunpack.c.l.b16 %v3168
      %v3358 = vunpack.c.h.b16 %v3168
      %v3359 = vunpack.c.l.b16 %v3169
      %v3360 = vunpack.c.h.b16 %v3169
      %v3361 = vunpack.c.l.b16 %v3170
      %v3362 = vunpack.c.h.b16 %v3170
      %v3363 = vunpack.c.l.b16 %v3171
      %v3364 = vunpack.c.h.b16 %v3171
      %v3365 = vunpack.c.l.b16 %v3172
      %v3366 = vunpack.c.h.b16 %v3172
      %v3367 = vunpack.c.l.b16 %v3173
      %v3368 = vunpack.c.h.b16 %v3173
      %v3369 = vunpack.c.l.b16 %v3174
      %v3370 = vunpack.c.h.b16 %v3174
      %v3371 = vunpack.c.l.b16 %v3175
      %v3372 = vunpack.c.h.b16 %v3175
      %v3373 = vunpack.c.l.b16 %v3176
      %v3374 = vunpack.c.h.b16 %v3176
      %v3375 = vunpack.c.l.b16 %v3177
      %v3376 = vunpack.c.h.b16 %v3177
      %v3377 = vunpack.c.l.b16 %v3178
      %v3378 = vunpack.c.h.b16 %v3178
      %v3379 = vunpack.c.l.b16 %v3179
      %v3380 = vunpack.c.h.b16 %v3179
      %v3381 = vunpack.c.l.b16 %v3180
      %v3382 = vunpack.c.h.b16 %v3180
      %v3383 = vunpack.c.l.b16 %v3181
      %v3384 = vunpack.c.h.b16 %v3181
      %v3385 = vunpack.c.l.b16 %v3182
      %v3386 = vunpack.c.h.b16 %v3182
      %v3387 = vunpack.c.l.b16 %v3183
      %v3388 = vunpack.c.h.b16 %v3183
      %v3389 = vunpack.c.l.b16 %v3184
      %v3390 = vunpack.c.h.b16 %v3184
      %v3391 = vunpack.c.l.b16 %v3185
      %v3392 = vunpack.c.h.b16 %v3185
      %v3393 = vunpack.c.l.b16 %v3186
      %v3394 = vunpack.c.h.b16 %v3186
      %v3395 = vunpack.c.l.b16 %v3187
      %v3396 = vunpack.c.h.b16 %v3187
      %v3397 = vunpack.c.l.b16 %v3188
      %v3398 = vunpack.c.h.b16 %v3188
      %v3399 = vunpack.c.l.b16 %v3189
      %v3400 = vunpack.c.h.b16 %v3189
      %v3401 = vunpack.c.l.b16 %v3190
      %v3402 = vunpack.c.h.b16 %v3190
      %v3403 = vpack.c.b16 %v3279, %v3275
      %v3404 = vpack.c.b16 %v3280, %v3276
      %v3405 = vpack.c.b16 %v3281, %v3277
      %v3406 = vpack.c.b16 %v3282, %v3278
      %v3407 = vpack.c.b16 %v3287, %v3283
      %v3408 = vpack.c.b16 %v3288, %v3284
      %v3409 = vpack.c.b16 %v3289, %v3285
      %v3410 = vpack.c.b16 %v3290, %v3286
      %v3411 = vpack.c.b16 %v3295, %v3291
      %v3412 = vpack.c.b16 %v3296, %v3292
      %v3413 = vpack.c.b16 %v3297, %v3293
      %v3414 = vpack.c.b16 %v3298, %v3294
      %v3415 = vpack.c.b16 %v3303, %v3299
      %v3416 = vpack.c.b16 %v3304, %v3300
      %v3417 = vpack.c.b16 %v3305, %v3301
      %v3418 = vpack.c.b16 %v3306, %v3302
      %v3419 = vpack.c.b16 %v3311, %v3307
      %v3420 = vpack.c.b16 %v3312, %v3308
      %v3421 = vpack.c.b16 %v3313, %v3309
      %v3422 = vpack.c.b16 %v3314, %v3310
      %v3423 = vpack.c.b16 %v3319, %v3315
      %v3424 = vpack.c.b16 %v3320, %v3316
      %v3425 = vpack.c.b16 %v3321, %v3317
      %v3426 = vpack.c.b16 %v3322, %v3318
      %v3427 = vpack.c.b16 %v3327, %v3323
      %v3428 = vpack.c.b16 %v3328, %v3324
      %v3429 = vpack.c.b16 %v3329, %v3325
      %v3430 = vpack.c.b16 %v3330, %v3326
      %v3431 = vpack.c.b16 %v3335, %v3331
      %v3432 = vpack.c.b16 %v3336, %v3332
      %v3433 = vpack.c.b16 %v3337, %v3333
      %v3434 = vpack.c.b16 %v3338, %v3334
      %v3435 = vpack.c.b16 %v3343, %v3339
      %v3436 = vpack.c.b16 %v3344, %v3340
      %v3437 = vpack.c.b16 %v3345, %v3341
      %v3438 = vpack.c.b16 %v3346, %v3342
      %v3439 = vpack.c.b16 %v3351, %v3347
      %v3440 = vpack.c.b16 %v3352, %v3348
      %v3441 = vpack.c.b16 %v3353, %v3349
      %v3442 = vpack.c.b16 %v3354, %v3350
      %v3443 = vpack.c.b16 %v3359, %v3355
      %v3444 = vpack.c.b16 %v3360, %v3356
      %v3445 = vpack.c.b16 %v3361, %v3357
      %v3446 = vpack.c.b16 %v3362, %v3358
      %v3447 = vpack.c.b16 %v3367, %v3363
      %v3448 = vpack.c.b16 %v3368, %v3364
      %v3449 = vpack.c.b16 %v3369, %v3365
      %v3450 = vpack.c.b16 %v3370, %v3366
      %v3451 = vpack.c.b16 %v3375, %v3371
      %v3452 = vpack.c.b16 %v3376, %v3372
      %v3453 = vpack.c.b16 %v3377, %v3373
      %v3454 = vpack.c.b16 %v3378, %v3374
      %v3455 = vpack.c.b16 %v3383, %v3379
      %v3456 = vpack.c.b16 %v3384, %v3380
      %v3457 = vpack.c.b16 %v3385, %v3381
      %v3458 = vpack.c.b16 %v3386, %v3382
      %v3459 = vpack.c.b16 %v3391, %v3387
      %v3460 = vpack.c.b16 %v3392, %v3388
      %v3461 = vpack.c.b16 %v3393, %v3389
      %v3462 = vpack.c.b16 %v3394, %v3390
      %v3463 = vpack.c.b16 %v3399, %v3395
      %v3464 = vpack.c.b16 %v3400, %v3396
      %v3465 = vpack.c.b16 %v3401, %v3397
      %v3466 = vpack.c.b16 %v3402, %v3398
      %3531 = vmatpush.bf16.msra.mxu0 %v3431
      %3532 = vmatpush.bf16.msra.mxu0 %v3427
      %3533 = vmatpush.bf16.msra.mxu0 %v3423
      %3534 = vmatpush.bf16.msra.mxu0 %v3419
      %3535 = vmatpush.bf16.msra.mxu0 %v3415
      %3536 = vmatpush.bf16.msra.mxu0 %v3411
      %3537 = vmatpush.bf16.msra.mxu0 %v3407
      %3538 = vmatpush.bf16.msra.mxu0 %v3403
      %3539 = vmatmul.bf16.gmra.mxu0 %v3203
      %v3540 = vpop.f32.mrf.mxu0
      %v3541 = vadd.f32 0.0, %v3540
      %v3542 = vpop.f32.mrf.mxu0
      %v3543 = vadd.f32 0.0, %v3542
      %3544 = vmatmul.bf16.gmra.mxu0 %v3205
      %v3545 = vpop.f32.mrf.mxu0
      %v3546 = vadd.f32 0.0, %v3545
      %v3547 = vpop.f32.mrf.mxu0
      %v3548 = vadd.f32 0.0, %v3547
      %3549 = vdwg.mxu0
      %3550 = vmatpush.bf16.msra.mxu0 %v3463
      %3551 = vmatpush.bf16.msra.mxu0 %v3459
      %3552 = vmatpush.bf16.msra.mxu0 %v3455
      %3553 = vmatpush.bf16.msra.mxu0 %v3451
      %3554 = vmatpush.bf16.msra.mxu0 %v3447
      %3555 = vmatpush.bf16.msra.mxu0 %v3443
      %3556 = vmatpush.bf16.msra.mxu0 %v3439
      %3557 = vmatpush.bf16.msra.mxu0 %v3435
      %3558 = vmatmul.bf16.gmra.mxu0 %v3204
      %v3559 = vpop.f32.mrf.mxu0
      %v3560 = vadd.f32 %v3541, %v3559
      %v3561 = vpop.f32.mrf.mxu0
      %v3562 = vadd.f32 %v3543, %v3561
      %3563 = vmatmul.bf16.gmra.mxu0 %v3206
      %v3564 = vpop.f32.mrf.mxu0
      %v3565 = vadd.f32 %v3546, %v3564
      %v3566 = vpop.f32.mrf.mxu0
      %v3567 = vadd.f32 %v3548, %v3566
      %3568 = vdwg.mxu0
      %3569 = vmatpush.bf16.msra.mxu0 %v3432
      %3570 = vmatpush.bf16.msra.mxu0 %v3428
      %3571 = vmatpush.bf16.msra.mxu0 %v3424
      %3572 = vmatpush.bf16.msra.mxu0 %v3420
      %3573 = vmatpush.bf16.msra.mxu0 %v3416
      %3574 = vmatpush.bf16.msra.mxu0 %v3412
      %3575 = vmatpush.bf16.msra.mxu0 %v3408
      %3576 = vmatpush.bf16.msra.mxu0 %v3404
      %3577 = vmatmul.bf16.gmra.mxu0 %v3203
      %v3578 = vpop.f32.mrf.mxu0
      %v3579 = vadd.f32 0.0, %v3578
      %v3580 = vpop.f32.mrf.mxu0
      %v3581 = vadd.f32 0.0, %v3580
      %3582 = vmatmul.bf16.gmra.mxu0 %v3205
      %v3583 = vpop.f32.mrf.mxu0
      %v3584 = vadd.f32 0.0, %v3583
      %v3585 = vpop.f32.mrf.mxu0
      %v3586 = vadd.f32 0.0, %v3585
      %3587 = vdwg.mxu0
      %3588 = vmatpush.bf16.msra.mxu0 %v3464
      %3589 = vmatpush.bf16.msra.mxu0 %v3460
      %3590 = vmatpush.bf16.msra.mxu0 %v3456
      %3591 = vmatpush.bf16.msra.mxu0 %v3452
      %3592 = vmatpush.bf16.msra.mxu0 %v3448
      %3593 = vmatpush.bf16.msra.mxu0 %v3444
      %3594 = vmatpush.bf16.msra.mxu0 %v3440
      %3595 = vmatpush.bf16.msra.mxu0 %v3436
      %3596 = vmatmul.bf16.gmra.mxu0 %v3204
      %v3597 = vpop.f32.mrf.mxu0
      %v3598 = vadd.f32 %v3579, %v3597
      %v3599 = vpop.f32.mrf.mxu0
      %v3600 = vadd.f32 %v3581, %v3599
      %3601 = vmatmul.bf16.gmra.mxu0 %v3206
      %v3602 = vpop.f32.mrf.mxu0
      %v3603 = vadd.f32 %v3584, %v3602
      %v3604 = vpop.f32.mrf.mxu0
      %v3605 = vadd.f32 %v3586, %v3604
      %3606 = vdwg.mxu0
      %3607 = vmatpush.bf16.msra.mxu0 %v3433
      %3608 = vmatpush.bf16.msra.mxu0 %v3429
      %3609 = vmatpush.bf16.msra.mxu0 %v3425
      %3610 = vmatpush.bf16.msra.mxu0 %v3421
      %3611 = vmatpush.bf16.msra.mxu0 %v3417
      %3612 = vmatpush.bf16.msra.mxu0 %v3413
      %3613 = vmatpush.bf16.msra.mxu0 %v3409
      %3614 = vmatpush.bf16.msra.mxu0 %v3405
      %3615 = vmatmul.bf16.gmra.mxu0 %v3203
      %v3616 = vpop.f32.mrf.mxu0
      %v3617 = vadd.f32 0.0, %v3616
      %v3618 = vpop.f32.mrf.mxu0
      %v3619 = vadd.f32 0.0, %v3618
      %3620 = vmatmul.bf16.gmra.mxu0 %v3205
      %v3621 = vpop.f32.mrf.mxu0
      %v3622 = vadd.f32 0.0, %v3621
      %v3623 = vpop.f32.mrf.mxu0
      %v3624 = vadd.f32 0.0, %v3623
      %3625 = vdwg.mxu0
      %3626 = vmatpush.bf16.msra.mxu0 %v3465
      %3627 = vmatpush.bf16.msra.mxu0 %v3461
      %3628 = vmatpush.bf16.msra.mxu0 %v3457
      %3629 = vmatpush.bf16.msra.mxu0 %v3453
      %3630 = vmatpush.bf16.msra.mxu0 %v3449
      %3631 = vmatpush.bf16.msra.mxu0 %v3445
      %3632 = vmatpush.bf16.msra.mxu0 %v3441
      %3633 = vmatpush.bf16.msra.mxu0 %v3437
      %3634 = vmatmul.bf16.gmra.mxu0 %v3204
      %v3635 = vpop.f32.mrf.mxu0
      %v3636 = vadd.f32 %v3617, %v3635
      %v3637 = vpop.f32.mrf.mxu0
      %v3638 = vadd.f32 %v3619, %v3637
      %3639 = vmatmul.bf16.gmra.mxu0 %v3206
      %v3640 = vpop.f32.mrf.mxu0
      %v3641 = vadd.f32 %v3622, %v3640
      %v3642 = vpop.f32.mrf.mxu0
      %v3643 = vadd.f32 %v3624, %v3642
      %3644 = vdwg.mxu0
      %3645 = vmatpush.bf16.msra.mxu0 %v3434
      %3646 = vmatpush.bf16.msra.mxu0 %v3430
      %3647 = vmatpush.bf16.msra.mxu0 %v3426
      %3648 = vmatpush.bf16.msra.mxu0 %v3422
      %3649 = vmatpush.bf16.msra.mxu0 %v3418
      %3650 = vmatpush.bf16.msra.mxu0 %v3414
      %3651 = vmatpush.bf16.msra.mxu0 %v3410
      %3652 = vmatpush.bf16.msra.mxu0 %v3406
      %3653 = vmatmul.bf16.gmra.mxu0 %v3203
      %v3654 = vpop.f32.mrf.mxu0
      %v3655 = vadd.f32 0.0, %v3654
      %v3656 = vpop.f32.mrf.mxu0
      %v3657 = vadd.f32 0.0, %v3656
      %3658 = vmatmul.bf16.gmra.mxu0 %v3205
      %v3659 = vpop.f32.mrf.mxu0
      %v3660 = vadd.f32 0.0, %v3659
      %v3661 = vpop.f32.mrf.mxu0
      %v3662 = vadd.f32 0.0, %v3661
      %3663 = vdwg.mxu0
      %3664 = vmatpush.bf16.msra.mxu0 %v3466
      %3665 = vmatpush.bf16.msra.mxu0 %v3462
      %3666 = vmatpush.bf16.msra.mxu0 %v3458
      %3667 = vmatpush.bf16.msra.mxu0 %v3454
      %3668 = vmatpush.bf16.msra.mxu0 %v3450
      %3669 = vmatpush.bf16.msra.mxu0 %v3446
      %3670 = vmatpush.bf16.msra.mxu0 %v3442
      %3671 = vmatpush.bf16.msra.mxu0 %v3438
      %3672 = vmatmul.bf16.gmra.mxu0 %v3204
      %v3673 = vpop.f32.mrf.mxu0
      %v3674 = vadd.f32 %v3655, %v3673
      %v3675 = vpop.f32.mrf.mxu0
      %v3676 = vadd.f32 %v3657, %v3675
      %3677 = vmatmul.bf16.gmra.mxu0 %v3206
      %v3678 = vpop.f32.mrf.mxu0
      %v3679 = vadd.f32 %v3660, %v3678
      %v3680 = vpop.f32.mrf.mxu0
      %v3681 = vadd.f32 %v3662, %v3680
      %3682 = vdwg.mxu0
      %v3683 = vadd.f32 %v3105, %v3560
      %v3684 = vadd.f32 %v3106, %v3598
      %v3685 = vadd.f32 %v3107, %v3636
      %v3686 = vadd.f32 %v3108, %v3674
      %v3687 = vadd.f32 %v3109, %v3562
      %v3688 = vadd.f32 %v3110, %v3600
      %v3689 = vadd.f32 %v3111, %v3638
      %v3690 = vadd.f32 %v3112, %v3676
      %v3691 = vadd.f32 %v3113, %v3565
      %v3692 = vadd.f32 %v3114, %v3603
      %v3693 = vadd.f32 %v3115, %v3641
      %v3694 = vadd.f32 %v3116, %v3679
      %v3695 = vadd.f32 %v3117, %v3567
      %v3696 = vadd.f32 %v3118, %v3605
      %v3697 = vadd.f32 %v3119, %v3643
      %v3698 = vadd.f32 %v3120, %v3681
      %s3699 = scalar_lea.vmem %s254, 192
      %v3700 = vld [vmem:[%s3699] sm:$0xff]
      %v3701 = vld [vmem:[%s3699 + $0x8] sm:$0xff]
      %v3702 = vld [vmem:[%s3699 + $0x10] sm:$0xff]
      %v3703 = vld [vmem:[%s3699 + $0x18] sm:$0x11]
      %s3704 = scalar_lea.vmem %s1, 3072
      %v3705 = vld [vmem:[%s3704] sm:$0xff]
      %v3706 = vld [vmem:[%s3704 + $0x8] sm:$0xff]
      %v3707 = vld [vmem:[%s3704 + $0x10] sm:$0xff]
      %v3708 = vld [vmem:[%s3704 + $0x18] sm:$0xff]
      %v3709 = vld [vmem:[%s3704 + $0x20] sm:$0xff]
      %v3710 = vld [vmem:[%s3704 + $0x28] sm:$0xff]
      %v3711 = vld [vmem:[%s3704 + $0x30] sm:$0xff]
      %v3712 = vld [vmem:[%s3704 + $0x38] sm:$0xff]
      %v3713 = vld [vmem:[%s3704 + $0x40] sm:$0xff]
      %v3714 = vld [vmem:[%s3704 + $0x48] sm:$0xff]
      %v3715 = vld [vmem:[%s3704 + $0x50] sm:$0xff]
      %v3716 = vld [vmem:[%s3704 + $0x58] sm:$0xff]
      %v3717 = vld [vmem:[%s3704 + $0x60] sm:$0xff]
      %v3718 = vld [vmem:[%s3704 + $0x68] sm:$0xff]
      %v3719 = vld [vmem:[%s3704 + $0x70] sm:$0xff]
      %v3720 = vld [vmem:[%s3704 + $0x78] sm:$0xff]
      %v3721 = vld [vmem:[%s3704 + $0x80] sm:$0xff]
      %v3722 = vld [vmem:[%s3704 + $0x88] sm:$0xff]
      %v3723 = vld [vmem:[%s3704 + $0x90] sm:$0xff]
      %v3724 = vld [vmem:[%s3704 + $0x98] sm:$0xff]
      %v3725 = vld [vmem:[%s3704 + $0xa0] sm:$0xff]
      %v3726 = vld [vmem:[%s3704 + $0xa8] sm:$0xff]
      %v3727 = vld [vmem:[%s3704 + $0xb0] sm:$0xff]
      %v3728 = vld [vmem:[%s3704 + $0xb8] sm:$0xff]
      %v3729 = vld [vmem:[%s3704 + $0xc0] sm:$0xff]
      %v3730 = vld [vmem:[%s3704 + $0xc8] sm:$0xff]
      %v3731 = vld [vmem:[%s3704 + $0xd0] sm:$0xff]
      %v3732 = vld [vmem:[%s3704 + $0xd8] sm:$0xff]
      %v3733 = vld [vmem:[%s3704 + $0xe0] sm:$0xff]
      %v3734 = vld [vmem:[%s3704 + $0xe8] sm:$0xff]
      %v3735 = vld [vmem:[%s3704 + $0xf0] sm:$0xff]
      %v3736 = vld [vmem:[%s3704 + $0xf8] sm:$0xff]
      %v3737 = vld [vmem:[%s3704 + $0x100] sm:$0xff]
      %v3738 = vld [vmem:[%s3704 + $0x108] sm:$0xff]
      %v3739 = vld [vmem:[%s3704 + $0x110] sm:$0xff]
      %v3740 = vld [vmem:[%s3704 + $0x118] sm:$0xff]
      %v3741 = vld [vmem:[%s3704 + $0x120] sm:$0xff]
      %v3742 = vld [vmem:[%s3704 + $0x128] sm:$0xff]
      %v3743 = vld [vmem:[%s3704 + $0x130] sm:$0xff]
      %v3744 = vld [vmem:[%s3704 + $0x138] sm:$0xff]
      %v3745 = vld [vmem:[%s3704 + $0x140] sm:$0xff]
      %v3746 = vld [vmem:[%s3704 + $0x148] sm:$0xff]
      %v3747 = vld [vmem:[%s3704 + $0x150] sm:$0xff]
      %v3748 = vld [vmem:[%s3704 + $0x158] sm:$0xff]
      %v3749 = vld [vmem:[%s3704 + $0x160] sm:$0xff]
      %v3750 = vld [vmem:[%s3704 + $0x168] sm:$0xff]
      %v3751 = vld [vmem:[%s3704 + $0x170] sm:$0xff]
      %v3752 = vld [vmem:[%s3704 + $0x178] sm:$0xff]
      %v3753 = vld [vmem:[%s3704 + $0x180] sm:$0xff]
      %v3754 = vld [vmem:[%s3704 + $0x188] sm:$0xff]
      %v3755 = vld [vmem:[%s3704 + $0x190] sm:$0xff]
      %v3756 = vld [vmem:[%s3704 + $0x198] sm:$0xff]
      %v3757 = vld [vmem:[%s3704 + $0x1a0] sm:$0xff]
      %v3758 = vld [vmem:[%s3704 + $0x1a8] sm:$0xff]
      %v3759 = vld [vmem:[%s3704 + $0x1b0] sm:$0xff]
      %v3760 = vld [vmem:[%s3704 + $0x1b8] sm:$0xff]
      %v3761 = vld [vmem:[%s3704 + $0x1c0] sm:$0xff]
      %v3762 = vld [vmem:[%s3704 + $0x1c8] sm:$0xff]
      %v3763 = vld [vmem:[%s3704 + $0x1d0] sm:$0xff]
      %v3764 = vld [vmem:[%s3704 + $0x1d8] sm:$0xff]
      %v3765 = vld [vmem:[%s3704 + $0x1e0] sm:$0xff]
      %v3766 = vld [vmem:[%s3704 + $0x1e8] sm:$0xff]
      %v3767 = vld [vmem:[%s3704 + $0x1f0] sm:$0xff]
      %v3768 = vld [vmem:[%s3704 + $0x1f8] sm:$0xff]
      %v3773 = vunpack.c.l.b16 %v3700
      %v3774 = vunpack.c.h.b16 %v3700
      %v3775 = vunpack.c.l.b16 %v3701
      %v3776 = vunpack.c.h.b16 %v3701
      %v3777 = vunpack.c.l.b16 %v3702
      %v3778 = vunpack.c.h.b16 %v3702
      %v3779 = vunpack.c.l.b16 %v3703
      %v3780 = vunpack.c.h.b16 %v3703
      %v3781 = vpack.c.b16 %v3775, %v3773
      %v3782 = vpack.c.b16 %v3776, %v3774
      %v3783 = vpack.c.b16 %v3779, %v3777
      %v3784 = vpack.c.b16 %v3780, %v3778
      %v3853 = vunpack.c.l.b16 %v3705
      %v3854 = vunpack.c.h.b16 %v3705
      %v3855 = vunpack.c.l.b16 %v3706
      %v3856 = vunpack.c.h.b16 %v3706
      %v3857 = vunpack.c.l.b16 %v3707
      %v3858 = vunpack.c.h.b16 %v3707
      %v3859 = vunpack.c.l.b16 %v3708
      %v3860 = vunpack.c.h.b16 %v3708
      %v3861 = vunpack.c.l.b16 %v3709
      %v3862 = vunpack.c.h.b16 %v3709
      %v3863 = vunpack.c.l.b16 %v3710
      %v3864 = vunpack.c.h.b16 %v3710
      %v3865 = vunpack.c.l.b16 %v3711
      %v3866 = vunpack.c.h.b16 %v3711
      %v3867 = vunpack.c.l.b16 %v3712
      %v3868 = vunpack.c.h.b16 %v3712
      %v3869 = vunpack.c.l.b16 %v3713
      %v3870 = vunpack.c.h.b16 %v3713
      %v3871 = vunpack.c.l.b16 %v3714
      %v3872 = vunpack.c.h.b16 %v3714
      %v3873 = vunpack.c.l.b16 %v3715
      %v3874 = vunpack.c.h.b16 %v3715
      %v3875 = vunpack.c.l.b16 %v3716
      %v3876 = vunpack.c.h.b16 %v3716
      %v3877 = vunpack.c.l.b16 %v3717
      %v3878 = vunpack.c.h.b16 %v3717
      %v3879 = vunpack.c.l.b16 %v3718
      %v3880 = vunpack.c.h.b16 %v3718
      %v3881 = vunpack.c.l.b16 %v3719
      %v3882 = vunpack.c.h.b16 %v3719
      %v3883 = vunpack.c.l.b16 %v3720
      %v3884 = vunpack.c.h.b16 %v3720
      %v3885 = vunpack.c.l.b16 %v3721
      %v3886 = vunpack.c.h.b16 %v3721
      %v3887 = vunpack.c.l.b16 %v3722
      %v3888 = vunpack.c.h.b16 %v3722
      %v3889 = vunpack.c.l.b16 %v3723
      %v3890 = vunpack.c.h.b16 %v3723
      %v3891 = vunpack.c.l.b16 %v3724
      %v3892 = vunpack.c.h.b16 %v3724
      %v3893 = vunpack.c.l.b16 %v3725
      %v3894 = vunpack.c.h.b16 %v3725
      %v3895 = vunpack.c.l.b16 %v3726
      %v3896 = vunpack.c.h.b16 %v3726
      %v3897 = vunpack.c.l.b16 %v3727
      %v3898 = vunpack.c.h.b16 %v3727
      %v3899 = vunpack.c.l.b16 %v3728
      %v3900 = vunpack.c.h.b16 %v3728
      %v3901 = vunpack.c.l.b16 %v3729
      %v3902 = vunpack.c.h.b16 %v3729
      %v3903 = vunpack.c.l.b16 %v3730
      %v3904 = vunpack.c.h.b16 %v3730
      %v3905 = vunpack.c.l.b16 %v3731
      %v3906 = vunpack.c.h.b16 %v3731
      %v3907 = vunpack.c.l.b16 %v3732
      %v3908 = vunpack.c.h.b16 %v3732
      %v3909 = vunpack.c.l.b16 %v3733
      %v3910 = vunpack.c.h.b16 %v3733
      %v3911 = vunpack.c.l.b16 %v3734
      %v3912 = vunpack.c.h.b16 %v3734
      %v3913 = vunpack.c.l.b16 %v3735
      %v3914 = vunpack.c.h.b16 %v3735
      %v3915 = vunpack.c.l.b16 %v3736
      %v3916 = vunpack.c.h.b16 %v3736
      %v3917 = vunpack.c.l.b16 %v3737
      %v3918 = vunpack.c.h.b16 %v3737
      %v3919 = vunpack.c.l.b16 %v3738
      %v3920 = vunpack.c.h.b16 %v3738
      %v3921 = vunpack.c.l.b16 %v3739
      %v3922 = vunpack.c.h.b16 %v3739
      %v3923 = vunpack.c.l.b16 %v3740
      %v3924 = vunpack.c.h.b16 %v3740
      %v3925 = vunpack.c.l.b16 %v3741
      %v3926 = vunpack.c.h.b16 %v3741
      %v3927 = vunpack.c.l.b16 %v3742
      %v3928 = vunpack.c.h.b16 %v3742
      %v3929 = vunpack.c.l.b16 %v3743
      %v3930 = vunpack.c.h.b16 %v3743
      %v3931 = vunpack.c.l.b16 %v3744
      %v3932 = vunpack.c.h.b16 %v3744
      %v3933 = vunpack.c.l.b16 %v3745
      %v3934 = vunpack.c.h.b16 %v3745
      %v3935 = vunpack.c.l.b16 %v3746
      %v3936 = vunpack.c.h.b16 %v3746
      %v3937 = vunpack.c.l.b16 %v3747
      %v3938 = vunpack.c.h.b16 %v3747
      %v3939 = vunpack.c.l.b16 %v3748
      %v3940 = vunpack.c.h.b16 %v3748
      %v3941 = vunpack.c.l.b16 %v3749
      %v3942 = vunpack.c.h.b16 %v3749
      %v3943 = vunpack.c.l.b16 %v3750
      %v3944 = vunpack.c.h.b16 %v3750
      %v3945 = vunpack.c.l.b16 %v3751
      %v3946 = vunpack.c.h.b16 %v3751
      %v3947 = vunpack.c.l.b16 %v3752
      %v3948 = vunpack.c.h.b16 %v3752
      %v3949 = vunpack.c.l.b16 %v3753
      %v3950 = vunpack.c.h.b16 %v3753
      %v3951 = vunpack.c.l.b16 %v3754
      %v3952 = vunpack.c.h.b16 %v3754
      %v3953 = vunpack.c.l.b16 %v3755
      %v3954 = vunpack.c.h.b16 %v3755
      %v3955 = vunpack.c.l.b16 %v3756
      %v3956 = vunpack.c.h.b16 %v3756
      %v3957 = vunpack.c.l.b16 %v3757
      %v3958 = vunpack.c.h.b16 %v3757
      %v3959 = vunpack.c.l.b16 %v3758
      %v3960 = vunpack.c.h.b16 %v3758
      %v3961 = vunpack.c.l.b16 %v3759
      %v3962 = vunpack.c.h.b16 %v3759
      %v3963 = vunpack.c.l.b16 %v3760
      %v3964 = vunpack.c.h.b16 %v3760
      %v3965 = vunpack.c.l.b16 %v3761
      %v3966 = vunpack.c.h.b16 %v3761
      %v3967 = vunpack.c.l.b16 %v3762
      %v3968 = vunpack.c.h.b16 %v3762
      %v3969 = vunpack.c.l.b16 %v3763
      %v3970 = vunpack.c.h.b16 %v3763
      %v3971 = vunpack.c.l.b16 %v3764
      %v3972 = vunpack.c.h.b16 %v3764
      %v3973 = vunpack.c.l.b16 %v3765
      %v3974 = vunpack.c.h.b16 %v3765
      %v3975 = vunpack.c.l.b16 %v3766
      %v3976 = vunpack.c.h.b16 %v3766
      %v3977 = vunpack.c.l.b16 %v3767
      %v3978 = vunpack.c.h.b16 %v3767
      %v3979 = vunpack.c.l.b16 %v3768
      %v3980 = vunpack.c.h.b16 %v3768
      %v3981 = vpack.c.b16 %v3857, %v3853
      %v3982 = vpack.c.b16 %v3858, %v3854
      %v3983 = vpack.c.b16 %v3859, %v3855
      %v3984 = vpack.c.b16 %v3860, %v3856
      %v3985 = vpack.c.b16 %v3865, %v3861
      %v3986 = vpack.c.b16 %v3866, %v3862
      %v3987 = vpack.c.b16 %v3867, %v3863
      %v3988 = vpack.c.b16 %v3868, %v3864
      %v3989 = vpack.c.b16 %v3873, %v3869
      %v3990 = vpack.c.b16 %v3874, %v3870
      %v3991 = vpack.c.b16 %v3875, %v3871
      %v3992 = vpack.c.b16 %v3876, %v3872
      %v3993 = vpack.c.b16 %v3881, %v3877
      %v3994 = vpack.c.b16 %v3882, %v3878
      %v3995 = vpack.c.b16 %v3883, %v3879
      %v3996 = vpack.c.b16 %v3884, %v3880
      %v3997 = vpack.c.b16 %v3889, %v3885
      %v3998 = vpack.c.b16 %v3890, %v3886
      %v3999 = vpack.c.b16 %v3891, %v3887
      %v4000 = vpack.c.b16 %v3892, %v3888
      %v4001 = vpack.c.b16 %v3897, %v3893
      %v4002 = vpack.c.b16 %v3898, %v3894
      %v4003 = vpack.c.b16 %v3899, %v3895
      %v4004 = vpack.c.b16 %v3900, %v3896
      %v4005 = vpack.c.b16 %v3905, %v3901
      %v4006 = vpack.c.b16 %v3906, %v3902
      %v4007 = vpack.c.b16 %v3907, %v3903
      %v4008 = vpack.c.b16 %v3908, %v3904
      %v4009 = vpack.c.b16 %v3913, %v3909
      %v4010 = vpack.c.b16 %v3914, %v3910
      %v4011 = vpack.c.b16 %v3915, %v3911
      %v4012 = vpack.c.b16 %v3916, %v3912
      %v4013 = vpack.c.b16 %v3921, %v3917
      %v4014 = vpack.c.b16 %v3922, %v3918
      %v4015 = vpack.c.b16 %v3923, %v3919
      %v4016 = vpack.c.b16 %v3924, %v3920
      %v4017 = vpack.c.b16 %v3929, %v3925
      %v4018 = vpack.c.b16 %v3930, %v3926
      %v4019 = vpack.c.b16 %v3931, %v3927
      %v4020 = vpack.c.b16 %v3932, %v3928
      %v4021 = vpack.c.b16 %v3937, %v3933
      %v4022 = vpack.c.b16 %v3938, %v3934
      %v4023 = vpack.c.b16 %v3939, %v3935
      %v4024 = vpack.c.b16 %v3940, %v3936
      %v4025 = vpack.c.b16 %v3945, %v3941
      %v4026 = vpack.c.b16 %v3946, %v3942
      %v4027 = vpack.c.b16 %v3947, %v3943
      %v4028 = vpack.c.b16 %v3948, %v3944
      %v4029 = vpack.c.b16 %v3953, %v3949
      %v4030 = vpack.c.b16 %v3954, %v3950
      %v4031 = vpack.c.b16 %v3955, %v3951
      %v4032 = vpack.c.b16 %v3956, %v3952
      %v4033 = vpack.c.b16 %v3961, %v3957
      %v4034 = vpack.c.b16 %v3962, %v3958
      %v4035 = vpack.c.b16 %v3963, %v3959
      %v4036 = vpack.c.b16 %v3964, %v3960
      %v4037 = vpack.c.b16 %v3969, %v3965
      %v4038 = vpack.c.b16 %v3970, %v3966
      %v4039 = vpack.c.b16 %v3971, %v3967
      %v4040 = vpack.c.b16 %v3972, %v3968
      %v4041 = vpack.c.b16 %v3977, %v3973
      %v4042 = vpack.c.b16 %v3978, %v3974
      %v4043 = vpack.c.b16 %v3979, %v3975
      %v4044 = vpack.c.b16 %v3980, %v3976
      %4109 = vmatpush.bf16.msra.mxu0 %v4009
      %4110 = vmatpush.bf16.msra.mxu0 %v4005
      %4111 = vmatpush.bf16.msra.mxu0 %v4001
      %4112 = vmatpush.bf16.msra.mxu0 %v3997
      %4113 = vmatpush.bf16.msra.mxu0 %v3993
      %4114 = vmatpush.bf16.msra.mxu0 %v3989
      %4115 = vmatpush.bf16.msra.mxu0 %v3985
      %4116 = vmatpush.bf16.msra.mxu0 %v3981
      %4117 = vmatmul.bf16.gmra.mxu0 %v3781
      %v4118 = vpop.f32.mrf.mxu0
      %v4119 = vadd.f32 0.0, %v4118
      %v4120 = vpop.f32.mrf.mxu0
      %v4121 = vadd.f32 0.0, %v4120
      %4122 = vmatmul.bf16.gmra.mxu0 %v3783
      %v4123 = vpop.f32.mrf.mxu0
      %v4124 = vadd.f32 0.0, %v4123
      %v4125 = vpop.f32.mrf.mxu0
      %v4126 = vadd.f32 0.0, %v4125
      %4127 = vdwg.mxu0
      %4128 = vmatpush.bf16.msra.mxu0 %v4041
      %4129 = vmatpush.bf16.msra.mxu0 %v4037
      %4130 = vmatpush.bf16.msra.mxu0 %v4033
      %4131 = vmatpush.bf16.msra.mxu0 %v4029
      %4132 = vmatpush.bf16.msra.mxu0 %v4025
      %4133 = vmatpush.bf16.msra.mxu0 %v4021
      %4134 = vmatpush.bf16.msra.mxu0 %v4017
      %4135 = vmatpush.bf16.msra.mxu0 %v4013
      %4136 = vmatmul.bf16.gmra.mxu0 %v3782
      %v4137 = vpop.f32.mrf.mxu0
      %v4138 = vadd.f32 %v4119, %v4137
      %v4139 = vpop.f32.mrf.mxu0
      %v4140 = vadd.f32 %v4121, %v4139
      %4141 = vmatmul.bf16.gmra.mxu0 %v3784
      %v4142 = vpop.f32.mrf.mxu0
      %v4143 = vadd.f32 %v4124, %v4142
      %v4144 = vpop.f32.mrf.mxu0
      %v4145 = vadd.f32 %v4126, %v4144
      %4146 = vdwg.mxu0
      %4147 = vmatpush.bf16.msra.mxu0 %v4010
      %4148 = vmatpush.bf16.msra.mxu0 %v4006
      %4149 = vmatpush.bf16.msra.mxu0 %v4002
      %4150 = vmatpush.bf16.msra.mxu0 %v3998
      %4151 = vmatpush.bf16.msra.mxu0 %v3994
      %4152 = vmatpush.bf16.msra.mxu0 %v3990
      %4153 = vmatpush.bf16.msra.mxu0 %v3986
      %4154 = vmatpush.bf16.msra.mxu0 %v3982
      %4155 = vmatmul.bf16.gmra.mxu0 %v3781
      %v4156 = vpop.f32.mrf.mxu0
      %v4157 = vadd.f32 0.0, %v4156
      %v4158 = vpop.f32.mrf.mxu0
      %v4159 = vadd.f32 0.0, %v4158
      %4160 = vmatmul.bf16.gmra.mxu0 %v3783
      %v4161 = vpop.f32.mrf.mxu0
      %v4162 = vadd.f32 0.0, %v4161
      %v4163 = vpop.f32.mrf.mxu0
      %v4164 = vadd.f32 0.0, %v4163
      %4165 = vdwg.mxu0
      %4166 = vmatpush.bf16.msra.mxu0 %v4042
      %4167 = vmatpush.bf16.msra.mxu0 %v4038
      %4168 = vmatpush.bf16.msra.mxu0 %v4034
      %4169 = vmatpush.bf16.msra.mxu0 %v4030
      %4170 = vmatpush.bf16.msra.mxu0 %v4026
      %4171 = vmatpush.bf16.msra.mxu0 %v4022
      %4172 = vmatpush.bf16.msra.mxu0 %v4018
      %4173 = vmatpush.bf16.msra.mxu0 %v4014
      %4174 = vmatmul.bf16.gmra.mxu0 %v3782
      %v4175 = vpop.f32.mrf.mxu0
      %v4176 = vadd.f32 %v4157, %v4175
      %v4177 = vpop.f32.mrf.mxu0
      %v4178 = vadd.f32 %v4159, %v4177
      %4179 = vmatmul.bf16.gmra.mxu0 %v3784
      %v4180 = vpop.f32.mrf.mxu0
      %v4181 = vadd.f32 %v4162, %v4180
      %v4182 = vpop.f32.mrf.mxu0
      %v4183 = vadd.f32 %v4164, %v4182
      %4184 = vdwg.mxu0
      %4185 = vmatpush.bf16.msra.mxu0 %v4011
      %4186 = vmatpush.bf16.msra.mxu0 %v4007
      %4187 = vmatpush.bf16.msra.mxu0 %v4003
      %4188 = vmatpush.bf16.msra.mxu0 %v3999
      %4189 = vmatpush.bf16.msra.mxu0 %v3995
      %4190 = vmatpush.bf16.msra.mxu0 %v3991
      %4191 = vmatpush.bf16.msra.mxu0 %v3987
      %4192 = vmatpush.bf16.msra.mxu0 %v3983
      %4193 = vmatmul.bf16.gmra.mxu0 %v3781
      %v4194 = vpop.f32.mrf.mxu0
      %v4195 = vadd.f32 0.0, %v4194
      %v4196 = vpop.f32.mrf.mxu0
      %v4197 = vadd.f32 0.0, %v4196
      %4198 = vmatmul.bf16.gmra.mxu0 %v3783
      %v4199 = vpop.f32.mrf.mxu0
      %v4200 = vadd.f32 0.0, %v4199
      %v4201 = vpop.f32.mrf.mxu0
      %v4202 = vadd.f32 0.0, %v4201
      %4203 = vdwg.mxu0
      %4204 = vmatpush.bf16.msra.mxu0 %v4043
      %4205 = vmatpush.bf16.msra.mxu0 %v4039
      %4206 = vmatpush.bf16.msra.mxu0 %v4035
      %4207 = vmatpush.bf16.msra.mxu0 %v4031
      %4208 = vmatpush.bf16.msra.mxu0 %v4027
      %4209 = vmatpush.bf16.msra.mxu0 %v4023
      %4210 = vmatpush.bf16.msra.mxu0 %v4019
      %4211 = vmatpush.bf16.msra.mxu0 %v4015
      %4212 = vmatmul.bf16.gmra.mxu0 %v3782
      %v4213 = vpop.f32.mrf.mxu0
      %v4214 = vadd.f32 %v4195, %v4213
      %v4215 = vpop.f32.mrf.mxu0
      %v4216 = vadd.f32 %v4197, %v4215
      %4217 = vmatmul.bf16.gmra.mxu0 %v3784
      %v4218 = vpop.f32.mrf.mxu0
      %v4219 = vadd.f32 %v4200, %v4218
      %v4220 = vpop.f32.mrf.mxu0
      %v4221 = vadd.f32 %v4202, %v4220
      %4222 = vdwg.mxu0
      %4223 = vmatpush.bf16.msra.mxu0 %v4012
      %4224 = vmatpush.bf16.msra.mxu0 %v4008
      %4225 = vmatpush.bf16.msra.mxu0 %v4004
      %4226 = vmatpush.bf16.msra.mxu0 %v4000
      %4227 = vmatpush.bf16.msra.mxu0 %v3996
      %4228 = vmatpush.bf16.msra.mxu0 %v3992
      %4229 = vmatpush.bf16.msra.mxu0 %v3988
      %4230 = vmatpush.bf16.msra.mxu0 %v3984
      %4231 = vmatmul.bf16.gmra.mxu0 %v3781
      %v4232 = vpop.f32.mrf.mxu0
      %v4233 = vadd.f32 0.0, %v4232
      %v4234 = vpop.f32.mrf.mxu0
      %v4235 = vadd.f32 0.0, %v4234
      %4236 = vmatmul.bf16.gmra.mxu0 %v3783
      %v4237 = vpop.f32.mrf.mxu0
      %v4238 = vadd.f32 0.0, %v4237
      %v4239 = vpop.f32.mrf.mxu0
      %v4240 = vadd.f32 0.0, %v4239
      %4241 = vdwg.mxu0
      %4242 = vmatpush.bf16.msra.mxu0 %v4044
      %4243 = vmatpush.bf16.msra.mxu0 %v4040
      %4244 = vmatpush.bf16.msra.mxu0 %v4036
      %4245 = vmatpush.bf16.msra.mxu0 %v4032
      %4246 = vmatpush.bf16.msra.mxu0 %v4028
      %4247 = vmatpush.bf16.msra.mxu0 %v4024
      %4248 = vmatpush.bf16.msra.mxu0 %v4020
      %4249 = vmatpush.bf16.msra.mxu0 %v4016
      %4250 = vmatmul.bf16.gmra.mxu0 %v3782
      %v4251 = vpop.f32.mrf.mxu0
      %v4252 = vadd.f32 %v4233, %v4251
      %v4253 = vpop.f32.mrf.mxu0
      %v4254 = vadd.f32 %v4235, %v4253
      %4255 = vmatmul.bf16.gmra.mxu0 %v3784
      %v4256 = vpop.f32.mrf.mxu0
      %v4257 = vadd.f32 %v4238, %v4256
      %v4258 = vpop.f32.mrf.mxu0
      %v4259 = vadd.f32 %v4240, %v4258
      %4260 = vdwg.mxu0
      %v4261 = vadd.f32 %v3683, %v4138
      %v4262 = vadd.f32 %v3684, %v4176
      %v4263 = vadd.f32 %v3685, %v4214
      %v4264 = vadd.f32 %v3686, %v4252
      %v4265 = vadd.f32 %v3687, %v4140
      %v4266 = vadd.f32 %v3688, %v4178
      %v4267 = vadd.f32 %v3689, %v4216
      %v4268 = vadd.f32 %v3690, %v4254
      %v4269 = vadd.f32 %v3691, %v4143
      %v4270 = vadd.f32 %v3692, %v4181
      %v4271 = vadd.f32 %v3693, %v4219
      %v4272 = vadd.f32 %v3694, %v4257
      %v4273 = vadd.f32 %v3695, %v4145
      %v4274 = vadd.f32 %v3696, %v4183
      %v4275 = vadd.f32 %v3697, %v4221
      %v4276 = vadd.f32 %v3698, %v4259
      %s4277 = scalar_lea.vmem %s254, 224
      %v4278 = vld [vmem:[%s4277] sm:$0xff]
      %v4279 = vld [vmem:[%s4277 + $0x8] sm:$0xff]
      %v4280 = vld [vmem:[%s4277 + $0x10] sm:$0xff]
      %v4281 = vld [vmem:[%s4277 + $0x18] sm:$0x11]
      %s4282 = scalar_lea.vmem %s1, 3584
      %v4283 = vld [vmem:[%s4282] sm:$0xff]
      %v4284 = vld [vmem:[%s4282 + $0x8] sm:$0xff]
      %v4285 = vld [vmem:[%s4282 + $0x10] sm:$0xff]
      %v4286 = vld [vmem:[%s4282 + $0x18] sm:$0xff]
      %v4287 = vld [vmem:[%s4282 + $0x20] sm:$0xff]
      %v4288 = vld [vmem:[%s4282 + $0x28] sm:$0xff]
      %v4289 = vld [vmem:[%s4282 + $0x30] sm:$0xff]
      %v4290 = vld [vmem:[%s4282 + $0x38] sm:$0xff]
      %v4291 = vld [vmem:[%s4282 + $0x40] sm:$0xff]
      %v4292 = vld [vmem:[%s4282 + $0x48] sm:$0xff]
      %v4293 = vld [vmem:[%s4282 + $0x50] sm:$0xff]
      %v4294 = vld [vmem:[%s4282 + $0x58] sm:$0xff]
      %v4295 = vld [vmem:[%s4282 + $0x60] sm:$0xff]
      %v4296 = vld [vmem:[%s4282 + $0x68] sm:$0xff]
      %v4297 = vld [vmem:[%s4282 + $0x70] sm:$0xff]
      %v4298 = vld [vmem:[%s4282 + $0x78] sm:$0xff]
      %v4299 = vld [vmem:[%s4282 + $0x80] sm:$0xff]
      %v4300 = vld [vmem:[%s4282 + $0x88] sm:$0xff]
      %v4301 = vld [vmem:[%s4282 + $0x90] sm:$0xff]
      %v4302 = vld [vmem:[%s4282 + $0x98] sm:$0xff]
      %v4303 = vld [vmem:[%s4282 + $0xa0] sm:$0xff]
      %v4304 = vld [vmem:[%s4282 + $0xa8] sm:$0xff]
      %v4305 = vld [vmem:[%s4282 + $0xb0] sm:$0xff]
      %v4306 = vld [vmem:[%s4282 + $0xb8] sm:$0xff]
      %v4307 = vld [vmem:[%s4282 + $0xc0] sm:$0xff]
      %v4308 = vld [vmem:[%s4282 + $0xc8] sm:$0xff]
      %v4309 = vld [vmem:[%s4282 + $0xd0] sm:$0xff]
      %v4310 = vld [vmem:[%s4282 + $0xd8] sm:$0xff]
      %v4311 = vld [vmem:[%s4282 + $0xe0] sm:$0xff]
      %v4312 = vld [vmem:[%s4282 + $0xe8] sm:$0xff]
      %v4313 = vld [vmem:[%s4282 + $0xf0] sm:$0xff]
      %v4314 = vld [vmem:[%s4282 + $0xf8] sm:$0xff]
      %v4315 = vld [vmem:[%s4282 + $0x100] sm:$0xff]
      %v4316 = vld [vmem:[%s4282 + $0x108] sm:$0xff]
      %v4317 = vld [vmem:[%s4282 + $0x110] sm:$0xff]
      %v4318 = vld [vmem:[%s4282 + $0x118] sm:$0xff]
      %v4319 = vld [vmem:[%s4282 + $0x120] sm:$0xff]
      %v4320 = vld [vmem:[%s4282 + $0x128] sm:$0xff]
      %v4321 = vld [vmem:[%s4282 + $0x130] sm:$0xff]
      %v4322 = vld [vmem:[%s4282 + $0x138] sm:$0xff]
      %v4323 = vld [vmem:[%s4282 + $0x140] sm:$0xff]
      %v4324 = vld [vmem:[%s4282 + $0x148] sm:$0xff]
      %v4325 = vld [vmem:[%s4282 + $0x150] sm:$0xff]
      %v4326 = vld [vmem:[%s4282 + $0x158] sm:$0xff]
      %v4327 = vld [vmem:[%s4282 + $0x160] sm:$0xff]
      %v4328 = vld [vmem:[%s4282 + $0x168] sm:$0xff]
      %v4329 = vld [vmem:[%s4282 + $0x170] sm:$0xff]
      %v4330 = vld [vmem:[%s4282 + $0x178] sm:$0xff]
      %v4331 = vld [vmem:[%s4282 + $0x180] sm:$0xff]
      %v4332 = vld [vmem:[%s4282 + $0x188] sm:$0xff]
      %v4333 = vld [vmem:[%s4282 + $0x190] sm:$0xff]
      %v4334 = vld [vmem:[%s4282 + $0x198] sm:$0xff]
      %v4335 = vld [vmem:[%s4282 + $0x1a0] sm:$0xff]
      %v4336 = vld [vmem:[%s4282 + $0x1a8] sm:$0xff]
      %v4337 = vld [vmem:[%s4282 + $0x1b0] sm:$0xff]
      %v4338 = vld [vmem:[%s4282 + $0x1b8] sm:$0xff]
      %v4339 = vld [vmem:[%s4282 + $0x1c0] sm:$0xff]
      %v4340 = vld [vmem:[%s4282 + $0x1c8] sm:$0xff]
      %v4341 = vld [vmem:[%s4282 + $0x1d0] sm:$0xff]
      %v4342 = vld [vmem:[%s4282 + $0x1d8] sm:$0xff]
      %v4343 = vld [vmem:[%s4282 + $0x1e0] sm:$0xff]
      %v4344 = vld [vmem:[%s4282 + $0x1e8] sm:$0xff]
      %v4345 = vld [vmem:[%s4282 + $0x1f0] sm:$0xff]
      %v4346 = vld [vmem:[%s4282 + $0x1f8] sm:$0xff]
      %v4351 = vunpack.c.l.b16 %v4278
      %v4352 = vunpack.c.h.b16 %v4278
      %v4353 = vunpack.c.l.b16 %v4279
      %v4354 = vunpack.c.h.b16 %v4279
      %v4355 = vunpack.c.l.b16 %v4280
      %v4356 = vunpack.c.h.b16 %v4280
      %v4357 = vunpack.c.l.b16 %v4281
      %v4358 = vunpack.c.h.b16 %v4281
      %v4359 = vpack.c.b16 %v4353, %v4351
      %v4360 = vpack.c.b16 %v4354, %v4352
      %v4361 = vpack.c.b16 %v4357, %v4355
      %v4362 = vpack.c.b16 %v4358, %v4356
      %v4431 = vunpack.c.l.b16 %v4283
      %v4432 = vunpack.c.h.b16 %v4283
      %v4433 = vunpack.c.l.b16 %v4284
      %v4434 = vunpack.c.h.b16 %v4284
      %v4435 = vunpack.c.l.b16 %v4285
      %v4436 = vunpack.c.h.b16 %v4285
      %v4437 = vunpack.c.l.b16 %v4286
      %v4438 = vunpack.c.h.b16 %v4286
      %v4439 = vunpack.c.l.b16 %v4287
      %v4440 = vunpack.c.h.b16 %v4287
      %v4441 = vunpack.c.l.b16 %v4288
      %v4442 = vunpack.c.h.b16 %v4288
      %v4443 = vunpack.c.l.b16 %v4289
      %v4444 = vunpack.c.h.b16 %v4289
      %v4445 = vunpack.c.l.b16 %v4290
      %v4446 = vunpack.c.h.b16 %v4290
      %v4447 = vunpack.c.l.b16 %v4291
      %v4448 = vunpack.c.h.b16 %v4291
      %v4449 = vunpack.c.l.b16 %v4292
      %v4450 = vunpack.c.h.b16 %v4292
      %v4451 = vunpack.c.l.b16 %v4293
      %v4452 = vunpack.c.h.b16 %v4293
      %v4453 = vunpack.c.l.b16 %v4294
      %v4454 = vunpack.c.h.b16 %v4294
      %v4455 = vunpack.c.l.b16 %v4295
      %v4456 = vunpack.c.h.b16 %v4295
      %v4457 = vunpack.c.l.b16 %v4296
      %v4458 = vunpack.c.h.b16 %v4296
      %v4459 = vunpack.c.l.b16 %v4297
      %v4460 = vunpack.c.h.b16 %v4297
      %v4461 = vunpack.c.l.b16 %v4298
      %v4462 = vunpack.c.h.b16 %v4298
      %v4463 = vunpack.c.l.b16 %v4299
      %v4464 = vunpack.c.h.b16 %v4299
      %v4465 = vunpack.c.l.b16 %v4300
      %v4466 = vunpack.c.h.b16 %v4300
      %v4467 = vunpack.c.l.b16 %v4301
      %v4468 = vunpack.c.h.b16 %v4301
      %v4469 = vunpack.c.l.b16 %v4302
      %v4470 = vunpack.c.h.b16 %v4302
      %v4471 = vunpack.c.l.b16 %v4303
      %v4472 = vunpack.c.h.b16 %v4303
      %v4473 = vunpack.c.l.b16 %v4304
      %v4474 = vunpack.c.h.b16 %v4304
      %v4475 = vunpack.c.l.b16 %v4305
      %v4476 = vunpack.c.h.b16 %v4305
      %v4477 = vunpack.c.l.b16 %v4306
      %v4478 = vunpack.c.h.b16 %v4306
      %v4479 = vunpack.c.l.b16 %v4307
      %v4480 = vunpack.c.h.b16 %v4307
      %v4481 = vunpack.c.l.b16 %v4308
      %v4482 = vunpack.c.h.b16 %v4308
      %v4483 = vunpack.c.l.b16 %v4309
      %v4484 = vunpack.c.h.b16 %v4309
      %v4485 = vunpack.c.l.b16 %v4310
      %v4486 = vunpack.c.h.b16 %v4310
      %v4487 = vunpack.c.l.b16 %v4311
      %v4488 = vunpack.c.h.b16 %v4311
      %v4489 = vunpack.c.l.b16 %v4312
      %v4490 = vunpack.c.h.b16 %v4312
      %v4491 = vunpack.c.l.b16 %v4313
      %v4492 = vunpack.c.h.b16 %v4313
      %v4493 = vunpack.c.l.b16 %v4314
      %v4494 = vunpack.c.h.b16 %v4314
      %v4495 = vunpack.c.l.b16 %v4315
      %v4496 = vunpack.c.h.b16 %v4315
      %v4497 = vunpack.c.l.b16 %v4316
      %v4498 = vunpack.c.h.b16 %v4316
      %v4499 = vunpack.c.l.b16 %v4317
      %v4500 = vunpack.c.h.b16 %v4317
      %v4501 = vunpack.c.l.b16 %v4318
      %v4502 = vunpack.c.h.b16 %v4318
      %v4503 = vunpack.c.l.b16 %v4319
      %v4504 = vunpack.c.h.b16 %v4319
      %v4505 = vunpack.c.l.b16 %v4320
      %v4506 = vunpack.c.h.b16 %v4320
      %v4507 = vunpack.c.l.b16 %v4321
      %v4508 = vunpack.c.h.b16 %v4321
      %v4509 = vunpack.c.l.b16 %v4322
      %v4510 = vunpack.c.h.b16 %v4322
      %v4511 = vunpack.c.l.b16 %v4323
      %v4512 = vunpack.c.h.b16 %v4323
      %v4513 = vunpack.c.l.b16 %v4324
      %v4514 = vunpack.c.h.b16 %v4324
      %v4515 = vunpack.c.l.b16 %v4325
      %v4516 = vunpack.c.h.b16 %v4325
      %v4517 = vunpack.c.l.b16 %v4326
      %v4518 = vunpack.c.h.b16 %v4326
      %v4519 = vunpack.c.l.b16 %v4327
      %v4520 = vunpack.c.h.b16 %v4327
      %v4521 = vunpack.c.l.b16 %v4328
      %v4522 = vunpack.c.h.b16 %v4328
      %v4523 = vunpack.c.l.b16 %v4329
      %v4524 = vunpack.c.h.b16 %v4329
      %v4525 = vunpack.c.l.b16 %v4330
      %v4526 = vunpack.c.h.b16 %v4330
      %v4527 = vunpack.c.l.b16 %v4331
      %v4528 = vunpack.c.h.b16 %v4331
      %v4529 = vunpack.c.l.b16 %v4332
      %v4530 = vunpack.c.h.b16 %v4332
      %v4531 = vunpack.c.l.b16 %v4333
      %v4532 = vunpack.c.h.b16 %v4333
      %v4533 = vunpack.c.l.b16 %v4334
      %v4534 = vunpack.c.h.b16 %v4334
      %v4535 = vunpack.c.l.b16 %v4335
      %v4536 = vunpack.c.h.b16 %v4335
      %v4537 = vunpack.c.l.b16 %v4336
      %v4538 = vunpack.c.h.b16 %v4336
      %v4539 = vunpack.c.l.b16 %v4337
      %v4540 = vunpack.c.h.b16 %v4337
      %v4541 = vunpack.c.l.b16 %v4338
      %v4542 = vunpack.c.h.b16 %v4338
      %v4543 = vunpack.c.l.b16 %v4339
      %v4544 = vunpack.c.h.b16 %v4339
      %v4545 = vunpack.c.l.b16 %v4340
      %v4546 = vunpack.c.h.b16 %v4340
      %v4547 = vunpack.c.l.b16 %v4341
      %v4548 = vunpack.c.h.b16 %v4341
      %v4549 = vunpack.c.l.b16 %v4342
      %v4550 = vunpack.c.h.b16 %v4342
      %v4551 = vunpack.c.l.b16 %v4343
      %v4552 = vunpack.c.h.b16 %v4343
      %v4553 = vunpack.c.l.b16 %v4344
      %v4554 = vunpack.c.h.b16 %v4344
      %v4555 = vunpack.c.l.b16 %v4345
      %v4556 = vunpack.c.h.b16 %v4345
      %v4557 = vunpack.c.l.b16 %v4346
      %v4558 = vunpack.c.h.b16 %v4346
      %v4559 = vpack.c.b16 %v4435, %v4431
      %v4560 = vpack.c.b16 %v4436, %v4432
      %v4561 = vpack.c.b16 %v4437, %v4433
      %v4562 = vpack.c.b16 %v4438, %v4434
      %v4563 = vpack.c.b16 %v4443, %v4439
      %v4564 = vpack.c.b16 %v4444, %v4440
      %v4565 = vpack.c.b16 %v4445, %v4441
      %v4566 = vpack.c.b16 %v4446, %v4442
      %v4567 = vpack.c.b16 %v4451, %v4447
      %v4568 = vpack.c.b16 %v4452, %v4448
      %v4569 = vpack.c.b16 %v4453, %v4449
      %v4570 = vpack.c.b16 %v4454, %v4450
      %v4571 = vpack.c.b16 %v4459, %v4455
      %v4572 = vpack.c.b16 %v4460, %v4456
      %v4573 = vpack.c.b16 %v4461, %v4457
      %v4574 = vpack.c.b16 %v4462, %v4458
      %v4575 = vpack.c.b16 %v4467, %v4463
      %v4576 = vpack.c.b16 %v4468, %v4464
      %v4577 = vpack.c.b16 %v4469, %v4465
      %v4578 = vpack.c.b16 %v4470, %v4466
      %v4579 = vpack.c.b16 %v4475, %v4471
      %v4580 = vpack.c.b16 %v4476, %v4472
      %v4581 = vpack.c.b16 %v4477, %v4473
      %v4582 = vpack.c.b16 %v4478, %v4474
      %v4583 = vpack.c.b16 %v4483, %v4479
      %v4584 = vpack.c.b16 %v4484, %v4480
      %v4585 = vpack.c.b16 %v4485, %v4481
      %v4586 = vpack.c.b16 %v4486, %v4482
      %v4587 = vpack.c.b16 %v4491, %v4487
      %v4588 = vpack.c.b16 %v4492, %v4488
      %v4589 = vpack.c.b16 %v4493, %v4489
      %v4590 = vpack.c.b16 %v4494, %v4490
      %v4591 = vpack.c.b16 %v4499, %v4495
      %v4592 = vpack.c.b16 %v4500, %v4496
      %v4593 = vpack.c.b16 %v4501, %v4497
      %v4594 = vpack.c.b16 %v4502, %v4498
      %v4595 = vpack.c.b16 %v4507, %v4503
      %v4596 = vpack.c.b16 %v4508, %v4504
      %v4597 = vpack.c.b16 %v4509, %v4505
      %v4598 = vpack.c.b16 %v4510, %v4506
      %v4599 = vpack.c.b16 %v4515, %v4511
      %v4600 = vpack.c.b16 %v4516, %v4512
      %v4601 = vpack.c.b16 %v4517, %v4513
      %v4602 = vpack.c.b16 %v4518, %v4514
      %v4603 = vpack.c.b16 %v4523, %v4519
      %v4604 = vpack.c.b16 %v4524, %v4520
      %v4605 = vpack.c.b16 %v4525, %v4521
      %v4606 = vpack.c.b16 %v4526, %v4522
      %v4607 = vpack.c.b16 %v4531, %v4527
      %v4608 = vpack.c.b16 %v4532, %v4528
      %v4609 = vpack.c.b16 %v4533, %v4529
      %v4610 = vpack.c.b16 %v4534, %v4530
      %v4611 = vpack.c.b16 %v4539, %v4535
      %v4612 = vpack.c.b16 %v4540, %v4536
      %v4613 = vpack.c.b16 %v4541, %v4537
      %v4614 = vpack.c.b16 %v4542, %v4538
      %v4615 = vpack.c.b16 %v4547, %v4543
      %v4616 = vpack.c.b16 %v4548, %v4544
      %v4617 = vpack.c.b16 %v4549, %v4545
      %v4618 = vpack.c.b16 %v4550, %v4546
      %v4619 = vpack.c.b16 %v4555, %v4551
      %v4620 = vpack.c.b16 %v4556, %v4552
      %v4621 = vpack.c.b16 %v4557, %v4553
      %v4622 = vpack.c.b16 %v4558, %v4554
      %4687 = vmatpush.bf16.msra.mxu0 %v4587
      %4688 = vmatpush.bf16.msra.mxu0 %v4583
      %4689 = vmatpush.bf16.msra.mxu0 %v4579
      %4690 = vmatpush.bf16.msra.mxu0 %v4575
      %4691 = vmatpush.bf16.msra.mxu0 %v4571
      %4692 = vmatpush.bf16.msra.mxu0 %v4567
      %4693 = vmatpush.bf16.msra.mxu0 %v4563
      %4694 = vmatpush.bf16.msra.mxu0 %v4559
      %4695 = vmatmul.bf16.gmra.mxu0 %v4359
      %v4696 = vpop.f32.mrf.mxu0
      %v4697 = vadd.f32 0.0, %v4696
      %v4698 = vpop.f32.mrf.mxu0
      %v4699 = vadd.f32 0.0, %v4698
      %4700 = vmatmul.bf16.gmra.mxu0 %v4361
      %v4701 = vpop.f32.mrf.mxu0
      %v4702 = vadd.f32 0.0, %v4701
      %v4703 = vpop.f32.mrf.mxu0
      %v4704 = vadd.f32 0.0, %v4703
      %4705 = vdwg.mxu0
      %4706 = vmatpush.bf16.msra.mxu0 %v4619
      %4707 = vmatpush.bf16.msra.mxu0 %v4615
      %4708 = vmatpush.bf16.msra.mxu0 %v4611
      %4709 = vmatpush.bf16.msra.mxu0 %v4607
      %4710 = vmatpush.bf16.msra.mxu0 %v4603
      %4711 = vmatpush.bf16.msra.mxu0 %v4599
      %4712 = vmatpush.bf16.msra.mxu0 %v4595
      %4713 = vmatpush.bf16.msra.mxu0 %v4591
      %4714 = vmatmul.bf16.gmra.mxu0 %v4360
      %v4715 = vpop.f32.mrf.mxu0
      %v4716 = vadd.f32 %v4697, %v4715
      %v4717 = vpop.f32.mrf.mxu0
      %v4718 = vadd.f32 %v4699, %v4717
      %4719 = vmatmul.bf16.gmra.mxu0 %v4362
      %v4720 = vpop.f32.mrf.mxu0
      %v4721 = vadd.f32 %v4702, %v4720
      %v4722 = vpop.f32.mrf.mxu0
      %v4723 = vadd.f32 %v4704, %v4722
      %4724 = vdwg.mxu0
      %4725 = vmatpush.bf16.msra.mxu0 %v4588
      %4726 = vmatpush.bf16.msra.mxu0 %v4584
      %4727 = vmatpush.bf16.msra.mxu0 %v4580
      %4728 = vmatpush.bf16.msra.mxu0 %v4576
      %4729 = vmatpush.bf16.msra.mxu0 %v4572
      %4730 = vmatpush.bf16.msra.mxu0 %v4568
      %4731 = vmatpush.bf16.msra.mxu0 %v4564
      %4732 = vmatpush.bf16.msra.mxu0 %v4560
      %4733 = vmatmul.bf16.gmra.mxu0 %v4359
      %v4734 = vpop.f32.mrf.mxu0
      %v4735 = vadd.f32 0.0, %v4734
      %v4736 = vpop.f32.mrf.mxu0
      %v4737 = vadd.f32 0.0, %v4736
      %4738 = vmatmul.bf16.gmra.mxu0 %v4361
      %v4739 = vpop.f32.mrf.mxu0
      %v4740 = vadd.f32 0.0, %v4739
      %v4741 = vpop.f32.mrf.mxu0
      %v4742 = vadd.f32 0.0, %v4741
      %4743 = vdwg.mxu0
      %4744 = vmatpush.bf16.msra.mxu0 %v4620
      %4745 = vmatpush.bf16.msra.mxu0 %v4616
      %4746 = vmatpush.bf16.msra.mxu0 %v4612
      %4747 = vmatpush.bf16.msra.mxu0 %v4608
      %4748 = vmatpush.bf16.msra.mxu0 %v4604
      %4749 = vmatpush.bf16.msra.mxu0 %v4600
      %4750 = vmatpush.bf16.msra.mxu0 %v4596
      %4751 = vmatpush.bf16.msra.mxu0 %v4592
      %4752 = vmatmul.bf16.gmra.mxu0 %v4360
      %v4753 = vpop.f32.mrf.mxu0
      %v4754 = vadd.f32 %v4735, %v4753
      %v4755 = vpop.f32.mrf.mxu0
      %v4756 = vadd.f32 %v4737, %v4755
      %4757 = vmatmul.bf16.gmra.mxu0 %v4362
      %v4758 = vpop.f32.mrf.mxu0
      %v4759 = vadd.f32 %v4740, %v4758
      %v4760 = vpop.f32.mrf.mxu0
      %v4761 = vadd.f32 %v4742, %v4760
      %4762 = vdwg.mxu0
      %4763 = vmatpush.bf16.msra.mxu0 %v4589
      %4764 = vmatpush.bf16.msra.mxu0 %v4585
      %4765 = vmatpush.bf16.msra.mxu0 %v4581
      %4766 = vmatpush.bf16.msra.mxu0 %v4577
      %4767 = vmatpush.bf16.msra.mxu0 %v4573
      %4768 = vmatpush.bf16.msra.mxu0 %v4569
      %4769 = vmatpush.bf16.msra.mxu0 %v4565
      %4770 = vmatpush.bf16.msra.mxu0 %v4561
      %4771 = vmatmul.bf16.gmra.mxu0 %v4359
      %v4772 = vpop.f32.mrf.mxu0
      %v4773 = vadd.f32 0.0, %v4772
      %v4774 = vpop.f32.mrf.mxu0
      %v4775 = vadd.f32 0.0, %v4774
      %4776 = vmatmul.bf16.gmra.mxu0 %v4361
      %v4777 = vpop.f32.mrf.mxu0
      %v4778 = vadd.f32 0.0, %v4777
      %v4779 = vpop.f32.mrf.mxu0
      %v4780 = vadd.f32 0.0, %v4779
      %4781 = vdwg.mxu0
      %4782 = vmatpush.bf16.msra.mxu0 %v4621
      %4783 = vmatpush.bf16.msra.mxu0 %v4617
      %4784 = vmatpush.bf16.msra.mxu0 %v4613
      %4785 = vmatpush.bf16.msra.mxu0 %v4609
      %4786 = vmatpush.bf16.msra.mxu0 %v4605
      %4787 = vmatpush.bf16.msra.mxu0 %v4601
      %4788 = vmatpush.bf16.msra.mxu0 %v4597
      %4789 = vmatpush.bf16.msra.mxu0 %v4593
      %4790 = vmatmul.bf16.gmra.mxu0 %v4360
      %v4791 = vpop.f32.mrf.mxu0
      %v4792 = vadd.f32 %v4773, %v4791
      %v4793 = vpop.f32.mrf.mxu0
      %v4794 = vadd.f32 %v4775, %v4793
      %4795 = vmatmul.bf16.gmra.mxu0 %v4362
      %v4796 = vpop.f32.mrf.mxu0
      %v4797 = vadd.f32 %v4778, %v4796
      %v4798 = vpop.f32.mrf.mxu0
      %v4799 = vadd.f32 %v4780, %v4798
      %4800 = vdwg.mxu0
      %4801 = vmatpush.bf16.msra.mxu0 %v4590
      %4802 = vmatpush.bf16.msra.mxu0 %v4586
      %4803 = vmatpush.bf16.msra.mxu0 %v4582
      %4804 = vmatpush.bf16.msra.mxu0 %v4578
      %4805 = vmatpush.bf16.msra.mxu0 %v4574
      %4806 = vmatpush.bf16.msra.mxu0 %v4570
      %4807 = vmatpush.bf16.msra.mxu0 %v4566
      %4808 = vmatpush.bf16.msra.mxu0 %v4562
      %4809 = vmatmul.bf16.gmra.mxu0 %v4359
      %v4810 = vpop.f32.mrf.mxu0
      %v4811 = vadd.f32 0.0, %v4810
      %v4812 = vpop.f32.mrf.mxu0
      %v4813 = vadd.f32 0.0, %v4812
      %4814 = vmatmul.bf16.gmra.mxu0 %v4361
      %v4815 = vpop.f32.mrf.mxu0
      %v4816 = vadd.f32 0.0, %v4815
      %v4817 = vpop.f32.mrf.mxu0
      %v4818 = vadd.f32 0.0, %v4817
      %4819 = vdwg.mxu0
      %4820 = vmatpush.bf16.msra.mxu0 %v4622
      %4821 = vmatpush.bf16.msra.mxu0 %v4618
      %4822 = vmatpush.bf16.msra.mxu0 %v4614
      %4823 = vmatpush.bf16.msra.mxu0 %v4610
      %4824 = vmatpush.bf16.msra.mxu0 %v4606
      %4825 = vmatpush.bf16.msra.mxu0 %v4602
      %4826 = vmatpush.bf16.msra.mxu0 %v4598
      %4827 = vmatpush.bf16.msra.mxu0 %v4594
      %4828 = vmatmul.bf16.gmra.mxu0 %v4360
      %v4829 = vpop.f32.mrf.mxu0
      %v4830 = vadd.f32 %v4811, %v4829
      %v4831 = vpop.f32.mrf.mxu0
      %v4832 = vadd.f32 %v4813, %v4831
      %4833 = vmatmul.bf16.gmra.mxu0 %v4362
      %v4834 = vpop.f32.mrf.mxu0
      %v4835 = vadd.f32 %v4816, %v4834
      %v4836 = vpop.f32.mrf.mxu0
      %v4837 = vadd.f32 %v4818, %v4836
      %4838 = vdwg.mxu0
      %v4839 = vadd.f32 %v4261, %v4716
      %v4840 = vadd.f32 %v4262, %v4754
      %v4841 = vadd.f32 %v4263, %v4792
      %v4842 = vadd.f32 %v4264, %v4830
      %v4843 = vadd.f32 %v4265, %v4718
      %v4844 = vadd.f32 %v4266, %v4756
      %v4845 = vadd.f32 %v4267, %v4794
      %v4846 = vadd.f32 %v4268, %v4832
      %v4847 = vadd.f32 %v4269, %v4721
      %v4848 = vadd.f32 %v4270, %v4759
      %v4849 = vadd.f32 %v4271, %v4797
      %v4850 = vadd.f32 %v4272, %v4835
      %v4851 = vadd.f32 %v4273, %v4723
      %v4852 = vadd.f32 %v4274, %v4761
      %v4853 = vadd.f32 %v4275, %v4799
      %v4854 = vadd.f32 %v4276, %v4837
      %s4855 = scalar_lea.vmem %s254, 256
      %v4856 = vld [vmem:[%s4855] sm:$0xff]
      %v4857 = vld [vmem:[%s4855 + $0x8] sm:$0xff]
      %v4858 = vld [vmem:[%s4855 + $0x10] sm:$0xff]
      %v4859 = vld [vmem:[%s4855 + $0x18] sm:$0x11]
      %s4860 = scalar_lea.vmem %s1, 4096
      %v4861 = vld [vmem:[%s4860] sm:$0xff]
      %v4862 = vld [vmem:[%s4860 + $0x8] sm:$0xff]
      %v4863 = vld [vmem:[%s4860 + $0x10] sm:$0xff]
      %v4864 = vld [vmem:[%s4860 + $0x18] sm:$0xff]
      %v4865 = vld [vmem:[%s4860 + $0x20] sm:$0xff]
      %v4866 = vld [vmem:[%s4860 + $0x28] sm:$0xff]
      %v4867 = vld [vmem:[%s4860 + $0x30] sm:$0xff]
      %v4868 = vld [vmem:[%s4860 + $0x38] sm:$0xff]
      %v4869 = vld [vmem:[%s4860 + $0x40] sm:$0xff]
      %v4870 = vld [vmem:[%s4860 + $0x48] sm:$0xff]
      %v4871 = vld [vmem:[%s4860 + $0x50] sm:$0xff]
      %v4872 = vld [vmem:[%s4860 + $0x58] sm:$0xff]
      %v4873 = vld [vmem:[%s4860 + $0x60] sm:$0xff]
      %v4874 = vld [vmem:[%s4860 + $0x68] sm:$0xff]
      %v4875 = vld [vmem:[%s4860 + $0x70] sm:$0xff]
      %v4876 = vld [vmem:[%s4860 + $0x78] sm:$0xff]
      %v4877 = vld [vmem:[%s4860 + $0x80] sm:$0xff]
      %v4878 = vld [vmem:[%s4860 + $0x88] sm:$0xff]
      %v4879 = vld [vmem:[%s4860 + $0x90] sm:$0xff]
      %v4880 = vld [vmem:[%s4860 + $0x98] sm:$0xff]
      %v4881 = vld [vmem:[%s4860 + $0xa0] sm:$0xff]
      %v4882 = vld [vmem:[%s4860 + $0xa8] sm:$0xff]
      %v4883 = vld [vmem:[%s4860 + $0xb0] sm:$0xff]
      %v4884 = vld [vmem:[%s4860 + $0xb8] sm:$0xff]
      %v4885 = vld [vmem:[%s4860 + $0xc0] sm:$0xff]
      %v4886 = vld [vmem:[%s4860 + $0xc8] sm:$0xff]
      %v4887 = vld [vmem:[%s4860 + $0xd0] sm:$0xff]
      %v4888 = vld [vmem:[%s4860 + $0xd8] sm:$0xff]
      %v4889 = vld [vmem:[%s4860 + $0xe0] sm:$0xff]
      %v4890 = vld [vmem:[%s4860 + $0xe8] sm:$0xff]
      %v4891 = vld [vmem:[%s4860 + $0xf0] sm:$0xff]
      %v4892 = vld [vmem:[%s4860 + $0xf8] sm:$0xff]
      %v4893 = vld [vmem:[%s4860 + $0x100] sm:$0xff]
      %v4894 = vld [vmem:[%s4860 + $0x108] sm:$0xff]
      %v4895 = vld [vmem:[%s4860 + $0x110] sm:$0xff]
      %v4896 = vld [vmem:[%s4860 + $0x118] sm:$0xff]
      %v4897 = vld [vmem:[%s4860 + $0x120] sm:$0xff]
      %v4898 = vld [vmem:[%s4860 + $0x128] sm:$0xff]
      %v4899 = vld [vmem:[%s4860 + $0x130] sm:$0xff]
      %v4900 = vld [vmem:[%s4860 + $0x138] sm:$0xff]
      %v4901 = vld [vmem:[%s4860 + $0x140] sm:$0xff]
      %v4902 = vld [vmem:[%s4860 + $0x148] sm:$0xff]
      %v4903 = vld [vmem:[%s4860 + $0x150] sm:$0xff]
      %v4904 = vld [vmem:[%s4860 + $0x158] sm:$0xff]
      %v4905 = vld [vmem:[%s4860 + $0x160] sm:$0xff]
      %v4906 = vld [vmem:[%s4860 + $0x168] sm:$0xff]
      %v4907 = vld [vmem:[%s4860 + $0x170] sm:$0xff]
      %v4908 = vld [vmem:[%s4860 + $0x178] sm:$0xff]
      %v4909 = vld [vmem:[%s4860 + $0x180] sm:$0xff]
      %v4910 = vld [vmem:[%s4860 + $0x188] sm:$0xff]
      %v4911 = vld [vmem:[%s4860 + $0x190] sm:$0xff]
      %v4912 = vld [vmem:[%s4860 + $0x198] sm:$0xff]
      %v4913 = vld [vmem:[%s4860 + $0x1a0] sm:$0xff]
      %v4914 = vld [vmem:[%s4860 + $0x1a8] sm:$0xff]
      %v4915 = vld [vmem:[%s4860 + $0x1b0] sm:$0xff]
      %v4916 = vld [vmem:[%s4860 + $0x1b8] sm:$0xff]
      %v4917 = vld [vmem:[%s4860 + $0x1c0] sm:$0xff]
      %v4918 = vld [vmem:[%s4860 + $0x1c8] sm:$0xff]
      %v4919 = vld [vmem:[%s4860 + $0x1d0] sm:$0xff]
      %v4920 = vld [vmem:[%s4860 + $0x1d8] sm:$0xff]
      %v4921 = vld [vmem:[%s4860 + $0x1e0] sm:$0xff]
      %v4922 = vld [vmem:[%s4860 + $0x1e8] sm:$0xff]
      %v4923 = vld [vmem:[%s4860 + $0x1f0] sm:$0xff]
      %v4924 = vld [vmem:[%s4860 + $0x1f8] sm:$0xff]
      %v4929 = vunpack.c.l.b16 %v4856
      %v4930 = vunpack.c.h.b16 %v4856
      %v4931 = vunpack.c.l.b16 %v4857
      %v4932 = vunpack.c.h.b16 %v4857
      %v4933 = vunpack.c.l.b16 %v4858
      %v4934 = vunpack.c.h.b16 %v4858
      %v4935 = vunpack.c.l.b16 %v4859
      %v4936 = vunpack.c.h.b16 %v4859
      %v4937 = vpack.c.b16 %v4931, %v4929
      %v4938 = vpack.c.b16 %v4932, %v4930
      %v4939 = vpack.c.b16 %v4935, %v4933
      %v4940 = vpack.c.b16 %v4936, %v4934
      %v5009 = vunpack.c.l.b16 %v4861
      %v5010 = vunpack.c.h.b16 %v4861
      %v5011 = vunpack.c.l.b16 %v4862
      %v5012 = vunpack.c.h.b16 %v4862
      %v5013 = vunpack.c.l.b16 %v4863
      %v5014 = vunpack.c.h.b16 %v4863
      %v5015 = vunpack.c.l.b16 %v4864
      %v5016 = vunpack.c.h.b16 %v4864
      %v5017 = vunpack.c.l.b16 %v4865
      %v5018 = vunpack.c.h.b16 %v4865
      %v5019 = vunpack.c.l.b16 %v4866
      %v5020 = vunpack.c.h.b16 %v4866
      %v5021 = vunpack.c.l.b16 %v4867
      %v5022 = vunpack.c.h.b16 %v4867
      %v5023 = vunpack.c.l.b16 %v4868
      %v5024 = vunpack.c.h.b16 %v4868
      %v5025 = vunpack.c.l.b16 %v4869
      %v5026 = vunpack.c.h.b16 %v4869
      %v5027 = vunpack.c.l.b16 %v4870
      %v5028 = vunpack.c.h.b16 %v4870
      %v5029 = vunpack.c.l.b16 %v4871
      %v5030 = vunpack.c.h.b16 %v4871
      %v5031 = vunpack.c.l.b16 %v4872
      %v5032 = vunpack.c.h.b16 %v4872
      %v5033 = vunpack.c.l.b16 %v4873
      %v5034 = vunpack.c.h.b16 %v4873
      %v5035 = vunpack.c.l.b16 %v4874
      %v5036 = vunpack.c.h.b16 %v4874
      %v5037 = vunpack.c.l.b16 %v4875
      %v5038 = vunpack.c.h.b16 %v4875
      %v5039 = vunpack.c.l.b16 %v4876
      %v5040 = vunpack.c.h.b16 %v4876
      %v5041 = vunpack.c.l.b16 %v4877
      %v5042 = vunpack.c.h.b16 %v4877
      %v5043 = vunpack.c.l.b16 %v4878
      %v5044 = vunpack.c.h.b16 %v4878
      %v5045 = vunpack.c.l.b16 %v4879
      %v5046 = vunpack.c.h.b16 %v4879
      %v5047 = vunpack.c.l.b16 %v4880
      %v5048 = vunpack.c.h.b16 %v4880
      %v5049 = vunpack.c.l.b16 %v4881
      %v5050 = vunpack.c.h.b16 %v4881
      %v5051 = vunpack.c.l.b16 %v4882
      %v5052 = vunpack.c.h.b16 %v4882
      %v5053 = vunpack.c.l.b16 %v4883
      %v5054 = vunpack.c.h.b16 %v4883
      %v5055 = vunpack.c.l.b16 %v4884
      %v5056 = vunpack.c.h.b16 %v4884
      %v5057 = vunpack.c.l.b16 %v4885
      %v5058 = vunpack.c.h.b16 %v4885
      %v5059 = vunpack.c.l.b16 %v4886
      %v5060 = vunpack.c.h.b16 %v4886
      %v5061 = vunpack.c.l.b16 %v4887
      %v5062 = vunpack.c.h.b16 %v4887
      %v5063 = vunpack.c.l.b16 %v4888
      %v5064 = vunpack.c.h.b16 %v4888
      %v5065 = vunpack.c.l.b16 %v4889
      %v5066 = vunpack.c.h.b16 %v4889
      %v5067 = vunpack.c.l.b16 %v4890
      %v5068 = vunpack.c.h.b16 %v4890
      %v5069 = vunpack.c.l.b16 %v4891
      %v5070 = vunpack.c.h.b16 %v4891
      %v5071 = vunpack.c.l.b16 %v4892
      %v5072 = vunpack.c.h.b16 %v4892
      %v5073 = vunpack.c.l.b16 %v4893
      %v5074 = vunpack.c.h.b16 %v4893
      %v5075 = vunpack.c.l.b16 %v4894
      %v5076 = vunpack.c.h.b16 %v4894
      %v5077 = vunpack.c.l.b16 %v4895
      %v5078 = vunpack.c.h.b16 %v4895
      %v5079 = vunpack.c.l.b16 %v4896
      %v5080 = vunpack.c.h.b16 %v4896
      %v5081 = vunpack.c.l.b16 %v4897
      %v5082 = vunpack.c.h.b16 %v4897
      %v5083 = vunpack.c.l.b16 %v4898
      %v5084 = vunpack.c.h.b16 %v4898
      %v5085 = vunpack.c.l.b16 %v4899
      %v5086 = vunpack.c.h.b16 %v4899
      %v5087 = vunpack.c.l.b16 %v4900
      %v5088 = vunpack.c.h.b16 %v4900
      %v5089 = vunpack.c.l.b16 %v4901
      %v5090 = vunpack.c.h.b16 %v4901
      %v5091 = vunpack.c.l.b16 %v4902
      %v5092 = vunpack.c.h.b16 %v4902
      %v5093 = vunpack.c.l.b16 %v4903
      %v5094 = vunpack.c.h.b16 %v4903
      %v5095 = vunpack.c.l.b16 %v4904
      %v5096 = vunpack.c.h.b16 %v4904
      %v5097 = vunpack.c.l.b16 %v4905
      %v5098 = vunpack.c.h.b16 %v4905
      %v5099 = vunpack.c.l.b16 %v4906
      %v5100 = vunpack.c.h.b16 %v4906
      %v5101 = vunpack.c.l.b16 %v4907
      %v5102 = vunpack.c.h.b16 %v4907
      %v5103 = vunpack.c.l.b16 %v4908
      %v5104 = vunpack.c.h.b16 %v4908
      %v5105 = vunpack.c.l.b16 %v4909
      %v5106 = vunpack.c.h.b16 %v4909
      %v5107 = vunpack.c.l.b16 %v4910
      %v5108 = vunpack.c.h.b16 %v4910
      %v5109 = vunpack.c.l.b16 %v4911
      %v5110 = vunpack.c.h.b16 %v4911
      %v5111 = vunpack.c.l.b16 %v4912
      %v5112 = vunpack.c.h.b16 %v4912
      %v5113 = vunpack.c.l.b16 %v4913
      %v5114 = vunpack.c.h.b16 %v4913
      %v5115 = vunpack.c.l.b16 %v4914
      %v5116 = vunpack.c.h.b16 %v4914
      %v5117 = vunpack.c.l.b16 %v4915
      %v5118 = vunpack.c.h.b16 %v4915
      %v5119 = vunpack.c.l.b16 %v4916
      %v5120 = vunpack.c.h.b16 %v4916
      %v5121 = vunpack.c.l.b16 %v4917
      %v5122 = vunpack.c.h.b16 %v4917
      %v5123 = vunpack.c.l.b16 %v4918
      %v5124 = vunpack.c.h.b16 %v4918
      %v5125 = vunpack.c.l.b16 %v4919
      %v5126 = vunpack.c.h.b16 %v4919
      %v5127 = vunpack.c.l.b16 %v4920
      %v5128 = vunpack.c.h.b16 %v4920
      %v5129 = vunpack.c.l.b16 %v4921
      %v5130 = vunpack.c.h.b16 %v4921
      %v5131 = vunpack.c.l.b16 %v4922
      %v5132 = vunpack.c.h.b16 %v4922
      %v5133 = vunpack.c.l.b16 %v4923
      %v5134 = vunpack.c.h.b16 %v4923
      %v5135 = vunpack.c.l.b16 %v4924
      %v5136 = vunpack.c.h.b16 %v4924
      %v5137 = vpack.c.b16 %v5013, %v5009
      %v5138 = vpack.c.b16 %v5014, %v5010
      %v5139 = vpack.c.b16 %v5015, %v5011
      %v5140 = vpack.c.b16 %v5016, %v5012
      %v5141 = vpack.c.b16 %v5021, %v5017
      %v5142 = vpack.c.b16 %v5022, %v5018
      %v5143 = vpack.c.b16 %v5023, %v5019
      %v5144 = vpack.c.b16 %v5024, %v5020
      %v5145 = vpack.c.b16 %v5029, %v5025
      %v5146 = vpack.c.b16 %v5030, %v5026
      %v5147 = vpack.c.b16 %v5031, %v5027
      %v5148 = vpack.c.b16 %v5032, %v5028
      %v5149 = vpack.c.b16 %v5037, %v5033
      %v5150 = vpack.c.b16 %v5038, %v5034
      %v5151 = vpack.c.b16 %v5039, %v5035
      %v5152 = vpack.c.b16 %v5040, %v5036
      %v5153 = vpack.c.b16 %v5045, %v5041
      %v5154 = vpack.c.b16 %v5046, %v5042
      %v5155 = vpack.c.b16 %v5047, %v5043
      %v5156 = vpack.c.b16 %v5048, %v5044
      %v5157 = vpack.c.b16 %v5053, %v5049
      %v5158 = vpack.c.b16 %v5054, %v5050
      %v5159 = vpack.c.b16 %v5055, %v5051
      %v5160 = vpack.c.b16 %v5056, %v5052
      %v5161 = vpack.c.b16 %v5061, %v5057
      %v5162 = vpack.c.b16 %v5062, %v5058
      %v5163 = vpack.c.b16 %v5063, %v5059
      %v5164 = vpack.c.b16 %v5064, %v5060
      %v5165 = vpack.c.b16 %v5069, %v5065
      %v5166 = vpack.c.b16 %v5070, %v5066
      %v5167 = vpack.c.b16 %v5071, %v5067
      %v5168 = vpack.c.b16 %v5072, %v5068
      %v5169 = vpack.c.b16 %v5077, %v5073
      %v5170 = vpack.c.b16 %v5078, %v5074
      %v5171 = vpack.c.b16 %v5079, %v5075
      %v5172 = vpack.c.b16 %v5080, %v5076
      %v5173 = vpack.c.b16 %v5085, %v5081
      %v5174 = vpack.c.b16 %v5086, %v5082
      %v5175 = vpack.c.b16 %v5087, %v5083
      %v5176 = vpack.c.b16 %v5088, %v5084
      %v5177 = vpack.c.b16 %v5093, %v5089
      %v5178 = vpack.c.b16 %v5094, %v5090
      %v5179 = vpack.c.b16 %v5095, %v5091
      %v5180 = vpack.c.b16 %v5096, %v5092
      %v5181 = vpack.c.b16 %v5101, %v5097
      %v5182 = vpack.c.b16 %v5102, %v5098
      %v5183 = vpack.c.b16 %v5103, %v5099
      %v5184 = vpack.c.b16 %v5104, %v5100
      %v5185 = vpack.c.b16 %v5109, %v5105
      %v5186 = vpack.c.b16 %v5110, %v5106
      %v5187 = vpack.c.b16 %v5111, %v5107
      %v5188 = vpack.c.b16 %v5112, %v5108
      %v5189 = vpack.c.b16 %v5117, %v5113
      %v5190 = vpack.c.b16 %v5118, %v5114
      %v5191 = vpack.c.b16 %v5119, %v5115
      %v5192 = vpack.c.b16 %v5120, %v5116
      %v5193 = vpack.c.b16 %v5125, %v5121
      %v5194 = vpack.c.b16 %v5126, %v5122
      %v5195 = vpack.c.b16 %v5127, %v5123
      %v5196 = vpack.c.b16 %v5128, %v5124
      %v5197 = vpack.c.b16 %v5133, %v5129
      %v5198 = vpack.c.b16 %v5134, %v5130
      %v5199 = vpack.c.b16 %v5135, %v5131
      %v5200 = vpack.c.b16 %v5136, %v5132
      %5265 = vmatpush.bf16.msra.mxu0 %v5165
      %5266 = vmatpush.bf16.msra.mxu0 %v5161
      %5267 = vmatpush.bf16.msra.mxu0 %v5157
      %5268 = vmatpush.bf16.msra.mxu0 %v5153
      %5269 = vmatpush.bf16.msra.mxu0 %v5149
      %5270 = vmatpush.bf16.msra.mxu0 %v5145
      %5271 = vmatpush.bf16.msra.mxu0 %v5141
      %5272 = vmatpush.bf16.msra.mxu0 %v5137
      %5273 = vmatmul.bf16.gmra.mxu0 %v4937
      %v5274 = vpop.f32.mrf.mxu0
      %v5275 = vadd.f32 0.0, %v5274
      %v5276 = vpop.f32.mrf.mxu0
      %v5277 = vadd.f32 0.0, %v5276
      %5278 = vmatmul.bf16.gmra.mxu0 %v4939
      %v5279 = vpop.f32.mrf.mxu0
      %v5280 = vadd.f32 0.0, %v5279
      %v5281 = vpop.f32.mrf.mxu0
      %v5282 = vadd.f32 0.0, %v5281
      %5283 = vdwg.mxu0
      %5284 = vmatpush.bf16.msra.mxu0 %v5197
      %5285 = vmatpush.bf16.msra.mxu0 %v5193
      %5286 = vmatpush.bf16.msra.mxu0 %v5189
      %5287 = vmatpush.bf16.msra.mxu0 %v5185
      %5288 = vmatpush.bf16.msra.mxu0 %v5181
      %5289 = vmatpush.bf16.msra.mxu0 %v5177
      %5290 = vmatpush.bf16.msra.mxu0 %v5173
      %5291 = vmatpush.bf16.msra.mxu0 %v5169
      %5292 = vmatmul.bf16.gmra.mxu0 %v4938
      %v5293 = vpop.f32.mrf.mxu0
      %v5294 = vadd.f32 %v5275, %v5293
      %v5295 = vpop.f32.mrf.mxu0
      %v5296 = vadd.f32 %v5277, %v5295
      %5297 = vmatmul.bf16.gmra.mxu0 %v4940
      %v5298 = vpop.f32.mrf.mxu0
      %v5299 = vadd.f32 %v5280, %v5298
      %v5300 = vpop.f32.mrf.mxu0
      %v5301 = vadd.f32 %v5282, %v5300
      %5302 = vdwg.mxu0
      %5303 = vmatpush.bf16.msra.mxu0 %v5166
      %5304 = vmatpush.bf16.msra.mxu0 %v5162
      %5305 = vmatpush.bf16.msra.mxu0 %v5158
      %5306 = vmatpush.bf16.msra.mxu0 %v5154
      %5307 = vmatpush.bf16.msra.mxu0 %v5150
      %5308 = vmatpush.bf16.msra.mxu0 %v5146
      %5309 = vmatpush.bf16.msra.mxu0 %v5142
      %5310 = vmatpush.bf16.msra.mxu0 %v5138
      %5311 = vmatmul.bf16.gmra.mxu0 %v4937
      %v5312 = vpop.f32.mrf.mxu0
      %v5313 = vadd.f32 0.0, %v5312
      %v5314 = vpop.f32.mrf.mxu0
      %v5315 = vadd.f32 0.0, %v5314
      %5316 = vmatmul.bf16.gmra.mxu0 %v4939
      %v5317 = vpop.f32.mrf.mxu0
      %v5318 = vadd.f32 0.0, %v5317
      %v5319 = vpop.f32.mrf.mxu0
      %v5320 = vadd.f32 0.0, %v5319
      %5321 = vdwg.mxu0
      %5322 = vmatpush.bf16.msra.mxu0 %v5198
      %5323 = vmatpush.bf16.msra.mxu0 %v5194
      %5324 = vmatpush.bf16.msra.mxu0 %v5190
      %5325 = vmatpush.bf16.msra.mxu0 %v5186
      %5326 = vmatpush.bf16.msra.mxu0 %v5182
      %5327 = vmatpush.bf16.msra.mxu0 %v5178
      %5328 = vmatpush.bf16.msra.mxu0 %v5174
      %5329 = vmatpush.bf16.msra.mxu0 %v5170
      %5330 = vmatmul.bf16.gmra.mxu0 %v4938
      %v5331 = vpop.f32.mrf.mxu0
      %v5332 = vadd.f32 %v5313, %v5331
      %v5333 = vpop.f32.mrf.mxu0
      %v5334 = vadd.f32 %v5315, %v5333
      %5335 = vmatmul.bf16.gmra.mxu0 %v4940
      %v5336 = vpop.f32.mrf.mxu0
      %v5337 = vadd.f32 %v5318, %v5336
      %v5338 = vpop.f32.mrf.mxu0
      %v5339 = vadd.f32 %v5320, %v5338
      %5340 = vdwg.mxu0
      %5341 = vmatpush.bf16.msra.mxu0 %v5167
      %5342 = vmatpush.bf16.msra.mxu0 %v5163
      %5343 = vmatpush.bf16.msra.mxu0 %v5159
      %5344 = vmatpush.bf16.msra.mxu0 %v5155
      %5345 = vmatpush.bf16.msra.mxu0 %v5151
      %5346 = vmatpush.bf16.msra.mxu0 %v5147
      %5347 = vmatpush.bf16.msra.mxu0 %v5143
      %5348 = vmatpush.bf16.msra.mxu0 %v5139
      %5349 = vmatmul.bf16.gmra.mxu0 %v4937
      %v5350 = vpop.f32.mrf.mxu0
      %v5351 = vadd.f32 0.0, %v5350
      %v5352 = vpop.f32.mrf.mxu0
      %v5353 = vadd.f32 0.0, %v5352
      %5354 = vmatmul.bf16.gmra.mxu0 %v4939
      %v5355 = vpop.f32.mrf.mxu0
      %v5356 = vadd.f32 0.0, %v5355
      %v5357 = vpop.f32.mrf.mxu0
      %v5358 = vadd.f32 0.0, %v5357
      %5359 = vdwg.mxu0
      %5360 = vmatpush.bf16.msra.mxu0 %v5199
      %5361 = vmatpush.bf16.msra.mxu0 %v5195
      %5362 = vmatpush.bf16.msra.mxu0 %v5191
      %5363 = vmatpush.bf16.msra.mxu0 %v5187
      %5364 = vmatpush.bf16.msra.mxu0 %v5183
      %5365 = vmatpush.bf16.msra.mxu0 %v5179
      %5366 = vmatpush.bf16.msra.mxu0 %v5175
      %5367 = vmatpush.bf16.msra.mxu0 %v5171
      %5368 = vmatmul.bf16.gmra.mxu0 %v4938
      %v5369 = vpop.f32.mrf.mxu0
      %v5370 = vadd.f32 %v5351, %v5369
      %v5371 = vpop.f32.mrf.mxu0
      %v5372 = vadd.f32 %v5353, %v5371
      %5373 = vmatmul.bf16.gmra.mxu0 %v4940
      %v5374 = vpop.f32.mrf.mxu0
      %v5375 = vadd.f32 %v5356, %v5374
      %v5376 = vpop.f32.mrf.mxu0
      %v5377 = vadd.f32 %v5358, %v5376
      %5378 = vdwg.mxu0
      %5379 = vmatpush.bf16.msra.mxu0 %v5168
      %5380 = vmatpush.bf16.msra.mxu0 %v5164
      %5381 = vmatpush.bf16.msra.mxu0 %v5160
      %5382 = vmatpush.bf16.msra.mxu0 %v5156
      %5383 = vmatpush.bf16.msra.mxu0 %v5152
      %5384 = vmatpush.bf16.msra.mxu0 %v5148
      %5385 = vmatpush.bf16.msra.mxu0 %v5144
      %5386 = vmatpush.bf16.msra.mxu0 %v5140
      %5387 = vmatmul.bf16.gmra.mxu0 %v4937
      %v5388 = vpop.f32.mrf.mxu0
      %v5389 = vadd.f32 0.0, %v5388
      %v5390 = vpop.f32.mrf.mxu0
      %v5391 = vadd.f32 0.0, %v5390
      %5392 = vmatmul.bf16.gmra.mxu0 %v4939
      %v5393 = vpop.f32.mrf.mxu0
      %v5394 = vadd.f32 0.0, %v5393
      %v5395 = vpop.f32.mrf.mxu0
      %v5396 = vadd.f32 0.0, %v5395
      %5397 = vdwg.mxu0
      %5398 = vmatpush.bf16.msra.mxu0 %v5200
      %5399 = vmatpush.bf16.msra.mxu0 %v5196
      %5400 = vmatpush.bf16.msra.mxu0 %v5192
      %5401 = vmatpush.bf16.msra.mxu0 %v5188
      %5402 = vmatpush.bf16.msra.mxu0 %v5184
      %5403 = vmatpush.bf16.msra.mxu0 %v5180
      %5404 = vmatpush.bf16.msra.mxu0 %v5176
      %5405 = vmatpush.bf16.msra.mxu0 %v5172
      %5406 = vmatmul.bf16.gmra.mxu0 %v4938
      %v5407 = vpop.f32.mrf.mxu0
      %v5408 = vadd.f32 %v5389, %v5407
      %v5409 = vpop.f32.mrf.mxu0
      %v5410 = vadd.f32 %v5391, %v5409
      %5411 = vmatmul.bf16.gmra.mxu0 %v4940
      %v5412 = vpop.f32.mrf.mxu0
      %v5413 = vadd.f32 %v5394, %v5412
      %v5414 = vpop.f32.mrf.mxu0
      %v5415 = vadd.f32 %v5396, %v5414
      %5416 = vdwg.mxu0
      %v5417 = vadd.f32 %v4839, %v5294
      %v5418 = vadd.f32 %v4840, %v5332
      %v5419 = vadd.f32 %v4841, %v5370
      %v5420 = vadd.f32 %v4842, %v5408
      %v5421 = vadd.f32 %v4843, %v5296
      %v5422 = vadd.f32 %v4844, %v5334
      %v5423 = vadd.f32 %v4845, %v5372
      %v5424 = vadd.f32 %v4846, %v5410
      %v5425 = vadd.f32 %v4847, %v5299
      %v5426 = vadd.f32 %v4848, %v5337
      %v5427 = vadd.f32 %v4849, %v5375
      %v5428 = vadd.f32 %v4850, %v5413
      %v5429 = vadd.f32 %v4851, %v5301
      %v5430 = vadd.f32 %v4852, %v5339
      %v5431 = vadd.f32 %v4853, %v5377
      %v5432 = vadd.f32 %v4854, %v5415
      %v5433 = vld [vmem:[%s2] sm:$0xf]
      %v5435 = vperm.slane %v5433, 0
      %v5436 = vperm.slane %v5433, 1
      %v5437 = vperm.slane %v5433, 2
      %v5438 = vperm.slane %v5433, 3
      %v5443 = vadd.f32 %v5417, %v5435
      %v5444 = vadd.f32 %v5418, %v5436
      %v5445 = vadd.f32 %v5419, %v5437
      %v5446 = vadd.f32 %v5420, %v5438
      %v5447 = vadd.f32 %v5421, %v5435
      %v5448 = vadd.f32 %v5422, %v5436
      %v5449 = vadd.f32 %v5423, %v5437
      %v5450 = vadd.f32 %v5424, %v5438
      %v5451 = vadd.f32 %v5425, %v5435
      %v5452 = vadd.f32 %v5426, %v5436
      %v5453 = vadd.f32 %v5427, %v5437
      %v5454 = vadd.f32 %v5428, %v5438
      %v5455 = vadd.f32 %v5429, %v5435
      %v5456 = vadd.f32 %v5430, %v5436
      %v5457 = vadd.f32 %v5431, %v5437
      %v5458 = vadd.f32 %v5432, %v5438
      %v5459 = vmax.f32 %v5443, 0.0
      %v5460 = vmax.f32 %v5444, 0.0
      %v5461 = vmax.f32 %v5445, 0.0
      %v5462 = vmax.f32 %v5446, 0.0
      %v5463 = vmax.f32 %v5447, 0.0
      %v5464 = vmax.f32 %v5448, 0.0
      %v5465 = vmax.f32 %v5449, 0.0
      %v5466 = vmax.f32 %v5450, 0.0
      %v5467 = vmax.f32 %v5451, 0.0
      %v5468 = vmax.f32 %v5452, 0.0
      %v5469 = vmax.f32 %v5453, 0.0
      %v5470 = vmax.f32 %v5454, 0.0
      %v5471 = vmax.f32 %v5455, 0.0
      %v5472 = vmax.f32 %v5456, 0.0
      %v5473 = vmax.f32 %v5457, 0.0
      %v5474 = vmax.f32 %v5458, 0.0
      %5475 = vst [vmem:[%s259] sm:$0xff] %v5459
      %5476 = vst [vmem:[%s259 + $0x8] sm:$0xff] %v5460
      %5477 = vst [vmem:[%s259 + $0x10] sm:$0xff] %v5461
      %5478 = vst [vmem:[%s259 + $0x18] sm:$0xff] %v5462
      %5479 = vst [vmem:[%s259 + $0x20] sm:$0xff] %v5463
      %5480 = vst [vmem:[%s259 + $0x28] sm:$0xff] %v5464
      %5481 = vst [vmem:[%s259 + $0x30] sm:$0xff] %v5465
      %5482 = vst [vmem:[%s259 + $0x38] sm:$0xff] %v5466
      %5483 = vst [vmem:[%s259 + $0x40] sm:$0xff] %v5467
      %5484 = vst [vmem:[%s259 + $0x48] sm:$0xff] %v5468
      %5485 = vst [vmem:[%s259 + $0x50] sm:$0xff] %v5469
      %5486 = vst [vmem:[%s259 + $0x58] sm:$0xff] %v5470
      %5487 = vst [vmem:[%s259 + $0x60] sm:$0x1] %v5471
      %5488 = vst [vmem:[%s259 + $0x68] sm:$0x1] %v5472
      %5489 = vst [vmem:[%s259 + $0x70] sm:$0x1] %v5473
      %5490 = vst [vmem:[%s259 + $0x78] sm:$0x1] %v5474
      %v5491 = vpack.c.bf16 %v5463, %v5459
      %v5492 = vpack.c.bf16 %v5464, %v5460
      %v5493 = vpack.c.bf16 %v5465, %v5461
      %v5494 = vpack.c.bf16 %v5466, %v5462
      %v5495 = vpack.c.bf16 %v5471, %v5467
      %v5496 = vpack.c.bf16 %v5472, %v5468
      %v5497 = vpack.c.bf16 %v5473, %v5469
      %v5498 = vpack.c.bf16 %v5474, %v5470
      %v5499 = vld [vmem:[%s3] sm:$0xf]
      %v5500 = vld [vmem:[%s3 + $0x4] sm:$0xf]
      %v5501 = vld [vmem:[%s3 + $0x8] sm:$0xf]
      %v5502 = vld [vmem:[%s3 + $0xc] sm:$0xf]
      %v5503 = vld [vmem:[%s3 + $0x10] sm:$0xf]
      %v5504 = vld [vmem:[%s3 + $0x14] sm:$0xf]
      %v5505 = vld [vmem:[%s3 + $0x18] sm:$0xf]
      %v5506 = vld [vmem:[%s3 + $0x1c] sm:$0xf]
      %v5507 = vld [vmem:[%s3 + $0x20] sm:$0xf]
      %v5508 = vld [vmem:[%s3 + $0x24] sm:$0xf]
      %v5509 = vld [vmem:[%s3 + $0x28] sm:$0xf]
      %v5510 = vld [vmem:[%s3 + $0x2c] sm:$0xf]
      %v5511 = vld [vmem:[%s3 + $0x30] sm:$0xf]
      %v5512 = vld [vmem:[%s3 + $0x34] sm:$0xf]
      %v5513 = vld [vmem:[%s3 + $0x38] sm:$0xf]
      %v5514 = vld [vmem:[%s3 + $0x3c] sm:$0xf]
      %v5515 = vld [vmem:[%s3 + $0x40] sm:$0xf]
      %v5516 = vld [vmem:[%s3 + $0x44] sm:$0xf]
      %v5517 = vld [vmem:[%s3 + $0x48] sm:$0xf]
      %v5518 = vld [vmem:[%s3 + $0x4c] sm:$0xf]
      %v5519 = vld [vmem:[%s3 + $0x50] sm:$0xf]
      %v5520 = vld [vmem:[%s3 + $0x54] sm:$0xf]
      %v5521 = vld [vmem:[%s3 + $0x58] sm:$0xf]
      %v5522 = vld [vmem:[%s3 + $0x5c] sm:$0xf]
      %v5523 = vld [vmem:[%s3 + $0x60] sm:$0xf]
      %v5524 = vld [vmem:[%s3 + $0x64] sm:$0xf]
      %v5525 = vld [vmem:[%s3 + $0x68] sm:$0xf]
      %v5526 = vld [vmem:[%s3 + $0x6c] sm:$0xf]
      %v5527 = vld [vmem:[%s3 + $0x70] sm:$0xf]
      %v5528 = vld [vmem:[%s3 + $0x74] sm:$0xf]
      %v5529 = vld [vmem:[%s3 + $0x78] sm:$0xf]
      %v5530 = vld [vmem:[%s3 + $0x7c] sm:$0xf]
      %v5531 = vld [vmem:[%s3 + $0x80] sm:$0xf]
      %v5532 = vld [vmem:[%s3 + $0x84] sm:$0xf]
      %v5533 = vld [vmem:[%s3 + $0x88] sm:$0xf]
      %v5534 = vld [vmem:[%s3 + $0x8c] sm:$0xf]
      %v5535 = vld [vmem:[%s3 + $0x90] sm:$0xf]
      %v5536 = vld [vmem:[%s3 + $0x94] sm:$0xf]
      %v5537 = vld [vmem:[%s3 + $0x98] sm:$0xf]
      %v5538 = vld [vmem:[%s3 + $0x9c] sm:$0xf]
      %v5539 = vld [vmem:[%s3 + $0xa0] sm:$0xf]
      %v5540 = vld [vmem:[%s3 + $0xa4] sm:$0xf]
      %v5541 = vld [vmem:[%s3 + $0xa8] sm:$0xf]
      %v5542 = vld [vmem:[%s3 + $0xac] sm:$0xf]
      %v5543 = vld [vmem:[%s3 + $0xb0] sm:$0xf]
      %v5544 = vld [vmem:[%s3 + $0xb4] sm:$0xf]
      %v5545 = vld [vmem:[%s3 + $0xb8] sm:$0xf]
      %v5546 = vld [vmem:[%s3 + $0xbc] sm:$0xf]
      %v5547 = vld [vmem:[%s3 + $0xc0] sm:$0xf]
      %v5548 = vld [vmem:[%s3 + $0xc4] sm:$0xf]
      %v5549 = vld [vmem:[%s3 + $0xc8] sm:$0xf]
      %v5550 = vld [vmem:[%s3 + $0xcc] sm:$0xf]
      %v5551 = vld [vmem:[%s3 + $0xd0] sm:$0xf]
      %v5552 = vld [vmem:[%s3 + $0xd4] sm:$0xf]
      %v5553 = vld [vmem:[%s3 + $0xd8] sm:$0xf]
      %v5554 = vld [vmem:[%s3 + $0xdc] sm:$0xf]
      %v5555 = vld [vmem:[%s3 + $0xe0] sm:$0xf]
      %v5556 = vld [vmem:[%s3 + $0xe4] sm:$0xf]
      %v5557 = vld [vmem:[%s3 + $0xe8] sm:$0xf]
      %v5558 = vld [vmem:[%s3 + $0xec] sm:$0xf]
      %v5559 = vld [vmem:[%s3 + $0xf0] sm:$0xf]
      %v5560 = vld [vmem:[%s3 + $0xf4] sm:$0xf]
      %v5561 = vld [vmem:[%s3 + $0xf8] sm:$0xf]
      %v5562 = vld [vmem:[%s3 + $0xfc] sm:$0xf]
      %v5563 = vld [vmem:[%s4] sm:$0x1]
      %v5565 = vperm.slane %v5563, 0
      %v5631 = vunpack.c.l.b16 %v5499
      %v5632 = vunpack.c.l.b16 %v5500
      %v5633 = vunpack.c.l.b16 %v5501
      %v5634 = vunpack.c.l.b16 %v5502
      %v5635 = vunpack.c.l.b16 %v5503
      %v5636 = vunpack.c.l.b16 %v5504
      %v5637 = vunpack.c.l.b16 %v5505
      %v5638 = vunpack.c.l.b16 %v5506
      %v5639 = vunpack.c.l.b16 %v5507
      %v5640 = vunpack.c.l.b16 %v5508
      %v5641 = vunpack.c.l.b16 %v5509
      %v5642 = vunpack.c.l.b16 %v5510
      %v5643 = vunpack.c.l.b16 %v5511
      %v5644 = vunpack.c.l.b16 %v5512
      %v5645 = vunpack.c.l.b16 %v5513
      %v5646 = vunpack.c.l.b16 %v5514
      %v5647 = vunpack.c.l.b16 %v5515
      %v5648 = vunpack.c.l.b16 %v5516
      %v5649 = vunpack.c.l.b16 %v5517
      %v5650 = vunpack.c.l.b16 %v5518
      %v5651 = vunpack.c.l.b16 %v5519
      %v5652 = vunpack.c.l.b16 %v5520
      %v5653 = vunpack.c.l.b16 %v5521
      %v5654 = vunpack.c.l.b16 %v5522
      %v5655 = vunpack.c.l.b16 %v5523
      %v5656 = vunpack.c.l.b16 %v5524
      %v5657 = vunpack.c.l.b16 %v5525
      %v5658 = vunpack.c.l.b16 %v5526
      %v5659 = vunpack.c.l.b16 %v5527
      %v5660 = vunpack.c.l.b16 %v5528
      %v5661 = vunpack.c.l.b16 %v5529
      %v5662 = vunpack.c.l.b16 %v5530
      %v5663 = vunpack.c.l.b16 %v5531
      %v5664 = vunpack.c.l.b16 %v5532
      %v5665 = vunpack.c.l.b16 %v5533
      %v5666 = vunpack.c.l.b16 %v5534
      %v5667 = vunpack.c.l.b16 %v5535
      %v5668 = vunpack.c.l.b16 %v5536
      %v5669 = vunpack.c.l.b16 %v5537
      %v5670 = vunpack.c.l.b16 %v5538
      %v5671 = vunpack.c.l.b16 %v5539
      %v5672 = vunpack.c.l.b16 %v5540
      %v5673 = vunpack.c.l.b16 %v5541
      %v5674 = vunpack.c.l.b16 %v5542
      %v5675 = vunpack.c.l.b16 %v5543
      %v5676 = vunpack.c.l.b16 %v5544
      %v5677 = vunpack.c.l.b16 %v5545
      %v5678 = vunpack.c.l.b16 %v5546
      %v5679 = vunpack.c.l.b16 %v5547
      %v5680 = vunpack.c.l.b16 %v5548
      %v5681 = vunpack.c.l.b16 %v5549
      %v5682 = vunpack.c.l.b16 %v5550
      %v5683 = vunpack.c.l.b16 %v5551
      %v5684 = vunpack.c.l.b16 %v5552
      %v5685 = vunpack.c.l.b16 %v5553
      %v5686 = vunpack.c.l.b16 %v5554
      %v5687 = vunpack.c.l.b16 %v5555
      %v5688 = vunpack.c.l.b16 %v5556
      %v5689 = vunpack.c.l.b16 %v5557
      %v5690 = vunpack.c.l.b16 %v5558
      %v5691 = vunpack.c.l.b16 %v5559
      %v5692 = vunpack.c.l.b16 %v5560
      %v5693 = vunpack.c.l.b16 %v5561
      %v5694 = vunpack.c.l.b16 %v5562
      %v5695 = vpack.c.b16 %v5632, %v5631
      %v5696 = vpack.c.b16 %v5634, %v5633
      %v5697 = vpack.c.b16 %v5636, %v5635
      %v5698 = vpack.c.b16 %v5638, %v5637
      %v5699 = vpack.c.b16 %v5640, %v5639
      %v5700 = vpack.c.b16 %v5642, %v5641
      %v5701 = vpack.c.b16 %v5644, %v5643
      %v5702 = vpack.c.b16 %v5646, %v5645
      %v5703 = vpack.c.b16 %v5648, %v5647
      %v5704 = vpack.c.b16 %v5650, %v5649
      %v5705 = vpack.c.b16 %v5652, %v5651
      %v5706 = vpack.c.b16 %v5654, %v5653
      %v5707 = vpack.c.b16 %v5656, %v5655
      %v5708 = vpack.c.b16 %v5658, %v5657
      %v5709 = vpack.c.b16 %v5660, %v5659
      %v5710 = vpack.c.b16 %v5662, %v5661
      %v5711 = vpack.c.b16 %v5664, %v5663
      %v5712 = vpack.c.b16 %v5666, %v5665
      %v5713 = vpack.c.b16 %v5668, %v5667
      %v5714 = vpack.c.b16 %v5670, %v5669
      %v5715 = vpack.c.b16 %v5672, %v5671
      %v5716 = vpack.c.b16 %v5674, %v5673
      %v5717 = vpack.c.b16 %v5676, %v5675
      %v5718 = vpack.c.b16 %v5678, %v5677
      %v5719 = vpack.c.b16 %v5680, %v5679
      %v5720 = vpack.c.b16 %v5682, %v5681
      %v5721 = vpack.c.b16 %v5684, %v5683
      %v5722 = vpack.c.b16 %v5686, %v5685
      %v5723 = vpack.c.b16 %v5688, %v5687
      %v5724 = vpack.c.b16 %v5690, %v5689
      %v5725 = vpack.c.b16 %v5692, %v5691
      %v5726 = vpack.c.b16 %v5694, %v5693
      %5759 = vmatpush.bf16.msra.mxu0 %v5702
      %5760 = vmatpush.bf16.msra.mxu0 %v5701
      %5761 = vmatpush.bf16.msra.mxu0 %v5700
      %5762 = vmatpush.bf16.msra.mxu0 %v5699
      %5763 = vmatpush.bf16.msra.mxu0 %v5698
      %5764 = vmatpush.bf16.msra.mxu0 %v5697
      %5765 = vmatpush.bf16.msra.mxu0 %v5696
      %5766 = vmatpush.bf16.msra.mxu0 %v5695
      %5767 = vmatmul.bf16.gmra.mxu0 %v5491
      %v5768 = vpop.f32.mrf.mxu0
      %v5769 = vadd.f32 %v5565, %v5768
      %v5770 = vpop.f32.mrf.mxu0
      %v5771 = vadd.f32 %v5565, %v5770
      %5772 = vmatmul.bf16.gmra.mxu0 %v5495
      %v5773 = vpop.f32.mrf.mxu0
      %v5774 = vadd.f32 %v5565, %v5773
      %v5775 = vpop.f32.mrf.mxu0
      %v5776 = vadd.f32 %v5565, %v5775
      %5777 = vdwg.mxu0
      %5778 = vmatpush.bf16.msra.mxu0 %v5710
      %5779 = vmatpush.bf16.msra.mxu0 %v5709
      %5780 = vmatpush.bf16.msra.mxu0 %v5708
      %5781 = vmatpush.bf16.msra.mxu0 %v5707
      %5782 = vmatpush.bf16.msra.mxu0 %v5706
      %5783 = vmatpush.bf16.msra.mxu0 %v5705
      %5784 = vmatpush.bf16.msra.mxu0 %v5704
      %5785 = vmatpush.bf16.msra.mxu0 %v5703
      %5786 = vmatmul.bf16.gmra.mxu0 %v5492
      %v5787 = vpop.f32.mrf.mxu0
      %v5788 = vadd.f32 %v5769, %v5787
      %v5789 = vpop.f32.mrf.mxu0
      %v5790 = vadd.f32 %v5771, %v5789
      %5791 = vmatmul.bf16.gmra.mxu0 %v5496
      %v5792 = vpop.f32.mrf.mxu0
      %v5793 = vadd.f32 %v5774, %v5792
      %v5794 = vpop.f32.mrf.mxu0
      %v5795 = vadd.f32 %v5776, %v5794
      %5796 = vdwg.mxu0
      %5797 = vmatpush.bf16.msra.mxu0 %v5718
      %5798 = vmatpush.bf16.msra.mxu0 %v5717
      %5799 = vmatpush.bf16.msra.mxu0 %v5716
      %5800 = vmatpush.bf16.msra.mxu0 %v5715
      %5801 = vmatpush.bf16.msra.mxu0 %v5714
      %5802 = vmatpush.bf16.msra.mxu0 %v5713
      %5803 = vmatpush.bf16.msra.mxu0 %v5712
      %5804 = vmatpush.bf16.msra.mxu0 %v5711
      %5805 = vmatmul.bf16.gmra.mxu0 %v5493
      %v5806 = vpop.f32.mrf.mxu0
      %v5807 = vadd.f32 %v5788, %v5806
      %v5808 = vpop.f32.mrf.mxu0
      %v5809 = vadd.f32 %v5790, %v5808
      %5810 = vmatmul.bf16.gmra.mxu0 %v5497
      %v5811 = vpop.f32.mrf.mxu0
      %v5812 = vadd.f32 %v5793, %v5811
      %v5813 = vpop.f32.mrf.mxu0
      %v5814 = vadd.f32 %v5795, %v5813
      %5815 = vdwg.mxu0
      %5816 = vmatpush.bf16.msra.mxu0 %v5726
      %5817 = vmatpush.bf16.msra.mxu0 %v5725
      %5818 = vmatpush.bf16.msra.mxu0 %v5724
      %5819 = vmatpush.bf16.msra.mxu0 %v5723
      %5820 = vmatpush.bf16.msra.mxu0 %v5722
      %5821 = vmatpush.bf16.msra.mxu0 %v5721
      %5822 = vmatpush.bf16.msra.mxu0 %v5720
      %5823 = vmatpush.bf16.msra.mxu0 %v5719
      %5824 = vmatmul.bf16.gmra.mxu0 %v5494
      %v5825 = vpop.f32.mrf.mxu0
      %v5826 = vadd.f32 %v5807, %v5825
      %v5827 = vpop.f32.mrf.mxu0
      %v5828 = vadd.f32 %v5809, %v5827
      %5829 = vmatmul.bf16.gmra.mxu0 %v5498
      %v5830 = vpop.f32.mrf.mxu0
      %v5831 = vadd.f32 %v5812, %v5830
      %v5832 = vpop.f32.mrf.mxu0
      %v5833 = vadd.f32 %v5814, %v5832
      %5834 = vdwg.mxu0
      %v5835 = vmax.f32 %v5826, 0.0
      %v5836 = vmax.f32 %v5828, 0.0
      %v5837 = vmax.f32 %v5831, 0.0
      %v5838 = vmax.f32 %v5833, 0.0
      %v5839 = vpack.c.bf16 %v5835, %v5835
      %v5840 = vpack.c.bf16 %v5836, %v5836
      %v5841 = vpack.c.bf16 %v5837, %v5837
      %v5842 = vpack.c.bf16 %v5838, %v5838
      %5843 = vst [vmem:[%s264] sm:$0xf] %v5839
      %5844 = vst [vmem:[%s264 + $0x4] sm:$0xf] %v5840
      %5845 = vst [vmem:[%s264 + $0x8] sm:$0xf] %v5841
      %vm5846 = vcmask 1040384
      %vm5847 = vsmask.f32 256
      %vm5848 = vmand %vm5846, %vm5847
      %v5849 = vld [vmem:[%s264 + $0xc] sm:$0x1]
      %v5850 = vsel %vm5848, %v5842, %v5849
      %5851 = vst [vmem:[%s264 + $0xc] sm:$0x1] %v5850
      %p5852 = scmp.lt.s32.totalorder %s18, 1
      %s5853 = scalar_select %p5852, %s18, 1
      %s5854 = smul.addr %s5853, 16
      %s5855 = smul.addr %s5854, 8
      %s5856 = scalar_lea.vmem %s5, %s5855
      %p5857 = scmp.lt.s32.totalorder %s18, 1
      %s5858 = scalar_select %p5857, %s18, 1
      %s5859 = smul.addr %s5858, 4
      %s5860 = smul.addr %s5859, 4
      %s5861 = scalar_lea.vmem %s6, %s5860
      // Predicated region
      $region41: #{auxiliary_convolutions_forward.4} parent=39 // pred_check
        %p5862 = pneg %p146
      $region42: #{auxiliary_convolutions_forward.4} parent=39 // pred_check_branch
        %5864 = sbr.rel (%p5862) target = $region44
      $region43: #{auxiliary_convolutions_forward.4} parent=39 // pred_region
        _
      $region44: #{auxiliary_convolutions_forward.4} parent=39 // pred_fallthru
        _
      // Predicated region
      $region45: #{auxiliary_convolutions_forward.4} parent=39 // pred_check
        %p5865 = pneg %p172
      $region46: #{auxiliary_convolutions_forward.4} parent=39 // pred_check_branch
        %5867 = sbr.rel (%p5865) target = $region48
      $region47: #{auxiliary_convolutions_forward.4} parent=39 // pred_region
        _
      $region48: #{auxiliary_convolutions_forward.4} parent=39 // pred_fallthru
        _
    $region40: #{auxiliary_convolutions_forward.4} parent=5 // pred_fallthru
      _
    %p5868 = scmp.le.s32.totalorder 2, %s13
    // Predicated region
    $region49: #{auxiliary_convolutions_forward.4} parent=5 // pred_check
      %p5869 = pneg %p5868
    $region50: #{auxiliary_convolutions_forward.4} parent=5 // pred_check_branch
      %5871 = sbr.rel (%p5869) target = $region52
    $region51: #{auxiliary_convolutions_forward.4} parent=5 // pred_region
      %s5872 = ssub.s32 %s13, 2
      // Predicated region
      $region53: #{auxiliary_convolutions_forward.4} parent=51 // pred_check
        %p5873 = pneg %p152
      $region54: #{auxiliary_convolutions_forward.4} parent=51 // pred_check_branch
        %5875 = sbr.rel (%p5873) target = $region56
      $region55: #{auxiliary_convolutions_forward.4} parent=51 // pred_region
        %p5876 = scmp.lt.s32.totalorder %s19, 1
        %s5877 = scalar_select %p5876, %s19, 1
        %s5878 = smul.addr %s5877, 16
        %s5879 = smul.addr %s5878, 8
        %s5880 = scalar_lea.vmem %s5, %s5879
      $region56: #{auxiliary_convolutions_forward.4} parent=51 // pred_fallthru
        _
      // Predicated region
      $region57: #{auxiliary_convolutions_forward.4} parent=51 // pred_check
        %p5881 = pneg %p178
      $region58: #{auxiliary_convolutions_forward.4} parent=51 // pred_check_branch
        %5883 = sbr.rel (%p5881) target = $region60
      $region59: #{auxiliary_convolutions_forward.4} parent=51 // pred_region
        %p5884 = scmp.lt.s32.totalorder %s19, 1
        %s5885 = scalar_select %p5884, %s19, 1
        %s5886 = smul.addr %s5885, 4
        %s5887 = smul.addr %s5886, 4
        %s5888 = scalar_lea.vmem %s6, %s5887
      $region60: #{auxiliary_convolutions_forward.4} parent=51 // pred_fallthru
        _
    $region52: #{auxiliary_convolutions_forward.4} parent=5 // pred_fallthru
      _
  $region6: #{auxiliary_convolutions_forward.4} parent=0 // loop_footer
    %s17 = sadd.s32 1, %s13
  $region7: #{auxiliary_convolutions_forward.4} parent=0 // loop_footer_branch
    %12 = sbr.rel target = $region3
  $region8: #{auxiliary_convolutions_forward.4} parent=0 // loop_exit
    _

</llo_original>
